<compile_context>
chip_gen: v7x
topology: tpu7x:2x2x1
jax: 0.10.0
libtpu: 0.0.40
codegen_flags: <defaults>
</compile_context>

<pallas_src>
import jax
import jax.numpy as jnp
from jax.experimental import pallas as pl
from jax.experimental.pallas import tpu as pltpu

_BN_EPS = 1e-5
_VMEM_LIMIT = 32 * 1024 * 1024


# ----------------------------------------------------------------------------
# Pallas kernels (single grid step: whole layer resident in VMEM)
# ----------------------------------------------------------------------------

def _matmul_bias_bn_relu_kernel(a_ref, b_ref, bias_ref, gamma_ref, beta_ref, o_ref):
    """o = relu(batchnorm_train(a @ b + bias)); BN stats over rows per column."""
    y = jnp.dot(a_ref[...], b_ref[...], preferred_element_type=jnp.float32)
    y = y + bias_ref[...]
    # Training-mode batch statistics (biased variance), single pass: E[x^2]-m^2.
    mean = jnp.mean(y, axis=0, keepdims=True)
    var = jnp.mean(y * y, axis=0, keepdims=True) - mean * mean
    x_hat = (y - mean) * jax.lax.rsqrt(var + _BN_EPS)
    o_ref[...] = jnp.maximum(x_hat * gamma_ref[...] + beta_ref[...], 0.0).astype(
        o_ref.dtype
    )


def _matmul_bias_kernel(a_ref, b_ref, bias_ref, o_ref):
    """o = a @ b + bias (final fc3 layer: no BN, no ReLU)."""
    y = jnp.dot(a_ref[...], b_ref[...], preferred_element_type=jnp.float32)
    o_ref[...] = (y + bias_ref[...]).astype(o_ref.dtype)


# ----------------------------------------------------------------------------
# Wrappers
# ----------------------------------------------------------------------------

def matmul_bias_bn_relu(a, b, bias, gamma, beta):
    """a: (M, K), b: (K, N), bias/gamma/beta: (N,) -> (M, N) f32."""
    M, K = a.shape
    K2, N = b.shape
    assert K == K2
    return pl.pallas_call(
        _matmul_bias_bn_relu_kernel,
        out_shape=jax.ShapeDtypeStruct((M, N), jnp.float32),
        compiler_params=pltpu.CompilerParams(vmem_limit_bytes=_VMEM_LIMIT),
    )(a, b, bias.reshape(1, N), gamma.reshape(1, N), beta.reshape(1, N))


def matmul_bias(a, b, bias):
    """a: (M, K), b: (K, N), bias: (N,) -> (M, N) f32."""
    M, K = a.shape
    K2, N = b.shape
    assert K == K2
    return pl.pallas_call(
        _matmul_bias_kernel,
        out_shape=jax.ShapeDtypeStruct((M, N), jnp.float32),
        compiler_params=pltpu.CompilerParams(vmem_limit_bytes=_VMEM_LIMIT),
    )(a, b, bias.reshape(1, N))


def im2col_nhwc(x, kh, kw, stride):
    """x: (N, H, W, C) -> patches (N*OH*OW, kh*kw*C), column order (i, j, c)."""
    N, H, W, C = x.shape
    OH = (H - kh) // stride + 1
    OW = (W - kw) // stride + 1
    cols = []
    for i in range(kh):
        for j in range(kw):
            cols.append(
                x[:, i : i + stride * OH : stride, j : j + stride * OW : stride, :]
            )
    p = jnp.stack(cols, axis=3)                      # (N, OH, OW, kh*kw, C)
    return p.reshape(N * OH * OW, kh * kw * C), (N, OH, OW)


# ----------------------------------------------------------------------------
# Parameters
# ----------------------------------------------------------------------------

def init_params(key, in_channels, num_actions):
    """Parameters in PyTorch layouts (Conv2d: (Cout,Cin,kh,kw), Linear: (out,in))."""
    ks = jax.random.split(key, 6)

    def w(k, shape, fan_in):
        return jax.random.normal(k, shape, jnp.float32) / jnp.sqrt(fan_in)

    p = {}
    p["conv1_w"] = w(ks[0], (32, in_channels, 8, 8), in_channels * 64)
    p["conv1_b"] = jnp.zeros((32,), jnp.float32)
    p["conv1_g"] = jnp.ones((32,), jnp.float32)
    p["conv1_be"] = jnp.zeros((32,), jnp.float32)

    p["conv2_w"] = w(ks[1], (64, 32, 4, 4), 32 * 16)
    p["conv2_b"] = jnp.zeros((64,), jnp.float32)
    p["conv2_g"] = jnp.ones((64,), jnp.float32)
    p["conv2_be"] = jnp.zeros((64,), jnp.float32)

    p["conv3_w"] = w(ks[2], (64, 64, 3, 3), 64 * 9)
    p["conv3_b"] = jnp.zeros((64,), jnp.float32)
    p["conv3_g"] = jnp.ones((64,), jnp.float32)
    p["conv3_be"] = jnp.zeros((64,), jnp.float32)

    p["fc1_w"] = w(ks[3], (256, 64 * 8 * 8), 64 * 8 * 8)
    p["fc1_b"] = jnp.zeros((256,), jnp.float32)
    p["fc1_g"] = jnp.ones((256,), jnp.float32)
    p["fc1_be"] = jnp.zeros((256,), jnp.float32)

    p["fc2_w"] = w(ks[4], (32, 256), 256)
    p["fc2_b"] = jnp.zeros((32,), jnp.float32)
    p["fc2_g"] = jnp.ones((32,), jnp.float32)
    p["fc2_be"] = jnp.zeros((32,), jnp.float32)

    p["fc3_w"] = w(ks[5], (num_actions, 32), 32)
    p["fc3_b"] = jnp.zeros((num_actions,), jnp.float32)
    return p


def prepare_params(p):
    """One-time weight re-layout (hoisted out of the forward):
    conv (Cout,Cin,kh,kw) -> (kh*kw*Cin, Cout) matching im2col (i,j,c) columns;
    fc (out,in) -> (in,out)."""
    q = dict(p)
    for name in ("conv1", "conv2", "conv3"):
        w = p[name + "_w"]
        cout, cin, kh, kw = w.shape
        q[name + "_w"] = jnp.transpose(w, (2, 3, 1, 0)).reshape(kh * kw * cin, cout)
    for name in ("fc1", "fc2", "fc3"):
        q[name + "_w"] = jnp.transpose(p[name + "_w"], (1, 0))
    return q


# ----------------------------------------------------------------------------
# ConvNet forward (whole thing jitted)
# ----------------------------------------------------------------------------

@jax.jit
def convnet_forward(params, x_nchw):
    p = params
    x = jnp.transpose(x_nchw, (0, 2, 3, 1))          # NCHW -> NHWC

    def conv_layer(x, name, kh, kw, stride):
        patches, (N, OH, OW) = im2col_nhwc(x, kh, kw, stride)
        y = matmul_bias_bn_relu(
            patches, p[name + "_w"], p[name + "_b"], p[name + "_g"], p[name + "_be"]
        )                                            # BN2d == BN over (N, OH, OW)
        return y.reshape(N, OH, OW, -1)

    x = conv_layer(x, "conv1", 8, 8, 4)
    x = conv_layer(x, "conv2", 4, 4, 3)
    x = conv_layer(x, "conv3", 3, 3, 1)

    # PyTorch flatten is over NCHW: (N, 64, 8, 8) -> (N, 4096) in (c, h, w) order.
    N = x.shape[0]
    x = jnp.transpose(x, (0, 3, 1, 2)).reshape(N, 64 * 8 * 8)

    x = matmul_bias_bn_relu(x, p["fc1_w"], p["fc1_b"], p["fc1_g"], p["fc1_be"])
    x = matmul_bias_bn_relu(x, p["fc2_w"], p["fc2_b"], p["fc2_g"], p["fc2_be"])
    x = matmul_bias(x, p["fc3_w"], p["fc3_b"])
    return x


if __name__ == "__main__":
    # fc1 expects 64*8*8 features, which forces a 128x128 spatial input
    # (128 -k8/s4-> 31 -k4/s3-> 10 -k3/s1-> 8).
    batch, in_channels, num_actions = 2, 4, 6
    key = jax.random.PRNGKey(0)
    k_params, k_input = jax.random.split(key)

    params = prepare_params(init_params(k_params, in_channels, num_actions))
    x = jax.random.normal(k_input, (batch, in_channels, 128, 128), jnp.float32)

    out = convnet_forward(params, x)
    out = jax.block_until_ready(out)
    assert out.shape == (batch, num_actions), out.shape
    print("KERNEL_OK")
</pallas_src>

<mosaic_0001>
module attributes {stable_mosaic.version = 11 : i64} {
  func.func @_matmul_bias_bn_relu_kernel(%arg0: memref<1922x256xf32, #tpu.memory_space<vmem>>, %arg1: memref<256x32xf32, #tpu.memory_space<vmem>>, %arg2: memref<1x32xf32, #tpu.memory_space<vmem>>, %arg3: memref<1x32xf32, #tpu.memory_space<vmem>>, %arg4: memref<1x32xf32, #tpu.memory_space<vmem>>, %arg5: memref<1922x32xf32, #tpu.memory_space<vmem>>) attributes {dimension_semantics = [], scalar_prefetch = 0 : i64, scratch_operands = 0 : i64, tpu.core_type = #tpu.core_type<tc>} {
    %c0 = arith.constant 0 : index
    %c0_0 = arith.constant 0 : index
    %0 = vector.load %arg0[%c0, %c0_0] : memref<1922x256xf32, #tpu.memory_space<vmem>>, vector<1922x256xf32>
    %c0_1 = arith.constant 0 : index
    %c0_2 = arith.constant 0 : index
    %1 = vector.load %arg1[%c0_1, %c0_2] : memref<256x32xf32, #tpu.memory_space<vmem>>, vector<256x32xf32>
    %cst = arith.constant dense<0.000000e+00> : vector<1922x32xf32>
    %2 = tpu.matmul %0, %1, %cst {dimension_numbers = #tpu.dot_dimension_numbers<[1], [0], [0], [1], [0, 0, 1, 1], [], []>} : vector<1922x256xf32>, vector<256x32xf32>, vector<1922x32xf32> -> vector<1922x32xf32>
    %c0_3 = arith.constant 0 : index
    %c0_4 = arith.constant 0 : index
    %3 = vector.load %arg2[%c0_3, %c0_4] : memref<1x32xf32, #tpu.memory_space<vmem>>, vector<1x32xf32>
    %4 = vector.broadcast %3 : vector<1x32xf32> to vector<1922x32xf32>
    %5 = arith.addf %2, %4 : vector<1922x32xf32>
    %cst_5 = arith.constant dense<0.000000e+00> : vector<32xf32>
    %6 = vector.multi_reduction <add>, %5, %cst_5 [0] : vector<1922x32xf32> to vector<32xf32>
    %7 = vector.shape_cast %6 : vector<32xf32> to vector<1x32xf32>
    %cst_6 = arith.constant 1.922000e+03 : f32
    %8 = vector.broadcast %cst_6 : f32 to vector<1x32xf32>
    %9 = arith.divf %7, %8 : vector<1x32xf32>
    %10 = arith.mulf %5, %5 : vector<1922x32xf32>
    %cst_7 = arith.constant dense<0.000000e+00> : vector<32xf32>
    %11 = vector.multi_reduction <add>, %10, %cst_7 [0] : vector<1922x32xf32> to vector<32xf32>
    %12 = vector.shape_cast %11 : vector<32xf32> to vector<1x32xf32>
    %cst_8 = arith.constant 1.922000e+03 : f32
    %13 = vector.broadcast %cst_8 : f32 to vector<1x32xf32>
    %14 = arith.divf %12, %13 : vector<1x32xf32>
    %15 = arith.mulf %9, %9 : vector<1x32xf32>
    %16 = arith.subf %14, %15 : vector<1x32xf32>
    %17 = vector.broadcast %9 : vector<1x32xf32> to vector<1922x32xf32>
    %18 = arith.subf %5, %17 : vector<1922x32xf32>
    %cst_9 = arith.constant 9.99999974E-6 : f32
    %19 = vector.broadcast %cst_9 : f32 to vector<1x32xf32>
    %20 = arith.addf %16, %19 : vector<1x32xf32>
    %21 = math.rsqrt %20 : vector<1x32xf32>
    %22 = vector.broadcast %21 : vector<1x32xf32> to vector<1922x32xf32>
    %23 = arith.mulf %18, %22 : vector<1922x32xf32>
    %c0_10 = arith.constant 0 : index
    %c0_11 = arith.constant 0 : index
    %24 = vector.load %arg3[%c0_10, %c0_11] : memref<1x32xf32, #tpu.memory_space<vmem>>, vector<1x32xf32>
    %25 = vector.broadcast %24 : vector<1x32xf32> to vector<1922x32xf32>
    %26 = arith.mulf %23, %25 : vector<1922x32xf32>
    %c0_12 = arith.constant 0 : index
    %c0_13 = arith.constant 0 : index
    %27 = vector.load %arg4[%c0_12, %c0_13] : memref<1x32xf32, #tpu.memory_space<vmem>>, vector<1x32xf32>
    %28 = vector.broadcast %27 : vector<1x32xf32> to vector<1922x32xf32>
    %29 = arith.addf %26, %28 : vector<1922x32xf32>
    %cst_14 = arith.constant 0.000000e+00 : f32
    %30 = vector.broadcast %cst_14 : f32 to vector<1922x32xf32>
    %31 = arith.maximumf %29, %30 : vector<1922x32xf32>
    %c0_15 = arith.constant 0 : index
    %c0_16 = arith.constant 0 : index
    %32 = vector.load %arg5[%c0_15, %c0_16] : memref<1922x32xf32, #tpu.memory_space<vmem>>, vector<1922x32xf32>
    tpu.vector_store %arg5[%c0_15, %c0_16], %31 {strides = array<i32>} : memref<1922x32xf32, #tpu.memory_space<vmem>>, vector<1922x32xf32>,
    return
  }
}

module attributes {stable_mosaic.version = 11 : i64} {
  func.func @_matmul_bias_bn_relu_kernel(%arg0: memref<200x512xf32, #tpu.memory_space<vmem>>, %arg1: memref<512x64xf32, #tpu.memory_space<vmem>>, %arg2: memref<1x64xf32, #tpu.memory_space<vmem>>, %arg3: memref<1x64xf32, #tpu.memory_space<vmem>>, %arg4: memref<1x64xf32, #tpu.memory_space<vmem>>, %arg5: memref<200x64xf32, #tpu.memory_space<vmem>>) attributes {dimension_semantics = [], scalar_prefetch = 0 : i64, scratch_operands = 0 : i64, tpu.core_type = #tpu.core_type<tc>} {
    %c0 = arith.constant 0 : index
    %c0_0 = arith.constant 0 : index
    %0 = vector.load %arg0[%c0, %c0_0] : memref<200x512xf32, #tpu.memory_space<vmem>>, vector<200x512xf32>
    %c0_1 = arith.constant 0 : index
    %c0_2 = arith.constant 0 : index
    %1 = vector.load %arg1[%c0_1, %c0_2] : memref<512x64xf32, #tpu.memory_space<vmem>>, vector<512x64xf32>
    %cst = arith.constant dense<0.000000e+00> : vector<200x64xf32>
    %2 = tpu.matmul %0, %1, %cst {dimension_numbers = #tpu.dot_dimension_numbers<[1], [0], [0], [1], [0, 0, 1, 1], [], []>} : vector<200x512xf32>, vector<512x64xf32>, vector<200x64xf32> -> vector<200x64xf32>
    %c0_3 = arith.constant 0 : index
    %c0_4 = arith.constant 0 : index
    %3 = vector.load %arg2[%c0_3, %c0_4] : memref<1x64xf32, #tpu.memory_space<vmem>>, vector<1x64xf32>
    %4 = vector.broadcast %3 : vector<1x64xf32> to vector<200x64xf32>
    %5 = arith.addf %2, %4 : vector<200x64xf32>
    %cst_5 = arith.constant dense<0.000000e+00> : vector<64xf32>
    %6 = vector.multi_reduction <add>, %5, %cst_5 [0] : vector<200x64xf32> to vector<64xf32>
    %7 = vector.shape_cast %6 : vector<64xf32> to vector<1x64xf32>
    %cst_6 = arith.constant 2.000000e+02 : f32
    %8 = vector.broadcast %cst_6 : f32 to vector<1x64xf32>
    %9 = arith.divf %7, %8 : vector<1x64xf32>
    %10 = arith.mulf %5, %5 : vector<200x64xf32>
    %cst_7 = arith.constant dense<0.000000e+00> : vector<64xf32>
    %11 = vector.multi_reduction <add>, %10, %cst_7 [0] : vector<200x64xf32> to vector<64xf32>
    %12 = vector.shape_cast %11 : vector<64xf32> to vector<1x64xf32>
    %cst_8 = arith.constant 2.000000e+02 : f32
    %13 = vector.broadcast %cst_8 : f32 to vector<1x64xf32>
    %14 = arith.divf %12, %13 : vector<1x64xf32>
    %15 = arith.mulf %9, %9 : vector<1x64xf32>
    %16 = arith.subf %14, %15 : vector<1x64xf32>
    %17 = vector.broadcast %9 : vector<1x64xf32> to vector<200x64xf32>
    %18 = arith.subf %5, %17 : vector<200x64xf32>
    %cst_9 = arith.constant 9.99999974E-6 : f32
    %19 = vector.broadcast %cst_9 : f32 to vector<1x64xf32>
    %20 = arith.addf %16, %19 : vector<1x64xf32>
    %21 = math.rsqrt %20 : vector<1x64xf32>
    %22 = vector.broadcast %21 : vector<1x64xf32> to vector<200x64xf32>
    %23 = arith.mulf %18, %22 : vector<200x64xf32>
    %c0_10 = arith.constant 0 : index
    %c0_11 = arith.constant 0 : index
    %24 = vector.load %arg3[%c0_10, %c0_11] : memref<1x64xf32, #tpu.memory_space<vmem>>, vector<1x64xf32>
    %25 = vector.broadcast %24 : vector<1x64xf32> to vector<200x64xf32>
    %26 = arith.mulf %23, %25 : vector<200x64xf32>
    %c0_12 = arith.constant 0 : index
    %c0_13 = arith.constant 0 : index
    %27 = vector.load %arg4[%c0_12, %c0_13] : memref<1x64xf32, #tpu.memory_space<vmem>>, vector<1x64xf32>
    %28 = vector.broadcast %27 : vector<1x64xf32> to vector<200x64xf32>
    %29 = arith.addf %26, %28 : vector<200x64xf32>
    %cst_14 = arith.constant 0.000000e+00 : f32
    %30 = vector.broadcast %cst_14 : f32 to vector<200x64xf32>
    %31 = arith.maximumf %29, %30 : vector<200x64xf32>
    %c0_15 = arith.constant 0 : index
    %c0_16 = arith.constant 0 : index
    %32 = vector.load %arg5[%c0_15, %c0_16] : memref<200x64xf32, #tpu.memory_space<vmem>>, vector<200x64xf32>
    tpu.vector_store %arg5[%c0_15, %c0_16], %31 {strides = array<i32>} : memref<200x64xf32, #tpu.memory_space<vmem>>, vector<200x64xf32>,
    return
  }
}

module attributes {stable_mosaic.version = 11 : i64} {
  func.func @_matmul_bias_bn_relu_kernel(%arg0: memref<128x576xf32, #tpu.memory_space<vmem>>, %arg1: memref<576x64xf32, #tpu.memory_space<vmem>>, %arg2: memref<1x64xf32, #tpu.memory_space<vmem>>, %arg3: memref<1x64xf32, #tpu.memory_space<vmem>>, %arg4: memref<1x64xf32, #tpu.memory_space<vmem>>, %arg5: memref<128x64xf32, #tpu.memory_space<vmem>>) attributes {dimension_semantics = [], scalar_prefetch = 0 : i64, scratch_operands = 0 : i64, tpu.core_type = #tpu.core_type<tc>} {
    %c0 = arith.constant 0 : index
    %c0_0 = arith.constant 0 : index
    %0 = vector.load %arg0[%c0, %c0_0] : memref<128x576xf32, #tpu.memory_space<vmem>>, vector<128x576xf32>
    %c0_1 = arith.constant 0 : index
    %c0_2 = arith.constant 0 : index
    %1 = vector.load %arg1[%c0_1, %c0_2] : memref<576x64xf32, #tpu.memory_space<vmem>>, vector<576x64xf32>
    %cst = arith.constant dense<0.000000e+00> : vector<128x64xf32>
    %2 = tpu.matmul %0, %1, %cst {dimension_numbers = #tpu.dot_dimension_numbers<[1], [0], [0], [1], [0, 0, 1, 1], [], []>} : vector<128x576xf32>, vector<576x64xf32>, vector<128x64xf32> -> vector<128x64xf32>
    %c0_3 = arith.constant 0 : index
    %c0_4 = arith.constant 0 : index
    %3 = vector.load %arg2[%c0_3, %c0_4] : memref<1x64xf32, #tpu.memory_space<vmem>>, vector<1x64xf32>
    %4 = vector.broadcast %3 : vector<1x64xf32> to vector<128x64xf32>
    %5 = arith.addf %2, %4 : vector<128x64xf32>
    %cst_5 = arith.constant dense<0.000000e+00> : vector<64xf32>
    %6 = vector.multi_reduction <add>, %5, %cst_5 [0] : vector<128x64xf32> to vector<64xf32>
    %7 = vector.shape_cast %6 : vector<64xf32> to vector<1x64xf32>
    %cst_6 = arith.constant 1.280000e+02 : f32
    %8 = vector.broadcast %cst_6 : f32 to vector<1x64xf32>
    %9 = arith.divf %7, %8 : vector<1x64xf32>
    %10 = arith.mulf %5, %5 : vector<128x64xf32>
    %cst_7 = arith.constant dense<0.000000e+00> : vector<64xf32>
    %11 = vector.multi_reduction <add>, %10, %cst_7 [0] : vector<128x64xf32> to vector<64xf32>
    %12 = vector.shape_cast %11 : vector<64xf32> to vector<1x64xf32>
    %cst_8 = arith.constant 1.280000e+02 : f32
    %13 = vector.broadcast %cst_8 : f32 to vector<1x64xf32>
    %14 = arith.divf %12, %13 : vector<1x64xf32>
    %15 = arith.mulf %9, %9 : vector<1x64xf32>
    %16 = arith.subf %14, %15 : vector<1x64xf32>
    %17 = vector.broadcast %9 : vector<1x64xf32> to vector<128x64xf32>
    %18 = arith.subf %5, %17 : vector<128x64xf32>
    %cst_9 = arith.constant 9.99999974E-6 : f32
    %19 = vector.broadcast %cst_9 : f32 to vector<1x64xf32>
    %20 = arith.addf %16, %19 : vector<1x64xf32>
    %21 = math.rsqrt %20 : vector<1x64xf32>
    %22 = vector.broadcast %21 : vector<1x64xf32> to vector<128x64xf32>
    %23 = arith.mulf %18, %22 : vector<128x64xf32>
    %c0_10 = arith.constant 0 : index
    %c0_11 = arith.constant 0 : index
    %24 = vector.load %arg3[%c0_10, %c0_11] : memref<1x64xf32, #tpu.memory_space<vmem>>, vector<1x64xf32>
    %25 = vector.broadcast %24 : vector<1x64xf32> to vector<128x64xf32>
    %26 = arith.mulf %23, %25 : vector<128x64xf32>
    %c0_12 = arith.constant 0 : index
    %c0_13 = arith.constant 0 : index
    %27 = vector.load %arg4[%c0_12, %c0_13] : memref<1x64xf32, #tpu.memory_space<vmem>>, vector<1x64xf32>
    %28 = vector.broadcast %27 : vector<1x64xf32> to vector<128x64xf32>
    %29 = arith.addf %26, %28 : vector<128x64xf32>
    %cst_14 = arith.constant 0.000000e+00 : f32
    %30 = vector.broadcast %cst_14 : f32 to vector<128x64xf32>
    %31 = arith.maximumf %29, %30 : vector<128x64xf32>
    %c0_15 = arith.constant 0 : index
    %c0_16 = arith.constant 0 : index
    %32 = vector.load %arg5[%c0_15, %c0_16] : memref<128x64xf32, #tpu.memory_space<vmem>>, vector<128x64xf32>
    tpu.vector_store %arg5[%c0_15, %c0_16], %31 {strides = array<i32>} : memref<128x64xf32, #tpu.memory_space<vmem>>, vector<128x64xf32>,
    return
  }
}

module attributes {stable_mosaic.version = 11 : i64} {
  func.func @_matmul_bias_bn_relu_kernel(%arg0: memref<2x4096xf32, #tpu.memory_space<vmem>>, %arg1: memref<4096x256xf32, #tpu.memory_space<vmem>>, %arg2: memref<1x256xf32, #tpu.memory_space<vmem>>, %arg3: memref<1x256xf32, #tpu.memory_space<vmem>>, %arg4: memref<1x256xf32, #tpu.memory_space<vmem>>, %arg5: memref<2x256xf32, #tpu.memory_space<vmem>>) attributes {dimension_semantics = [], scalar_prefetch = 0 : i64, scratch_operands = 0 : i64, tpu.core_type = #tpu.core_type<tc>} {
    %c0 = arith.constant 0 : index
    %c0_0 = arith.constant 0 : index
    %0 = vector.load %arg0[%c0, %c0_0] : memref<2x4096xf32, #tpu.memory_space<vmem>>, vector<2x4096xf32>
    %c0_1 = arith.constant 0 : index
    %c0_2 = arith.constant 0 : index
    %1 = vector.load %arg1[%c0_1, %c0_2] : memref<4096x256xf32, #tpu.memory_space<vmem>>, vector<4096x256xf32>
    %cst = arith.constant dense<0.000000e+00> : vector<2x256xf32>
    %2 = tpu.matmul %0, %1, %cst {dimension_numbers = #tpu.dot_dimension_numbers<[1], [0], [0], [1], [0, 0, 1, 1], [], []>} : vector<2x4096xf32>, vector<4096x256xf32>, vector<2x256xf32> -> vector<2x256xf32>
    %c0_3 = arith.constant 0 : index
    %c0_4 = arith.constant 0 : index
    %3 = vector.load %arg2[%c0_3, %c0_4] : memref<1x256xf32, #tpu.memory_space<vmem>>, vector<1x256xf32>
    %4 = vector.broadcast %3 : vector<1x256xf32> to vector<2x256xf32>
    %5 = arith.addf %2, %4 : vector<2x256xf32>
    %cst_5 = arith.constant dense<0.000000e+00> : vector<256xf32>
    %6 = vector.multi_reduction <add>, %5, %cst_5 [0] : vector<2x256xf32> to vector<256xf32>
    %7 = vector.shape_cast %6 : vector<256xf32> to vector<1x256xf32>
    %cst_6 = arith.constant 2.000000e+00 : f32
    %8 = vector.broadcast %cst_6 : f32 to vector<1x256xf32>
    %9 = arith.divf %7, %8 : vector<1x256xf32>
    %10 = arith.mulf %5, %5 : vector<2x256xf32>
    %cst_7 = arith.constant dense<0.000000e+00> : vector<256xf32>
    %11 = vector.multi_reduction <add>, %10, %cst_7 [0] : vector<2x256xf32> to vector<256xf32>
    %12 = vector.shape_cast %11 : vector<256xf32> to vector<1x256xf32>
    %cst_8 = arith.constant 2.000000e+00 : f32
    %13 = vector.broadcast %cst_8 : f32 to vector<1x256xf32>
    %14 = arith.divf %12, %13 : vector<1x256xf32>
    %15 = arith.mulf %9, %9 : vector<1x256xf32>
    %16 = arith.subf %14, %15 : vector<1x256xf32>
    %17 = vector.broadcast %9 : vector<1x256xf32> to vector<2x256xf32>
    %18 = arith.subf %5, %17 : vector<2x256xf32>
    %cst_9 = arith.constant 9.99999974E-6 : f32
    %19 = vector.broadcast %cst_9 : f32 to vector<1x256xf32>
    %20 = arith.addf %16, %19 : vector<1x256xf32>
    %21 = math.rsqrt %20 : vector<1x256xf32>
    %22 = vector.broadcast %21 : vector<1x256xf32> to vector<2x256xf32>
    %23 = arith.mulf %18, %22 : vector<2x256xf32>
    %c0_10 = arith.constant 0 : index
    %c0_11 = arith.constant 0 : index
    %24 = vector.load %arg3[%c0_10, %c0_11] : memref<1x256xf32, #tpu.memory_space<vmem>>, vector<1x256xf32>
    %25 = vector.broadcast %24 : vector<1x256xf32> to vector<2x256xf32>
    %26 = arith.mulf %23, %25 : vector<2x256xf32>
    %c0_12 = arith.constant 0 : index
    %c0_13 = arith.constant 0 : index
    %27 = vector.load %arg4[%c0_12, %c0_13] : memref<1x256xf32, #tpu.memory_space<vmem>>, vector<1x256xf32>
    %28 = vector.broadcast %27 : vector<1x256xf32> to vector<2x256xf32>
    %29 = arith.addf %26, %28 : vector<2x256xf32>
    %cst_14 = arith.constant 0.000000e+00 : f32
    %30 = vector.broadcast %cst_14 : f32 to vector<2x256xf32>
    %31 = arith.maximumf %29, %30 : vector<2x256xf32>
    %c0_15 = arith.constant 0 : index
    %c0_16 = arith.constant 0 : index
    %32 = vector.load %arg5[%c0_15, %c0_16] : memref<2x256xf32, #tpu.memory_space<vmem>>, vector<2x256xf32>
    tpu.vector_store %arg5[%c0_15, %c0_16], %31 {strides = array<i32>} : memref<2x256xf32, #tpu.memory_space<vmem>>, vector<2x256xf32>,
    return
  }
}

module attributes {stable_mosaic.version = 11 : i64} {
  func.func @_matmul_bias_bn_relu_kernel(%arg0: memref<2x256xf32, #tpu.memory_space<vmem>>, %arg1: memref<256x32xf32, #tpu.memory_space<vmem>>, %arg2: memref<1x32xf32, #tpu.memory_space<vmem>>, %arg3: memref<1x32xf32, #tpu.memory_space<vmem>>, %arg4: memref<1x32xf32, #tpu.memory_space<vmem>>, %arg5: memref<2x32xf32, #tpu.memory_space<vmem>>) attributes {dimension_semantics = [], scalar_prefetch = 0 : i64, scratch_operands = 0 : i64, tpu.core_type = #tpu.core_type<tc>} {
    %c0 = arith.constant 0 : index
    %c0_0 = arith.constant 0 : index
    %0 = vector.load %arg0[%c0, %c0_0] : memref<2x256xf32, #tpu.memory_space<vmem>>, vector<2x256xf32>
    %c0_1 = arith.constant 0 : index
    %c0_2 = arith.constant 0 : index
    %1 = vector.load %arg1[%c0_1, %c0_2] : memref<256x32xf32, #tpu.memory_space<vmem>>, vector<256x32xf32>
    %cst = arith.constant dense<0.000000e+00> : vector<2x32xf32>
    %2 = tpu.matmul %0, %1, %cst {dimension_numbers = #tpu.dot_dimension_numbers<[1], [0], [0], [1], [0, 0, 1, 1], [], []>} : vector<2x256xf32>, vector<256x32xf32>, vector<2x32xf32> -> vector<2x32xf32>
    %c0_3 = arith.constant 0 : index
    %c0_4 = arith.constant 0 : index
    %3 = vector.load %arg2[%c0_3, %c0_4] : memref<1x32xf32, #tpu.memory_space<vmem>>, vector<1x32xf32>
    %4 = vector.broadcast %3 : vector<1x32xf32> to vector<2x32xf32>
    %5 = arith.addf %2, %4 : vector<2x32xf32>
    %cst_5 = arith.constant dense<0.000000e+00> : vector<32xf32>
    %6 = vector.multi_reduction <add>, %5, %cst_5 [0] : vector<2x32xf32> to vector<32xf32>
    %7 = vector.shape_cast %6 : vector<32xf32> to vector<1x32xf32>
    %cst_6 = arith.constant 2.000000e+00 : f32
    %8 = vector.broadcast %cst_6 : f32 to vector<1x32xf32>
    %9 = arith.divf %7, %8 : vector<1x32xf32>
    %10 = arith.mulf %5, %5 : vector<2x32xf32>
    %cst_7 = arith.constant dense<0.000000e+00> : vector<32xf32>
    %11 = vector.multi_reduction <add>, %10, %cst_7 [0] : vector<2x32xf32> to vector<32xf32>
    %12 = vector.shape_cast %11 : vector<32xf32> to vector<1x32xf32>
    %cst_8 = arith.constant 2.000000e+00 : f32
    %13 = vector.broadcast %cst_8 : f32 to vector<1x32xf32>
    %14 = arith.divf %12, %13 : vector<1x32xf32>
    %15 = arith.mulf %9, %9 : vector<1x32xf32>
    %16 = arith.subf %14, %15 : vector<1x32xf32>
    %17 = vector.broadcast %9 : vector<1x32xf32> to vector<2x32xf32>
    %18 = arith.subf %5, %17 : vector<2x32xf32>
    %cst_9 = arith.constant 9.99999974E-6 : f32
    %19 = vector.broadcast %cst_9 : f32 to vector<1x32xf32>
    %20 = arith.addf %16, %19 : vector<1x32xf32>
    %21 = math.rsqrt %20 : vector<1x32xf32>
    %22 = vector.broadcast %21 : vector<1x32xf32> to vector<2x32xf32>
    %23 = arith.mulf %18, %22 : vector<2x32xf32>
    %c0_10 = arith.constant 0 : index
    %c0_11 = arith.constant 0 : index
    %24 = vector.load %arg3[%c0_10, %c0_11] : memref<1x32xf32, #tpu.memory_space<vmem>>, vector<1x32xf32>
    %25 = vector.broadcast %24 : vector<1x32xf32> to vector<2x32xf32>
    %26 = arith.mulf %23, %25 : vector<2x32xf32>
    %c0_12 = arith.constant 0 : index
    %c0_13 = arith.constant 0 : index
    %27 = vector.load %arg4[%c0_12, %c0_13] : memref<1x32xf32, #tpu.memory_space<vmem>>, vector<1x32xf32>
    %28 = vector.broadcast %27 : vector<1x32xf32> to vector<2x32xf32>
    %29 = arith.addf %26, %28 : vector<2x32xf32>
    %cst_14 = arith.constant 0.000000e+00 : f32
    %30 = vector.broadcast %cst_14 : f32 to vector<2x32xf32>
    %31 = arith.maximumf %29, %30 : vector<2x32xf32>
    %c0_15 = arith.constant 0 : index
    %c0_16 = arith.constant 0 : index
    %32 = vector.load %arg5[%c0_15, %c0_16] : memref<2x32xf32, #tpu.memory_space<vmem>>, vector<2x32xf32>
    tpu.vector_store %arg5[%c0_15, %c0_16], %31 {strides = array<i32>} : memref<2x32xf32, #tpu.memory_space<vmem>>, vector<2x32xf32>,
    return
  }
}

module attributes {stable_mosaic.version = 11 : i64} {
  func.func @_matmul_bias_kernel(%arg0: memref<2x32xf32, #tpu.memory_space<vmem>>, %arg1: memref<32x6xf32, #tpu.memory_space<vmem>>, %arg2: memref<1x6xf32, #tpu.memory_space<vmem>>, %arg3: memref<2x6xf32, #tpu.memory_space<vmem>>) attributes {dimension_semantics = [], scalar_prefetch = 0 : i64, scratch_operands = 0 : i64, tpu.core_type = #tpu.core_type<tc>} {
    %c0 = arith.constant 0 : index
    %c0_0 = arith.constant 0 : index
    %0 = vector.load %arg0[%c0, %c0_0] : memref<2x32xf32, #tpu.memory_space<vmem>>, vector<2x32xf32>
    %c0_1 = arith.constant 0 : index
    %c0_2 = arith.constant 0 : index
    %1 = vector.load %arg1[%c0_1, %c0_2] : memref<32x6xf32, #tpu.memory_space<vmem>>, vector<32x6xf32>
    %cst = arith.constant dense<0.000000e+00> : vector<2x6xf32>
    %2 = tpu.matmul %0, %1, %cst {dimension_numbers = #tpu.dot_dimension_numbers<[1], [0], [0], [1], [0, 0, 1, 1], [], []>} : vector<2x32xf32>, vector<32x6xf32>, vector<2x6xf32> -> vector<2x6xf32>
    %c0_3 = arith.constant 0 : index
    %c0_4 = arith.constant 0 : index
    %3 = vector.load %arg2[%c0_3, %c0_4] : memref<1x6xf32, #tpu.memory_space<vmem>>, vector<1x6xf32>
    %4 = vector.broadcast %3 : vector<1x6xf32> to vector<2x6xf32>
    %5 = arith.addf %2, %4 : vector<2x6xf32>
    %c0_5 = arith.constant 0 : index
    %c0_6 = arith.constant 0 : index
    %6 = vector.load %arg3[%c0_5, %c0_6] : memref<2x6xf32, #tpu.memory_space<vmem>>, vector<2x6xf32>
    tpu.vector_store %arg3[%c0_5, %c0_6], %5 {strides = array<i32>} : memref<2x6xf32, #tpu.memory_space<vmem>>, vector<2x6xf32>,
    return
  }
}

</mosaic_0001>

<llo_original>
// kernel: convnet_forward.6
$region0: #{convnet_forward.6}
  #allocation0 [shape = 'u32[]', space=smem, size = 0x4, offset = 0x4, fixed_abs, tag = 'smem constant byte address 0x4 - core index']
  #allocation1 [shape = 'u32[144,128]{1,0:T(1,128)}', space=vmem, size = 0x12000, scoped, tag = 'internal scratch']
  %s0 = inlined_call_operand.vmem [shape: f32[1922,256], index: 0, kind: input, shape index: {}]
  %s1 = inlined_call_operand.vmem [shape: f32[256,32], index: 1, kind: input, shape index: {}]
  %s2 = inlined_call_operand.vmem [shape: f32[1,32], index: 2, kind: input, shape index: {}]
  %s3 = inlined_call_operand.vmem [shape: f32[1,32], index: 3, kind: input, shape index: {}]
  %s4 = inlined_call_operand.vmem [shape: f32[1,32], index: 4, kind: input, shape index: {}]
  %s5 = inlined_call_operand.vmem [shape: f32[1922,32], index: 5, kind: output, shape index: {}]
  %s6 = sld [smem:[#allocation0]]
  $region30: #{convnet_forward.6} parent=0
    _
  %s8 = ssub.s32 1, %s6
  %s9 = scalar_select 0, %s8, %s6
  // Predicated region
  $region2: #{convnet_forward.6} parent=0 // pred_check
    _
  $region3: #{convnet_forward.6} parent=0 // pred_check_branch
    %11 = sbr.rel (0) target = $region5
  $region4: #{convnet_forward.6} parent=0 // pred_region
    _
  $region5: #{convnet_forward.6} parent=0 // pred_fallthru
    _
  // Predicated region
  $region6: #{convnet_forward.6} parent=0 // pred_check
    _
  $region7: #{convnet_forward.6} parent=0 // pred_check_branch
    %13 = sbr.rel (0) target = $region9
  $region8: #{convnet_forward.6} parent=0 // pred_region
    _
  $region9: #{convnet_forward.6} parent=0 // pred_fallthru
    _
  // Predicated region
  $region10: #{convnet_forward.6} parent=0 // pred_check
    _
  $region11: #{convnet_forward.6} parent=0 // pred_check_branch
    %15 = sbr.rel (0) target = $region13
  $region12: #{convnet_forward.6} parent=0 // pred_region
    _
  $region13: #{convnet_forward.6} parent=0 // pred_fallthru
    _
  // Predicated region
  $region14: #{convnet_forward.6} parent=0 // pred_check
    _
  $region15: #{convnet_forward.6} parent=0 // pred_check_branch
    %17 = sbr.rel (0) target = $region17
  $region16: #{convnet_forward.6} parent=0 // pred_region
    _
  $region17: #{convnet_forward.6} parent=0 // pred_fallthru
    _
  // Predicated region
  $region18: #{convnet_forward.6} parent=0 // pred_check
    _
  $region19: #{convnet_forward.6} parent=0 // pred_check_branch
    %19 = sbr.rel (0) target = $region21
  $region20: #{convnet_forward.6} parent=0 // pred_region
    _
  $region21: #{convnet_forward.6} parent=0 // pred_fallthru
    _
  %v20 = vld [vmem:[%s0] sm:$0xff]
  %v21 = vld [vmem:[%s0 + $0x8] sm:$0xff]
  %v22 = vld [vmem:[%s0 + $0x10] sm:$0xff]
  %v23 = vld [vmem:[%s0 + $0x18] sm:$0xff]
  %v24 = vld [vmem:[%s0 + $0x20] sm:$0xff]
  %v25 = vld [vmem:[%s0 + $0x28] sm:$0xff]
  %v26 = vld [vmem:[%s0 + $0x30] sm:$0xff]
  %v27 = vld [vmem:[%s0 + $0x38] sm:$0xff]
  %v28 = vld [vmem:[%s0 + $0x40] sm:$0xff]
  %v29 = vld [vmem:[%s0 + $0x48] sm:$0xff]
  %v30 = vld [vmem:[%s0 + $0x50] sm:$0xff]
  %v31 = vld [vmem:[%s0 + $0x58] sm:$0xff]
  %v32 = vld [vmem:[%s0 + $0x60] sm:$0xff]
  %v33 = vld [vmem:[%s0 + $0x68] sm:$0xff]
  %v34 = vld [vmem:[%s0 + $0x70] sm:$0xff]
  %v35 = vld [vmem:[%s0 + $0x78] sm:$0xff]
  %v36 = vld [vmem:[%s0 + $0x80] sm:$0xff]
  %v37 = vld [vmem:[%s0 + $0x88] sm:$0xff]
  %v38 = vld [vmem:[%s0 + $0x90] sm:$0xff]
  %v39 = vld [vmem:[%s0 + $0x98] sm:$0xff]
  %v40 = vld [vmem:[%s0 + $0xa0] sm:$0xff]
  %v41 = vld [vmem:[%s0 + $0xa8] sm:$0xff]
  %v42 = vld [vmem:[%s0 + $0xb0] sm:$0xff]
  %v43 = vld [vmem:[%s0 + $0xb8] sm:$0xff]
  %v44 = vld [vmem:[%s0 + $0xc0] sm:$0xff]
  %v45 = vld [vmem:[%s0 + $0xc8] sm:$0xff]
  %v46 = vld [vmem:[%s0 + $0xd0] sm:$0xff]
  %v47 = vld [vmem:[%s0 + $0xd8] sm:$0xff]
  %v48 = vld [vmem:[%s0 + $0xe0] sm:$0xff]
  %v49 = vld [vmem:[%s0 + $0xe8] sm:$0xff]
  %v50 = vld [vmem:[%s0 + $0xf0] sm:$0xff]
  %v51 = vld [vmem:[%s0 + $0xf8] sm:$0xff]
  %v52 = vld [vmem:[%s0 + $0x100] sm:$0xff]
  %v53 = vld [vmem:[%s0 + $0x108] sm:$0xff]
  %v54 = vld [vmem:[%s0 + $0x110] sm:$0xff]
  %v55 = vld [vmem:[%s0 + $0x118] sm:$0xff]
  %v56 = vld [vmem:[%s0 + $0x120] sm:$0xff]
  %v57 = vld [vmem:[%s0 + $0x128] sm:$0xff]
  %v58 = vld [vmem:[%s0 + $0x130] sm:$0xff]
  %v59 = vld [vmem:[%s0 + $0x138] sm:$0xff]
  %v60 = vld [vmem:[%s0 + $0x140] sm:$0xff]
  %v61 = vld [vmem:[%s0 + $0x148] sm:$0xff]
  %v62 = vld [vmem:[%s0 + $0x150] sm:$0xff]
  %v63 = vld [vmem:[%s0 + $0x158] sm:$0xff]
  %v64 = vld [vmem:[%s0 + $0x160] sm:$0xff]
  %v65 = vld [vmem:[%s0 + $0x168] sm:$0xff]
  %v66 = vld [vmem:[%s0 + $0x170] sm:$0xff]
  %v67 = vld [vmem:[%s0 + $0x178] sm:$0xff]
  %v68 = vld [vmem:[%s0 + $0x180] sm:$0xff]
  %v69 = vld [vmem:[%s0 + $0x188] sm:$0xff]
  %v70 = vld [vmem:[%s0 + $0x190] sm:$0xff]
  %v71 = vld [vmem:[%s0 + $0x198] sm:$0xff]
  %v72 = vld [vmem:[%s0 + $0x1a0] sm:$0xff]
  %v73 = vld [vmem:[%s0 + $0x1a8] sm:$0xff]
  %v74 = vld [vmem:[%s0 + $0x1b0] sm:$0xff]
  %v75 = vld [vmem:[%s0 + $0x1b8] sm:$0xff]
  %v76 = vld [vmem:[%s0 + $0x1c0] sm:$0xff]
  %v77 = vld [vmem:[%s0 + $0x1c8] sm:$0xff]
  %v78 = vld [vmem:[%s0 + $0x1d0] sm:$0xff]
  %v79 = vld [vmem:[%s0 + $0x1d8] sm:$0xff]
  %v80 = vld [vmem:[%s0 + $0x1e0] sm:$0xff]
  %v81 = vld [vmem:[%s0 + $0x1e8] sm:$0xff]
  %v82 = vld [vmem:[%s0 + $0x1f0] sm:$0xff]
  %v83 = vld [vmem:[%s0 + $0x1f8] sm:$0xff]
  %v84 = vld [vmem:[%s0 + $0x200] sm:$0xff]
  %v85 = vld [vmem:[%s0 + $0x208] sm:$0xff]
  %v86 = vld [vmem:[%s0 + $0x210] sm:$0xff]
  %v87 = vld [vmem:[%s0 + $0x218] sm:$0xff]
  %v88 = vld [vmem:[%s0 + $0x220] sm:$0xff]
  %v89 = vld [vmem:[%s0 + $0x228] sm:$0xff]
  %v90 = vld [vmem:[%s0 + $0x230] sm:$0xff]
  %v91 = vld [vmem:[%s0 + $0x238] sm:$0xff]
  %v92 = vld [vmem:[%s0 + $0x240] sm:$0xff]
  %v93 = vld [vmem:[%s0 + $0x248] sm:$0xff]
  %v94 = vld [vmem:[%s0 + $0x250] sm:$0xff]
  %v95 = vld [vmem:[%s0 + $0x258] sm:$0xff]
  %v96 = vld [vmem:[%s0 + $0x260] sm:$0xff]
  %v97 = vld [vmem:[%s0 + $0x268] sm:$0xff]
  %v98 = vld [vmem:[%s0 + $0x270] sm:$0xff]
  %v99 = vld [vmem:[%s0 + $0x278] sm:$0xff]
  %v100 = vld [vmem:[%s0 + $0x280] sm:$0xff]
  %v101 = vld [vmem:[%s0 + $0x288] sm:$0xff]
  %v102 = vld [vmem:[%s0 + $0x290] sm:$0xff]
  %v103 = vld [vmem:[%s0 + $0x298] sm:$0xff]
  %v104 = vld [vmem:[%s0 + $0x2a0] sm:$0xff]
  %v105 = vld [vmem:[%s0 + $0x2a8] sm:$0xff]
  %v106 = vld [vmem:[%s0 + $0x2b0] sm:$0xff]
  %v107 = vld [vmem:[%s0 + $0x2b8] sm:$0xff]
  %v108 = vld [vmem:[%s0 + $0x2c0] sm:$0xff]
  %v109 = vld [vmem:[%s0 + $0x2c8] sm:$0xff]
  %v110 = vld [vmem:[%s0 + $0x2d0] sm:$0xff]
  %v111 = vld [vmem:[%s0 + $0x2d8] sm:$0xff]
  %v112 = vld [vmem:[%s0 + $0x2e0] sm:$0xff]
  %v113 = vld [vmem:[%s0 + $0x2e8] sm:$0xff]
  %v114 = vld [vmem:[%s0 + $0x2f0] sm:$0xff]
  %v115 = vld [vmem:[%s0 + $0x2f8] sm:$0xff]
  %v116 = vld [vmem:[%s0 + $0x300] sm:$0xff]
  %v117 = vld [vmem:[%s0 + $0x308] sm:$0xff]
  %v118 = vld [vmem:[%s0 + $0x310] sm:$0xff]
  %v119 = vld [vmem:[%s0 + $0x318] sm:$0xff]
  %v120 = vld [vmem:[%s0 + $0x320] sm:$0xff]
  %v121 = vld [vmem:[%s0 + $0x328] sm:$0xff]
  %v122 = vld [vmem:[%s0 + $0x330] sm:$0xff]
  %v123 = vld [vmem:[%s0 + $0x338] sm:$0xff]
  %v124 = vld [vmem:[%s0 + $0x340] sm:$0xff]
  %v125 = vld [vmem:[%s0 + $0x348] sm:$0xff]
  %v126 = vld [vmem:[%s0 + $0x350] sm:$0xff]
  %v127 = vld [vmem:[%s0 + $0x358] sm:$0xff]
  %v128 = vld [vmem:[%s0 + $0x360] sm:$0xff]
  %v129 = vld [vmem:[%s0 + $0x368] sm:$0xff]
  %v130 = vld [vmem:[%s0 + $0x370] sm:$0xff]
  %v131 = vld [vmem:[%s0 + $0x378] sm:$0xff]
  %v132 = vld [vmem:[%s0 + $0x380] sm:$0xff]
  %v133 = vld [vmem:[%s0 + $0x388] sm:$0xff]
  %v134 = vld [vmem:[%s0 + $0x390] sm:$0xff]
  %v135 = vld [vmem:[%s0 + $0x398] sm:$0xff]
  %v136 = vld [vmem:[%s0 + $0x3a0] sm:$0xff]
  %v137 = vld [vmem:[%s0 + $0x3a8] sm:$0xff]
  %v138 = vld [vmem:[%s0 + $0x3b0] sm:$0xff]
  %v139 = vld [vmem:[%s0 + $0x3b8] sm:$0xff]
  %v140 = vld [vmem:[%s0 + $0x3c0] sm:$0xff]
  %v141 = vld [vmem:[%s0 + $0x3c8] sm:$0xff]
  %v142 = vld [vmem:[%s0 + $0x3d0] sm:$0xff]
  %v143 = vld [vmem:[%s0 + $0x3d8] sm:$0xff]
  %v144 = vld [vmem:[%s0 + $0x3e0] sm:$0xff]
  %v145 = vld [vmem:[%s0 + $0x3e8] sm:$0xff]
  %v146 = vld [vmem:[%s0 + $0x3f0] sm:$0xff]
  %v147 = vld [vmem:[%s0 + $0x3f8] sm:$0xff]
  %v148 = vld [vmem:[%s0 + $0x400] sm:$0xff]
  %v149 = vld [vmem:[%s0 + $0x408] sm:$0xff]
  %v150 = vld [vmem:[%s0 + $0x410] sm:$0xff]
  %v151 = vld [vmem:[%s0 + $0x418] sm:$0xff]
  %v152 = vld [vmem:[%s0 + $0x420] sm:$0xff]
  %v153 = vld [vmem:[%s0 + $0x428] sm:$0xff]
  %v154 = vld [vmem:[%s0 + $0x430] sm:$0xff]
  %v155 = vld [vmem:[%s0 + $0x438] sm:$0xff]
  %v156 = vld [vmem:[%s0 + $0x440] sm:$0xff]
  %v157 = vld [vmem:[%s0 + $0x448] sm:$0xff]
  %v158 = vld [vmem:[%s0 + $0x450] sm:$0xff]
  %v159 = vld [vmem:[%s0 + $0x458] sm:$0xff]
  %v160 = vld [vmem:[%s0 + $0x460] sm:$0xff]
  %v161 = vld [vmem:[%s0 + $0x468] sm:$0xff]
  %v162 = vld [vmem:[%s0 + $0x470] sm:$0xff]
  %v163 = vld [vmem:[%s0 + $0x478] sm:$0xff]
  %v164 = vld [vmem:[%s0 + $0x480] sm:$0xff]
  %v165 = vld [vmem:[%s0 + $0x488] sm:$0xff]
  %v166 = vld [vmem:[%s0 + $0x490] sm:$0xff]
  %v167 = vld [vmem:[%s0 + $0x498] sm:$0xff]
  %v168 = vld [vmem:[%s0 + $0x4a0] sm:$0xff]
  %v169 = vld [vmem:[%s0 + $0x4a8] sm:$0xff]
  %v170 = vld [vmem:[%s0 + $0x4b0] sm:$0xff]
  %v171 = vld [vmem:[%s0 + $0x4b8] sm:$0xff]
  %v172 = vld [vmem:[%s0 + $0x4c0] sm:$0xff]
  %v173 = vld [vmem:[%s0 + $0x4c8] sm:$0xff]
  %v174 = vld [vmem:[%s0 + $0x4d0] sm:$0xff]
  %v175 = vld [vmem:[%s0 + $0x4d8] sm:$0xff]
  %v176 = vld [vmem:[%s0 + $0x4e0] sm:$0xff]
  %v177 = vld [vmem:[%s0 + $0x4e8] sm:$0xff]
  %v178 = vld [vmem:[%s0 + $0x4f0] sm:$0xff]
  %v179 = vld [vmem:[%s0 + $0x4f8] sm:$0xff]
  %v180 = vld [vmem:[%s0 + $0x500] sm:$0xff]
  %v181 = vld [vmem:[%s0 + $0x508] sm:$0xff]
  %v182 = vld [vmem:[%s0 + $0x510] sm:$0xff]
  %v183 = vld [vmem:[%s0 + $0x518] sm:$0xff]
  %v184 = vld [vmem:[%s0 + $0x520] sm:$0xff]
  %v185 = vld [vmem:[%s0 + $0x528] sm:$0xff]
  %v186 = vld [vmem:[%s0 + $0x530] sm:$0xff]
  %v187 = vld [vmem:[%s0 + $0x538] sm:$0xff]
  %v188 = vld [vmem:[%s0 + $0x540] sm:$0xff]
  %v189 = vld [vmem:[%s0 + $0x548] sm:$0xff]
  %v190 = vld [vmem:[%s0 + $0x550] sm:$0xff]
  %v191 = vld [vmem:[%s0 + $0x558] sm:$0xff]
  %v192 = vld [vmem:[%s0 + $0x560] sm:$0xff]
  %v193 = vld [vmem:[%s0 + $0x568] sm:$0xff]
  %v194 = vld [vmem:[%s0 + $0x570] sm:$0xff]
  %v195 = vld [vmem:[%s0 + $0x578] sm:$0xff]
  %v196 = vld [vmem:[%s0 + $0x580] sm:$0xff]
  %v197 = vld [vmem:[%s0 + $0x588] sm:$0xff]
  %v198 = vld [vmem:[%s0 + $0x590] sm:$0xff]
  %v199 = vld [vmem:[%s0 + $0x598] sm:$0xff]
  %v200 = vld [vmem:[%s0 + $0x5a0] sm:$0xff]
  %v201 = vld [vmem:[%s0 + $0x5a8] sm:$0xff]
  %v202 = vld [vmem:[%s0 + $0x5b0] sm:$0xff]
  %v203 = vld [vmem:[%s0 + $0x5b8] sm:$0xff]
  %v204 = vld [vmem:[%s0 + $0x5c0] sm:$0xff]
  %v205 = vld [vmem:[%s0 + $0x5c8] sm:$0xff]
  %v206 = vld [vmem:[%s0 + $0x5d0] sm:$0xff]
  %v207 = vld [vmem:[%s0 + $0x5d8] sm:$0xff]
  %v208 = vld [vmem:[%s0 + $0x5e0] sm:$0xff]
  %v209 = vld [vmem:[%s0 + $0x5e8] sm:$0xff]
  %v210 = vld [vmem:[%s0 + $0x5f0] sm:$0xff]
  %v211 = vld [vmem:[%s0 + $0x5f8] sm:$0xff]
  %v212 = vld [vmem:[%s0 + $0x600] sm:$0xff]
  %v213 = vld [vmem:[%s0 + $0x608] sm:$0xff]
  %v214 = vld [vmem:[%s0 + $0x610] sm:$0xff]
  %v215 = vld [vmem:[%s0 + $0x618] sm:$0xff]
  %v216 = vld [vmem:[%s0 + $0x620] sm:$0xff]
  %v217 = vld [vmem:[%s0 + $0x628] sm:$0xff]
  %v218 = vld [vmem:[%s0 + $0x630] sm:$0xff]
  %v219 = vld [vmem:[%s0 + $0x638] sm:$0xff]
  %v220 = vld [vmem:[%s0 + $0x640] sm:$0xff]
  %v221 = vld [vmem:[%s0 + $0x648] sm:$0xff]
  %v222 = vld [vmem:[%s0 + $0x650] sm:$0xff]
  %v223 = vld [vmem:[%s0 + $0x658] sm:$0xff]
  %v224 = vld [vmem:[%s0 + $0x660] sm:$0xff]
  %v225 = vld [vmem:[%s0 + $0x668] sm:$0xff]
  %v226 = vld [vmem:[%s0 + $0x670] sm:$0xff]
  %v227 = vld [vmem:[%s0 + $0x678] sm:$0xff]
  %v228 = vld [vmem:[%s0 + $0x680] sm:$0xff]
  %v229 = vld [vmem:[%s0 + $0x688] sm:$0xff]
  %v230 = vld [vmem:[%s0 + $0x690] sm:$0xff]
  %v231 = vld [vmem:[%s0 + $0x698] sm:$0xff]
  %v232 = vld [vmem:[%s0 + $0x6a0] sm:$0xff]
  %v233 = vld [vmem:[%s0 + $0x6a8] sm:$0xff]
  %v234 = vld [vmem:[%s0 + $0x6b0] sm:$0xff]
  %v235 = vld [vmem:[%s0 + $0x6b8] sm:$0xff]
  %v236 = vld [vmem:[%s0 + $0x6c0] sm:$0xff]
  %v237 = vld [vmem:[%s0 + $0x6c8] sm:$0xff]
  %v238 = vld [vmem:[%s0 + $0x6d0] sm:$0xff]
  %v239 = vld [vmem:[%s0 + $0x6d8] sm:$0xff]
  %v240 = vld [vmem:[%s0 + $0x6e0] sm:$0xff]
  %v241 = vld [vmem:[%s0 + $0x6e8] sm:$0xff]
  %v242 = vld [vmem:[%s0 + $0x6f0] sm:$0xff]
  %v243 = vld [vmem:[%s0 + $0x6f8] sm:$0xff]
  %v244 = vld [vmem:[%s0 + $0x700] sm:$0xff]
  %v245 = vld [vmem:[%s0 + $0x708] sm:$0xff]
  %v246 = vld [vmem:[%s0 + $0x710] sm:$0xff]
  %v247 = vld [vmem:[%s0 + $0x718] sm:$0xff]
  %v248 = vld [vmem:[%s0 + $0x720] sm:$0xff]
  %v249 = vld [vmem:[%s0 + $0x728] sm:$0xff]
  %v250 = vld [vmem:[%s0 + $0x730] sm:$0xff]
  %v251 = vld [vmem:[%s0 + $0x738] sm:$0xff]
  %v252 = vld [vmem:[%s0 + $0x740] sm:$0xff]
  %v253 = vld [vmem:[%s0 + $0x748] sm:$0xff]
  %v254 = vld [vmem:[%s0 + $0x750] sm:$0xff]
  %v255 = vld [vmem:[%s0 + $0x758] sm:$0xff]
  %v256 = vld [vmem:[%s0 + $0x760] sm:$0xff]
  %v257 = vld [vmem:[%s0 + $0x768] sm:$0xff]
  %v258 = vld [vmem:[%s0 + $0x770] sm:$0xff]
  %v259 = vld [vmem:[%s0 + $0x778] sm:$0xff]
  %v260 = vld [vmem:[%s0 + $0x780] sm:$0xff]
  %v261 = vld [vmem:[%s0 + $0x788] sm:$0xff]
  %v262 = vld [vmem:[%s0 + $0x790] sm:$0xff]
  %v263 = vld [vmem:[%s0 + $0x798] sm:$0xff]
  %v264 = vld [vmem:[%s0 + $0x7a0] sm:$0xff]
  %v265 = vld [vmem:[%s0 + $0x7a8] sm:$0xff]
  %v266 = vld [vmem:[%s0 + $0x7b0] sm:$0xff]
  %v267 = vld [vmem:[%s0 + $0x7b8] sm:$0xff]
  %v268 = vld [vmem:[%s0 + $0x7c0] sm:$0xff]
  %v269 = vld [vmem:[%s0 + $0x7c8] sm:$0xff]
  %v270 = vld [vmem:[%s0 + $0x7d0] sm:$0xff]
  %v271 = vld [vmem:[%s0 + $0x7d8] sm:$0xff]
  %v272 = vld [vmem:[%s0 + $0x7e0] sm:$0xff]
  %v273 = vld [vmem:[%s0 + $0x7e8] sm:$0xff]
  %v274 = vld [vmem:[%s0 + $0x7f0] sm:$0xff]
  %v275 = vld [vmem:[%s0 + $0x7f8] sm:$0xff]
  %v276 = vld [vmem:[%s0 + $0x800] sm:$0xff]
  %v277 = vld [vmem:[%s0 + $0x808] sm:$0xff]
  %v278 = vld [vmem:[%s0 + $0x810] sm:$0xff]
  %v279 = vld [vmem:[%s0 + $0x818] sm:$0xff]
  %v280 = vld [vmem:[%s0 + $0x820] sm:$0xff]
  %v281 = vld [vmem:[%s0 + $0x828] sm:$0xff]
  %v282 = vld [vmem:[%s0 + $0x830] sm:$0xff]
  %v283 = vld [vmem:[%s0 + $0x838] sm:$0xff]
  %v284 = vld [vmem:[%s0 + $0x840] sm:$0xff]
  %v285 = vld [vmem:[%s0 + $0x848] sm:$0xff]
  %v286 = vld [vmem:[%s0 + $0x850] sm:$0xff]
  %v287 = vld [vmem:[%s0 + $0x858] sm:$0xff]
  %v288 = vld [vmem:[%s0 + $0x860] sm:$0xff]
  %v289 = vld [vmem:[%s0 + $0x868] sm:$0xff]
  %v290 = vld [vmem:[%s0 + $0x870] sm:$0xff]
  %v291 = vld [vmem:[%s0 + $0x878] sm:$0xff]
  %v292 = vld [vmem:[%s0 + $0x880] sm:$0xff]
  %v293 = vld [vmem:[%s0 + $0x888] sm:$0xff]
  %v294 = vld [vmem:[%s0 + $0x890] sm:$0xff]
  %v295 = vld [vmem:[%s0 + $0x898] sm:$0xff]
  %v296 = vld [vmem:[%s0 + $0x8a0] sm:$0xff]
  %v297 = vld [vmem:[%s0 + $0x8a8] sm:$0xff]
  %v298 = vld [vmem:[%s0 + $0x8b0] sm:$0xff]
  %v299 = vld [vmem:[%s0 + $0x8b8] sm:$0xff]
  %v300 = vld [vmem:[%s0 + $0x8c0] sm:$0xff]
  %v301 = vld [vmem:[%s0 + $0x8c8] sm:$0xff]
  %v302 = vld [vmem:[%s0 + $0x8d0] sm:$0xff]
  %v303 = vld [vmem:[%s0 + $0x8d8] sm:$0xff]
  %v304 = vld [vmem:[%s0 + $0x8e0] sm:$0xff]
  %v305 = vld [vmem:[%s0 + $0x8e8] sm:$0xff]
  %v306 = vld [vmem:[%s0 + $0x8f0] sm:$0xff]
  %v307 = vld [vmem:[%s0 + $0x8f8] sm:$0xff]
  %v308 = vld [vmem:[%s0 + $0x900] sm:$0xff]
  %v309 = vld [vmem:[%s0 + $0x908] sm:$0xff]
  %v310 = vld [vmem:[%s0 + $0x910] sm:$0xff]
  %v311 = vld [vmem:[%s0 + $0x918] sm:$0xff]
  %v312 = vld [vmem:[%s0 + $0x920] sm:$0xff]
  %v313 = vld [vmem:[%s0 + $0x928] sm:$0xff]
  %v314 = vld [vmem:[%s0 + $0x930] sm:$0xff]
  %v315 = vld [vmem:[%s0 + $0x938] sm:$0xff]
  %v316 = vld [vmem:[%s0 + $0x940] sm:$0xff]
  %v317 = vld [vmem:[%s0 + $0x948] sm:$0xff]
  %v318 = vld [vmem:[%s0 + $0x950] sm:$0xff]
  %v319 = vld [vmem:[%s0 + $0x958] sm:$0xff]
  %v320 = vld [vmem:[%s0 + $0x960] sm:$0xff]
  %v321 = vld [vmem:[%s0 + $0x968] sm:$0xff]
  %v322 = vld [vmem:[%s0 + $0x970] sm:$0xff]
  %v323 = vld [vmem:[%s0 + $0x978] sm:$0xff]
  %v324 = vld [vmem:[%s0 + $0x980] sm:$0xff]
  %v325 = vld [vmem:[%s0 + $0x988] sm:$0xff]
  %v326 = vld [vmem:[%s0 + $0x990] sm:$0xff]
  %v327 = vld [vmem:[%s0 + $0x998] sm:$0xff]
  %v328 = vld [vmem:[%s0 + $0x9a0] sm:$0xff]
  %v329 = vld [vmem:[%s0 + $0x9a8] sm:$0xff]
  %v330 = vld [vmem:[%s0 + $0x9b0] sm:$0xff]
  %v331 = vld [vmem:[%s0 + $0x9b8] sm:$0xff]
  %v332 = vld [vmem:[%s0 + $0x9c0] sm:$0xff]
  %v333 = vld [vmem:[%s0 + $0x9c8] sm:$0xff]
  %v334 = vld [vmem:[%s0 + $0x9d0] sm:$0xff]
  %v335 = vld [vmem:[%s0 + $0x9d8] sm:$0xff]
  %v336 = vld [vmem:[%s0 + $0x9e0] sm:$0xff]
  %v337 = vld [vmem:[%s0 + $0x9e8] sm:$0xff]
  %v338 = vld [vmem:[%s0 + $0x9f0] sm:$0xff]
  %v339 = vld [vmem:[%s0 + $0x9f8] sm:$0xff]
  %v340 = vld [vmem:[%s0 + $0xa00] sm:$0xff]
  %v341 = vld [vmem:[%s0 + $0xa08] sm:$0xff]
  %v342 = vld [vmem:[%s0 + $0xa10] sm:$0xff]
  %v343 = vld [vmem:[%s0 + $0xa18] sm:$0xff]
  %v344 = vld [vmem:[%s0 + $0xa20] sm:$0xff]
  %v345 = vld [vmem:[%s0 + $0xa28] sm:$0xff]
  %v346 = vld [vmem:[%s0 + $0xa30] sm:$0xff]
  %v347 = vld [vmem:[%s0 + $0xa38] sm:$0xff]
  %v348 = vld [vmem:[%s0 + $0xa40] sm:$0xff]
  %v349 = vld [vmem:[%s0 + $0xa48] sm:$0xff]
  %v350 = vld [vmem:[%s0 + $0xa50] sm:$0xff]
  %v351 = vld [vmem:[%s0 + $0xa58] sm:$0xff]
  %v352 = vld [vmem:[%s0 + $0xa60] sm:$0xff]
  %v353 = vld [vmem:[%s0 + $0xa68] sm:$0xff]
  %v354 = vld [vmem:[%s0 + $0xa70] sm:$0xff]
  %v355 = vld [vmem:[%s0 + $0xa78] sm:$0xff]
  %v356 = vld [vmem:[%s0 + $0xa80] sm:$0xff]
  %v357 = vld [vmem:[%s0 + $0xa88] sm:$0xff]
  %v358 = vld [vmem:[%s0 + $0xa90] sm:$0xff]
  %v359 = vld [vmem:[%s0 + $0xa98] sm:$0xff]
  %v360 = vld [vmem:[%s0 + $0xaa0] sm:$0xff]
  %v361 = vld [vmem:[%s0 + $0xaa8] sm:$0xff]
  %v362 = vld [vmem:[%s0 + $0xab0] sm:$0xff]
  %v363 = vld [vmem:[%s0 + $0xab8] sm:$0xff]
  %v364 = vld [vmem:[%s0 + $0xac0] sm:$0xff]
  %v365 = vld [vmem:[%s0 + $0xac8] sm:$0xff]
  %v366 = vld [vmem:[%s0 + $0xad0] sm:$0xff]
  %v367 = vld [vmem:[%s0 + $0xad8] sm:$0xff]
  %v368 = vld [vmem:[%s0 + $0xae0] sm:$0xff]
  %v369 = vld [vmem:[%s0 + $0xae8] sm:$0xff]
  %v370 = vld [vmem:[%s0 + $0xaf0] sm:$0xff]
  %v371 = vld [vmem:[%s0 + $0xaf8] sm:$0xff]
  %v372 = vld [vmem:[%s0 + $0xb00] sm:$0xff]
  %v373 = vld [vmem:[%s0 + $0xb08] sm:$0xff]
  %v374 = vld [vmem:[%s0 + $0xb10] sm:$0xff]
  %v375 = vld [vmem:[%s0 + $0xb18] sm:$0xff]
  %v376 = vld [vmem:[%s0 + $0xb20] sm:$0xff]
  %v377 = vld [vmem:[%s0 + $0xb28] sm:$0xff]
  %v378 = vld [vmem:[%s0 + $0xb30] sm:$0xff]
  %v379 = vld [vmem:[%s0 + $0xb38] sm:$0xff]
  %v380 = vld [vmem:[%s0 + $0xb40] sm:$0xff]
  %v381 = vld [vmem:[%s0 + $0xb48] sm:$0xff]
  %v382 = vld [vmem:[%s0 + $0xb50] sm:$0xff]
  %v383 = vld [vmem:[%s0 + $0xb58] sm:$0xff]
  %v384 = vld [vmem:[%s0 + $0xb60] sm:$0xff]
  %v385 = vld [vmem:[%s0 + $0xb68] sm:$0xff]
  %v386 = vld [vmem:[%s0 + $0xb70] sm:$0xff]
  %v387 = vld [vmem:[%s0 + $0xb78] sm:$0xff]
  %v388 = vld [vmem:[%s0 + $0xb80] sm:$0xff]
  %v389 = vld [vmem:[%s0 + $0xb88] sm:$0xff]
  %v390 = vld [vmem:[%s0 + $0xb90] sm:$0xff]
  %v391 = vld [vmem:[%s0 + $0xb98] sm:$0xff]
  %v392 = vld [vmem:[%s0 + $0xba0] sm:$0xff]
  %v393 = vld [vmem:[%s0 + $0xba8] sm:$0xff]
  %v394 = vld [vmem:[%s0 + $0xbb0] sm:$0xff]
  %v395 = vld [vmem:[%s0 + $0xbb8] sm:$0xff]
  %v396 = vld [vmem:[%s0 + $0xbc0] sm:$0xff]
  %v397 = vld [vmem:[%s0 + $0xbc8] sm:$0xff]
  %v398 = vld [vmem:[%s0 + $0xbd0] sm:$0xff]
  %v399 = vld [vmem:[%s0 + $0xbd8] sm:$0xff]
  %v400 = vld [vmem:[%s0 + $0xbe0] sm:$0xff]
  %v401 = vld [vmem:[%s0 + $0xbe8] sm:$0xff]
  %v402 = vld [vmem:[%s0 + $0xbf0] sm:$0xff]
  %v403 = vld [vmem:[%s0 + $0xbf8] sm:$0xff]
  %v404 = vld [vmem:[%s0 + $0xc00] sm:$0xff]
  %v405 = vld [vmem:[%s0 + $0xc08] sm:$0xff]
  %v406 = vld [vmem:[%s0 + $0xc10] sm:$0xff]
  %v407 = vld [vmem:[%s0 + $0xc18] sm:$0xff]
  %v408 = vld [vmem:[%s0 + $0xc20] sm:$0xff]
  %v409 = vld [vmem:[%s0 + $0xc28] sm:$0xff]
  %v410 = vld [vmem:[%s0 + $0xc30] sm:$0xff]
  %v411 = vld [vmem:[%s0 + $0xc38] sm:$0xff]
  %v412 = vld [vmem:[%s0 + $0xc40] sm:$0xff]
  %v413 = vld [vmem:[%s0 + $0xc48] sm:$0xff]
  %v414 = vld [vmem:[%s0 + $0xc50] sm:$0xff]
  %v415 = vld [vmem:[%s0 + $0xc58] sm:$0xff]
  %v416 = vld [vmem:[%s0 + $0xc60] sm:$0xff]
  %v417 = vld [vmem:[%s0 + $0xc68] sm:$0xff]
  %v418 = vld [vmem:[%s0 + $0xc70] sm:$0xff]
  %v419 = vld [vmem:[%s0 + $0xc78] sm:$0xff]
  %v420 = vld [vmem:[%s0 + $0xc80] sm:$0xff]
  %v421 = vld [vmem:[%s0 + $0xc88] sm:$0xff]
  %v422 = vld [vmem:[%s0 + $0xc90] sm:$0xff]
  %v423 = vld [vmem:[%s0 + $0xc98] sm:$0xff]
  %v424 = vld [vmem:[%s0 + $0xca0] sm:$0xff]
  %v425 = vld [vmem:[%s0 + $0xca8] sm:$0xff]
  %v426 = vld [vmem:[%s0 + $0xcb0] sm:$0xff]
  %v427 = vld [vmem:[%s0 + $0xcb8] sm:$0xff]
  %v428 = vld [vmem:[%s0 + $0xcc0] sm:$0xff]
  %v429 = vld [vmem:[%s0 + $0xcc8] sm:$0xff]
  %v430 = vld [vmem:[%s0 + $0xcd0] sm:$0xff]
  %v431 = vld [vmem:[%s0 + $0xcd8] sm:$0xff]
  %v432 = vld [vmem:[%s0 + $0xce0] sm:$0xff]
  %v433 = vld [vmem:[%s0 + $0xce8] sm:$0xff]
  %v434 = vld [vmem:[%s0 + $0xcf0] sm:$0xff]
  %v435 = vld [vmem:[%s0 + $0xcf8] sm:$0xff]
  %v436 = vld [vmem:[%s0 + $0xd00] sm:$0xff]
  %v437 = vld [vmem:[%s0 + $0xd08] sm:$0xff]
  %v438 = vld [vmem:[%s0 + $0xd10] sm:$0xff]
  %v439 = vld [vmem:[%s0 + $0xd18] sm:$0xff]
  %v440 = vld [vmem:[%s0 + $0xd20] sm:$0xff]
  %v441 = vld [vmem:[%s0 + $0xd28] sm:$0xff]
  %v442 = vld [vmem:[%s0 + $0xd30] sm:$0xff]
  %v443 = vld [vmem:[%s0 + $0xd38] sm:$0xff]
  %v444 = vld [vmem:[%s0 + $0xd40] sm:$0xff]
  %v445 = vld [vmem:[%s0 + $0xd48] sm:$0xff]
  %v446 = vld [vmem:[%s0 + $0xd50] sm:$0xff]
  %v447 = vld [vmem:[%s0 + $0xd58] sm:$0xff]
  %v448 = vld [vmem:[%s0 + $0xd60] sm:$0xff]
  %v449 = vld [vmem:[%s0 + $0xd68] sm:$0xff]
  %v450 = vld [vmem:[%s0 + $0xd70] sm:$0xff]
  %v451 = vld [vmem:[%s0 + $0xd78] sm:$0xff]
  %v452 = vld [vmem:[%s0 + $0xd80] sm:$0xff]
  %v453 = vld [vmem:[%s0 + $0xd88] sm:$0xff]
  %v454 = vld [vmem:[%s0 + $0xd90] sm:$0xff]
  %v455 = vld [vmem:[%s0 + $0xd98] sm:$0xff]
  %v456 = vld [vmem:[%s0 + $0xda0] sm:$0xff]
  %v457 = vld [vmem:[%s0 + $0xda8] sm:$0xff]
  %v458 = vld [vmem:[%s0 + $0xdb0] sm:$0xff]
  %v459 = vld [vmem:[%s0 + $0xdb8] sm:$0xff]
  %v460 = vld [vmem:[%s0 + $0xdc0] sm:$0xff]
  %v461 = vld [vmem:[%s0 + $0xdc8] sm:$0xff]
  %v462 = vld [vmem:[%s0 + $0xdd0] sm:$0xff]
  %v463 = vld [vmem:[%s0 + $0xdd8] sm:$0xff]
  %v464 = vld [vmem:[%s0 + $0xde0] sm:$0xff]
  %v465 = vld [vmem:[%s0 + $0xde8] sm:$0xff]
  %v466 = vld [vmem:[%s0 + $0xdf0] sm:$0xff]
  %v467 = vld [vmem:[%s0 + $0xdf8] sm:$0xff]
  %v468 = vld [vmem:[%s0 + $0xe00] sm:$0xff]
  %v469 = vld [vmem:[%s0 + $0xe08] sm:$0xff]
  %v470 = vld [vmem:[%s0 + $0xe10] sm:$0xff]
  %v471 = vld [vmem:[%s0 + $0xe18] sm:$0xff]
  %v472 = vld [vmem:[%s0 + $0xe20] sm:$0xff]
  %v473 = vld [vmem:[%s0 + $0xe28] sm:$0xff]
  %v474 = vld [vmem:[%s0 + $0xe30] sm:$0xff]
  %v475 = vld [vmem:[%s0 + $0xe38] sm:$0xff]
  %v476 = vld [vmem:[%s0 + $0xe40] sm:$0xff]
  %v477 = vld [vmem:[%s0 + $0xe48] sm:$0xff]
  %v478 = vld [vmem:[%s0 + $0xe50] sm:$0xff]
  %v479 = vld [vmem:[%s0 + $0xe58] sm:$0xff]
  %v480 = vld [vmem:[%s0 + $0xe60] sm:$0xff]
  %v481 = vld [vmem:[%s0 + $0xe68] sm:$0xff]
  %v482 = vld [vmem:[%s0 + $0xe70] sm:$0xff]
  %v483 = vld [vmem:[%s0 + $0xe78] sm:$0xff]
  %v484 = vld [vmem:[%s0 + $0xe80] sm:$0xff]
  %v485 = vld [vmem:[%s0 + $0xe88] sm:$0xff]
  %v486 = vld [vmem:[%s0 + $0xe90] sm:$0xff]
  %v487 = vld [vmem:[%s0 + $0xe98] sm:$0xff]
  %v488 = vld [vmem:[%s0 + $0xea0] sm:$0xff]
  %v489 = vld [vmem:[%s0 + $0xea8] sm:$0xff]
  %v490 = vld [vmem:[%s0 + $0xeb0] sm:$0xff]
  %v491 = vld [vmem:[%s0 + $0xeb8] sm:$0xff]
  %v492 = vld [vmem:[%s0 + $0xec0] sm:$0xff]
  %v493 = vld [vmem:[%s0 + $0xec8] sm:$0xff]
  %v494 = vld [vmem:[%s0 + $0xed0] sm:$0xff]
  %v495 = vld [vmem:[%s0 + $0xed8] sm:$0xff]
  %v496 = vld [vmem:[%s0 + $0xee0] sm:$0xff]
  %v497 = vld [vmem:[%s0 + $0xee8] sm:$0xff]
  %v498 = vld [vmem:[%s0 + $0xef0] sm:$0xff]
  %v499 = vld [vmem:[%s0 + $0xef8] sm:$0xff]
  %v500 = vld [vmem:[%s0 + $0xf00] sm:$0x3]
  %v501 = vld [vmem:[%s0 + $0xf08] sm:$0x3]
  %v502 = vld [vmem:[%s1] sm:$0xff]
  %v503 = vld [vmem:[%s1 + $0x8] sm:$0xff]
  %v504 = vld [vmem:[%s1 + $0x10] sm:$0xff]
  %v505 = vld [vmem:[%s1 + $0x18] sm:$0xff]
  %v506 = vld [vmem:[%s1 + $0x20] sm:$0xff]
  %v507 = vld [vmem:[%s1 + $0x28] sm:$0xff]
  %v508 = vld [vmem:[%s1 + $0x30] sm:$0xff]
  %v509 = vld [vmem:[%s1 + $0x38] sm:$0xff]
  %v510 = vld [vmem:[%s1 + $0x40] sm:$0xff]
  %v511 = vld [vmem:[%s1 + $0x48] sm:$0xff]
  %v512 = vld [vmem:[%s1 + $0x50] sm:$0xff]
  %v513 = vld [vmem:[%s1 + $0x58] sm:$0xff]
  %v514 = vld [vmem:[%s1 + $0x60] sm:$0xff]
  %v515 = vld [vmem:[%s1 + $0x68] sm:$0xff]
  %v516 = vld [vmem:[%s1 + $0x70] sm:$0xff]
  %v517 = vld [vmem:[%s1 + $0x78] sm:$0xff]
  %v518 = vld [vmem:[%s1 + $0x80] sm:$0xff]
  %v519 = vld [vmem:[%s1 + $0x88] sm:$0xff]
  %v520 = vld [vmem:[%s1 + $0x90] sm:$0xff]
  %v521 = vld [vmem:[%s1 + $0x98] sm:$0xff]
  %v522 = vld [vmem:[%s1 + $0xa0] sm:$0xff]
  %v523 = vld [vmem:[%s1 + $0xa8] sm:$0xff]
  %v524 = vld [vmem:[%s1 + $0xb0] sm:$0xff]
  %v525 = vld [vmem:[%s1 + $0xb8] sm:$0xff]
  %v526 = vld [vmem:[%s1 + $0xc0] sm:$0xff]
  %v527 = vld [vmem:[%s1 + $0xc8] sm:$0xff]
  %v528 = vld [vmem:[%s1 + $0xd0] sm:$0xff]
  %v529 = vld [vmem:[%s1 + $0xd8] sm:$0xff]
  %v530 = vld [vmem:[%s1 + $0xe0] sm:$0xff]
  %v531 = vld [vmem:[%s1 + $0xe8] sm:$0xff]
  %v532 = vld [vmem:[%s1 + $0xf0] sm:$0xff]
  %v533 = vld [vmem:[%s1 + $0xf8] sm:$0xff]
  %v534 = vld [vmem:[%s2] sm:$0x1]
  %v536 = vlaneseq
  %v537 = vshrl.u32 %v536, 7
  %v538 = vsub.s32 0, %v537
  %v539 = vrot.slane %v534, %v538
  %541 = vmatprep.subr.mxu0 0.0
  %542 = vmatpush1.msra.mxu0 %v502
  %543 = vmatprep.subr.mxu0 0.0
  %544 = vmatpush1.msra.mxu0 %v503
  %545 = vmatprep.subr.mxu0 0.0
  %546 = vmatpush1.msra.mxu0 %v504
  %547 = vmatprep.subr.mxu0 0.0
  %548 = vmatpush1.msra.mxu0 %v505
  %549 = vmatprep.subr.mxu0 0.0
  %550 = vmatpush1.msra.mxu0 %v506
  %551 = vmatprep.subr.mxu0 0.0
  %552 = vmatpush1.msra.mxu0 %v507
  %553 = vmatprep.subr.mxu0 0.0
  %554 = vmatpush1.msra.mxu0 %v508
  %555 = vmatprep.subr.mxu0 0.0
  %556 = vmatpush1.msra.mxu0 %v509
  %557 = vmatprep.subr.mxu0 0.0
  %558 = vmatpush1.msra.mxu0 %v510
  %559 = vmatprep.subr.mxu0 0.0
  %560 = vmatpush1.msra.mxu0 %v511
  %561 = vmatprep.subr.mxu0 0.0
  %562 = vmatpush1.msra.mxu0 %v512
  %563 = vmatprep.subr.mxu0 0.0
  %564 = vmatpush1.msra.mxu0 %v513
  %565 = vmatprep.subr.mxu0 0.0
  %566 = vmatpush1.msra.mxu0 %v514
  %567 = vmatprep.subr.mxu0 0.0
  %568 = vmatpush1.msra.mxu0 %v515
  %569 = vmatprep.subr.mxu0 0.0
  %570 = vmatpush1.msra.mxu0 %v516
  %571 = vmatprep.subr.mxu0 0.0
  %572 = vmatpush1.msra.mxu0 %v517
  %573 = vmatprep.subr.mxu0 0.0
  %574 = vmatpush1.msra.mxu0 %v518
  %575 = vmatprep.subr.mxu0 0.0
  %576 = vmatpush1.msra.mxu0 %v519
  %577 = vmatprep.subr.mxu0 0.0
  %578 = vmatpush1.msra.mxu0 %v520
  %579 = vmatprep.subr.mxu0 0.0
  %580 = vmatpush1.msra.mxu0 %v521
  %581 = vmatprep.subr.mxu0 0.0
  %582 = vmatpush1.msra.mxu0 %v522
  %583 = vmatprep.subr.mxu0 0.0
  %584 = vmatpush1.msra.mxu0 %v523
  %585 = vmatprep.subr.mxu0 0.0
  %586 = vmatpush1.msra.mxu0 %v524
  %587 = vmatprep.subr.mxu0 0.0
  %588 = vmatpush1.msra.mxu0 %v525
  %589 = vmatprep.subr.mxu0 0.0
  %590 = vmatpush1.msra.mxu0 %v526
  %591 = vmatprep.subr.mxu0 0.0
  %592 = vmatpush1.msra.mxu0 %v527
  %593 = vmatprep.subr.mxu0 0.0
  %594 = vmatpush1.msra.mxu0 %v528
  %595 = vmatprep.subr.mxu0 0.0
  %596 = vmatpush1.msra.mxu0 %v529
  %597 = vmatprep.subr.mxu0 0.0
  %598 = vmatpush1.msra.mxu0 %v530
  %599 = vmatprep.subr.mxu0 0.0
  %600 = vmatpush1.msra.mxu0 %v531
  %601 = vmatprep.subr.mxu0 0.0
  %602 = vmatpush1.msra.mxu0 %v532
  %603 = vmatprep.subr.mxu0 0.0
  %604 = vmatpush1.msra.mxu0 %v533
  %605 = vmatprep.mubr.f32.mxu0 %v21
  %606 = vmatmul.mubr.f32.gmra.mrb[0].mxu0 %v20
  %v607 = vpop.f32.mrb[0].mxu0
  %v608 = vadd.f32 %v539, %v607
  %v609 = vpop.f32.mrb[0].mxu0
  %610 = vmatprep.mubr.f32.mxu0 %v23
  %611 = vmatmul.mubr.f32.gmra.mrb[0].mxu0 %v22
  %v612 = vpop.f32.mrb[0].mxu0
  %v613 = vadd.f32 %v539, %v612
  %v614 = vpop.f32.mrb[0].mxu0
  %615 = vmatprep.mubr.f32.mxu0 %v25
  %616 = vmatmul.mubr.f32.gmra.mrb[0].mxu0 %v24
  %v617 = vpop.f32.mrb[0].mxu0
  %v618 = vadd.f32 %v539, %v617
  %v619 = vpop.f32.mrb[0].mxu0
  %620 = vmatprep.mubr.f32.mxu0 %v27
  %621 = vmatmul.mubr.f32.gmra.mrb[0].mxu0 %v26
  %v622 = vpop.f32.mrb[0].mxu0
  %v623 = vadd.f32 %v539, %v622
  %v624 = vpop.f32.mrb[0].mxu0
  %625 = vmatprep.mubr.f32.mxu0 %v29
  %626 = vmatmul.mubr.f32.gmra.mrb[0].mxu0 %v28
  %v627 = vpop.f32.mrb[0].mxu0
  %v628 = vadd.f32 %v539, %v627
  %v629 = vpop.f32.mrb[0].mxu0
  %630 = vmatprep.mubr.f32.mxu0 %v31
  %631 = vmatmul.mubr.f32.gmra.mrb[0].mxu0 %v30
  %v632 = vpop.f32.mrb[0].mxu0
  %v633 = vadd.f32 %v539, %v632
  %v634 = vpop.f32.mrb[0].mxu0
  %635 = vmatprep.mubr.f32.mxu0 %v33
  %636 = vmatmul.mubr.f32.gmra.mrb[0].mxu0 %v32
  %v637 = vpop.f32.mrb[0].mxu0
  %v638 = vadd.f32 %v539, %v637
  %v639 = vpop.f32.mrb[0].mxu0
  %640 = vmatprep.mubr.f32.mxu0 %v35
  %641 = vmatmul.mubr.f32.gmra.mrb[0].mxu0 %v34
  %v642 = vpop.f32.mrb[0].mxu0
  %v643 = vadd.f32 %v539, %v642
  %v644 = vpop.f32.mrb[0].mxu0
  %645 = vmatprep.mubr.f32.mxu0 %v37
  %646 = vmatmul.mubr.f32.gmra.mrb[0].mxu0 %v36
  %v647 = vpop.f32.mrb[0].mxu0
  %v648 = vadd.f32 %v539, %v647
  %v649 = vpop.f32.mrb[0].mxu0
  %650 = vmatprep.mubr.f32.mxu0 %v39
  %651 = vmatmul.mubr.f32.gmra.mrb[0].mxu0 %v38
  %v652 = vpop.f32.mrb[0].mxu0
  %v653 = vadd.f32 %v539, %v652
  %v654 = vpop.f32.mrb[0].mxu0
  %655 = vmatprep.mubr.f32.mxu0 %v41
  %656 = vmatmul.mubr.f32.gmra.mrb[0].mxu0 %v40
  %v657 = vpop.f32.mrb[0].mxu0
  %v658 = vadd.f32 %v539, %v657
  %v659 = vpop.f32.mrb[0].mxu0
  %660 = vmatprep.mubr.f32.mxu0 %v43
  %661 = vmatmul.mubr.f32.gmra.mrb[0].mxu0 %v42
  %v662 = vpop.f32.mrb[0].mxu0
  %v663 = vadd.f32 %v539, %v662
  %v664 = vpop.f32.mrb[0].mxu0
  %665 = vmatprep.mubr.f32.mxu0 %v45
  %666 = vmatmul.mubr.f32.gmra.mrb[0].mxu0 %v44
  %v667 = vpop.f32.mrb[0].mxu0
  %v668 = vadd.f32 %v539, %v667
  %v669 = vpop.f32.mrb[0].mxu0
  %670 = vmatprep.mubr.f32.mxu0 %v47
  %671 = vmatmul.mubr.f32.gmra.mrb[0].mxu0 %v46
  %v672 = vpop.f32.mrb[0].mxu0
  %v673 = vadd.f32 %v539, %v672
  %v674 = vpop.f32.mrb[0].mxu0
  %675 = vmatprep.mubr.f32.mxu0 %v49
  %676 = vmatmul.mubr.f32.gmra.mrb[0].mxu0 %v48
  %v677 = vpop.f32.mrb[0].mxu0
  %v678 = vadd.f32 %v539, %v677
  %v679 = vpop.f32.mrb[0].mxu0
  %680 = vmatprep.mubr.f32.mxu0 %v51
  %681 = vmatmul.mubr.f32.gmra.mrb[0].mxu0 %v50
  %v682 = vpop.f32.mrb[0].mxu0
  %v683 = vadd.f32 %v539, %v682
  %v684 = vpop.f32.mrb[0].mxu0
  %685 = vmatprep.mubr.f32.mxu0 %v53
  %686 = vmatmul.mubr.f32.gmra.mrb[0].mxu0 %v52
  %v687 = vpop.f32.mrb[0].mxu0
  %v688 = vadd.f32 %v539, %v687
  %v689 = vpop.f32.mrb[0].mxu0
  %690 = vmatprep.mubr.f32.mxu0 %v55
  %691 = vmatmul.mubr.f32.gmra.mrb[0].mxu0 %v54
  %v692 = vpop.f32.mrb[0].mxu0
  %v693 = vadd.f32 %v539, %v692
  %v694 = vpop.f32.mrb[0].mxu0
  %695 = vmatprep.mubr.f32.mxu0 %v57
  %696 = vmatmul.mubr.f32.gmra.mrb[0].mxu0 %v56
  %v697 = vpop.f32.mrb[0].mxu0
  %v698 = vadd.f32 %v539, %v697
  %v699 = vpop.f32.mrb[0].mxu0
  %700 = vmatprep.mubr.f32.mxu0 %v59
  %701 = vmatmul.mubr.f32.gmra.mrb[0].mxu0 %v58
  %v702 = vpop.f32.mrb[0].mxu0
  %v703 = vadd.f32 %v539, %v702
  %v704 = vpop.f32.mrb[0].mxu0
  %705 = vmatprep.mubr.f32.mxu0 %v61
  %706 = vmatmul.mubr.f32.gmra.mrb[0].mxu0 %v60
  %v707 = vpop.f32.mrb[0].mxu0
  %v708 = vadd.f32 %v539, %v707
  %v709 = vpop.f32.mrb[0].mxu0
  %710 = vmatprep.mubr.f32.mxu0 %v63
  %711 = vmatmul.mubr.f32.gmra.mrb[0].mxu0 %v62
  %v712 = vpop.f32.mrb[0].mxu0
  %v713 = vadd.f32 %v539, %v712
  %v714 = vpop.f32.mrb[0].mxu0
  %715 = vmatprep.mubr.f32.mxu0 %v65
  %716 = vmatmul.mubr.f32.gmra.mrb[0].mxu0 %v64
  %v717 = vpop.f32.mrb[0].mxu0
  %v718 = vadd.f32 %v539, %v717
  %v719 = vpop.f32.mrb[0].mxu0
  %720 = vmatprep.mubr.f32.mxu0 %v67
  %721 = vmatmul.mubr.f32.gmra.mrb[0].mxu0 %v66
  %v722 = vpop.f32.mrb[0].mxu0
  %v723 = vadd.f32 %v539, %v722
  %v724 = vpop.f32.mrb[0].mxu0
  %725 = vmatprep.mubr.f32.mxu0 %v69
  %726 = vmatmul.mubr.f32.gmra.mrb[0].mxu0 %v68
  %v727 = vpop.f32.mrb[0].mxu0
  %v728 = vadd.f32 %v539, %v727
  %v729 = vpop.f32.mrb[0].mxu0
  %730 = vmatprep.mubr.f32.mxu0 %v71
  %731 = vmatmul.mubr.f32.gmra.mrb[0].mxu0 %v70
  %v732 = vpop.f32.mrb[0].mxu0
  %v733 = vadd.f32 %v539, %v732
  %v734 = vpop.f32.mrb[0].mxu0
  %735 = vmatprep.mubr.f32.mxu0 %v73
  %736 = vmatmul.mubr.f32.gmra.mrb[0].mxu0 %v72
  %v737 = vpop.f32.mrb[0].mxu0
  %v738 = vadd.f32 %v539, %v737
  %v739 = vpop.f32.mrb[0].mxu0
  %740 = vmatprep.mubr.f32.mxu0 %v75
  %741 = vmatmul.mubr.f32.gmra.mrb[0].mxu0 %v74
  %v742 = vpop.f32.mrb[0].mxu0
  %v743 = vadd.f32 %v539, %v742
  %v744 = vpop.f32.mrb[0].mxu0
  %745 = vmatprep.mubr.f32.mxu0 %v77
  %746 = vmatmul.mubr.f32.gmra.mrb[0].mxu0 %v76
  %v747 = vpop.f32.mrb[0].mxu0
  %v748 = vadd.f32 %v539, %v747
  %v749 = vpop.f32.mrb[0].mxu0
  %750 = vmatprep.mubr.f32.mxu0 %v79
  %751 = vmatmul.mubr.f32.gmra.mrb[0].mxu0 %v78
  %v752 = vpop.f32.mrb[0].mxu0
  %v753 = vadd.f32 %v539, %v752
  %v754 = vpop.f32.mrb[0].mxu0
  %755 = vmatprep.mubr.f32.mxu0 %v81
  %756 = vmatmul.mubr.f32.gmra.mrb[0].mxu0 %v80
  %v757 = vpop.f32.mrb[0].mxu0
  %v758 = vadd.f32 %v539, %v757
  %v759 = vpop.f32.mrb[0].mxu0
  %760 = vmatprep.mubr.f32.mxu0 %v83
  %761 = vmatmul.mubr.f32.gmra.mrb[0].mxu0 %v82
  %v762 = vpop.f32.mrb[0].mxu0
  %v763 = vadd.f32 %v539, %v762
  %v764 = vpop.f32.mrb[0].mxu0
  %765 = vmatprep.mubr.f32.mxu0 %v85
  %766 = vmatmul.mubr.f32.gmra.mrb[0].mxu0 %v84
  %v767 = vpop.f32.mrb[0].mxu0
  %v768 = vadd.f32 %v539, %v767
  %v769 = vpop.f32.mrb[0].mxu0
  %770 = vmatprep.mubr.f32.mxu0 %v87
  %771 = vmatmul.mubr.f32.gmra.mrb[0].mxu0 %v86
  %v772 = vpop.f32.mrb[0].mxu0
  %v773 = vadd.f32 %v539, %v772
  %v774 = vpop.f32.mrb[0].mxu0
  %775 = vmatprep.mubr.f32.mxu0 %v89
  %776 = vmatmul.mubr.f32.gmra.mrb[0].mxu0 %v88
  %v777 = vpop.f32.mrb[0].mxu0
  %v778 = vadd.f32 %v539, %v777
  %v779 = vpop.f32.mrb[0].mxu0
  %780 = vmatprep.mubr.f32.mxu0 %v91
  %781 = vmatmul.mubr.f32.gmra.mrb[0].mxu0 %v90
  %v782 = vpop.f32.mrb[0].mxu0
  %v783 = vadd.f32 %v539, %v782
  %v784 = vpop.f32.mrb[0].mxu0
  %785 = vmatprep.mubr.f32.mxu0 %v93
  %786 = vmatmul.mubr.f32.gmra.mrb[0].mxu0 %v92
  %v787 = vpop.f32.mrb[0].mxu0
  %v788 = vadd.f32 %v539, %v787
  %v789 = vpop.f32.mrb[0].mxu0
  %790 = vmatprep.mubr.f32.mxu0 %v95
  %791 = vmatmul.mubr.f32.gmra.mrb[0].mxu0 %v94
  %v792 = vpop.f32.mrb[0].mxu0
  %v793 = vadd.f32 %v539, %v792
  %v794 = vpop.f32.mrb[0].mxu0
  %795 = vmatprep.mubr.f32.mxu0 %v97
  %796 = vmatmul.mubr.f32.gmra.mrb[0].mxu0 %v96
  %v797 = vpop.f32.mrb[0].mxu0
  %v798 = vadd.f32 %v539, %v797
  %v799 = vpop.f32.mrb[0].mxu0
  %800 = vmatprep.mubr.f32.mxu0 %v99
  %801 = vmatmul.mubr.f32.gmra.mrb[0].mxu0 %v98
  %v802 = vpop.f32.mrb[0].mxu0
  %v803 = vadd.f32 %v539, %v802
  %v804 = vpop.f32.mrb[0].mxu0
  %805 = vmatprep.mubr.f32.mxu0 %v101
  %806 = vmatmul.mubr.f32.gmra.mrb[0].mxu0 %v100
  %v807 = vpop.f32.mrb[0].mxu0
  %v808 = vadd.f32 %v539, %v807
  %v809 = vpop.f32.mrb[0].mxu0
  %810 = vmatprep.mubr.f32.mxu0 %v103
  %811 = vmatmul.mubr.f32.gmra.mrb[0].mxu0 %v102
  %v812 = vpop.f32.mrb[0].mxu0
  %v813 = vadd.f32 %v539, %v812
  %v814 = vpop.f32.mrb[0].mxu0
  %815 = vmatprep.mubr.f32.mxu0 %v105
  %816 = vmatmul.mubr.f32.gmra.mrb[0].mxu0 %v104
  %v817 = vpop.f32.mrb[0].mxu0
  %v818 = vadd.f32 %v539, %v817
  %v819 = vpop.f32.mrb[0].mxu0
  %820 = vmatprep.mubr.f32.mxu0 %v107
  %821 = vmatmul.mubr.f32.gmra.mrb[0].mxu0 %v106
  %v822 = vpop.f32.mrb[0].mxu0
  %v823 = vadd.f32 %v539, %v822
  %v824 = vpop.f32.mrb[0].mxu0
  %825 = vmatprep.mubr.f32.mxu0 %v109
  %826 = vmatmul.mubr.f32.gmra.mrb[0].mxu0 %v108
  %v827 = vpop.f32.mrb[0].mxu0
  %v828 = vadd.f32 %v539, %v827
  %v829 = vpop.f32.mrb[0].mxu0
  %830 = vmatprep.mubr.f32.mxu0 %v111
  %831 = vmatmul.mubr.f32.gmra.mrb[0].mxu0 %v110
  %v832 = vpop.f32.mrb[0].mxu0
  %v833 = vadd.f32 %v539, %v832
  %v834 = vpop.f32.mrb[0].mxu0
  %835 = vmatprep.mubr.f32.mxu0 %v113
  %836 = vmatmul.mubr.f32.gmra.mrb[0].mxu0 %v112
  %v837 = vpop.f32.mrb[0].mxu0
  %v838 = vadd.f32 %v539, %v837
  %v839 = vpop.f32.mrb[0].mxu0
  %840 = vmatprep.mubr.f32.mxu0 %v115
  %841 = vmatmul.mubr.f32.gmra.mrb[0].mxu0 %v114
  %v842 = vpop.f32.mrb[0].mxu0
  %v843 = vadd.f32 %v539, %v842
  %v844 = vpop.f32.mrb[0].mxu0
  %845 = vmatprep.mubr.f32.mxu0 %v117
  %846 = vmatmul.mubr.f32.gmra.mrb[0].mxu0 %v116
  %v847 = vpop.f32.mrb[0].mxu0
  %v848 = vadd.f32 %v539, %v847
  %v849 = vpop.f32.mrb[0].mxu0
  %850 = vmatprep.mubr.f32.mxu0 %v119
  %851 = vmatmul.mubr.f32.gmra.mrb[0].mxu0 %v118
  %v852 = vpop.f32.mrb[0].mxu0
  %v853 = vadd.f32 %v539, %v852
  %v854 = vpop.f32.mrb[0].mxu0
  %855 = vmatprep.mubr.f32.mxu0 %v121
  %856 = vmatmul.mubr.f32.gmra.mrb[0].mxu0 %v120
  %v857 = vpop.f32.mrb[0].mxu0
  %v858 = vadd.f32 %v539, %v857
  %v859 = vpop.f32.mrb[0].mxu0
  %860 = vmatprep.mubr.f32.mxu0 %v123
  %861 = vmatmul.mubr.f32.gmra.mrb[0].mxu0 %v122
  %v862 = vpop.f32.mrb[0].mxu0
  %v863 = vadd.f32 %v539, %v862
  %v864 = vpop.f32.mrb[0].mxu0
  %865 = vmatprep.mubr.f32.mxu0 %v125
  %866 = vmatmul.mubr.f32.gmra.mrb[0].mxu0 %v124
  %v867 = vpop.f32.mrb[0].mxu0
  %v868 = vadd.f32 %v539, %v867
  %v869 = vpop.f32.mrb[0].mxu0
  %870 = vmatprep.mubr.f32.mxu0 %v127
  %871 = vmatmul.mubr.f32.gmra.mrb[0].mxu0 %v126
  %v872 = vpop.f32.mrb[0].mxu0
  %v873 = vadd.f32 %v539, %v872
  %v874 = vpop.f32.mrb[0].mxu0
  %875 = vmatprep.mubr.f32.mxu0 %v129
  %876 = vmatmul.mubr.f32.gmra.mrb[0].mxu0 %v128
  %v877 = vpop.f32.mrb[0].mxu0
  %v878 = vadd.f32 %v539, %v877
  %v879 = vpop.f32.mrb[0].mxu0
  %880 = vmatprep.mubr.f32.mxu0 %v131
  %881 = vmatmul.mubr.f32.gmra.mrb[0].mxu0 %v130
  %v882 = vpop.f32.mrb[0].mxu0
  %v883 = vadd.f32 %v539, %v882
  %v884 = vpop.f32.mrb[0].mxu0
  %885 = vmatprep.mubr.f32.mxu0 %v133
  %886 = vmatmul.mubr.f32.gmra.mrb[0].mxu0 %v132
  %v887 = vpop.f32.mrb[0].mxu0
  %v888 = vadd.f32 %v539, %v887
  %v889 = vpop.f32.mrb[0].mxu0
  %890 = vmatprep.mubr.f32.mxu0 %v135
  %891 = vmatmul.mubr.f32.gmra.mrb[0].mxu0 %v134
  %v892 = vpop.f32.mrb[0].mxu0
  %v893 = vadd.f32 %v539, %v892
  %v894 = vpop.f32.mrb[0].mxu0
  %895 = vmatprep.mubr.f32.mxu0 %v137
  %896 = vmatmul.mubr.f32.gmra.mrb[0].mxu0 %v136
  %v897 = vpop.f32.mrb[0].mxu0
  %v898 = vadd.f32 %v539, %v897
  %v899 = vpop.f32.mrb[0].mxu0
  %900 = vmatprep.mubr.f32.mxu0 %v139
  %901 = vmatmul.mubr.f32.gmra.mrb[0].mxu0 %v138
  %v902 = vpop.f32.mrb[0].mxu0
  %v903 = vadd.f32 %v539, %v902
  %v904 = vpop.f32.mrb[0].mxu0
  %905 = vmatprep.mubr.f32.mxu0 %v141
  %906 = vmatmul.mubr.f32.gmra.mrb[0].mxu0 %v140
  %v907 = vpop.f32.mrb[0].mxu0
  %v908 = vadd.f32 %v539, %v907
  %v909 = vpop.f32.mrb[0].mxu0
  %910 = vmatprep.mubr.f32.mxu0 %v143
  %911 = vmatmul.mubr.f32.gmra.mrb[0].mxu0 %v142
  %v912 = vpop.f32.mrb[0].mxu0
  %v913 = vadd.f32 %v539, %v912
  %v914 = vpop.f32.mrb[0].mxu0
  %915 = vmatprep.mubr.f32.mxu0 %v145
  %916 = vmatmul.mubr.f32.gmra.mrb[0].mxu0 %v144
  %v917 = vpop.f32.mrb[0].mxu0
  %v918 = vadd.f32 %v539, %v917
  %v919 = vpop.f32.mrb[0].mxu0
  %920 = vmatprep.mubr.f32.mxu0 %v147
  %921 = vmatmul.mubr.f32.gmra.mrb[0].mxu0 %v146
  %v922 = vpop.f32.mrb[0].mxu0
  %v923 = vadd.f32 %v539, %v922
  %v924 = vpop.f32.mrb[0].mxu0
  %925 = vmatprep.mubr.f32.mxu0 %v149
  %926 = vmatmul.mubr.f32.gmra.mrb[0].mxu0 %v148
  %v927 = vpop.f32.mrb[0].mxu0
  %v928 = vadd.f32 %v539, %v927
  %v929 = vpop.f32.mrb[0].mxu0
  %930 = vmatprep.mubr.f32.mxu0 %v151
  %931 = vmatmul.mubr.f32.gmra.mrb[0].mxu0 %v150
  %v932 = vpop.f32.mrb[0].mxu0
  %v933 = vadd.f32 %v539, %v932
  %v934 = vpop.f32.mrb[0].mxu0
  %935 = vmatprep.mubr.f32.mxu0 %v153
  %936 = vmatmul.mubr.f32.gmra.mrb[0].mxu0 %v152
  %v937 = vpop.f32.mrb[0].mxu0
  %v938 = vadd.f32 %v539, %v937
  %v939 = vpop.f32.mrb[0].mxu0
  %940 = vmatprep.mubr.f32.mxu0 %v155
  %941 = vmatmul.mubr.f32.gmra.mrb[0].mxu0 %v154
  %v942 = vpop.f32.mrb[0].mxu0
  %v943 = vadd.f32 %v539, %v942
  %v944 = vpop.f32.mrb[0].mxu0
  %945 = vmatprep.mubr.f32.mxu0 %v157
  %946 = vmatmul.mubr.f32.gmra.mrb[0].mxu0 %v156
  %v947 = vpop.f32.mrb[0].mxu0
  %v948 = vadd.f32 %v539, %v947
  %v949 = vpop.f32.mrb[0].mxu0
  %950 = vmatprep.mubr.f32.mxu0 %v159
  %951 = vmatmul.mubr.f32.gmra.mrb[0].mxu0 %v158
  %v952 = vpop.f32.mrb[0].mxu0
  %v953 = vadd.f32 %v539, %v952
  %v954 = vpop.f32.mrb[0].mxu0
  %955 = vmatprep.mubr.f32.mxu0 %v161
  %956 = vmatmul.mubr.f32.gmra.mrb[0].mxu0 %v160
  %v957 = vpop.f32.mrb[0].mxu0
  %v958 = vadd.f32 %v539, %v957
  %v959 = vpop.f32.mrb[0].mxu0
  %960 = vmatprep.mubr.f32.mxu0 %v163
  %961 = vmatmul.mubr.f32.gmra.mrb[0].mxu0 %v162
  %v962 = vpop.f32.mrb[0].mxu0
  %v963 = vadd.f32 %v539, %v962
  %v964 = vpop.f32.mrb[0].mxu0
  %965 = vmatprep.mubr.f32.mxu0 %v165
  %966 = vmatmul.mubr.f32.gmra.mrb[0].mxu0 %v164
  %v967 = vpop.f32.mrb[0].mxu0
  %v968 = vadd.f32 %v539, %v967
  %v969 = vpop.f32.mrb[0].mxu0
  %970 = vmatprep.mubr.f32.mxu0 %v167
  %971 = vmatmul.mubr.f32.gmra.mrb[0].mxu0 %v166
  %v972 = vpop.f32.mrb[0].mxu0
  %v973 = vadd.f32 %v539, %v972
  %v974 = vpop.f32.mrb[0].mxu0
  %975 = vmatprep.mubr.f32.mxu0 %v169
  %976 = vmatmul.mubr.f32.gmra.mrb[0].mxu0 %v168
  %v977 = vpop.f32.mrb[0].mxu0
  %v978 = vadd.f32 %v539, %v977
  %v979 = vpop.f32.mrb[0].mxu0
  %980 = vmatprep.mubr.f32.mxu0 %v171
  %981 = vmatmul.mubr.f32.gmra.mrb[0].mxu0 %v170
  %v982 = vpop.f32.mrb[0].mxu0
  %v983 = vadd.f32 %v539, %v982
  %v984 = vpop.f32.mrb[0].mxu0
  %985 = vmatprep.mubr.f32.mxu0 %v173
  %986 = vmatmul.mubr.f32.gmra.mrb[0].mxu0 %v172
  %v987 = vpop.f32.mrb[0].mxu0
  %v988 = vadd.f32 %v539, %v987
  %v989 = vpop.f32.mrb[0].mxu0
  %990 = vmatprep.mubr.f32.mxu0 %v175
  %991 = vmatmul.mubr.f32.gmra.mrb[0].mxu0 %v174
  %v992 = vpop.f32.mrb[0].mxu0
  %v993 = vadd.f32 %v539, %v992
  %v994 = vpop.f32.mrb[0].mxu0
  %995 = vmatprep.mubr.f32.mxu0 %v177
  %996 = vmatmul.mubr.f32.gmra.mrb[0].mxu0 %v176
  %v997 = vpop.f32.mrb[0].mxu0
  %v998 = vadd.f32 %v539, %v997
  %v999 = vpop.f32.mrb[0].mxu0
  %1000 = vmatprep.mubr.f32.mxu0 %v179
  %1001 = vmatmul.mubr.f32.gmra.mrb[0].mxu0 %v178
  %v1002 = vpop.f32.mrb[0].mxu0
  %v1003 = vadd.f32 %v539, %v1002
  %v1004 = vpop.f32.mrb[0].mxu0
  %1005 = vmatprep.mubr.f32.mxu0 %v181
  %1006 = vmatmul.mubr.f32.gmra.mrb[0].mxu0 %v180
  %v1007 = vpop.f32.mrb[0].mxu0
  %v1008 = vadd.f32 %v539, %v1007
  %v1009 = vpop.f32.mrb[0].mxu0
  %1010 = vmatprep.mubr.f32.mxu0 %v183
  %1011 = vmatmul.mubr.f32.gmra.mrb[0].mxu0 %v182
  %v1012 = vpop.f32.mrb[0].mxu0
  %v1013 = vadd.f32 %v539, %v1012
  %v1014 = vpop.f32.mrb[0].mxu0
  %1015 = vmatprep.mubr.f32.mxu0 %v185
  %1016 = vmatmul.mubr.f32.gmra.mrb[0].mxu0 %v184
  %v1017 = vpop.f32.mrb[0].mxu0
  %v1018 = vadd.f32 %v539, %v1017
  %v1019 = vpop.f32.mrb[0].mxu0
  %1020 = vmatprep.mubr.f32.mxu0 %v187
  %1021 = vmatmul.mubr.f32.gmra.mrb[0].mxu0 %v186
  %v1022 = vpop.f32.mrb[0].mxu0
  %v1023 = vadd.f32 %v539, %v1022
  %v1024 = vpop.f32.mrb[0].mxu0
  %1025 = vmatprep.mubr.f32.mxu0 %v189
  %1026 = vmatmul.mubr.f32.gmra.mrb[0].mxu0 %v188
  %v1027 = vpop.f32.mrb[0].mxu0
  %v1028 = vadd.f32 %v539, %v1027
  %v1029 = vpop.f32.mrb[0].mxu0
  %1030 = vmatprep.mubr.f32.mxu0 %v191
  %1031 = vmatmul.mubr.f32.gmra.mrb[0].mxu0 %v190
  %v1032 = vpop.f32.mrb[0].mxu0
  %v1033 = vadd.f32 %v539, %v1032
  %v1034 = vpop.f32.mrb[0].mxu0
  %1035 = vmatprep.mubr.f32.mxu0 %v193
  %1036 = vmatmul.mubr.f32.gmra.mrb[0].mxu0 %v192
  %v1037 = vpop.f32.mrb[0].mxu0
  %v1038 = vadd.f32 %v539, %v1037
  %v1039 = vpop.f32.mrb[0].mxu0
  %1040 = vmatprep.mubr.f32.mxu0 %v195
  %1041 = vmatmul.mubr.f32.gmra.mrb[0].mxu0 %v194
  %v1042 = vpop.f32.mrb[0].mxu0
  %v1043 = vadd.f32 %v539, %v1042
  %v1044 = vpop.f32.mrb[0].mxu0
  %1045 = vmatprep.mubr.f32.mxu0 %v197
  %1046 = vmatmul.mubr.f32.gmra.mrb[0].mxu0 %v196
  %v1047 = vpop.f32.mrb[0].mxu0
  %v1048 = vadd.f32 %v539, %v1047
  %v1049 = vpop.f32.mrb[0].mxu0
  %1050 = vmatprep.mubr.f32.mxu0 %v199
  %1051 = vmatmul.mubr.f32.gmra.mrb[0].mxu0 %v198
  %v1052 = vpop.f32.mrb[0].mxu0
  %v1053 = vadd.f32 %v539, %v1052
  %v1054 = vpop.f32.mrb[0].mxu0
  %1055 = vmatprep.mubr.f32.mxu0 %v201
  %1056 = vmatmul.mubr.f32.gmra.mrb[0].mxu0 %v200
  %v1057 = vpop.f32.mrb[0].mxu0
  %v1058 = vadd.f32 %v539, %v1057
  %v1059 = vpop.f32.mrb[0].mxu0
  %1060 = vmatprep.mubr.f32.mxu0 %v203
  %1061 = vmatmul.mubr.f32.gmra.mrb[0].mxu0 %v202
  %v1062 = vpop.f32.mrb[0].mxu0
  %v1063 = vadd.f32 %v539, %v1062
  %v1064 = vpop.f32.mrb[0].mxu0
  %1065 = vmatprep.mubr.f32.mxu0 %v205
  %1066 = vmatmul.mubr.f32.gmra.mrb[0].mxu0 %v204
  %v1067 = vpop.f32.mrb[0].mxu0
  %v1068 = vadd.f32 %v539, %v1067
  %v1069 = vpop.f32.mrb[0].mxu0
  %1070 = vmatprep.mubr.f32.mxu0 %v207
  %1071 = vmatmul.mubr.f32.gmra.mrb[0].mxu0 %v206
  %v1072 = vpop.f32.mrb[0].mxu0
  %v1073 = vadd.f32 %v539, %v1072
  %v1074 = vpop.f32.mrb[0].mxu0
  %1075 = vmatprep.mubr.f32.mxu0 %v209
  %1076 = vmatmul.mubr.f32.gmra.mrb[0].mxu0 %v208
  %v1077 = vpop.f32.mrb[0].mxu0
  %v1078 = vadd.f32 %v539, %v1077
  %v1079 = vpop.f32.mrb[0].mxu0
  %1080 = vmatprep.mubr.f32.mxu0 %v211
  %1081 = vmatmul.mubr.f32.gmra.mrb[0].mxu0 %v210
  %v1082 = vpop.f32.mrb[0].mxu0
  %v1083 = vadd.f32 %v539, %v1082
  %v1084 = vpop.f32.mrb[0].mxu0
  %1085 = vmatprep.mubr.f32.mxu0 %v213
  %1086 = vmatmul.mubr.f32.gmra.mrb[0].mxu0 %v212
  %v1087 = vpop.f32.mrb[0].mxu0
  %v1088 = vadd.f32 %v539, %v1087
  %v1089 = vpop.f32.mrb[0].mxu0
  %1090 = vmatprep.mubr.f32.mxu0 %v215
  %1091 = vmatmul.mubr.f32.gmra.mrb[0].mxu0 %v214
  %v1092 = vpop.f32.mrb[0].mxu0
  %v1093 = vadd.f32 %v539, %v1092
  %v1094 = vpop.f32.mrb[0].mxu0
  %1095 = vmatprep.mubr.f32.mxu0 %v217
  %1096 = vmatmul.mubr.f32.gmra.mrb[0].mxu0 %v216
  %v1097 = vpop.f32.mrb[0].mxu0
  %v1098 = vadd.f32 %v539, %v1097
  %v1099 = vpop.f32.mrb[0].mxu0
  %1100 = vmatprep.mubr.f32.mxu0 %v219
  %1101 = vmatmul.mubr.f32.gmra.mrb[0].mxu0 %v218
  %v1102 = vpop.f32.mrb[0].mxu0
  %v1103 = vadd.f32 %v539, %v1102
  %v1104 = vpop.f32.mrb[0].mxu0
  %1105 = vmatprep.mubr.f32.mxu0 %v221
  %1106 = vmatmul.mubr.f32.gmra.mrb[0].mxu0 %v220
  %v1107 = vpop.f32.mrb[0].mxu0
  %v1108 = vadd.f32 %v539, %v1107
  %v1109 = vpop.f32.mrb[0].mxu0
  %1110 = vmatprep.mubr.f32.mxu0 %v223
  %1111 = vmatmul.mubr.f32.gmra.mrb[0].mxu0 %v222
  %v1112 = vpop.f32.mrb[0].mxu0
  %v1113 = vadd.f32 %v539, %v1112
  %v1114 = vpop.f32.mrb[0].mxu0
  %1115 = vmatprep.mubr.f32.mxu0 %v225
  %1116 = vmatmul.mubr.f32.gmra.mrb[0].mxu0 %v224
  %v1117 = vpop.f32.mrb[0].mxu0
  %v1118 = vadd.f32 %v539, %v1117
  %v1119 = vpop.f32.mrb[0].mxu0
  %1120 = vmatprep.mubr.f32.mxu0 %v227
  %1121 = vmatmul.mubr.f32.gmra.mrb[0].mxu0 %v226
  %v1122 = vpop.f32.mrb[0].mxu0
  %v1123 = vadd.f32 %v539, %v1122
  %v1124 = vpop.f32.mrb[0].mxu0
  %1125 = vmatprep.mubr.f32.mxu0 %v229
  %1126 = vmatmul.mubr.f32.gmra.mrb[0].mxu0 %v228
  %v1127 = vpop.f32.mrb[0].mxu0
  %v1128 = vadd.f32 %v539, %v1127
  %v1129 = vpop.f32.mrb[0].mxu0
  %1130 = vmatprep.mubr.f32.mxu0 %v231
  %1131 = vmatmul.mubr.f32.gmra.mrb[0].mxu0 %v230
  %v1132 = vpop.f32.mrb[0].mxu0
  %v1133 = vadd.f32 %v539, %v1132
  %v1134 = vpop.f32.mrb[0].mxu0
  %1135 = vmatprep.mubr.f32.mxu0 %v233
  %1136 = vmatmul.mubr.f32.gmra.mrb[0].mxu0 %v232
  %v1137 = vpop.f32.mrb[0].mxu0
  %v1138 = vadd.f32 %v539, %v1137
  %v1139 = vpop.f32.mrb[0].mxu0
  %1140 = vmatprep.mubr.f32.mxu0 %v235
  %1141 = vmatmul.mubr.f32.gmra.mrb[0].mxu0 %v234
  %v1142 = vpop.f32.mrb[0].mxu0
  %v1143 = vadd.f32 %v539, %v1142
  %v1144 = vpop.f32.mrb[0].mxu0
  %1145 = vmatprep.mubr.f32.mxu0 %v237
  %1146 = vmatmul.mubr.f32.gmra.mrb[0].mxu0 %v236
  %v1147 = vpop.f32.mrb[0].mxu0
  %v1148 = vadd.f32 %v539, %v1147
  %v1149 = vpop.f32.mrb[0].mxu0
  %1150 = vmatprep.mubr.f32.mxu0 %v239
  %1151 = vmatmul.mubr.f32.gmra.mrb[0].mxu0 %v238
  %v1152 = vpop.f32.mrb[0].mxu0
  %v1153 = vadd.f32 %v539, %v1152
  %v1154 = vpop.f32.mrb[0].mxu0
  %1155 = vmatprep.mubr.f32.mxu0 %v241
  %1156 = vmatmul.mubr.f32.gmra.mrb[0].mxu0 %v240
  %v1157 = vpop.f32.mrb[0].mxu0
  %v1158 = vadd.f32 %v539, %v1157
  %v1159 = vpop.f32.mrb[0].mxu0
  %1160 = vmatprep.mubr.f32.mxu0 %v243
  %1161 = vmatmul.mubr.f32.gmra.mrb[0].mxu0 %v242
  %v1162 = vpop.f32.mrb[0].mxu0
  %v1163 = vadd.f32 %v539, %v1162
  %v1164 = vpop.f32.mrb[0].mxu0
  %1165 = vmatprep.mubr.f32.mxu0 %v245
  %1166 = vmatmul.mubr.f32.gmra.mrb[0].mxu0 %v244
  %v1167 = vpop.f32.mrb[0].mxu0
  %v1168 = vadd.f32 %v539, %v1167
  %v1169 = vpop.f32.mrb[0].mxu0
  %1170 = vmatprep.mubr.f32.mxu0 %v247
  %1171 = vmatmul.mubr.f32.gmra.mrb[0].mxu0 %v246
  %v1172 = vpop.f32.mrb[0].mxu0
  %v1173 = vadd.f32 %v539, %v1172
  %v1174 = vpop.f32.mrb[0].mxu0
  %1175 = vmatprep.mubr.f32.mxu0 %v249
  %1176 = vmatmul.mubr.f32.gmra.mrb[0].mxu0 %v248
  %v1177 = vpop.f32.mrb[0].mxu0
  %v1178 = vadd.f32 %v539, %v1177
  %v1179 = vpop.f32.mrb[0].mxu0
  %1180 = vmatprep.mubr.f32.mxu0 %v251
  %1181 = vmatmul.mubr.f32.gmra.mrb[0].mxu0 %v250
  %v1182 = vpop.f32.mrb[0].mxu0
  %v1183 = vadd.f32 %v539, %v1182
  %v1184 = vpop.f32.mrb[0].mxu0
  %1185 = vmatprep.mubr.f32.mxu0 %v253
  %1186 = vmatmul.mubr.f32.gmra.mrb[0].mxu0 %v252
  %v1187 = vpop.f32.mrb[0].mxu0
  %v1188 = vadd.f32 %v539, %v1187
  %v1189 = vpop.f32.mrb[0].mxu0
  %1190 = vmatprep.mubr.f32.mxu0 %v255
  %1191 = vmatmul.mubr.f32.gmra.mrb[0].mxu0 %v254
  %v1192 = vpop.f32.mrb[0].mxu0
  %v1193 = vadd.f32 %v539, %v1192
  %v1194 = vpop.f32.mrb[0].mxu0
  %1195 = vmatprep.mubr.f32.mxu0 %v257
  %1196 = vmatmul.mubr.f32.gmra.mrb[0].mxu0 %v256
  %v1197 = vpop.f32.mrb[0].mxu0
  %v1198 = vadd.f32 %v539, %v1197
  %v1199 = vpop.f32.mrb[0].mxu0
  %1200 = vmatprep.mubr.f32.mxu0 %v259
  %1201 = vmatmul.mubr.f32.gmra.mrb[0].mxu0 %v258
  %v1202 = vpop.f32.mrb[0].mxu0
  %v1203 = vadd.f32 %v539, %v1202
  %v1204 = vpop.f32.mrb[0].mxu0
  %1205 = vmatprep.mubr.f32.mxu0 %v261
  %1206 = vmatmul.mubr.f32.gmra.mrb[0].mxu0 %v260
  %v1207 = vpop.f32.mrb[0].mxu0
  %v1208 = vadd.f32 %v539, %v1207
  %v1209 = vpop.f32.mrb[0].mxu0
  %1210 = vmatprep.mubr.f32.mxu0 %v263
  %1211 = vmatmul.mubr.f32.gmra.mrb[0].mxu0 %v262
  %v1212 = vpop.f32.mrb[0].mxu0
  %v1213 = vadd.f32 %v539, %v1212
  %v1214 = vpop.f32.mrb[0].mxu0
  %1215 = vmatprep.mubr.f32.mxu0 %v265
  %1216 = vmatmul.mubr.f32.gmra.mrb[0].mxu0 %v264
  %v1217 = vpop.f32.mrb[0].mxu0
  %v1218 = vadd.f32 %v539, %v1217
  %v1219 = vpop.f32.mrb[0].mxu0
  %1220 = vmatprep.mubr.f32.mxu0 %v267
  %1221 = vmatmul.mubr.f32.gmra.mrb[0].mxu0 %v266
  %v1222 = vpop.f32.mrb[0].mxu0
  %v1223 = vadd.f32 %v539, %v1222
  %v1224 = vpop.f32.mrb[0].mxu0
  %1225 = vmatprep.mubr.f32.mxu0 %v269
  %1226 = vmatmul.mubr.f32.gmra.mrb[0].mxu0 %v268
  %v1227 = vpop.f32.mrb[0].mxu0
  %v1228 = vadd.f32 %v539, %v1227
  %v1229 = vpop.f32.mrb[0].mxu0
  %1230 = vmatprep.mubr.f32.mxu0 %v271
  %1231 = vmatmul.mubr.f32.gmra.mrb[0].mxu0 %v270
  %v1232 = vpop.f32.mrb[0].mxu0
  %v1233 = vadd.f32 %v539, %v1232
  %v1234 = vpop.f32.mrb[0].mxu0
  %1235 = vmatprep.mubr.f32.mxu0 %v273
  %1236 = vmatmul.mubr.f32.gmra.mrb[0].mxu0 %v272
  %v1237 = vpop.f32.mrb[0].mxu0
  %v1238 = vadd.f32 %v539, %v1237
  %v1239 = vpop.f32.mrb[0].mxu0
  %1240 = vmatprep.mubr.f32.mxu0 %v275
  %1241 = vmatmul.mubr.f32.gmra.mrb[0].mxu0 %v274
  %v1242 = vpop.f32.mrb[0].mxu0
  %v1243 = vadd.f32 %v539, %v1242
  %v1244 = vpop.f32.mrb[0].mxu0
  %1245 = vmatprep.mubr.f32.mxu0 %v277
  %1246 = vmatmul.mubr.f32.gmra.mrb[0].mxu0 %v276
  %v1247 = vpop.f32.mrb[0].mxu0
  %v1248 = vadd.f32 %v539, %v1247
  %v1249 = vpop.f32.mrb[0].mxu0
  %1250 = vmatprep.mubr.f32.mxu0 %v279
  %1251 = vmatmul.mubr.f32.gmra.mrb[0].mxu0 %v278
  %v1252 = vpop.f32.mrb[0].mxu0
  %v1253 = vadd.f32 %v539, %v1252
  %v1254 = vpop.f32.mrb[0].mxu0
  %1255 = vmatprep.mubr.f32.mxu0 %v281
  %1256 = vmatmul.mubr.f32.gmra.mrb[0].mxu0 %v280
  %v1257 = vpop.f32.mrb[0].mxu0
  %v1258 = vadd.f32 %v539, %v1257
  %v1259 = vpop.f32.mrb[0].mxu0
  %1260 = vmatprep.mubr.f32.mxu0 %v283
  %1261 = vmatmul.mubr.f32.gmra.mrb[0].mxu0 %v282
  %v1262 = vpop.f32.mrb[0].mxu0
  %v1263 = vadd.f32 %v539, %v1262
  %v1264 = vpop.f32.mrb[0].mxu0
  %1265 = vmatprep.mubr.f32.mxu0 %v285
  %1266 = vmatmul.mubr.f32.gmra.mrb[0].mxu0 %v284
  %v1267 = vpop.f32.mrb[0].mxu0
  %v1268 = vadd.f32 %v539, %v1267
  %v1269 = vpop.f32.mrb[0].mxu0
  %1270 = vmatprep.mubr.f32.mxu0 %v287
  %1271 = vmatmul.mubr.f32.gmra.mrb[0].mxu0 %v286
  %v1272 = vpop.f32.mrb[0].mxu0
  %v1273 = vadd.f32 %v539, %v1272
  %v1274 = vpop.f32.mrb[0].mxu0
  %1275 = vmatprep.mubr.f32.mxu0 %v289
  %1276 = vmatmul.mubr.f32.gmra.mrb[0].mxu0 %v288
  %v1277 = vpop.f32.mrb[0].mxu0
  %v1278 = vadd.f32 %v539, %v1277
  %v1279 = vpop.f32.mrb[0].mxu0
  %1280 = vmatprep.mubr.f32.mxu0 %v291
  %1281 = vmatmul.mubr.f32.gmra.mrb[0].mxu0 %v290
  %v1282 = vpop.f32.mrb[0].mxu0
  %v1283 = vadd.f32 %v539, %v1282
  %v1284 = vpop.f32.mrb[0].mxu0
  %1285 = vmatprep.mubr.f32.mxu0 %v293
  %1286 = vmatmul.mubr.f32.gmra.mrb[0].mxu0 %v292
  %v1287 = vpop.f32.mrb[0].mxu0
  %v1288 = vadd.f32 %v539, %v1287
  %v1289 = vpop.f32.mrb[0].mxu0
  %1290 = vmatprep.mubr.f32.mxu0 %v295
  %1291 = vmatmul.mubr.f32.gmra.mrb[0].mxu0 %v294
  %v1292 = vpop.f32.mrb[0].mxu0
  %v1293 = vadd.f32 %v539, %v1292
  %v1294 = vpop.f32.mrb[0].mxu0
  %1295 = vmatprep.mubr.f32.mxu0 %v297
  %1296 = vmatmul.mubr.f32.gmra.mrb[0].mxu0 %v296
  %v1297 = vpop.f32.mrb[0].mxu0
  %v1298 = vadd.f32 %v539, %v1297
  %v1299 = vpop.f32.mrb[0].mxu0
  %1300 = vmatprep.mubr.f32.mxu0 %v299
  %1301 = vmatmul.mubr.f32.gmra.mrb[0].mxu0 %v298
  %v1302 = vpop.f32.mrb[0].mxu0
  %v1303 = vadd.f32 %v539, %v1302
  %v1304 = vpop.f32.mrb[0].mxu0
  %1305 = vmatprep.mubr.f32.mxu0 %v301
  %1306 = vmatmul.mubr.f32.gmra.mrb[0].mxu0 %v300
  %v1307 = vpop.f32.mrb[0].mxu0
  %v1308 = vadd.f32 %v539, %v1307
  %v1309 = vpop.f32.mrb[0].mxu0
  %1310 = vmatprep.mubr.f32.mxu0 %v303
  %1311 = vmatmul.mubr.f32.gmra.mrb[0].mxu0 %v302
  %v1312 = vpop.f32.mrb[0].mxu0
  %v1313 = vadd.f32 %v539, %v1312
  %v1314 = vpop.f32.mrb[0].mxu0
  %1315 = vmatprep.mubr.f32.mxu0 %v305
  %1316 = vmatmul.mubr.f32.gmra.mrb[0].mxu0 %v304
  %v1317 = vpop.f32.mrb[0].mxu0
  %v1318 = vadd.f32 %v539, %v1317
  %v1319 = vpop.f32.mrb[0].mxu0
  %1320 = vmatprep.mubr.f32.mxu0 %v307
  %1321 = vmatmul.mubr.f32.gmra.mrb[0].mxu0 %v306
  %v1322 = vpop.f32.mrb[0].mxu0
  %v1323 = vadd.f32 %v539, %v1322
  %v1324 = vpop.f32.mrb[0].mxu0
  %1325 = vmatprep.mubr.f32.mxu0 %v309
  %1326 = vmatmul.mubr.f32.gmra.mrb[0].mxu0 %v308
  %v1327 = vpop.f32.mrb[0].mxu0
  %v1328 = vadd.f32 %v539, %v1327
  %v1329 = vpop.f32.mrb[0].mxu0
  %1330 = vmatprep.mubr.f32.mxu0 %v311
  %1331 = vmatmul.mubr.f32.gmra.mrb[0].mxu0 %v310
  %v1332 = vpop.f32.mrb[0].mxu0
  %v1333 = vadd.f32 %v539, %v1332
  %v1334 = vpop.f32.mrb[0].mxu0
  %1335 = vmatprep.mubr.f32.mxu0 %v313
  %1336 = vmatmul.mubr.f32.gmra.mrb[0].mxu0 %v312
  %v1337 = vpop.f32.mrb[0].mxu0
  %v1338 = vadd.f32 %v539, %v1337
  %v1339 = vpop.f32.mrb[0].mxu0
  %1340 = vmatprep.mubr.f32.mxu0 %v315
  %1341 = vmatmul.mubr.f32.gmra.mrb[0].mxu0 %v314
  %v1342 = vpop.f32.mrb[0].mxu0
  %v1343 = vadd.f32 %v539, %v1342
  %v1344 = vpop.f32.mrb[0].mxu0
  %1345 = vmatprep.mubr.f32.mxu0 %v317
  %1346 = vmatmul.mubr.f32.gmra.mrb[0].mxu0 %v316
  %v1347 = vpop.f32.mrb[0].mxu0
  %v1348 = vadd.f32 %v539, %v1347
  %v1349 = vpop.f32.mrb[0].mxu0
  %1350 = vmatprep.mubr.f32.mxu0 %v319
  %1351 = vmatmul.mubr.f32.gmra.mrb[0].mxu0 %v318
  %v1352 = vpop.f32.mrb[0].mxu0
  %v1353 = vadd.f32 %v539, %v1352
  %v1354 = vpop.f32.mrb[0].mxu0
  %1355 = vmatprep.mubr.f32.mxu0 %v321
  %1356 = vmatmul.mubr.f32.gmra.mrb[0].mxu0 %v320
  %v1357 = vpop.f32.mrb[0].mxu0
  %v1358 = vadd.f32 %v539, %v1357
  %v1359 = vpop.f32.mrb[0].mxu0
  %1360 = vmatprep.mubr.f32.mxu0 %v323
  %1361 = vmatmul.mubr.f32.gmra.mrb[0].mxu0 %v322
  %v1362 = vpop.f32.mrb[0].mxu0
  %v1363 = vadd.f32 %v539, %v1362
  %v1364 = vpop.f32.mrb[0].mxu0
  %1365 = vmatprep.mubr.f32.mxu0 %v325
  %1366 = vmatmul.mubr.f32.gmra.mrb[0].mxu0 %v324
  %v1367 = vpop.f32.mrb[0].mxu0
  %v1368 = vadd.f32 %v539, %v1367
  %v1369 = vpop.f32.mrb[0].mxu0
  %1370 = vmatprep.mubr.f32.mxu0 %v327
  %1371 = vmatmul.mubr.f32.gmra.mrb[0].mxu0 %v326
  %v1372 = vpop.f32.mrb[0].mxu0
  %v1373 = vadd.f32 %v539, %v1372
  %v1374 = vpop.f32.mrb[0].mxu0
  %1375 = vmatprep.mubr.f32.mxu0 %v329
  %1376 = vmatmul.mubr.f32.gmra.mrb[0].mxu0 %v328
  %v1377 = vpop.f32.mrb[0].mxu0
  %v1378 = vadd.f32 %v539, %v1377
  %v1379 = vpop.f32.mrb[0].mxu0
  %1380 = vmatprep.mubr.f32.mxu0 %v331
  %1381 = vmatmul.mubr.f32.gmra.mrb[0].mxu0 %v330
  %v1382 = vpop.f32.mrb[0].mxu0
  %v1383 = vadd.f32 %v539, %v1382
  %v1384 = vpop.f32.mrb[0].mxu0
  %1385 = vmatprep.mubr.f32.mxu0 %v333
  %1386 = vmatmul.mubr.f32.gmra.mrb[0].mxu0 %v332
  %v1387 = vpop.f32.mrb[0].mxu0
  %v1388 = vadd.f32 %v539, %v1387
  %v1389 = vpop.f32.mrb[0].mxu0
  %1390 = vmatprep.mubr.f32.mxu0 %v335
  %1391 = vmatmul.mubr.f32.gmra.mrb[0].mxu0 %v334
  %v1392 = vpop.f32.mrb[0].mxu0
  %v1393 = vadd.f32 %v539, %v1392
  %v1394 = vpop.f32.mrb[0].mxu0
  %1395 = vmatprep.mubr.f32.mxu0 %v337
  %1396 = vmatmul.mubr.f32.gmra.mrb[0].mxu0 %v336
  %v1397 = vpop.f32.mrb[0].mxu0
  %v1398 = vadd.f32 %v539, %v1397
  %v1399 = vpop.f32.mrb[0].mxu0
  %1400 = vmatprep.mubr.f32.mxu0 %v339
  %1401 = vmatmul.mubr.f32.gmra.mrb[0].mxu0 %v338
  %v1402 = vpop.f32.mrb[0].mxu0
  %v1403 = vadd.f32 %v539, %v1402
  %v1404 = vpop.f32.mrb[0].mxu0
  %1405 = vmatprep.mubr.f32.mxu0 %v341
  %1406 = vmatmul.mubr.f32.gmra.mrb[0].mxu0 %v340
  %v1407 = vpop.f32.mrb[0].mxu0
  %v1408 = vadd.f32 %v539, %v1407
  %v1409 = vpop.f32.mrb[0].mxu0
  %1410 = vmatprep.mubr.f32.mxu0 %v343
  %1411 = vmatmul.mubr.f32.gmra.mrb[0].mxu0 %v342
  %v1412 = vpop.f32.mrb[0].mxu0
  %v1413 = vadd.f32 %v539, %v1412
  %v1414 = vpop.f32.mrb[0].mxu0
  %1415 = vmatprep.mubr.f32.mxu0 %v345
  %1416 = vmatmul.mubr.f32.gmra.mrb[0].mxu0 %v344
  %v1417 = vpop.f32.mrb[0].mxu0
  %v1418 = vadd.f32 %v539, %v1417
  %v1419 = vpop.f32.mrb[0].mxu0
  %1420 = vmatprep.mubr.f32.mxu0 %v347
  %1421 = vmatmul.mubr.f32.gmra.mrb[0].mxu0 %v346
  %v1422 = vpop.f32.mrb[0].mxu0
  %v1423 = vadd.f32 %v539, %v1422
  %v1424 = vpop.f32.mrb[0].mxu0
  %1425 = vmatprep.mubr.f32.mxu0 %v349
  %1426 = vmatmul.mubr.f32.gmra.mrb[0].mxu0 %v348
  %v1427 = vpop.f32.mrb[0].mxu0
  %v1428 = vadd.f32 %v539, %v1427
  %v1429 = vpop.f32.mrb[0].mxu0
  %1430 = vmatprep.mubr.f32.mxu0 %v351
  %1431 = vmatmul.mubr.f32.gmra.mrb[0].mxu0 %v350
  %v1432 = vpop.f32.mrb[0].mxu0
  %v1433 = vadd.f32 %v539, %v1432
  %v1434 = vpop.f32.mrb[0].mxu0
  %1435 = vmatprep.mubr.f32.mxu0 %v353
  %1436 = vmatmul.mubr.f32.gmra.mrb[0].mxu0 %v352
  %v1437 = vpop.f32.mrb[0].mxu0
  %v1438 = vadd.f32 %v539, %v1437
  %v1439 = vpop.f32.mrb[0].mxu0
  %1440 = vmatprep.mubr.f32.mxu0 %v355
  %1441 = vmatmul.mubr.f32.gmra.mrb[0].mxu0 %v354
  %v1442 = vpop.f32.mrb[0].mxu0
  %v1443 = vadd.f32 %v539, %v1442
  %v1444 = vpop.f32.mrb[0].mxu0
  %1445 = vmatprep.mubr.f32.mxu0 %v357
  %1446 = vmatmul.mubr.f32.gmra.mrb[0].mxu0 %v356
  %v1447 = vpop.f32.mrb[0].mxu0
  %v1448 = vadd.f32 %v539, %v1447
  %v1449 = vpop.f32.mrb[0].mxu0
  %1450 = vmatprep.mubr.f32.mxu0 %v359
  %1451 = vmatmul.mubr.f32.gmra.mrb[0].mxu0 %v358
  %v1452 = vpop.f32.mrb[0].mxu0
  %v1453 = vadd.f32 %v539, %v1452
  %v1454 = vpop.f32.mrb[0].mxu0
  %1455 = vmatprep.mubr.f32.mxu0 %v361
  %1456 = vmatmul.mubr.f32.gmra.mrb[0].mxu0 %v360
  %v1457 = vpop.f32.mrb[0].mxu0
  %v1458 = vadd.f32 %v539, %v1457
  %v1459 = vpop.f32.mrb[0].mxu0
  %1460 = vmatprep.mubr.f32.mxu0 %v363
  %1461 = vmatmul.mubr.f32.gmra.mrb[0].mxu0 %v362
  %v1462 = vpop.f32.mrb[0].mxu0
  %v1463 = vadd.f32 %v539, %v1462
  %v1464 = vpop.f32.mrb[0].mxu0
  %1465 = vmatprep.mubr.f32.mxu0 %v365
  %1466 = vmatmul.mubr.f32.gmra.mrb[0].mxu0 %v364
  %v1467 = vpop.f32.mrb[0].mxu0
  %v1468 = vadd.f32 %v539, %v1467
  %v1469 = vpop.f32.mrb[0].mxu0
  %1470 = vmatprep.mubr.f32.mxu0 %v367
  %1471 = vmatmul.mubr.f32.gmra.mrb[0].mxu0 %v366
  %v1472 = vpop.f32.mrb[0].mxu0
  %v1473 = vadd.f32 %v539, %v1472
  %v1474 = vpop.f32.mrb[0].mxu0
  %1475 = vmatprep.mubr.f32.mxu0 %v369
  %1476 = vmatmul.mubr.f32.gmra.mrb[0].mxu0 %v368
  %v1477 = vpop.f32.mrb[0].mxu0
  %v1478 = vadd.f32 %v539, %v1477
  %v1479 = vpop.f32.mrb[0].mxu0
  %1480 = vmatprep.mubr.f32.mxu0 %v371
  %1481 = vmatmul.mubr.f32.gmra.mrb[0].mxu0 %v370
  %v1482 = vpop.f32.mrb[0].mxu0
  %v1483 = vadd.f32 %v539, %v1482
  %v1484 = vpop.f32.mrb[0].mxu0
  %1485 = vmatprep.mubr.f32.mxu0 %v373
  %1486 = vmatmul.mubr.f32.gmra.mrb[0].mxu0 %v372
  %v1487 = vpop.f32.mrb[0].mxu0
  %v1488 = vadd.f32 %v539, %v1487
  %v1489 = vpop.f32.mrb[0].mxu0
  %1490 = vmatprep.mubr.f32.mxu0 %v375
  %1491 = vmatmul.mubr.f32.gmra.mrb[0].mxu0 %v374
  %v1492 = vpop.f32.mrb[0].mxu0
  %v1493 = vadd.f32 %v539, %v1492
  %v1494 = vpop.f32.mrb[0].mxu0
  %1495 = vmatprep.mubr.f32.mxu0 %v377
  %1496 = vmatmul.mubr.f32.gmra.mrb[0].mxu0 %v376
  %v1497 = vpop.f32.mrb[0].mxu0
  %v1498 = vadd.f32 %v539, %v1497
  %v1499 = vpop.f32.mrb[0].mxu0
  %1500 = vmatprep.mubr.f32.mxu0 %v379
  %1501 = vmatmul.mubr.f32.gmra.mrb[0].mxu0 %v378
  %v1502 = vpop.f32.mrb[0].mxu0
  %v1503 = vadd.f32 %v539, %v1502
  %v1504 = vpop.f32.mrb[0].mxu0
  %1505 = vmatprep.mubr.f32.mxu0 %v381
  %1506 = vmatmul.mubr.f32.gmra.mrb[0].mxu0 %v380
  %v1507 = vpop.f32.mrb[0].mxu0
  %v1508 = vadd.f32 %v539, %v1507
  %v1509 = vpop.f32.mrb[0].mxu0
  %1510 = vmatprep.mubr.f32.mxu0 %v383
  %1511 = vmatmul.mubr.f32.gmra.mrb[0].mxu0 %v382
  %v1512 = vpop.f32.mrb[0].mxu0
  %v1513 = vadd.f32 %v539, %v1512
  %v1514 = vpop.f32.mrb[0].mxu0
  %1515 = vmatprep.mubr.f32.mxu0 %v385
  %1516 = vmatmul.mubr.f32.gmra.mrb[0].mxu0 %v384
  %v1517 = vpop.f32.mrb[0].mxu0
  %v1518 = vadd.f32 %v539, %v1517
  %v1519 = vpop.f32.mrb[0].mxu0
  %1520 = vmatprep.mubr.f32.mxu0 %v387
  %1521 = vmatmul.mubr.f32.gmra.mrb[0].mxu0 %v386
  %v1522 = vpop.f32.mrb[0].mxu0
  %v1523 = vadd.f32 %v539, %v1522
  %v1524 = vpop.f32.mrb[0].mxu0
  %1525 = vmatprep.mubr.f32.mxu0 %v389
  %1526 = vmatmul.mubr.f32.gmra.mrb[0].mxu0 %v388
  %v1527 = vpop.f32.mrb[0].mxu0
  %v1528 = vadd.f32 %v539, %v1527
  %v1529 = vpop.f32.mrb[0].mxu0
  %1530 = vmatprep.mubr.f32.mxu0 %v391
  %1531 = vmatmul.mubr.f32.gmra.mrb[0].mxu0 %v390
  %v1532 = vpop.f32.mrb[0].mxu0
  %v1533 = vadd.f32 %v539, %v1532
  %v1534 = vpop.f32.mrb[0].mxu0
  %1535 = vmatprep.mubr.f32.mxu0 %v393
  %1536 = vmatmul.mubr.f32.gmra.mrb[0].mxu0 %v392
  %v1537 = vpop.f32.mrb[0].mxu0
  %v1538 = vadd.f32 %v539, %v1537
  %v1539 = vpop.f32.mrb[0].mxu0
  %1540 = vmatprep.mubr.f32.mxu0 %v395
  %1541 = vmatmul.mubr.f32.gmra.mrb[0].mxu0 %v394
  %v1542 = vpop.f32.mrb[0].mxu0
  %v1543 = vadd.f32 %v539, %v1542
  %v1544 = vpop.f32.mrb[0].mxu0
  %1545 = vmatprep.mubr.f32.mxu0 %v397
  %1546 = vmatmul.mubr.f32.gmra.mrb[0].mxu0 %v396
  %v1547 = vpop.f32.mrb[0].mxu0
  %v1548 = vadd.f32 %v539, %v1547
  %v1549 = vpop.f32.mrb[0].mxu0
  %1550 = vmatprep.mubr.f32.mxu0 %v399
  %1551 = vmatmul.mubr.f32.gmra.mrb[0].mxu0 %v398
  %v1552 = vpop.f32.mrb[0].mxu0
  %v1553 = vadd.f32 %v539, %v1552
  %v1554 = vpop.f32.mrb[0].mxu0
  %1555 = vmatprep.mubr.f32.mxu0 %v401
  %1556 = vmatmul.mubr.f32.gmra.mrb[0].mxu0 %v400
  %v1557 = vpop.f32.mrb[0].mxu0
  %v1558 = vadd.f32 %v539, %v1557
  %v1559 = vpop.f32.mrb[0].mxu0
  %1560 = vmatprep.mubr.f32.mxu0 %v403
  %1561 = vmatmul.mubr.f32.gmra.mrb[0].mxu0 %v402
  %v1562 = vpop.f32.mrb[0].mxu0
  %v1563 = vadd.f32 %v539, %v1562
  %v1564 = vpop.f32.mrb[0].mxu0
  %1565 = vmatprep.mubr.f32.mxu0 %v405
  %1566 = vmatmul.mubr.f32.gmra.mrb[0].mxu0 %v404
  %v1567 = vpop.f32.mrb[0].mxu0
  %v1568 = vadd.f32 %v539, %v1567
  %v1569 = vpop.f32.mrb[0].mxu0
  %1570 = vmatprep.mubr.f32.mxu0 %v407
  %1571 = vmatmul.mubr.f32.gmra.mrb[0].mxu0 %v406
  %v1572 = vpop.f32.mrb[0].mxu0
  %v1573 = vadd.f32 %v539, %v1572
  %v1574 = vpop.f32.mrb[0].mxu0
  %1575 = vmatprep.mubr.f32.mxu0 %v409
  %1576 = vmatmul.mubr.f32.gmra.mrb[0].mxu0 %v408
  %v1577 = vpop.f32.mrb[0].mxu0
  %v1578 = vadd.f32 %v539, %v1577
  %v1579 = vpop.f32.mrb[0].mxu0
  %1580 = vmatprep.mubr.f32.mxu0 %v411
  %1581 = vmatmul.mubr.f32.gmra.mrb[0].mxu0 %v410
  %v1582 = vpop.f32.mrb[0].mxu0
  %v1583 = vadd.f32 %v539, %v1582
  %v1584 = vpop.f32.mrb[0].mxu0
  %1585 = vmatprep.mubr.f32.mxu0 %v413
  %1586 = vmatmul.mubr.f32.gmra.mrb[0].mxu0 %v412
  %v1587 = vpop.f32.mrb[0].mxu0
  %v1588 = vadd.f32 %v539, %v1587
  %v1589 = vpop.f32.mrb[0].mxu0
  %1590 = vmatprep.mubr.f32.mxu0 %v415
  %1591 = vmatmul.mubr.f32.gmra.mrb[0].mxu0 %v414
  %v1592 = vpop.f32.mrb[0].mxu0
  %v1593 = vadd.f32 %v539, %v1592
  %v1594 = vpop.f32.mrb[0].mxu0
  %1595 = vmatprep.mubr.f32.mxu0 %v417
  %1596 = vmatmul.mubr.f32.gmra.mrb[0].mxu0 %v416
  %v1597 = vpop.f32.mrb[0].mxu0
  %v1598 = vadd.f32 %v539, %v1597
  %v1599 = vpop.f32.mrb[0].mxu0
  %1600 = vmatprep.mubr.f32.mxu0 %v419
  %1601 = vmatmul.mubr.f32.gmra.mrb[0].mxu0 %v418
  %v1602 = vpop.f32.mrb[0].mxu0
  %v1603 = vadd.f32 %v539, %v1602
  %v1604 = vpop.f32.mrb[0].mxu0
  %1605 = vmatprep.mubr.f32.mxu0 %v421
  %1606 = vmatmul.mubr.f32.gmra.mrb[0].mxu0 %v420
  %v1607 = vpop.f32.mrb[0].mxu0
  %v1608 = vadd.f32 %v539, %v1607
  %v1609 = vpop.f32.mrb[0].mxu0
  %1610 = vmatprep.mubr.f32.mxu0 %v423
  %1611 = vmatmul.mubr.f32.gmra.mrb[0].mxu0 %v422
  %v1612 = vpop.f32.mrb[0].mxu0
  %v1613 = vadd.f32 %v539, %v1612
  %v1614 = vpop.f32.mrb[0].mxu0
  %1615 = vmatprep.mubr.f32.mxu0 %v425
  %1616 = vmatmul.mubr.f32.gmra.mrb[0].mxu0 %v424
  %v1617 = vpop.f32.mrb[0].mxu0
  %v1618 = vadd.f32 %v539, %v1617
  %v1619 = vpop.f32.mrb[0].mxu0
  %1620 = vmatprep.mubr.f32.mxu0 %v427
  %1621 = vmatmul.mubr.f32.gmra.mrb[0].mxu0 %v426
  %v1622 = vpop.f32.mrb[0].mxu0
  %v1623 = vadd.f32 %v539, %v1622
  %v1624 = vpop.f32.mrb[0].mxu0
  %1625 = vmatprep.mubr.f32.mxu0 %v429
  %1626 = vmatmul.mubr.f32.gmra.mrb[0].mxu0 %v428
  %v1627 = vpop.f32.mrb[0].mxu0
  %v1628 = vadd.f32 %v539, %v1627
  %v1629 = vpop.f32.mrb[0].mxu0
  %1630 = vmatprep.mubr.f32.mxu0 %v431
  %1631 = vmatmul.mubr.f32.gmra.mrb[0].mxu0 %v430
  %v1632 = vpop.f32.mrb[0].mxu0
  %v1633 = vadd.f32 %v539, %v1632
  %v1634 = vpop.f32.mrb[0].mxu0
  %1635 = vmatprep.mubr.f32.mxu0 %v433
  %1636 = vmatmul.mubr.f32.gmra.mrb[0].mxu0 %v432
  %v1637 = vpop.f32.mrb[0].mxu0
  %v1638 = vadd.f32 %v539, %v1637
  %v1639 = vpop.f32.mrb[0].mxu0
  %1640 = vmatprep.mubr.f32.mxu0 %v435
  %1641 = vmatmul.mubr.f32.gmra.mrb[0].mxu0 %v434
  %v1642 = vpop.f32.mrb[0].mxu0
  %v1643 = vadd.f32 %v539, %v1642
  %v1644 = vpop.f32.mrb[0].mxu0
  %1645 = vmatprep.mubr.f32.mxu0 %v437
  %1646 = vmatmul.mubr.f32.gmra.mrb[0].mxu0 %v436
  %v1647 = vpop.f32.mrb[0].mxu0
  %v1648 = vadd.f32 %v539, %v1647
  %v1649 = vpop.f32.mrb[0].mxu0
  %1650 = vmatprep.mubr.f32.mxu0 %v439
  %1651 = vmatmul.mubr.f32.gmra.mrb[0].mxu0 %v438
  %v1652 = vpop.f32.mrb[0].mxu0
  %v1653 = vadd.f32 %v539, %v1652
  %v1654 = vpop.f32.mrb[0].mxu0
  %1655 = vmatprep.mubr.f32.mxu0 %v441
  %1656 = vmatmul.mubr.f32.gmra.mrb[0].mxu0 %v440
  %v1657 = vpop.f32.mrb[0].mxu0
  %v1658 = vadd.f32 %v539, %v1657
  %v1659 = vpop.f32.mrb[0].mxu0
  %1660 = vmatprep.mubr.f32.mxu0 %v443
  %1661 = vmatmul.mubr.f32.gmra.mrb[0].mxu0 %v442
  %v1662 = vpop.f32.mrb[0].mxu0
  %v1663 = vadd.f32 %v539, %v1662
  %v1664 = vpop.f32.mrb[0].mxu0
  %1665 = vmatprep.mubr.f32.mxu0 %v445
  %1666 = vmatmul.mubr.f32.gmra.mrb[0].mxu0 %v444
  %v1667 = vpop.f32.mrb[0].mxu0
  %v1668 = vadd.f32 %v539, %v1667
  %v1669 = vpop.f32.mrb[0].mxu0
  %1670 = vmatprep.mubr.f32.mxu0 %v447
  %1671 = vmatmul.mubr.f32.gmra.mrb[0].mxu0 %v446
  %v1672 = vpop.f32.mrb[0].mxu0
  %v1673 = vadd.f32 %v539, %v1672
  %v1674 = vpop.f32.mrb[0].mxu0
  %1675 = vmatprep.mubr.f32.mxu0 %v449
  %1676 = vmatmul.mubr.f32.gmra.mrb[0].mxu0 %v448
  %v1677 = vpop.f32.mrb[0].mxu0
  %v1678 = vadd.f32 %v539, %v1677
  %v1679 = vpop.f32.mrb[0].mxu0
  %1680 = vmatprep.mubr.f32.mxu0 %v451
  %1681 = vmatmul.mubr.f32.gmra.mrb[0].mxu0 %v450
  %v1682 = vpop.f32.mrb[0].mxu0
  %v1683 = vadd.f32 %v539, %v1682
  %v1684 = vpop.f32.mrb[0].mxu0
  %1685 = vmatprep.mubr.f32.mxu0 %v453
  %1686 = vmatmul.mubr.f32.gmra.mrb[0].mxu0 %v452
  %v1687 = vpop.f32.mrb[0].mxu0
  %v1688 = vadd.f32 %v539, %v1687
  %v1689 = vpop.f32.mrb[0].mxu0
  %1690 = vmatprep.mubr.f32.mxu0 %v455
  %1691 = vmatmul.mubr.f32.gmra.mrb[0].mxu0 %v454
  %v1692 = vpop.f32.mrb[0].mxu0
  %v1693 = vadd.f32 %v539, %v1692
  %v1694 = vpop.f32.mrb[0].mxu0
  %1695 = vmatprep.mubr.f32.mxu0 %v457
  %1696 = vmatmul.mubr.f32.gmra.mrb[0].mxu0 %v456
  %v1697 = vpop.f32.mrb[0].mxu0
  %v1698 = vadd.f32 %v539, %v1697
  %v1699 = vpop.f32.mrb[0].mxu0
  %1700 = vmatprep.mubr.f32.mxu0 %v459
  %1701 = vmatmul.mubr.f32.gmra.mrb[0].mxu0 %v458
  %v1702 = vpop.f32.mrb[0].mxu0
  %v1703 = vadd.f32 %v539, %v1702
  %v1704 = vpop.f32.mrb[0].mxu0
  %1705 = vmatprep.mubr.f32.mxu0 %v461
  %1706 = vmatmul.mubr.f32.gmra.mrb[0].mxu0 %v460
  %v1707 = vpop.f32.mrb[0].mxu0
  %v1708 = vadd.f32 %v539, %v1707
  %v1709 = vpop.f32.mrb[0].mxu0
  %1710 = vmatprep.mubr.f32.mxu0 %v463
  %1711 = vmatmul.mubr.f32.gmra.mrb[0].mxu0 %v462
  %v1712 = vpop.f32.mrb[0].mxu0
  %v1713 = vadd.f32 %v539, %v1712
  %v1714 = vpop.f32.mrb[0].mxu0
  %1715 = vmatprep.mubr.f32.mxu0 %v465
  %1716 = vmatmul.mubr.f32.gmra.mrb[0].mxu0 %v464
  %v1717 = vpop.f32.mrb[0].mxu0
  %v1718 = vadd.f32 %v539, %v1717
  %v1719 = vpop.f32.mrb[0].mxu0
  %1720 = vmatprep.mubr.f32.mxu0 %v467
  %1721 = vmatmul.mubr.f32.gmra.mrb[0].mxu0 %v466
  %v1722 = vpop.f32.mrb[0].mxu0
  %v1723 = vadd.f32 %v539, %v1722
  %v1724 = vpop.f32.mrb[0].mxu0
  %1725 = vmatprep.mubr.f32.mxu0 %v469
  %1726 = vmatmul.mubr.f32.gmra.mrb[0].mxu0 %v468
  %v1727 = vpop.f32.mrb[0].mxu0
  %v1728 = vadd.f32 %v539, %v1727
  %v1729 = vpop.f32.mrb[0].mxu0
  %1730 = vmatprep.mubr.f32.mxu0 %v471
  %1731 = vmatmul.mubr.f32.gmra.mrb[0].mxu0 %v470
  %v1732 = vpop.f32.mrb[0].mxu0
  %v1733 = vadd.f32 %v539, %v1732
  %v1734 = vpop.f32.mrb[0].mxu0
  %1735 = vmatprep.mubr.f32.mxu0 %v473
  %1736 = vmatmul.mubr.f32.gmra.mrb[0].mxu0 %v472
  %v1737 = vpop.f32.mrb[0].mxu0
  %v1738 = vadd.f32 %v539, %v1737
  %v1739 = vpop.f32.mrb[0].mxu0
  %1740 = vmatprep.mubr.f32.mxu0 %v475
  %1741 = vmatmul.mubr.f32.gmra.mrb[0].mxu0 %v474
  %v1742 = vpop.f32.mrb[0].mxu0
  %v1743 = vadd.f32 %v539, %v1742
  %v1744 = vpop.f32.mrb[0].mxu0
  %1745 = vmatprep.mubr.f32.mxu0 %v477
  %1746 = vmatmul.mubr.f32.gmra.mrb[0].mxu0 %v476
  %v1747 = vpop.f32.mrb[0].mxu0
  %v1748 = vadd.f32 %v539, %v1747
  %v1749 = vpop.f32.mrb[0].mxu0
  %1750 = vmatprep.mubr.f32.mxu0 %v479
  %1751 = vmatmul.mubr.f32.gmra.mrb[0].mxu0 %v478
  %v1752 = vpop.f32.mrb[0].mxu0
  %v1753 = vadd.f32 %v539, %v1752
  %v1754 = vpop.f32.mrb[0].mxu0
  %1755 = vmatprep.mubr.f32.mxu0 %v481
  %1756 = vmatmul.mubr.f32.gmra.mrb[0].mxu0 %v480
  %v1757 = vpop.f32.mrb[0].mxu0
  %v1758 = vadd.f32 %v539, %v1757
  %v1759 = vpop.f32.mrb[0].mxu0
  %1760 = vmatprep.mubr.f32.mxu0 %v483
  %1761 = vmatmul.mubr.f32.gmra.mrb[0].mxu0 %v482
  %v1762 = vpop.f32.mrb[0].mxu0
  %v1763 = vadd.f32 %v539, %v1762
  %v1764 = vpop.f32.mrb[0].mxu0
  %1765 = vmatprep.mubr.f32.mxu0 %v485
  %1766 = vmatmul.mubr.f32.gmra.mrb[0].mxu0 %v484
  %v1767 = vpop.f32.mrb[0].mxu0
  %v1768 = vadd.f32 %v539, %v1767
  %v1769 = vpop.f32.mrb[0].mxu0
  %1770 = vmatprep.mubr.f32.mxu0 %v487
  %1771 = vmatmul.mubr.f32.gmra.mrb[0].mxu0 %v486
  %v1772 = vpop.f32.mrb[0].mxu0
  %v1773 = vadd.f32 %v539, %v1772
  %v1774 = vpop.f32.mrb[0].mxu0
  %1775 = vmatprep.mubr.f32.mxu0 %v489
  %1776 = vmatmul.mubr.f32.gmra.mrb[0].mxu0 %v488
  %v1777 = vpop.f32.mrb[0].mxu0
  %v1778 = vadd.f32 %v539, %v1777
  %v1779 = vpop.f32.mrb[0].mxu0
  %1780 = vmatprep.mubr.f32.mxu0 %v491
  %1781 = vmatmul.mubr.f32.gmra.mrb[0].mxu0 %v490
  %v1782 = vpop.f32.mrb[0].mxu0
  %v1783 = vadd.f32 %v539, %v1782
  %v1784 = vpop.f32.mrb[0].mxu0
  %1785 = vmatprep.mubr.f32.mxu0 %v493
  %1786 = vmatmul.mubr.f32.gmra.mrb[0].mxu0 %v492
  %v1787 = vpop.f32.mrb[0].mxu0
  %v1788 = vadd.f32 %v539, %v1787
  %v1789 = vpop.f32.mrb[0].mxu0
  %1790 = vmatprep.mubr.f32.mxu0 %v495
  %1791 = vmatmul.mubr.f32.gmra.mrb[0].mxu0 %v494
  %v1792 = vpop.f32.mrb[0].mxu0
  %v1793 = vadd.f32 %v539, %v1792
  %v1794 = vpop.f32.mrb[0].mxu0
  %1795 = vmatprep.mubr.f32.mxu0 %v497
  %1796 = vmatmul.mubr.f32.gmra.mrb[0].mxu0 %v496
  %v1797 = vpop.f32.mrb[0].mxu0
  %v1798 = vadd.f32 %v539, %v1797
  %v1799 = vpop.f32.mrb[0].mxu0
  %1800 = vmatprep.mubr.f32.mxu0 %v499
  %1801 = vmatmul.mubr.f32.gmra.mrb[0].mxu0 %v498
  %v1802 = vpop.f32.mrb[0].mxu0
  %v1803 = vadd.f32 %v539, %v1802
  %v1804 = vpop.f32.mrb[0].mxu0
  %1805 = vmatprep.mubr.f32.mxu0 %v501
  %1806 = vmatmul.mubr.f32.gmra.mrb[0].mxu0 %v500
  %v1807 = vpop.f32.mrb[0].mxu0
  %v1808 = vadd.f32 %v539, %v1807
  %v1809 = vpop.f32.mrb[0].mxu0
  %1810 = vdwg.mxu0
  %vm1811 = vcmask 261120
  %v1812 = vsel %vm1811, %v608, 0.0
  %v1813 = vsel %vm1811, %v613, 0.0
  %v1814 = vadd.f32 %v1812, %v1813
  %v1815 = vsel %vm1811, %v618, 0.0
  %v1816 = vadd.f32 %v1814, %v1815
  %v1817 = vsel %vm1811, %v623, 0.0
  %v1818 = vadd.f32 %v1816, %v1817
  %v1819 = vsel %vm1811, %v628, 0.0
  %v1820 = vadd.f32 %v1818, %v1819
  %v1821 = vsel %vm1811, %v633, 0.0
  %v1822 = vadd.f32 %v1820, %v1821
  %v1823 = vsel %vm1811, %v638, 0.0
  %v1824 = vadd.f32 %v1822, %v1823
  %v1825 = vsel %vm1811, %v643, 0.0
  %v1826 = vadd.f32 %v1824, %v1825
  %v1827 = vsel %vm1811, %v648, 0.0
  %v1828 = vadd.f32 %v1826, %v1827
  %v1829 = vsel %vm1811, %v653, 0.0
  %v1830 = vadd.f32 %v1828, %v1829
  %v1831 = vsel %vm1811, %v658, 0.0
  %v1832 = vadd.f32 %v1830, %v1831
  %v1833 = vsel %vm1811, %v663, 0.0
  %v1834 = vadd.f32 %v1832, %v1833
  %v1835 = vsel %vm1811, %v668, 0.0
  %v1836 = vadd.f32 %v1834, %v1835
  %v1837 = vsel %vm1811, %v673, 0.0
  %v1838 = vadd.f32 %v1836, %v1837
  %v1839 = vsel %vm1811, %v678, 0.0
  %v1840 = vadd.f32 %v1838, %v1839
  %v1841 = vsel %vm1811, %v683, 0.0
  %v1842 = vadd.f32 %v1840, %v1841
  %v1843 = vsel %vm1811, %v688, 0.0
  %v1844 = vadd.f32 %v1842, %v1843
  %v1845 = vsel %vm1811, %v693, 0.0
  %v1846 = vadd.f32 %v1844, %v1845
  %v1847 = vsel %vm1811, %v698, 0.0
  %v1848 = vadd.f32 %v1846, %v1847
  %v1849 = vsel %vm1811, %v703, 0.0
  %v1850 = vadd.f32 %v1848, %v1849
  %v1851 = vsel %vm1811, %v708, 0.0
  %v1852 = vadd.f32 %v1850, %v1851
  %v1853 = vsel %vm1811, %v713, 0.0
  %v1854 = vadd.f32 %v1852, %v1853
  %v1855 = vsel %vm1811, %v718, 0.0
  %v1856 = vadd.f32 %v1854, %v1855
  %v1857 = vsel %vm1811, %v723, 0.0
  %v1858 = vadd.f32 %v1856, %v1857
  %v1859 = vsel %vm1811, %v728, 0.0
  %v1860 = vadd.f32 %v1858, %v1859
  %v1861 = vsel %vm1811, %v733, 0.0
  %v1862 = vadd.f32 %v1860, %v1861
  %v1863 = vsel %vm1811, %v738, 0.0
  %v1864 = vadd.f32 %v1862, %v1863
  %v1865 = vsel %vm1811, %v743, 0.0
  %v1866 = vadd.f32 %v1864, %v1865
  %v1867 = vsel %vm1811, %v748, 0.0
  %v1868 = vadd.f32 %v1866, %v1867
  %v1869 = vsel %vm1811, %v753, 0.0
  %v1870 = vadd.f32 %v1868, %v1869
  %v1871 = vsel %vm1811, %v758, 0.0
  %v1872 = vadd.f32 %v1870, %v1871
  %v1873 = vsel %vm1811, %v763, 0.0
  %v1874 = vadd.f32 %v1872, %v1873
  %v1875 = vsel %vm1811, %v768, 0.0
  %v1876 = vadd.f32 %v1874, %v1875
  %v1877 = vsel %vm1811, %v773, 0.0
  %v1878 = vadd.f32 %v1876, %v1877
  %v1879 = vsel %vm1811, %v778, 0.0
  %v1880 = vadd.f32 %v1878, %v1879
  %v1881 = vsel %vm1811, %v783, 0.0
  %v1882 = vadd.f32 %v1880, %v1881
  %v1883 = vsel %vm1811, %v788, 0.0
  %v1884 = vadd.f32 %v1882, %v1883
  %v1885 = vsel %vm1811, %v793, 0.0
  %v1886 = vadd.f32 %v1884, %v1885
  %v1887 = vsel %vm1811, %v798, 0.0
  %v1888 = vadd.f32 %v1886, %v1887
  %v1889 = vsel %vm1811, %v803, 0.0
  %v1890 = vadd.f32 %v1888, %v1889
  %v1891 = vsel %vm1811, %v808, 0.0
  %v1892 = vadd.f32 %v1890, %v1891
  %v1893 = vsel %vm1811, %v813, 0.0
  %v1894 = vadd.f32 %v1892, %v1893
  %v1895 = vsel %vm1811, %v818, 0.0
  %v1896 = vadd.f32 %v1894, %v1895
  %v1897 = vsel %vm1811, %v823, 0.0
  %v1898 = vadd.f32 %v1896, %v1897
  %v1899 = vsel %vm1811, %v828, 0.0
  %v1900 = vadd.f32 %v1898, %v1899
  %v1901 = vsel %vm1811, %v833, 0.0
  %v1902 = vadd.f32 %v1900, %v1901
  %v1903 = vsel %vm1811, %v838, 0.0
  %v1904 = vadd.f32 %v1902, %v1903
  %v1905 = vsel %vm1811, %v843, 0.0
  %v1906 = vadd.f32 %v1904, %v1905
  %v1907 = vsel %vm1811, %v848, 0.0
  %v1908 = vadd.f32 %v1906, %v1907
  %v1909 = vsel %vm1811, %v853, 0.0
  %v1910 = vadd.f32 %v1908, %v1909
  %v1911 = vsel %vm1811, %v858, 0.0
  %v1912 = vadd.f32 %v1910, %v1911
  %v1913 = vsel %vm1811, %v863, 0.0
  %v1914 = vadd.f32 %v1912, %v1913
  %v1915 = vsel %vm1811, %v868, 0.0
  %v1916 = vadd.f32 %v1914, %v1915
  %v1917 = vsel %vm1811, %v873, 0.0
  %v1918 = vadd.f32 %v1916, %v1917
  %v1919 = vsel %vm1811, %v878, 0.0
  %v1920 = vadd.f32 %v1918, %v1919
  %v1921 = vsel %vm1811, %v883, 0.0
  %v1922 = vadd.f32 %v1920, %v1921
  %v1923 = vsel %vm1811, %v888, 0.0
  %v1924 = vadd.f32 %v1922, %v1923
  %v1925 = vsel %vm1811, %v893, 0.0
  %v1926 = vadd.f32 %v1924, %v1925
  %v1927 = vsel %vm1811, %v898, 0.0
  %v1928 = vadd.f32 %v1926, %v1927
  %v1929 = vsel %vm1811, %v903, 0.0
  %v1930 = vadd.f32 %v1928, %v1929
  %v1931 = vsel %vm1811, %v908, 0.0
  %v1932 = vadd.f32 %v1930, %v1931
  %v1933 = vsel %vm1811, %v913, 0.0
  %v1934 = vadd.f32 %v1932, %v1933
  %v1935 = vsel %vm1811, %v918, 0.0
  %v1936 = vadd.f32 %v1934, %v1935
  %v1937 = vsel %vm1811, %v923, 0.0
  %v1938 = vadd.f32 %v1936, %v1937
  %v1939 = vsel %vm1811, %v928, 0.0
  %v1940 = vadd.f32 %v1938, %v1939
  %v1941 = vsel %vm1811, %v933, 0.0
  %v1942 = vadd.f32 %v1940, %v1941
  %v1943 = vsel %vm1811, %v938, 0.0
  %v1944 = vadd.f32 %v1942, %v1943
  %v1945 = vsel %vm1811, %v943, 0.0
  %v1946 = vadd.f32 %v1944, %v1945
  %v1947 = vsel %vm1811, %v948, 0.0
  %v1948 = vadd.f32 %v1946, %v1947
  %v1949 = vsel %vm1811, %v953, 0.0
  %v1950 = vadd.f32 %v1948, %v1949
  %v1951 = vsel %vm1811, %v958, 0.0
  %v1952 = vadd.f32 %v1950, %v1951
  %v1953 = vsel %vm1811, %v963, 0.0
  %v1954 = vadd.f32 %v1952, %v1953
  %v1955 = vsel %vm1811, %v968, 0.0
  %v1956 = vadd.f32 %v1954, %v1955
  %v1957 = vsel %vm1811, %v973, 0.0
  %v1958 = vadd.f32 %v1956, %v1957
  %v1959 = vsel %vm1811, %v978, 0.0
  %v1960 = vadd.f32 %v1958, %v1959
  %v1961 = vsel %vm1811, %v983, 0.0
  %v1962 = vadd.f32 %v1960, %v1961
  %v1963 = vsel %vm1811, %v988, 0.0
  %v1964 = vadd.f32 %v1962, %v1963
  %v1965 = vsel %vm1811, %v993, 0.0
  %v1966 = vadd.f32 %v1964, %v1965
  %v1967 = vsel %vm1811, %v998, 0.0
  %v1968 = vadd.f32 %v1966, %v1967
  %v1969 = vsel %vm1811, %v1003, 0.0
  %v1970 = vadd.f32 %v1968, %v1969
  %v1971 = vsel %vm1811, %v1008, 0.0
  %v1972 = vadd.f32 %v1970, %v1971
  %v1973 = vsel %vm1811, %v1013, 0.0
  %v1974 = vadd.f32 %v1972, %v1973
  %v1975 = vsel %vm1811, %v1018, 0.0
  %v1976 = vadd.f32 %v1974, %v1975
  %v1977 = vsel %vm1811, %v1023, 0.0
  %v1978 = vadd.f32 %v1976, %v1977
  %v1979 = vsel %vm1811, %v1028, 0.0
  %v1980 = vadd.f32 %v1978, %v1979
  %v1981 = vsel %vm1811, %v1033, 0.0
  %v1982 = vadd.f32 %v1980, %v1981
  %v1983 = vsel %vm1811, %v1038, 0.0
  %v1984 = vadd.f32 %v1982, %v1983
  %v1985 = vsel %vm1811, %v1043, 0.0
  %v1986 = vadd.f32 %v1984, %v1985
  %v1987 = vsel %vm1811, %v1048, 0.0
  %v1988 = vadd.f32 %v1986, %v1987
  %v1989 = vsel %vm1811, %v1053, 0.0
  %v1990 = vadd.f32 %v1988, %v1989
  %v1991 = vsel %vm1811, %v1058, 0.0
  %v1992 = vadd.f32 %v1990, %v1991
  %v1993 = vsel %vm1811, %v1063, 0.0
  %v1994 = vadd.f32 %v1992, %v1993
  %v1995 = vsel %vm1811, %v1068, 0.0
  %v1996 = vadd.f32 %v1994, %v1995
  %v1997 = vsel %vm1811, %v1073, 0.0
  %v1998 = vadd.f32 %v1996, %v1997
  %v1999 = vsel %vm1811, %v1078, 0.0
  %v2000 = vadd.f32 %v1998, %v1999
  %v2001 = vsel %vm1811, %v1083, 0.0
  %v2002 = vadd.f32 %v2000, %v2001
  %v2003 = vsel %vm1811, %v1088, 0.0
  %v2004 = vadd.f32 %v2002, %v2003
  %v2005 = vsel %vm1811, %v1093, 0.0
  %v2006 = vadd.f32 %v2004, %v2005
  %v2007 = vsel %vm1811, %v1098, 0.0
  %v2008 = vadd.f32 %v2006, %v2007
  %v2009 = vsel %vm1811, %v1103, 0.0
  %v2010 = vadd.f32 %v2008, %v2009
  %v2011 = vsel %vm1811, %v1108, 0.0
  %v2012 = vadd.f32 %v2010, %v2011
  %v2013 = vsel %vm1811, %v1113, 0.0
  %v2014 = vadd.f32 %v2012, %v2013
  %v2015 = vsel %vm1811, %v1118, 0.0
  %v2016 = vadd.f32 %v2014, %v2015
  %v2017 = vsel %vm1811, %v1123, 0.0
  %v2018 = vadd.f32 %v2016, %v2017
  %v2019 = vsel %vm1811, %v1128, 0.0
  %v2020 = vadd.f32 %v2018, %v2019
  %v2021 = vsel %vm1811, %v1133, 0.0
  %v2022 = vadd.f32 %v2020, %v2021
  %v2023 = vsel %vm1811, %v1138, 0.0
  %v2024 = vadd.f32 %v2022, %v2023
  %v2025 = vsel %vm1811, %v1143, 0.0
  %v2026 = vadd.f32 %v2024, %v2025
  %v2027 = vsel %vm1811, %v1148, 0.0
  %v2028 = vadd.f32 %v2026, %v2027
  %v2029 = vsel %vm1811, %v1153, 0.0
  %v2030 = vadd.f32 %v2028, %v2029
  %v2031 = vsel %vm1811, %v1158, 0.0
  %v2032 = vadd.f32 %v2030, %v2031
  %v2033 = vsel %vm1811, %v1163, 0.0
  %v2034 = vadd.f32 %v2032, %v2033
  %v2035 = vsel %vm1811, %v1168, 0.0
  %v2036 = vadd.f32 %v2034, %v2035
  %v2037 = vsel %vm1811, %v1173, 0.0
  %v2038 = vadd.f32 %v2036, %v2037
  %v2039 = vsel %vm1811, %v1178, 0.0
  %v2040 = vadd.f32 %v2038, %v2039
  %v2041 = vsel %vm1811, %v1183, 0.0
  %v2042 = vadd.f32 %v2040, %v2041
  %v2043 = vsel %vm1811, %v1188, 0.0
  %v2044 = vadd.f32 %v2042, %v2043
  %v2045 = vsel %vm1811, %v1193, 0.0
  %v2046 = vadd.f32 %v2044, %v2045
  %v2047 = vsel %vm1811, %v1198, 0.0
  %v2048 = vadd.f32 %v2046, %v2047
  %v2049 = vsel %vm1811, %v1203, 0.0
  %v2050 = vadd.f32 %v2048, %v2049
  %v2051 = vsel %vm1811, %v1208, 0.0
  %v2052 = vadd.f32 %v2050, %v2051
  %v2053 = vsel %vm1811, %v1213, 0.0
  %v2054 = vadd.f32 %v2052, %v2053
  %v2055 = vsel %vm1811, %v1218, 0.0
  %v2056 = vadd.f32 %v2054, %v2055
  %v2057 = vsel %vm1811, %v1223, 0.0
  %v2058 = vadd.f32 %v2056, %v2057
  %v2059 = vsel %vm1811, %v1228, 0.0
  %v2060 = vadd.f32 %v2058, %v2059
  %v2061 = vsel %vm1811, %v1233, 0.0
  %v2062 = vadd.f32 %v2060, %v2061
  %v2063 = vsel %vm1811, %v1238, 0.0
  %v2064 = vadd.f32 %v2062, %v2063
  %v2065 = vsel %vm1811, %v1243, 0.0
  %v2066 = vadd.f32 %v2064, %v2065
  %v2067 = vsel %vm1811, %v1248, 0.0
  %v2068 = vadd.f32 %v2066, %v2067
  %v2069 = vsel %vm1811, %v1253, 0.0
  %v2070 = vadd.f32 %v2068, %v2069
  %v2071 = vsel %vm1811, %v1258, 0.0
  %v2072 = vadd.f32 %v2070, %v2071
  %v2073 = vsel %vm1811, %v1263, 0.0
  %v2074 = vadd.f32 %v2072, %v2073
  %v2075 = vsel %vm1811, %v1268, 0.0
  %v2076 = vadd.f32 %v2074, %v2075
  %v2077 = vsel %vm1811, %v1273, 0.0
  %v2078 = vadd.f32 %v2076, %v2077
  %v2079 = vsel %vm1811, %v1278, 0.0
  %v2080 = vadd.f32 %v2078, %v2079
  %v2081 = vsel %vm1811, %v1283, 0.0
  %v2082 = vadd.f32 %v2080, %v2081
  %v2083 = vsel %vm1811, %v1288, 0.0
  %v2084 = vadd.f32 %v2082, %v2083
  %v2085 = vsel %vm1811, %v1293, 0.0
  %v2086 = vadd.f32 %v2084, %v2085
  %v2087 = vsel %vm1811, %v1298, 0.0
  %v2088 = vadd.f32 %v2086, %v2087
  %v2089 = vsel %vm1811, %v1303, 0.0
  %v2090 = vadd.f32 %v2088, %v2089
  %v2091 = vsel %vm1811, %v1308, 0.0
  %v2092 = vadd.f32 %v2090, %v2091
  %v2093 = vsel %vm1811, %v1313, 0.0
  %v2094 = vadd.f32 %v2092, %v2093
  %v2095 = vsel %vm1811, %v1318, 0.0
  %v2096 = vadd.f32 %v2094, %v2095
  %v2097 = vsel %vm1811, %v1323, 0.0
  %v2098 = vadd.f32 %v2096, %v2097
  %v2099 = vsel %vm1811, %v1328, 0.0
  %v2100 = vadd.f32 %v2098, %v2099
  %v2101 = vsel %vm1811, %v1333, 0.0
  %v2102 = vadd.f32 %v2100, %v2101
  %v2103 = vsel %vm1811, %v1338, 0.0
  %v2104 = vadd.f32 %v2102, %v2103
  %v2105 = vsel %vm1811, %v1343, 0.0
  %v2106 = vadd.f32 %v2104, %v2105
  %v2107 = vsel %vm1811, %v1348, 0.0
  %v2108 = vadd.f32 %v2106, %v2107
  %v2109 = vsel %vm1811, %v1353, 0.0
  %v2110 = vadd.f32 %v2108, %v2109
  %v2111 = vsel %vm1811, %v1358, 0.0
  %v2112 = vadd.f32 %v2110, %v2111
  %v2113 = vsel %vm1811, %v1363, 0.0
  %v2114 = vadd.f32 %v2112, %v2113
  %v2115 = vsel %vm1811, %v1368, 0.0
  %v2116 = vadd.f32 %v2114, %v2115
  %v2117 = vsel %vm1811, %v1373, 0.0
  %v2118 = vadd.f32 %v2116, %v2117
  %v2119 = vsel %vm1811, %v1378, 0.0
  %v2120 = vadd.f32 %v2118, %v2119
  %v2121 = vsel %vm1811, %v1383, 0.0
  %v2122 = vadd.f32 %v2120, %v2121
  %v2123 = vsel %vm1811, %v1388, 0.0
  %v2124 = vadd.f32 %v2122, %v2123
  %v2125 = vsel %vm1811, %v1393, 0.0
  %v2126 = vadd.f32 %v2124, %v2125
  %v2127 = vsel %vm1811, %v1398, 0.0
  %v2128 = vadd.f32 %v2126, %v2127
  %v2129 = vsel %vm1811, %v1403, 0.0
  %v2130 = vadd.f32 %v2128, %v2129
  %v2131 = vsel %vm1811, %v1408, 0.0
  %v2132 = vadd.f32 %v2130, %v2131
  %v2133 = vsel %vm1811, %v1413, 0.0
  %v2134 = vadd.f32 %v2132, %v2133
  %v2135 = vsel %vm1811, %v1418, 0.0
  %v2136 = vadd.f32 %v2134, %v2135
  %v2137 = vsel %vm1811, %v1423, 0.0
  %v2138 = vadd.f32 %v2136, %v2137
  %v2139 = vsel %vm1811, %v1428, 0.0
  %v2140 = vadd.f32 %v2138, %v2139
  %v2141 = vsel %vm1811, %v1433, 0.0
  %v2142 = vadd.f32 %v2140, %v2141
  %v2143 = vsel %vm1811, %v1438, 0.0
  %v2144 = vadd.f32 %v2142, %v2143
  %v2145 = vsel %vm1811, %v1443, 0.0
  %v2146 = vadd.f32 %v2144, %v2145
  %v2147 = vsel %vm1811, %v1448, 0.0
  %v2148 = vadd.f32 %v2146, %v2147
  %v2149 = vsel %vm1811, %v1453, 0.0
  %v2150 = vadd.f32 %v2148, %v2149
  %v2151 = vsel %vm1811, %v1458, 0.0
  %v2152 = vadd.f32 %v2150, %v2151
  %v2153 = vsel %vm1811, %v1463, 0.0
  %v2154 = vadd.f32 %v2152, %v2153
  %v2155 = vsel %vm1811, %v1468, 0.0
  %v2156 = vadd.f32 %v2154, %v2155
  %v2157 = vsel %vm1811, %v1473, 0.0
  %v2158 = vadd.f32 %v2156, %v2157
  %v2159 = vsel %vm1811, %v1478, 0.0
  %v2160 = vadd.f32 %v2158, %v2159
  %v2161 = vsel %vm1811, %v1483, 0.0
  %v2162 = vadd.f32 %v2160, %v2161
  %v2163 = vsel %vm1811, %v1488, 0.0
  %v2164 = vadd.f32 %v2162, %v2163
  %v2165 = vsel %vm1811, %v1493, 0.0
  %v2166 = vadd.f32 %v2164, %v2165
  %v2167 = vsel %vm1811, %v1498, 0.0
  %v2168 = vadd.f32 %v2166, %v2167
  %v2169 = vsel %vm1811, %v1503, 0.0
  %v2170 = vadd.f32 %v2168, %v2169
  %v2171 = vsel %vm1811, %v1508, 0.0
  %v2172 = vadd.f32 %v2170, %v2171
  %v2173 = vsel %vm1811, %v1513, 0.0
  %v2174 = vadd.f32 %v2172, %v2173
  %v2175 = vsel %vm1811, %v1518, 0.0
  %v2176 = vadd.f32 %v2174, %v2175
  %v2177 = vsel %vm1811, %v1523, 0.0
  %v2178 = vadd.f32 %v2176, %v2177
  %v2179 = vsel %vm1811, %v1528, 0.0
  %v2180 = vadd.f32 %v2178, %v2179
  %v2181 = vsel %vm1811, %v1533, 0.0
  %v2182 = vadd.f32 %v2180, %v2181
  %v2183 = vsel %vm1811, %v1538, 0.0
  %v2184 = vadd.f32 %v2182, %v2183
  %v2185 = vsel %vm1811, %v1543, 0.0
  %v2186 = vadd.f32 %v2184, %v2185
  %v2187 = vsel %vm1811, %v1548, 0.0
  %v2188 = vadd.f32 %v2186, %v2187
  %v2189 = vsel %vm1811, %v1553, 0.0
  %v2190 = vadd.f32 %v2188, %v2189
  %v2191 = vsel %vm1811, %v1558, 0.0
  %v2192 = vadd.f32 %v2190, %v2191
  %v2193 = vsel %vm1811, %v1563, 0.0
  %v2194 = vadd.f32 %v2192, %v2193
  %v2195 = vsel %vm1811, %v1568, 0.0
  %v2196 = vadd.f32 %v2194, %v2195
  %v2197 = vsel %vm1811, %v1573, 0.0
  %v2198 = vadd.f32 %v2196, %v2197
  %v2199 = vsel %vm1811, %v1578, 0.0
  %v2200 = vadd.f32 %v2198, %v2199
  %v2201 = vsel %vm1811, %v1583, 0.0
  %v2202 = vadd.f32 %v2200, %v2201
  %v2203 = vsel %vm1811, %v1588, 0.0
  %v2204 = vadd.f32 %v2202, %v2203
  %v2205 = vsel %vm1811, %v1593, 0.0
  %v2206 = vadd.f32 %v2204, %v2205
  %v2207 = vsel %vm1811, %v1598, 0.0
  %v2208 = vadd.f32 %v2206, %v2207
  %v2209 = vsel %vm1811, %v1603, 0.0
  %v2210 = vadd.f32 %v2208, %v2209
  %v2211 = vsel %vm1811, %v1608, 0.0
  %v2212 = vadd.f32 %v2210, %v2211
  %v2213 = vsel %vm1811, %v1613, 0.0
  %v2214 = vadd.f32 %v2212, %v2213
  %v2215 = vsel %vm1811, %v1618, 0.0
  %v2216 = vadd.f32 %v2214, %v2215
  %v2217 = vsel %vm1811, %v1623, 0.0
  %v2218 = vadd.f32 %v2216, %v2217
  %v2219 = vsel %vm1811, %v1628, 0.0
  %v2220 = vadd.f32 %v2218, %v2219
  %v2221 = vsel %vm1811, %v1633, 0.0
  %v2222 = vadd.f32 %v2220, %v2221
  %v2223 = vsel %vm1811, %v1638, 0.0
  %v2224 = vadd.f32 %v2222, %v2223
  %v2225 = vsel %vm1811, %v1643, 0.0
  %v2226 = vadd.f32 %v2224, %v2225
  %v2227 = vsel %vm1811, %v1648, 0.0
  %v2228 = vadd.f32 %v2226, %v2227
  %v2229 = vsel %vm1811, %v1653, 0.0
  %v2230 = vadd.f32 %v2228, %v2229
  %v2231 = vsel %vm1811, %v1658, 0.0
  %v2232 = vadd.f32 %v2230, %v2231
  %v2233 = vsel %vm1811, %v1663, 0.0
  %v2234 = vadd.f32 %v2232, %v2233
  %v2235 = vsel %vm1811, %v1668, 0.0
  %v2236 = vadd.f32 %v2234, %v2235
  %v2237 = vsel %vm1811, %v1673, 0.0
  %v2238 = vadd.f32 %v2236, %v2237
  %v2239 = vsel %vm1811, %v1678, 0.0
  %v2240 = vadd.f32 %v2238, %v2239
  %v2241 = vsel %vm1811, %v1683, 0.0
  %v2242 = vadd.f32 %v2240, %v2241
  %v2243 = vsel %vm1811, %v1688, 0.0
  %v2244 = vadd.f32 %v2242, %v2243
  %v2245 = vsel %vm1811, %v1693, 0.0
  %v2246 = vadd.f32 %v2244, %v2245
  %v2247 = vsel %vm1811, %v1698, 0.0
  %v2248 = vadd.f32 %v2246, %v2247
  %v2249 = vsel %vm1811, %v1703, 0.0
  %v2250 = vadd.f32 %v2248, %v2249
  %v2251 = vsel %vm1811, %v1708, 0.0
  %v2252 = vadd.f32 %v2250, %v2251
  %v2253 = vsel %vm1811, %v1713, 0.0
  %v2254 = vadd.f32 %v2252, %v2253
  %v2255 = vsel %vm1811, %v1718, 0.0
  %v2256 = vadd.f32 %v2254, %v2255
  %v2257 = vsel %vm1811, %v1723, 0.0
  %v2258 = vadd.f32 %v2256, %v2257
  %v2259 = vsel %vm1811, %v1728, 0.0
  %v2260 = vadd.f32 %v2258, %v2259
  %v2261 = vsel %vm1811, %v1733, 0.0
  %v2262 = vadd.f32 %v2260, %v2261
  %v2263 = vsel %vm1811, %v1738, 0.0
  %v2264 = vadd.f32 %v2262, %v2263
  %v2265 = vsel %vm1811, %v1743, 0.0
  %v2266 = vadd.f32 %v2264, %v2265
  %v2267 = vsel %vm1811, %v1748, 0.0
  %v2268 = vadd.f32 %v2266, %v2267
  %v2269 = vsel %vm1811, %v1753, 0.0
  %v2270 = vadd.f32 %v2268, %v2269
  %v2271 = vsel %vm1811, %v1758, 0.0
  %v2272 = vadd.f32 %v2270, %v2271
  %v2273 = vsel %vm1811, %v1763, 0.0
  %v2274 = vadd.f32 %v2272, %v2273
  %v2275 = vsel %vm1811, %v1768, 0.0
  %v2276 = vadd.f32 %v2274, %v2275
  %v2277 = vsel %vm1811, %v1773, 0.0
  %v2278 = vadd.f32 %v2276, %v2277
  %v2279 = vsel %vm1811, %v1778, 0.0
  %v2280 = vadd.f32 %v2278, %v2279
  %v2281 = vsel %vm1811, %v1783, 0.0
  %v2282 = vadd.f32 %v2280, %v2281
  %v2283 = vsel %vm1811, %v1788, 0.0
  %v2284 = vadd.f32 %v2282, %v2283
  %v2285 = vsel %vm1811, %v1793, 0.0
  %v2286 = vadd.f32 %v2284, %v2285
  %v2287 = vsel %vm1811, %v1798, 0.0
  %v2288 = vadd.f32 %v2286, %v2287
  %v2289 = vsel %vm1811, %v1803, 0.0
  %v2290 = vadd.f32 %v2288, %v2289
  %vm2291 = vcmask 254976
  %v2292 = vsel %vm2291, %v1808, 0.0
  %v2293 = vadd.f32 %v2290, %v2292
  %v2294 = vrot.slane %v2293, 4
  %v2295 = vadd.f32 %v2293, %v2294
  %v2296 = vrot.slane %v2295, 2
  %v2297 = vadd.f32 %v2295, %v2296
  %v2298 = vrot.slane %v2297, 1
  %v2299 = vadd.f32 %v2297, %v2298
  %v2300 = vrcp.pop 1922.0
  %v2301 = vmul.f32 %v2299, %v2300
  %v2302 = vmul.f32 %v608, %v608
  %v2303 = vmul.f32 %v613, %v613
  %v2304 = vmul.f32 %v618, %v618
  %v2305 = vmul.f32 %v623, %v623
  %v2306 = vmul.f32 %v628, %v628
  %v2307 = vmul.f32 %v633, %v633
  %v2308 = vmul.f32 %v638, %v638
  %v2309 = vmul.f32 %v643, %v643
  %v2310 = vmul.f32 %v648, %v648
  %v2311 = vmul.f32 %v653, %v653
  %v2312 = vmul.f32 %v658, %v658
  %v2313 = vmul.f32 %v663, %v663
  %v2314 = vmul.f32 %v668, %v668
  %v2315 = vmul.f32 %v673, %v673
  %v2316 = vmul.f32 %v678, %v678
  %v2317 = vmul.f32 %v683, %v683
  %v2318 = vmul.f32 %v688, %v688
  %v2319 = vmul.f32 %v693, %v693
  %v2320 = vmul.f32 %v698, %v698
  %v2321 = vmul.f32 %v703, %v703
  %v2322 = vmul.f32 %v708, %v708
  %v2323 = vmul.f32 %v713, %v713
  %v2324 = vmul.f32 %v718, %v718
  %v2325 = vmul.f32 %v723, %v723
  %v2326 = vmul.f32 %v728, %v728
  %v2327 = vmul.f32 %v733, %v733
  %v2328 = vmul.f32 %v738, %v738
  %v2329 = vmul.f32 %v743, %v743
  %v2330 = vmul.f32 %v748, %v748
  %v2331 = vmul.f32 %v753, %v753
  %v2332 = vmul.f32 %v758, %v758
  %v2333 = vmul.f32 %v763, %v763
  %v2334 = vmul.f32 %v768, %v768
  %v2335 = vmul.f32 %v773, %v773
  %v2336 = vmul.f32 %v778, %v778
  %v2337 = vmul.f32 %v783, %v783
  %v2338 = vmul.f32 %v788, %v788
  %v2339 = vmul.f32 %v793, %v793
  %v2340 = vmul.f32 %v798, %v798
  %v2341 = vmul.f32 %v803, %v803
  %v2342 = vmul.f32 %v808, %v808
  %v2343 = vmul.f32 %v813, %v813
  %v2344 = vmul.f32 %v818, %v818
  %v2345 = vmul.f32 %v823, %v823
  %v2346 = vmul.f32 %v828, %v828
  %v2347 = vmul.f32 %v833, %v833
  %v2348 = vmul.f32 %v838, %v838
  %v2349 = vmul.f32 %v843, %v843
  %v2350 = vmul.f32 %v848, %v848
  %v2351 = vmul.f32 %v853, %v853
  %v2352 = vmul.f32 %v858, %v858
  %v2353 = vmul.f32 %v863, %v863
  %v2354 = vmul.f32 %v868, %v868
  %v2355 = vmul.f32 %v873, %v873
  %v2356 = vmul.f32 %v878, %v878
  %v2357 = vmul.f32 %v883, %v883
  %v2358 = vmul.f32 %v888, %v888
  %v2359 = vmul.f32 %v893, %v893
  %v2360 = vmul.f32 %v898, %v898
  %v2361 = vmul.f32 %v903, %v903
  %v2362 = vmul.f32 %v908, %v908
  %v2363 = vmul.f32 %v913, %v913
  %v2364 = vmul.f32 %v918, %v918
  %v2365 = vmul.f32 %v923, %v923
  %v2366 = vmul.f32 %v928, %v928
  %v2367 = vmul.f32 %v933, %v933
  %v2368 = vmul.f32 %v938, %v938
  %v2369 = vmul.f32 %v943, %v943
  %v2370 = vmul.f32 %v948, %v948
  %v2371 = vmul.f32 %v953, %v953
  %v2372 = vmul.f32 %v958, %v958
  %v2373 = vmul.f32 %v963, %v963
  %v2374 = vmul.f32 %v968, %v968
  %v2375 = vmul.f32 %v973, %v973
  %v2376 = vmul.f32 %v978, %v978
  %v2377 = vmul.f32 %v983, %v983
  %v2378 = vmul.f32 %v988, %v988
  %v2379 = vmul.f32 %v993, %v993
  %v2380 = vmul.f32 %v998, %v998
  %v2381 = vmul.f32 %v1003, %v1003
  %v2382 = vmul.f32 %v1008, %v1008
  %v2383 = vmul.f32 %v1013, %v1013
  %v2384 = vmul.f32 %v1018, %v1018
  %v2385 = vmul.f32 %v1023, %v1023
  %v2386 = vmul.f32 %v1028, %v1028
  %v2387 = vmul.f32 %v1033, %v1033
  %v2388 = vmul.f32 %v1038, %v1038
  %v2389 = vmul.f32 %v1043, %v1043
  %v2390 = vmul.f32 %v1048, %v1048
  %v2391 = vmul.f32 %v1053, %v1053
  %v2392 = vmul.f32 %v1058, %v1058
  %v2393 = vmul.f32 %v1063, %v1063
  %v2394 = vmul.f32 %v1068, %v1068
  %v2395 = vmul.f32 %v1073, %v1073
  %v2396 = vmul.f32 %v1078, %v1078
  %v2397 = vmul.f32 %v1083, %v1083
  %v2398 = vmul.f32 %v1088, %v1088
  %v2399 = vmul.f32 %v1093, %v1093
  %v2400 = vmul.f32 %v1098, %v1098
  %v2401 = vmul.f32 %v1103, %v1103
  %v2402 = vmul.f32 %v1108, %v1108
  %v2403 = vmul.f32 %v1113, %v1113
  %v2404 = vmul.f32 %v1118, %v1118
  %v2405 = vmul.f32 %v1123, %v1123
  %v2406 = vmul.f32 %v1128, %v1128
  %v2407 = vmul.f32 %v1133, %v1133
  %v2408 = vmul.f32 %v1138, %v1138
  %v2409 = vmul.f32 %v1143, %v1143
  %v2410 = vmul.f32 %v1148, %v1148
  %v2411 = vmul.f32 %v1153, %v1153
  %v2412 = vmul.f32 %v1158, %v1158
  %v2413 = vmul.f32 %v1163, %v1163
  %v2414 = vmul.f32 %v1168, %v1168
  %v2415 = vmul.f32 %v1173, %v1173
  %v2416 = vmul.f32 %v1178, %v1178
  %v2417 = vmul.f32 %v1183, %v1183
  %v2418 = vmul.f32 %v1188, %v1188
  %v2419 = vmul.f32 %v1193, %v1193
  %v2420 = vmul.f32 %v1198, %v1198
  %v2421 = vmul.f32 %v1203, %v1203
  %v2422 = vmul.f32 %v1208, %v1208
  %v2423 = vmul.f32 %v1213, %v1213
  %v2424 = vmul.f32 %v1218, %v1218
  %v2425 = vmul.f32 %v1223, %v1223
  %v2426 = vmul.f32 %v1228, %v1228
  %v2427 = vmul.f32 %v1233, %v1233
  %v2428 = vmul.f32 %v1238, %v1238
  %v2429 = vmul.f32 %v1243, %v1243
  %v2430 = vmul.f32 %v1248, %v1248
  %v2431 = vmul.f32 %v1253, %v1253
  %v2432 = vmul.f32 %v1258, %v1258
  %v2433 = vmul.f32 %v1263, %v1263
  %v2434 = vmul.f32 %v1268, %v1268
  %v2435 = vmul.f32 %v1273, %v1273
  %v2436 = vmul.f32 %v1278, %v1278
  %v2437 = vmul.f32 %v1283, %v1283
  %v2438 = vmul.f32 %v1288, %v1288
  %v2439 = vmul.f32 %v1293, %v1293
  %v2440 = vmul.f32 %v1298, %v1298
  %v2441 = vmul.f32 %v1303, %v1303
  %v2442 = vmul.f32 %v1308, %v1308
  %v2443 = vmul.f32 %v1313, %v1313
  %v2444 = vmul.f32 %v1318, %v1318
  %v2445 = vmul.f32 %v1323, %v1323
  %v2446 = vmul.f32 %v1328, %v1328
  %v2447 = vmul.f32 %v1333, %v1333
  %v2448 = vmul.f32 %v1338, %v1338
  %v2449 = vmul.f32 %v1343, %v1343
  %v2450 = vmul.f32 %v1348, %v1348
  %v2451 = vmul.f32 %v1353, %v1353
  %v2452 = vmul.f32 %v1358, %v1358
  %v2453 = vmul.f32 %v1363, %v1363
  %v2454 = vmul.f32 %v1368, %v1368
  %v2455 = vmul.f32 %v1373, %v1373
  %v2456 = vmul.f32 %v1378, %v1378
  %v2457 = vmul.f32 %v1383, %v1383
  %v2458 = vmul.f32 %v1388, %v1388
  %v2459 = vmul.f32 %v1393, %v1393
  %v2460 = vmul.f32 %v1398, %v1398
  %v2461 = vmul.f32 %v1403, %v1403
  %v2462 = vmul.f32 %v1408, %v1408
  %v2463 = vmul.f32 %v1413, %v1413
  %v2464 = vmul.f32 %v1418, %v1418
  %v2465 = vmul.f32 %v1423, %v1423
  %v2466 = vmul.f32 %v1428, %v1428
  %v2467 = vmul.f32 %v1433, %v1433
  %v2468 = vmul.f32 %v1438, %v1438
  %v2469 = vmul.f32 %v1443, %v1443
  %v2470 = vmul.f32 %v1448, %v1448
  %v2471 = vmul.f32 %v1453, %v1453
  %v2472 = vmul.f32 %v1458, %v1458
  %v2473 = vmul.f32 %v1463, %v1463
  %v2474 = vmul.f32 %v1468, %v1468
  %v2475 = vmul.f32 %v1473, %v1473
  %v2476 = vmul.f32 %v1478, %v1478
  %v2477 = vmul.f32 %v1483, %v1483
  %v2478 = vmul.f32 %v1488, %v1488
  %v2479 = vmul.f32 %v1493, %v1493
  %v2480 = vmul.f32 %v1498, %v1498
  %v2481 = vmul.f32 %v1503, %v1503
  %v2482 = vmul.f32 %v1508, %v1508
  %v2483 = vmul.f32 %v1513, %v1513
  %v2484 = vmul.f32 %v1518, %v1518
  %v2485 = vmul.f32 %v1523, %v1523
  %v2486 = vmul.f32 %v1528, %v1528
  %v2487 = vmul.f32 %v1533, %v1533
  %v2488 = vmul.f32 %v1538, %v1538
  %v2489 = vmul.f32 %v1543, %v1543
  %v2490 = vmul.f32 %v1548, %v1548
  %v2491 = vmul.f32 %v1553, %v1553
  %v2492 = vmul.f32 %v1558, %v1558
  %v2493 = vmul.f32 %v1563, %v1563
  %v2494 = vmul.f32 %v1568, %v1568
  %v2495 = vmul.f32 %v1573, %v1573
  %v2496 = vmul.f32 %v1578, %v1578
  %v2497 = vmul.f32 %v1583, %v1583
  %v2498 = vmul.f32 %v1588, %v1588
  %v2499 = vmul.f32 %v1593, %v1593
  %v2500 = vmul.f32 %v1598, %v1598
  %v2501 = vmul.f32 %v1603, %v1603
  %v2502 = vmul.f32 %v1608, %v1608
  %v2503 = vmul.f32 %v1613, %v1613
  %v2504 = vmul.f32 %v1618, %v1618
  %v2505 = vmul.f32 %v1623, %v1623
  %v2506 = vmul.f32 %v1628, %v1628
  %v2507 = vmul.f32 %v1633, %v1633
  %v2508 = vmul.f32 %v1638, %v1638
  %v2509 = vmul.f32 %v1643, %v1643
  %v2510 = vmul.f32 %v1648, %v1648
  %v2511 = vmul.f32 %v1653, %v1653
  %v2512 = vmul.f32 %v1658, %v1658
  %v2513 = vmul.f32 %v1663, %v1663
  %v2514 = vmul.f32 %v1668, %v1668
  %v2515 = vmul.f32 %v1673, %v1673
  %v2516 = vmul.f32 %v1678, %v1678
  %v2517 = vmul.f32 %v1683, %v1683
  %v2518 = vmul.f32 %v1688, %v1688
  %v2519 = vmul.f32 %v1693, %v1693
  %v2520 = vmul.f32 %v1698, %v1698
  %v2521 = vmul.f32 %v1703, %v1703
  %v2522 = vmul.f32 %v1708, %v1708
  %v2523 = vmul.f32 %v1713, %v1713
  %v2524 = vmul.f32 %v1718, %v1718
  %v2525 = vmul.f32 %v1723, %v1723
  %v2526 = vmul.f32 %v1728, %v1728
  %v2527 = vmul.f32 %v1733, %v1733
  %v2528 = vmul.f32 %v1738, %v1738
  %v2529 = vmul.f32 %v1743, %v1743
  %v2530 = vmul.f32 %v1748, %v1748
  %v2531 = vmul.f32 %v1753, %v1753
  %v2532 = vmul.f32 %v1758, %v1758
  %v2533 = vmul.f32 %v1763, %v1763
  %v2534 = vmul.f32 %v1768, %v1768
  %v2535 = vmul.f32 %v1773, %v1773
  %v2536 = vmul.f32 %v1778, %v1778
  %v2537 = vmul.f32 %v1783, %v1783
  %v2538 = vmul.f32 %v1788, %v1788
  %v2539 = vmul.f32 %v1793, %v1793
  %v2540 = vmul.f32 %v1798, %v1798
  %v2541 = vmul.f32 %v1803, %v1803
  %v2542 = vmul.f32 %v1808, %v1808
  %v2543 = vsel %vm1811, %v2302, 0.0
  %v2544 = vsel %vm1811, %v2303, 0.0
  %v2545 = vadd.f32 %v2543, %v2544
  %v2546 = vsel %vm1811, %v2304, 0.0
  %v2547 = vadd.f32 %v2545, %v2546
  %v2548 = vsel %vm1811, %v2305, 0.0
  %v2549 = vadd.f32 %v2547, %v2548
  %v2550 = vsel %vm1811, %v2306, 0.0
  %v2551 = vadd.f32 %v2549, %v2550
  %v2552 = vsel %vm1811, %v2307, 0.0
  %v2553 = vadd.f32 %v2551, %v2552
  %v2554 = vsel %vm1811, %v2308, 0.0
  %v2555 = vadd.f32 %v2553, %v2554
  %v2556 = vsel %vm1811, %v2309, 0.0
  %v2557 = vadd.f32 %v2555, %v2556
  %v2558 = vsel %vm1811, %v2310, 0.0
  %v2559 = vadd.f32 %v2557, %v2558
  %v2560 = vsel %vm1811, %v2311, 0.0
  %v2561 = vadd.f32 %v2559, %v2560
  %v2562 = vsel %vm1811, %v2312, 0.0
  %v2563 = vadd.f32 %v2561, %v2562
  %v2564 = vsel %vm1811, %v2313, 0.0
  %v2565 = vadd.f32 %v2563, %v2564
  %v2566 = vsel %vm1811, %v2314, 0.0
  %v2567 = vadd.f32 %v2565, %v2566
  %v2568 = vsel %vm1811, %v2315, 0.0
  %v2569 = vadd.f32 %v2567, %v2568
  %v2570 = vsel %vm1811, %v2316, 0.0
  %v2571 = vadd.f32 %v2569, %v2570
  %v2572 = vsel %vm1811, %v2317, 0.0
  %v2573 = vadd.f32 %v2571, %v2572
  %v2574 = vsel %vm1811, %v2318, 0.0
  %v2575 = vadd.f32 %v2573, %v2574
  %v2576 = vsel %vm1811, %v2319, 0.0
  %v2577 = vadd.f32 %v2575, %v2576
  %v2578 = vsel %vm1811, %v2320, 0.0
  %v2579 = vadd.f32 %v2577, %v2578
  %v2580 = vsel %vm1811, %v2321, 0.0
  %v2581 = vadd.f32 %v2579, %v2580
  %v2582 = vsel %vm1811, %v2322, 0.0
  %v2583 = vadd.f32 %v2581, %v2582
  %v2584 = vsel %vm1811, %v2323, 0.0
  %v2585 = vadd.f32 %v2583, %v2584
  %v2586 = vsel %vm1811, %v2324, 0.0
  %v2587 = vadd.f32 %v2585, %v2586
  %v2588 = vsel %vm1811, %v2325, 0.0
  %v2589 = vadd.f32 %v2587, %v2588
  %v2590 = vsel %vm1811, %v2326, 0.0
  %v2591 = vadd.f32 %v2589, %v2590
  %v2592 = vsel %vm1811, %v2327, 0.0
  %v2593 = vadd.f32 %v2591, %v2592
  %v2594 = vsel %vm1811, %v2328, 0.0
  %v2595 = vadd.f32 %v2593, %v2594
  %v2596 = vsel %vm1811, %v2329, 0.0
  %v2597 = vadd.f32 %v2595, %v2596
  %v2598 = vsel %vm1811, %v2330, 0.0
  %v2599 = vadd.f32 %v2597, %v2598
  %v2600 = vsel %vm1811, %v2331, 0.0
  %v2601 = vadd.f32 %v2599, %v2600
  %v2602 = vsel %vm1811, %v2332, 0.0
  %v2603 = vadd.f32 %v2601, %v2602
  %v2604 = vsel %vm1811, %v2333, 0.0
  %v2605 = vadd.f32 %v2603, %v2604
  %v2606 = vsel %vm1811, %v2334, 0.0
  %v2607 = vadd.f32 %v2605, %v2606
  %v2608 = vsel %vm1811, %v2335, 0.0
  %v2609 = vadd.f32 %v2607, %v2608
  %v2610 = vsel %vm1811, %v2336, 0.0
  %v2611 = vadd.f32 %v2609, %v2610
  %v2612 = vsel %vm1811, %v2337, 0.0
  %v2613 = vadd.f32 %v2611, %v2612
  %v2614 = vsel %vm1811, %v2338, 0.0
  %v2615 = vadd.f32 %v2613, %v2614
  %v2616 = vsel %vm1811, %v2339, 0.0
  %v2617 = vadd.f32 %v2615, %v2616
  %v2618 = vsel %vm1811, %v2340, 0.0
  %v2619 = vadd.f32 %v2617, %v2618
  %v2620 = vsel %vm1811, %v2341, 0.0
  %v2621 = vadd.f32 %v2619, %v2620
  %v2622 = vsel %vm1811, %v2342, 0.0
  %v2623 = vadd.f32 %v2621, %v2622
  %v2624 = vsel %vm1811, %v2343, 0.0
  %v2625 = vadd.f32 %v2623, %v2624
  %v2626 = vsel %vm1811, %v2344, 0.0
  %v2627 = vadd.f32 %v2625, %v2626
  %v2628 = vsel %vm1811, %v2345, 0.0
  %v2629 = vadd.f32 %v2627, %v2628
  %v2630 = vsel %vm1811, %v2346, 0.0
  %v2631 = vadd.f32 %v2629, %v2630
  %v2632 = vsel %vm1811, %v2347, 0.0
  %v2633 = vadd.f32 %v2631, %v2632
  %v2634 = vsel %vm1811, %v2348, 0.0
  %v2635 = vadd.f32 %v2633, %v2634
  %v2636 = vsel %vm1811, %v2349, 0.0
  %v2637 = vadd.f32 %v2635, %v2636
  %v2638 = vsel %vm1811, %v2350, 0.0
  %v2639 = vadd.f32 %v2637, %v2638
  %v2640 = vsel %vm1811, %v2351, 0.0
  %v2641 = vadd.f32 %v2639, %v2640
  %v2642 = vsel %vm1811, %v2352, 0.0
  %v2643 = vadd.f32 %v2641, %v2642
  %v2644 = vsel %vm1811, %v2353, 0.0
  %v2645 = vadd.f32 %v2643, %v2644
  %v2646 = vsel %vm1811, %v2354, 0.0
  %v2647 = vadd.f32 %v2645, %v2646
  %v2648 = vsel %vm1811, %v2355, 0.0
  %v2649 = vadd.f32 %v2647, %v2648
  %v2650 = vsel %vm1811, %v2356, 0.0
  %v2651 = vadd.f32 %v2649, %v2650
  %v2652 = vsel %vm1811, %v2357, 0.0
  %v2653 = vadd.f32 %v2651, %v2652
  %v2654 = vsel %vm1811, %v2358, 0.0
  %v2655 = vadd.f32 %v2653, %v2654
  %v2656 = vsel %vm1811, %v2359, 0.0
  %v2657 = vadd.f32 %v2655, %v2656
  %v2658 = vsel %vm1811, %v2360, 0.0
  %v2659 = vadd.f32 %v2657, %v2658
  %v2660 = vsel %vm1811, %v2361, 0.0
  %v2661 = vadd.f32 %v2659, %v2660
  %v2662 = vsel %vm1811, %v2362, 0.0
  %v2663 = vadd.f32 %v2661, %v2662
  %v2664 = vsel %vm1811, %v2363, 0.0
  %v2665 = vadd.f32 %v2663, %v2664
  %v2666 = vsel %vm1811, %v2364, 0.0
  %v2667 = vadd.f32 %v2665, %v2666
  %v2668 = vsel %vm1811, %v2365, 0.0
  %v2669 = vadd.f32 %v2667, %v2668
  %v2670 = vsel %vm1811, %v2366, 0.0
  %v2671 = vadd.f32 %v2669, %v2670
  %v2672 = vsel %vm1811, %v2367, 0.0
  %v2673 = vadd.f32 %v2671, %v2672
  %v2674 = vsel %vm1811, %v2368, 0.0
  %v2675 = vadd.f32 %v2673, %v2674
  %v2676 = vsel %vm1811, %v2369, 0.0
  %v2677 = vadd.f32 %v2675, %v2676
  %v2678 = vsel %vm1811, %v2370, 0.0
  %v2679 = vadd.f32 %v2677, %v2678
  %v2680 = vsel %vm1811, %v2371, 0.0
  %v2681 = vadd.f32 %v2679, %v2680
  %v2682 = vsel %vm1811, %v2372, 0.0
  %v2683 = vadd.f32 %v2681, %v2682
  %v2684 = vsel %vm1811, %v2373, 0.0
  %v2685 = vadd.f32 %v2683, %v2684
  %v2686 = vsel %vm1811, %v2374, 0.0
  %v2687 = vadd.f32 %v2685, %v2686
  %v2688 = vsel %vm1811, %v2375, 0.0
  %v2689 = vadd.f32 %v2687, %v2688
  %v2690 = vsel %vm1811, %v2376, 0.0
  %v2691 = vadd.f32 %v2689, %v2690
  %v2692 = vsel %vm1811, %v2377, 0.0
  %v2693 = vadd.f32 %v2691, %v2692
  %v2694 = vsel %vm1811, %v2378, 0.0
  %v2695 = vadd.f32 %v2693, %v2694
  %v2696 = vsel %vm1811, %v2379, 0.0
  %v2697 = vadd.f32 %v2695, %v2696
  %v2698 = vsel %vm1811, %v2380, 0.0
  %v2699 = vadd.f32 %v2697, %v2698
  %v2700 = vsel %vm1811, %v2381, 0.0
  %v2701 = vadd.f32 %v2699, %v2700
  %v2702 = vsel %vm1811, %v2382, 0.0
  %v2703 = vadd.f32 %v2701, %v2702
  %v2704 = vsel %vm1811, %v2383, 0.0
  %v2705 = vadd.f32 %v2703, %v2704
  %v2706 = vsel %vm1811, %v2384, 0.0
  %v2707 = vadd.f32 %v2705, %v2706
  %v2708 = vsel %vm1811, %v2385, 0.0
  %v2709 = vadd.f32 %v2707, %v2708
  %v2710 = vsel %vm1811, %v2386, 0.0
  %v2711 = vadd.f32 %v2709, %v2710
  %v2712 = vsel %vm1811, %v2387, 0.0
  %v2713 = vadd.f32 %v2711, %v2712
  %v2714 = vsel %vm1811, %v2388, 0.0
  %v2715 = vadd.f32 %v2713, %v2714
  %v2716 = vsel %vm1811, %v2389, 0.0
  %v2717 = vadd.f32 %v2715, %v2716
  %v2718 = vsel %vm1811, %v2390, 0.0
  %v2719 = vadd.f32 %v2717, %v2718
  %v2720 = vsel %vm1811, %v2391, 0.0
  %v2721 = vadd.f32 %v2719, %v2720
  %v2722 = vsel %vm1811, %v2392, 0.0
  %v2723 = vadd.f32 %v2721, %v2722
  %v2724 = vsel %vm1811, %v2393, 0.0
  %v2725 = vadd.f32 %v2723, %v2724
  %v2726 = vsel %vm1811, %v2394, 0.0
  %v2727 = vadd.f32 %v2725, %v2726
  %v2728 = vsel %vm1811, %v2395, 0.0
  %v2729 = vadd.f32 %v2727, %v2728
  %v2730 = vsel %vm1811, %v2396, 0.0
  %v2731 = vadd.f32 %v2729, %v2730
  %v2732 = vsel %vm1811, %v2397, 0.0
  %v2733 = vadd.f32 %v2731, %v2732
  %v2734 = vsel %vm1811, %v2398, 0.0
  %v2735 = vadd.f32 %v2733, %v2734
  %v2736 = vsel %vm1811, %v2399, 0.0
  %v2737 = vadd.f32 %v2735, %v2736
  %v2738 = vsel %vm1811, %v2400, 0.0
  %v2739 = vadd.f32 %v2737, %v2738
  %v2740 = vsel %vm1811, %v2401, 0.0
  %v2741 = vadd.f32 %v2739, %v2740
  %v2742 = vsel %vm1811, %v2402, 0.0
  %v2743 = vadd.f32 %v2741, %v2742
  %v2744 = vsel %vm1811, %v2403, 0.0
  %v2745 = vadd.f32 %v2743, %v2744
  %v2746 = vsel %vm1811, %v2404, 0.0
  %v2747 = vadd.f32 %v2745, %v2746
  %v2748 = vsel %vm1811, %v2405, 0.0
  %v2749 = vadd.f32 %v2747, %v2748
  %v2750 = vsel %vm1811, %v2406, 0.0
  %v2751 = vadd.f32 %v2749, %v2750
  %v2752 = vsel %vm1811, %v2407, 0.0
  %v2753 = vadd.f32 %v2751, %v2752
  %v2754 = vsel %vm1811, %v2408, 0.0
  %v2755 = vadd.f32 %v2753, %v2754
  %v2756 = vsel %vm1811, %v2409, 0.0
  %v2757 = vadd.f32 %v2755, %v2756
  %v2758 = vsel %vm1811, %v2410, 0.0
  %v2759 = vadd.f32 %v2757, %v2758
  %v2760 = vsel %vm1811, %v2411, 0.0
  %v2761 = vadd.f32 %v2759, %v2760
  %v2762 = vsel %vm1811, %v2412, 0.0
  %v2763 = vadd.f32 %v2761, %v2762
  %v2764 = vsel %vm1811, %v2413, 0.0
  %v2765 = vadd.f32 %v2763, %v2764
  %v2766 = vsel %vm1811, %v2414, 0.0
  %v2767 = vadd.f32 %v2765, %v2766
  %v2768 = vsel %vm1811, %v2415, 0.0
  %v2769 = vadd.f32 %v2767, %v2768
  %v2770 = vsel %vm1811, %v2416, 0.0
  %v2771 = vadd.f32 %v2769, %v2770
  %v2772 = vsel %vm1811, %v2417, 0.0
  %v2773 = vadd.f32 %v2771, %v2772
  %v2774 = vsel %vm1811, %v2418, 0.0
  %v2775 = vadd.f32 %v2773, %v2774
  %v2776 = vsel %vm1811, %v2419, 0.0
  %v2777 = vadd.f32 %v2775, %v2776
  %v2778 = vsel %vm1811, %v2420, 0.0
  %v2779 = vadd.f32 %v2777, %v2778
  %v2780 = vsel %vm1811, %v2421, 0.0
  %v2781 = vadd.f32 %v2779, %v2780
  %v2782 = vsel %vm1811, %v2422, 0.0
  %v2783 = vadd.f32 %v2781, %v2782
  %v2784 = vsel %vm1811, %v2423, 0.0
  %v2785 = vadd.f32 %v2783, %v2784
  %v2786 = vsel %vm1811, %v2424, 0.0
  %v2787 = vadd.f32 %v2785, %v2786
  %v2788 = vsel %vm1811, %v2425, 0.0
  %v2789 = vadd.f32 %v2787, %v2788
  %v2790 = vsel %vm1811, %v2426, 0.0
  %v2791 = vadd.f32 %v2789, %v2790
  %v2792 = vsel %vm1811, %v2427, 0.0
  %v2793 = vadd.f32 %v2791, %v2792
  %v2794 = vsel %vm1811, %v2428, 0.0
  %v2795 = vadd.f32 %v2793, %v2794
  %v2796 = vsel %vm1811, %v2429, 0.0
  %v2797 = vadd.f32 %v2795, %v2796
  %v2798 = vsel %vm1811, %v2430, 0.0
  %v2799 = vadd.f32 %v2797, %v2798
  %v2800 = vsel %vm1811, %v2431, 0.0
  %v2801 = vadd.f32 %v2799, %v2800
  %v2802 = vsel %vm1811, %v2432, 0.0
  %v2803 = vadd.f32 %v2801, %v2802
  %v2804 = vsel %vm1811, %v2433, 0.0
  %v2805 = vadd.f32 %v2803, %v2804
  %v2806 = vsel %vm1811, %v2434, 0.0
  %v2807 = vadd.f32 %v2805, %v2806
  %v2808 = vsel %vm1811, %v2435, 0.0
  %v2809 = vadd.f32 %v2807, %v2808
  %v2810 = vsel %vm1811, %v2436, 0.0
  %v2811 = vadd.f32 %v2809, %v2810
  %v2812 = vsel %vm1811, %v2437, 0.0
  %v2813 = vadd.f32 %v2811, %v2812
  %v2814 = vsel %vm1811, %v2438, 0.0
  %v2815 = vadd.f32 %v2813, %v2814
  %v2816 = vsel %vm1811, %v2439, 0.0
  %v2817 = vadd.f32 %v2815, %v2816
  %v2818 = vsel %vm1811, %v2440, 0.0
  %v2819 = vadd.f32 %v2817, %v2818
  %v2820 = vsel %vm1811, %v2441, 0.0
  %v2821 = vadd.f32 %v2819, %v2820
  %v2822 = vsel %vm1811, %v2442, 0.0
  %v2823 = vadd.f32 %v2821, %v2822
  %v2824 = vsel %vm1811, %v2443, 0.0
  %v2825 = vadd.f32 %v2823, %v2824
  %v2826 = vsel %vm1811, %v2444, 0.0
  %v2827 = vadd.f32 %v2825, %v2826
  %v2828 = vsel %vm1811, %v2445, 0.0
  %v2829 = vadd.f32 %v2827, %v2828
  %v2830 = vsel %vm1811, %v2446, 0.0
  %v2831 = vadd.f32 %v2829, %v2830
  %v2832 = vsel %vm1811, %v2447, 0.0
  %v2833 = vadd.f32 %v2831, %v2832
  %v2834 = vsel %vm1811, %v2448, 0.0
  %v2835 = vadd.f32 %v2833, %v2834
  %v2836 = vsel %vm1811, %v2449, 0.0
  %v2837 = vadd.f32 %v2835, %v2836
  %v2838 = vsel %vm1811, %v2450, 0.0
  %v2839 = vadd.f32 %v2837, %v2838
  %v2840 = vsel %vm1811, %v2451, 0.0
  %v2841 = vadd.f32 %v2839, %v2840
  %v2842 = vsel %vm1811, %v2452, 0.0
  %v2843 = vadd.f32 %v2841, %v2842
  %v2844 = vsel %vm1811, %v2453, 0.0
  %v2845 = vadd.f32 %v2843, %v2844
  %v2846 = vsel %vm1811, %v2454, 0.0
  %v2847 = vadd.f32 %v2845, %v2846
  %v2848 = vsel %vm1811, %v2455, 0.0
  %v2849 = vadd.f32 %v2847, %v2848
  %v2850 = vsel %vm1811, %v2456, 0.0
  %v2851 = vadd.f32 %v2849, %v2850
  %v2852 = vsel %vm1811, %v2457, 0.0
  %v2853 = vadd.f32 %v2851, %v2852
  %v2854 = vsel %vm1811, %v2458, 0.0
  %v2855 = vadd.f32 %v2853, %v2854
  %v2856 = vsel %vm1811, %v2459, 0.0
  %v2857 = vadd.f32 %v2855, %v2856
  %v2858 = vsel %vm1811, %v2460, 0.0
  %v2859 = vadd.f32 %v2857, %v2858
  %v2860 = vsel %vm1811, %v2461, 0.0
  %v2861 = vadd.f32 %v2859, %v2860
  %v2862 = vsel %vm1811, %v2462, 0.0
  %v2863 = vadd.f32 %v2861, %v2862
  %v2864 = vsel %vm1811, %v2463, 0.0
  %v2865 = vadd.f32 %v2863, %v2864
  %v2866 = vsel %vm1811, %v2464, 0.0
  %v2867 = vadd.f32 %v2865, %v2866
  %v2868 = vsel %vm1811, %v2465, 0.0
  %v2869 = vadd.f32 %v2867, %v2868
  %v2870 = vsel %vm1811, %v2466, 0.0
  %v2871 = vadd.f32 %v2869, %v2870
  %v2872 = vsel %vm1811, %v2467, 0.0
  %v2873 = vadd.f32 %v2871, %v2872
  %v2874 = vsel %vm1811, %v2468, 0.0
  %v2875 = vadd.f32 %v2873, %v2874
  %v2876 = vsel %vm1811, %v2469, 0.0
  %v2877 = vadd.f32 %v2875, %v2876
  %v2878 = vsel %vm1811, %v2470, 0.0
  %v2879 = vadd.f32 %v2877, %v2878
  %v2880 = vsel %vm1811, %v2471, 0.0
  %v2881 = vadd.f32 %v2879, %v2880
  %v2882 = vsel %vm1811, %v2472, 0.0
  %v2883 = vadd.f32 %v2881, %v2882
  %v2884 = vsel %vm1811, %v2473, 0.0
  %v2885 = vadd.f32 %v2883, %v2884
  %v2886 = vsel %vm1811, %v2474, 0.0
  %v2887 = vadd.f32 %v2885, %v2886
  %v2888 = vsel %vm1811, %v2475, 0.0
  %v2889 = vadd.f32 %v2887, %v2888
  %v2890 = vsel %vm1811, %v2476, 0.0
  %v2891 = vadd.f32 %v2889, %v2890
  %v2892 = vsel %vm1811, %v2477, 0.0
  %v2893 = vadd.f32 %v2891, %v2892
  %v2894 = vsel %vm1811, %v2478, 0.0
  %v2895 = vadd.f32 %v2893, %v2894
  %v2896 = vsel %vm1811, %v2479, 0.0
  %v2897 = vadd.f32 %v2895, %v2896
  %v2898 = vsel %vm1811, %v2480, 0.0
  %v2899 = vadd.f32 %v2897, %v2898
  %v2900 = vsel %vm1811, %v2481, 0.0
  %v2901 = vadd.f32 %v2899, %v2900
  %v2902 = vsel %vm1811, %v2482, 0.0
  %v2903 = vadd.f32 %v2901, %v2902
  %v2904 = vsel %vm1811, %v2483, 0.0
  %v2905 = vadd.f32 %v2903, %v2904
  %v2906 = vsel %vm1811, %v2484, 0.0
  %v2907 = vadd.f32 %v2905, %v2906
  %v2908 = vsel %vm1811, %v2485, 0.0
  %v2909 = vadd.f32 %v2907, %v2908
  %v2910 = vsel %vm1811, %v2486, 0.0
  %v2911 = vadd.f32 %v2909, %v2910
  %v2912 = vsel %vm1811, %v2487, 0.0
  %v2913 = vadd.f32 %v2911, %v2912
  %v2914 = vsel %vm1811, %v2488, 0.0
  %v2915 = vadd.f32 %v2913, %v2914
  %v2916 = vsel %vm1811, %v2489, 0.0
  %v2917 = vadd.f32 %v2915, %v2916
  %v2918 = vsel %vm1811, %v2490, 0.0
  %v2919 = vadd.f32 %v2917, %v2918
  %v2920 = vsel %vm1811, %v2491, 0.0
  %v2921 = vadd.f32 %v2919, %v2920
  %v2922 = vsel %vm1811, %v2492, 0.0
  %v2923 = vadd.f32 %v2921, %v2922
  %v2924 = vsel %vm1811, %v2493, 0.0
  %v2925 = vadd.f32 %v2923, %v2924
  %v2926 = vsel %vm1811, %v2494, 0.0
  %v2927 = vadd.f32 %v2925, %v2926
  %v2928 = vsel %vm1811, %v2495, 0.0
  %v2929 = vadd.f32 %v2927, %v2928
  %v2930 = vsel %vm1811, %v2496, 0.0
  %v2931 = vadd.f32 %v2929, %v2930
  %v2932 = vsel %vm1811, %v2497, 0.0
  %v2933 = vadd.f32 %v2931, %v2932
  %v2934 = vsel %vm1811, %v2498, 0.0
  %v2935 = vadd.f32 %v2933, %v2934
  %v2936 = vsel %vm1811, %v2499, 0.0
  %v2937 = vadd.f32 %v2935, %v2936
  %v2938 = vsel %vm1811, %v2500, 0.0
  %v2939 = vadd.f32 %v2937, %v2938
  %v2940 = vsel %vm1811, %v2501, 0.0
  %v2941 = vadd.f32 %v2939, %v2940
  %v2942 = vsel %vm1811, %v2502, 0.0
  %v2943 = vadd.f32 %v2941, %v2942
  %v2944 = vsel %vm1811, %v2503, 0.0
  %v2945 = vadd.f32 %v2943, %v2944
  %v2946 = vsel %vm1811, %v2504, 0.0
  %v2947 = vadd.f32 %v2945, %v2946
  %v2948 = vsel %vm1811, %v2505, 0.0
  %v2949 = vadd.f32 %v2947, %v2948
  %v2950 = vsel %vm1811, %v2506, 0.0
  %v2951 = vadd.f32 %v2949, %v2950
  %v2952 = vsel %vm1811, %v2507, 0.0
  %v2953 = vadd.f32 %v2951, %v2952
  %v2954 = vsel %vm1811, %v2508, 0.0
  %v2955 = vadd.f32 %v2953, %v2954
  %v2956 = vsel %vm1811, %v2509, 0.0
  %v2957 = vadd.f32 %v2955, %v2956
  %v2958 = vsel %vm1811, %v2510, 0.0
  %v2959 = vadd.f32 %v2957, %v2958
  %v2960 = vsel %vm1811, %v2511, 0.0
  %v2961 = vadd.f32 %v2959, %v2960
  %v2962 = vsel %vm1811, %v2512, 0.0
  %v2963 = vadd.f32 %v2961, %v2962
  %v2964 = vsel %vm1811, %v2513, 0.0
  %v2965 = vadd.f32 %v2963, %v2964
  %v2966 = vsel %vm1811, %v2514, 0.0
  %v2967 = vadd.f32 %v2965, %v2966
  %v2968 = vsel %vm1811, %v2515, 0.0
  %v2969 = vadd.f32 %v2967, %v2968
  %v2970 = vsel %vm1811, %v2516, 0.0
  %v2971 = vadd.f32 %v2969, %v2970
  %v2972 = vsel %vm1811, %v2517, 0.0
  %v2973 = vadd.f32 %v2971, %v2972
  %v2974 = vsel %vm1811, %v2518, 0.0
  %v2975 = vadd.f32 %v2973, %v2974
  %v2976 = vsel %vm1811, %v2519, 0.0
  %v2977 = vadd.f32 %v2975, %v2976
  %v2978 = vsel %vm1811, %v2520, 0.0
  %v2979 = vadd.f32 %v2977, %v2978
  %v2980 = vsel %vm1811, %v2521, 0.0
  %v2981 = vadd.f32 %v2979, %v2980
  %v2982 = vsel %vm1811, %v2522, 0.0
  %v2983 = vadd.f32 %v2981, %v2982
  %v2984 = vsel %vm1811, %v2523, 0.0
  %v2985 = vadd.f32 %v2983, %v2984
  %v2986 = vsel %vm1811, %v2524, 0.0
  %v2987 = vadd.f32 %v2985, %v2986
  %v2988 = vsel %vm1811, %v2525, 0.0
  %v2989 = vadd.f32 %v2987, %v2988
  %v2990 = vsel %vm1811, %v2526, 0.0
  %v2991 = vadd.f32 %v2989, %v2990
  %v2992 = vsel %vm1811, %v2527, 0.0
  %v2993 = vadd.f32 %v2991, %v2992
  %v2994 = vsel %vm1811, %v2528, 0.0
  %v2995 = vadd.f32 %v2993, %v2994
  %v2996 = vsel %vm1811, %v2529, 0.0
  %v2997 = vadd.f32 %v2995, %v2996
  %v2998 = vsel %vm1811, %v2530, 0.0
  %v2999 = vadd.f32 %v2997, %v2998
  %v3000 = vsel %vm1811, %v2531, 0.0
  %v3001 = vadd.f32 %v2999, %v3000
  %v3002 = vsel %vm1811, %v2532, 0.0
  %v3003 = vadd.f32 %v3001, %v3002
  %v3004 = vsel %vm1811, %v2533, 0.0
  %v3005 = vadd.f32 %v3003, %v3004
  %v3006 = vsel %vm1811, %v2534, 0.0
  %v3007 = vadd.f32 %v3005, %v3006
  %v3008 = vsel %vm1811, %v2535, 0.0
  %v3009 = vadd.f32 %v3007, %v3008
  %v3010 = vsel %vm1811, %v2536, 0.0
  %v3011 = vadd.f32 %v3009, %v3010
  %v3012 = vsel %vm1811, %v2537, 0.0
  %v3013 = vadd.f32 %v3011, %v3012
  %v3014 = vsel %vm1811, %v2538, 0.0
  %v3015 = vadd.f32 %v3013, %v3014
  %v3016 = vsel %vm1811, %v2539, 0.0
  %v3017 = vadd.f32 %v3015, %v3016
  %v3018 = vsel %vm1811, %v2540, 0.0
  %v3019 = vadd.f32 %v3017, %v3018
  %v3020 = vsel %vm1811, %v2541, 0.0
  %v3021 = vadd.f32 %v3019, %v3020
  %v3022 = vsel %vm2291, %v2542, 0.0
  %v3023 = vadd.f32 %v3021, %v3022
  %v3024 = vrot.slane %v3023, 4
  %v3025 = vadd.f32 %v3023, %v3024
  %v3026 = vrot.slane %v3025, 2
  %v3027 = vadd.f32 %v3025, %v3026
  %v3028 = vrot.slane %v3027, 1
  %v3029 = vadd.f32 %v3027, %v3028
  %v3030 = vmul.f32 %v3029, %v2300
  %v3031 = vmul.f32 %v2301, %v2301
  %v3032 = vsub.f32 %v3030, %v3031
  %v3033 = vsub.f32 %v608, %v2301
  %v3034 = vsub.f32 %v613, %v2301
  %v3035 = vsub.f32 %v618, %v2301
  %v3036 = vsub.f32 %v623, %v2301
  %v3037 = vsub.f32 %v628, %v2301
  %v3038 = vsub.f32 %v633, %v2301
  %v3039 = vsub.f32 %v638, %v2301
  %v3040 = vsub.f32 %v643, %v2301
  %v3041 = vsub.f32 %v648, %v2301
  %v3042 = vsub.f32 %v653, %v2301
  %v3043 = vsub.f32 %v658, %v2301
  %v3044 = vsub.f32 %v663, %v2301
  %v3045 = vsub.f32 %v668, %v2301
  %v3046 = vsub.f32 %v673, %v2301
  %v3047 = vsub.f32 %v678, %v2301
  %v3048 = vsub.f32 %v683, %v2301
  %v3049 = vsub.f32 %v688, %v2301
  %v3050 = vsub.f32 %v693, %v2301
  %v3051 = vsub.f32 %v698, %v2301
  %v3052 = vsub.f32 %v703, %v2301
  %v3053 = vsub.f32 %v708, %v2301
  %v3054 = vsub.f32 %v713, %v2301
  %v3055 = vsub.f32 %v718, %v2301
  %v3056 = vsub.f32 %v723, %v2301
  %v3057 = vsub.f32 %v728, %v2301
  %v3058 = vsub.f32 %v733, %v2301
  %v3059 = vsub.f32 %v738, %v2301
  %v3060 = vsub.f32 %v743, %v2301
  %v3061 = vsub.f32 %v748, %v2301
  %v3062 = vsub.f32 %v753, %v2301
  %v3063 = vsub.f32 %v758, %v2301
  %v3064 = vsub.f32 %v763, %v2301
  %v3065 = vsub.f32 %v768, %v2301
  %v3066 = vsub.f32 %v773, %v2301
  %v3067 = vsub.f32 %v778, %v2301
  %v3068 = vsub.f32 %v783, %v2301
  %v3069 = vsub.f32 %v788, %v2301
  %v3070 = vsub.f32 %v793, %v2301
  %v3071 = vsub.f32 %v798, %v2301
  %v3072 = vsub.f32 %v803, %v2301
  %v3073 = vsub.f32 %v808, %v2301
  %v3074 = vsub.f32 %v813, %v2301
  %v3075 = vsub.f32 %v818, %v2301
  %v3076 = vsub.f32 %v823, %v2301
  %v3077 = vsub.f32 %v828, %v2301
  %v3078 = vsub.f32 %v833, %v2301
  %v3079 = vsub.f32 %v838, %v2301
  %v3080 = vsub.f32 %v843, %v2301
  %v3081 = vsub.f32 %v848, %v2301
  %v3082 = vsub.f32 %v853, %v2301
  %v3083 = vsub.f32 %v858, %v2301
  %v3084 = vsub.f32 %v863, %v2301
  %v3085 = vsub.f32 %v868, %v2301
  %v3086 = vsub.f32 %v873, %v2301
  %v3087 = vsub.f32 %v878, %v2301
  %v3088 = vsub.f32 %v883, %v2301
  %v3089 = vsub.f32 %v888, %v2301
  %v3090 = vsub.f32 %v893, %v2301
  %v3091 = vsub.f32 %v898, %v2301
  %v3092 = vsub.f32 %v903, %v2301
  %v3093 = vsub.f32 %v908, %v2301
  %v3094 = vsub.f32 %v913, %v2301
  %v3095 = vsub.f32 %v918, %v2301
  %v3096 = vsub.f32 %v923, %v2301
  %v3097 = vsub.f32 %v928, %v2301
  %v3098 = vsub.f32 %v933, %v2301
  %v3099 = vsub.f32 %v938, %v2301
  %v3100 = vsub.f32 %v943, %v2301
  %v3101 = vsub.f32 %v948, %v2301
  %v3102 = vsub.f32 %v953, %v2301
  %v3103 = vsub.f32 %v958, %v2301
  %v3104 = vsub.f32 %v963, %v2301
  %v3105 = vsub.f32 %v968, %v2301
  %v3106 = vsub.f32 %v973, %v2301
  %v3107 = vsub.f32 %v978, %v2301
  %v3108 = vsub.f32 %v983, %v2301
  %v3109 = vsub.f32 %v988, %v2301
  %v3110 = vsub.f32 %v993, %v2301
  %v3111 = vsub.f32 %v998, %v2301
  %v3112 = vsub.f32 %v1003, %v2301
  %v3113 = vsub.f32 %v1008, %v2301
  %v3114 = vsub.f32 %v1013, %v2301
  %v3115 = vsub.f32 %v1018, %v2301
  %v3116 = vsub.f32 %v1023, %v2301
  %v3117 = vsub.f32 %v1028, %v2301
  %v3118 = vsub.f32 %v1033, %v2301
  %v3119 = vsub.f32 %v1038, %v2301
  %v3120 = vsub.f32 %v1043, %v2301
  %v3121 = vsub.f32 %v1048, %v2301
  %v3122 = vsub.f32 %v1053, %v2301
  %v3123 = vsub.f32 %v1058, %v2301
  %v3124 = vsub.f32 %v1063, %v2301
  %v3125 = vsub.f32 %v1068, %v2301
  %v3126 = vsub.f32 %v1073, %v2301
  %v3127 = vsub.f32 %v1078, %v2301
  %v3128 = vsub.f32 %v1083, %v2301
  %v3129 = vsub.f32 %v1088, %v2301
  %v3130 = vsub.f32 %v1093, %v2301
  %v3131 = vsub.f32 %v1098, %v2301
  %v3132 = vsub.f32 %v1103, %v2301
  %v3133 = vsub.f32 %v1108, %v2301
  %v3134 = vsub.f32 %v1113, %v2301
  %v3135 = vsub.f32 %v1118, %v2301
  %v3136 = vsub.f32 %v1123, %v2301
  %v3137 = vsub.f32 %v1128, %v2301
  %v3138 = vsub.f32 %v1133, %v2301
  %v3139 = vsub.f32 %v1138, %v2301
  %v3140 = vsub.f32 %v1143, %v2301
  %v3141 = vsub.f32 %v1148, %v2301
  %v3142 = vsub.f32 %v1153, %v2301
  %v3143 = vsub.f32 %v1158, %v2301
  %v3144 = vsub.f32 %v1163, %v2301
  %v3145 = vsub.f32 %v1168, %v2301
  %v3146 = vsub.f32 %v1173, %v2301
  %v3147 = vsub.f32 %v1178, %v2301
  %v3148 = vsub.f32 %v1183, %v2301
  %v3149 = vsub.f32 %v1188, %v2301
  %v3150 = vsub.f32 %v1193, %v2301
  %v3151 = vsub.f32 %v1198, %v2301
  %v3152 = vsub.f32 %v1203, %v2301
  %v3153 = vsub.f32 %v1208, %v2301
  %v3154 = vsub.f32 %v1213, %v2301
  %v3155 = vsub.f32 %v1218, %v2301
  %v3156 = vsub.f32 %v1223, %v2301
  %v3157 = vsub.f32 %v1228, %v2301
  %v3158 = vsub.f32 %v1233, %v2301
  %v3159 = vsub.f32 %v1238, %v2301
  %v3160 = vsub.f32 %v1243, %v2301
  %v3161 = vsub.f32 %v1248, %v2301
  %v3162 = vsub.f32 %v1253, %v2301
  %v3163 = vsub.f32 %v1258, %v2301
  %v3164 = vsub.f32 %v1263, %v2301
  %v3165 = vsub.f32 %v1268, %v2301
  %v3166 = vsub.f32 %v1273, %v2301
  %v3167 = vsub.f32 %v1278, %v2301
  %v3168 = vsub.f32 %v1283, %v2301
  %v3169 = vsub.f32 %v1288, %v2301
  %v3170 = vsub.f32 %v1293, %v2301
  %v3171 = vsub.f32 %v1298, %v2301
  %v3172 = vsub.f32 %v1303, %v2301
  %v3173 = vsub.f32 %v1308, %v2301
  %v3174 = vsub.f32 %v1313, %v2301
  %v3175 = vsub.f32 %v1318, %v2301
  %v3176 = vsub.f32 %v1323, %v2301
  %v3177 = vsub.f32 %v1328, %v2301
  %v3178 = vsub.f32 %v1333, %v2301
  %v3179 = vsub.f32 %v1338, %v2301
  %v3180 = vsub.f32 %v1343, %v2301
  %v3181 = vsub.f32 %v1348, %v2301
  %v3182 = vsub.f32 %v1353, %v2301
  %v3183 = vsub.f32 %v1358, %v2301
  %v3184 = vsub.f32 %v1363, %v2301
  %v3185 = vsub.f32 %v1368, %v2301
  %v3186 = vsub.f32 %v1373, %v2301
  %v3187 = vsub.f32 %v1378, %v2301
  %v3188 = vsub.f32 %v1383, %v2301
  %v3189 = vsub.f32 %v1388, %v2301
  %v3190 = vsub.f32 %v1393, %v2301
  %v3191 = vsub.f32 %v1398, %v2301
  %v3192 = vsub.f32 %v1403, %v2301
  %v3193 = vsub.f32 %v1408, %v2301
  %v3194 = vsub.f32 %v1413, %v2301
  %v3195 = vsub.f32 %v1418, %v2301
  %v3196 = vsub.f32 %v1423, %v2301
  %v3197 = vsub.f32 %v1428, %v2301
  %v3198 = vsub.f32 %v1433, %v2301
  %v3199 = vsub.f32 %v1438, %v2301
  %v3200 = vsub.f32 %v1443, %v2301
  %v3201 = vsub.f32 %v1448, %v2301
  %v3202 = vsub.f32 %v1453, %v2301
  %v3203 = vsub.f32 %v1458, %v2301
  %v3204 = vsub.f32 %v1463, %v2301
  %v3205 = vsub.f32 %v1468, %v2301
  %v3206 = vsub.f32 %v1473, %v2301
  %v3207 = vsub.f32 %v1478, %v2301
  %v3208 = vsub.f32 %v1483, %v2301
  %v3209 = vsub.f32 %v1488, %v2301
  %v3210 = vsub.f32 %v1493, %v2301
  %v3211 = vsub.f32 %v1498, %v2301
  %v3212 = vsub.f32 %v1503, %v2301
  %v3213 = vsub.f32 %v1508, %v2301
  %v3214 = vsub.f32 %v1513, %v2301
  %v3215 = vsub.f32 %v1518, %v2301
  %v3216 = vsub.f32 %v1523, %v2301
  %v3217 = vsub.f32 %v1528, %v2301
  %v3218 = vsub.f32 %v1533, %v2301
  %v3219 = vsub.f32 %v1538, %v2301
  %v3220 = vsub.f32 %v1543, %v2301
  %v3221 = vsub.f32 %v1548, %v2301
  %v3222 = vsub.f32 %v1553, %v2301
  %v3223 = vsub.f32 %v1558, %v2301
  %v3224 = vsub.f32 %v1563, %v2301
  %v3225 = vsub.f32 %v1568, %v2301
  %v3226 = vsub.f32 %v1573, %v2301
  %v3227 = vsub.f32 %v1578, %v2301
  %v3228 = vsub.f32 %v1583, %v2301
  %v3229 = vsub.f32 %v1588, %v2301
  %v3230 = vsub.f32 %v1593, %v2301
  %v3231 = vsub.f32 %v1598, %v2301
  %v3232 = vsub.f32 %v1603, %v2301
  %v3233 = vsub.f32 %v1608, %v2301
  %v3234 = vsub.f32 %v1613, %v2301
  %v3235 = vsub.f32 %v1618, %v2301
  %v3236 = vsub.f32 %v1623, %v2301
  %v3237 = vsub.f32 %v1628, %v2301
  %v3238 = vsub.f32 %v1633, %v2301
  %v3239 = vsub.f32 %v1638, %v2301
  %v3240 = vsub.f32 %v1643, %v2301
  %v3241 = vsub.f32 %v1648, %v2301
  %v3242 = vsub.f32 %v1653, %v2301
  %v3243 = vsub.f32 %v1658, %v2301
  %v3244 = vsub.f32 %v1663, %v2301
  %v3245 = vsub.f32 %v1668, %v2301
  %v3246 = vsub.f32 %v1673, %v2301
  %v3247 = vsub.f32 %v1678, %v2301
  %v3248 = vsub.f32 %v1683, %v2301
  %v3249 = vsub.f32 %v1688, %v2301
  %v3250 = vsub.f32 %v1693, %v2301
  %v3251 = vsub.f32 %v1698, %v2301
  %v3252 = vsub.f32 %v1703, %v2301
  %v3253 = vsub.f32 %v1708, %v2301
  %v3254 = vsub.f32 %v1713, %v2301
  %v3255 = vsub.f32 %v1718, %v2301
  %v3256 = vsub.f32 %v1723, %v2301
  %v3257 = vsub.f32 %v1728, %v2301
  %v3258 = vsub.f32 %v1733, %v2301
  %v3259 = vsub.f32 %v1738, %v2301
  %v3260 = vsub.f32 %v1743, %v2301
  %v3261 = vsub.f32 %v1748, %v2301
  %v3262 = vsub.f32 %v1753, %v2301
  %v3263 = vsub.f32 %v1758, %v2301
  %v3264 = vsub.f32 %v1763, %v2301
  %v3265 = vsub.f32 %v1768, %v2301
  %v3266 = vsub.f32 %v1773, %v2301
  %v3267 = vsub.f32 %v1778, %v2301
  %v3268 = vsub.f32 %v1783, %v2301
  %v3269 = vsub.f32 %v1788, %v2301
  %v3270 = vsub.f32 %v1793, %v2301
  %v3271 = vsub.f32 %v1798, %v2301
  %v3272 = vsub.f32 %v1803, %v2301
  %v3273 = vsub.f32 %v1808, %v2301
  %v3274 = vadd.f32 %v3032, 1e-05
  %v3275 = vrsqrt.pop %v3274
  %v3276 = vmul.f32 %v3033, %v3275
  %v3277 = vmul.f32 %v3034, %v3275
  %v3278 = vmul.f32 %v3035, %v3275
  %v3279 = vmul.f32 %v3036, %v3275
  %v3280 = vmul.f32 %v3037, %v3275
  %v3281 = vmul.f32 %v3038, %v3275
  %v3282 = vmul.f32 %v3039, %v3275
  %v3283 = vmul.f32 %v3040, %v3275
  %v3284 = vmul.f32 %v3041, %v3275
  %v3285 = vmul.f32 %v3042, %v3275
  %v3286 = vmul.f32 %v3043, %v3275
  %v3287 = vmul.f32 %v3044, %v3275
  %v3288 = vmul.f32 %v3045, %v3275
  %v3289 = vmul.f32 %v3046, %v3275
  %v3290 = vmul.f32 %v3047, %v3275
  %v3291 = vmul.f32 %v3048, %v3275
  %v3292 = vmul.f32 %v3049, %v3275
  %v3293 = vmul.f32 %v3050, %v3275
  %v3294 = vmul.f32 %v3051, %v3275
  %v3295 = vmul.f32 %v3052, %v3275
  %v3296 = vmul.f32 %v3053, %v3275
  %v3297 = vmul.f32 %v3054, %v3275
  %v3298 = vmul.f32 %v3055, %v3275
  %v3299 = vmul.f32 %v3056, %v3275
  %v3300 = vmul.f32 %v3057, %v3275
  %v3301 = vmul.f32 %v3058, %v3275
  %v3302 = vmul.f32 %v3059, %v3275
  %v3303 = vmul.f32 %v3060, %v3275
  %v3304 = vmul.f32 %v3061, %v3275
  %v3305 = vmul.f32 %v3062, %v3275
  %v3306 = vmul.f32 %v3063, %v3275
  %v3307 = vmul.f32 %v3064, %v3275
  %v3308 = vmul.f32 %v3065, %v3275
  %v3309 = vmul.f32 %v3066, %v3275
  %v3310 = vmul.f32 %v3067, %v3275
  %v3311 = vmul.f32 %v3068, %v3275
  %v3312 = vmul.f32 %v3069, %v3275
  %v3313 = vmul.f32 %v3070, %v3275
  %v3314 = vmul.f32 %v3071, %v3275
  %v3315 = vmul.f32 %v3072, %v3275
  %v3316 = vmul.f32 %v3073, %v3275
  %v3317 = vmul.f32 %v3074, %v3275
  %v3318 = vmul.f32 %v3075, %v3275
  %v3319 = vmul.f32 %v3076, %v3275
  %v3320 = vmul.f32 %v3077, %v3275
  %v3321 = vmul.f32 %v3078, %v3275
  %v3322 = vmul.f32 %v3079, %v3275
  %v3323 = vmul.f32 %v3080, %v3275
  %v3324 = vmul.f32 %v3081, %v3275
  %v3325 = vmul.f32 %v3082, %v3275
  %v3326 = vmul.f32 %v3083, %v3275
  %v3327 = vmul.f32 %v3084, %v3275
  %v3328 = vmul.f32 %v3085, %v3275
  %v3329 = vmul.f32 %v3086, %v3275
  %v3330 = vmul.f32 %v3087, %v3275
  %v3331 = vmul.f32 %v3088, %v3275
  %v3332 = vmul.f32 %v3089, %v3275
  %v3333 = vmul.f32 %v3090, %v3275
  %v3334 = vmul.f32 %v3091, %v3275
  %v3335 = vmul.f32 %v3092, %v3275
  %v3336 = vmul.f32 %v3093, %v3275
  %v3337 = vmul.f32 %v3094, %v3275
  %v3338 = vmul.f32 %v3095, %v3275
  %v3339 = vmul.f32 %v3096, %v3275
  %v3340 = vmul.f32 %v3097, %v3275
  %v3341 = vmul.f32 %v3098, %v3275
  %v3342 = vmul.f32 %v3099, %v3275
  %v3343 = vmul.f32 %v3100, %v3275
  %v3344 = vmul.f32 %v3101, %v3275
  %v3345 = vmul.f32 %v3102, %v3275
  %v3346 = vmul.f32 %v3103, %v3275
  %v3347 = vmul.f32 %v3104, %v3275
  %v3348 = vmul.f32 %v3105, %v3275
  %v3349 = vmul.f32 %v3106, %v3275
  %v3350 = vmul.f32 %v3107, %v3275
  %v3351 = vmul.f32 %v3108, %v3275
  %v3352 = vmul.f32 %v3109, %v3275
  %v3353 = vmul.f32 %v3110, %v3275
  %v3354 = vmul.f32 %v3111, %v3275
  %v3355 = vmul.f32 %v3112, %v3275
  %v3356 = vmul.f32 %v3113, %v3275
  %v3357 = vmul.f32 %v3114, %v3275
  %v3358 = vmul.f32 %v3115, %v3275
  %v3359 = vmul.f32 %v3116, %v3275
  %v3360 = vmul.f32 %v3117, %v3275
  %v3361 = vmul.f32 %v3118, %v3275
  %v3362 = vmul.f32 %v3119, %v3275
  %v3363 = vmul.f32 %v3120, %v3275
  %v3364 = vmul.f32 %v3121, %v3275
  %v3365 = vmul.f32 %v3122, %v3275
  %v3366 = vmul.f32 %v3123, %v3275
  %v3367 = vmul.f32 %v3124, %v3275
  %v3368 = vmul.f32 %v3125, %v3275
  %v3369 = vmul.f32 %v3126, %v3275
  %v3370 = vmul.f32 %v3127, %v3275
  %v3371 = vmul.f32 %v3128, %v3275
  %v3372 = vmul.f32 %v3129, %v3275
  %v3373 = vmul.f32 %v3130, %v3275
  %v3374 = vmul.f32 %v3131, %v3275
  %v3375 = vmul.f32 %v3132, %v3275
  %v3376 = vmul.f32 %v3133, %v3275
  %v3377 = vmul.f32 %v3134, %v3275
  %v3378 = vmul.f32 %v3135, %v3275
  %v3379 = vmul.f32 %v3136, %v3275
  %v3380 = vmul.f32 %v3137, %v3275
  %v3381 = vmul.f32 %v3138, %v3275
  %v3382 = vmul.f32 %v3139, %v3275
  %v3383 = vmul.f32 %v3140, %v3275
  %v3384 = vmul.f32 %v3141, %v3275
  %v3385 = vmul.f32 %v3142, %v3275
  %v3386 = vmul.f32 %v3143, %v3275
  %v3387 = vmul.f32 %v3144, %v3275
  %v3388 = vmul.f32 %v3145, %v3275
  %v3389 = vmul.f32 %v3146, %v3275
  %v3390 = vmul.f32 %v3147, %v3275
  %v3391 = vmul.f32 %v3148, %v3275
  %v3392 = vmul.f32 %v3149, %v3275
  %v3393 = vmul.f32 %v3150, %v3275
  %v3394 = vmul.f32 %v3151, %v3275
  %v3395 = vmul.f32 %v3152, %v3275
  %v3396 = vmul.f32 %v3153, %v3275
  %v3397 = vmul.f32 %v3154, %v3275
  %v3398 = vmul.f32 %v3155, %v3275
  %v3399 = vmul.f32 %v3156, %v3275
  %v3400 = vmul.f32 %v3157, %v3275
  %v3401 = vmul.f32 %v3158, %v3275
  %v3402 = vmul.f32 %v3159, %v3275
  %v3403 = vmul.f32 %v3160, %v3275
  %v3404 = vmul.f32 %v3161, %v3275
  %v3405 = vmul.f32 %v3162, %v3275
  %v3406 = vmul.f32 %v3163, %v3275
  %v3407 = vmul.f32 %v3164, %v3275
  %v3408 = vmul.f32 %v3165, %v3275
  %v3409 = vmul.f32 %v3166, %v3275
  %v3410 = vmul.f32 %v3167, %v3275
  %v3411 = vmul.f32 %v3168, %v3275
  %v3412 = vmul.f32 %v3169, %v3275
  %v3413 = vmul.f32 %v3170, %v3275
  %v3414 = vmul.f32 %v3171, %v3275
  %v3415 = vmul.f32 %v3172, %v3275
  %v3416 = vmul.f32 %v3173, %v3275
  %v3417 = vmul.f32 %v3174, %v3275
  %v3418 = vmul.f32 %v3175, %v3275
  %v3419 = vmul.f32 %v3176, %v3275
  %v3420 = vmul.f32 %v3177, %v3275
  %v3421 = vmul.f32 %v3178, %v3275
  %v3422 = vmul.f32 %v3179, %v3275
  %v3423 = vmul.f32 %v3180, %v3275
  %v3424 = vmul.f32 %v3181, %v3275
  %v3425 = vmul.f32 %v3182, %v3275
  %v3426 = vmul.f32 %v3183, %v3275
  %v3427 = vmul.f32 %v3184, %v3275
  %v3428 = vmul.f32 %v3185, %v3275
  %v3429 = vmul.f32 %v3186, %v3275
  %v3430 = vmul.f32 %v3187, %v3275
  %v3431 = vmul.f32 %v3188, %v3275
  %v3432 = vmul.f32 %v3189, %v3275
  %v3433 = vmul.f32 %v3190, %v3275
  %v3434 = vmul.f32 %v3191, %v3275
  %v3435 = vmul.f32 %v3192, %v3275
  %v3436 = vmul.f32 %v3193, %v3275
  %v3437 = vmul.f32 %v3194, %v3275
  %v3438 = vmul.f32 %v3195, %v3275
  %v3439 = vmul.f32 %v3196, %v3275
  %v3440 = vmul.f32 %v3197, %v3275
  %v3441 = vmul.f32 %v3198, %v3275
  %v3442 = vmul.f32 %v3199, %v3275
  %v3443 = vmul.f32 %v3200, %v3275
  %v3444 = vmul.f32 %v3201, %v3275
  %v3445 = vmul.f32 %v3202, %v3275
  %v3446 = vmul.f32 %v3203, %v3275
  %v3447 = vmul.f32 %v3204, %v3275
  %v3448 = vmul.f32 %v3205, %v3275
  %v3449 = vmul.f32 %v3206, %v3275
  %v3450 = vmul.f32 %v3207, %v3275
  %v3451 = vmul.f32 %v3208, %v3275
  %v3452 = vmul.f32 %v3209, %v3275
  %v3453 = vmul.f32 %v3210, %v3275
  %v3454 = vmul.f32 %v3211, %v3275
  %v3455 = vmul.f32 %v3212, %v3275
  %v3456 = vmul.f32 %v3213, %v3275
  %v3457 = vmul.f32 %v3214, %v3275
  %v3458 = vmul.f32 %v3215, %v3275
  %v3459 = vmul.f32 %v3216, %v3275
  %v3460 = vmul.f32 %v3217, %v3275
  %v3461 = vmul.f32 %v3218, %v3275
  %v3462 = vmul.f32 %v3219, %v3275
  %v3463 = vmul.f32 %v3220, %v3275
  %v3464 = vmul.f32 %v3221, %v3275
  %v3465 = vmul.f32 %v3222, %v3275
  %v3466 = vmul.f32 %v3223, %v3275
  %v3467 = vmul.f32 %v3224, %v3275
  %v3468 = vmul.f32 %v3225, %v3275
  %v3469 = vmul.f32 %v3226, %v3275
  %v3470 = vmul.f32 %v3227, %v3275
  %v3471 = vmul.f32 %v3228, %v3275
  %v3472 = vmul.f32 %v3229, %v3275
  %v3473 = vmul.f32 %v3230, %v3275
  %v3474 = vmul.f32 %v3231, %v3275
  %v3475 = vmul.f32 %v3232, %v3275
  %v3476 = vmul.f32 %v3233, %v3275
  %v3477 = vmul.f32 %v3234, %v3275
  %v3478 = vmul.f32 %v3235, %v3275
  %v3479 = vmul.f32 %v3236, %v3275
  %v3480 = vmul.f32 %v3237, %v3275
  %v3481 = vmul.f32 %v3238, %v3275
  %v3482 = vmul.f32 %v3239, %v3275
  %v3483 = vmul.f32 %v3240, %v3275
  %v3484 = vmul.f32 %v3241, %v3275
  %v3485 = vmul.f32 %v3242, %v3275
  %v3486 = vmul.f32 %v3243, %v3275
  %v3487 = vmul.f32 %v3244, %v3275
  %v3488 = vmul.f32 %v3245, %v3275
  %v3489 = vmul.f32 %v3246, %v3275
  %v3490 = vmul.f32 %v3247, %v3275
  %v3491 = vmul.f32 %v3248, %v3275
  %v3492 = vmul.f32 %v3249, %v3275
  %v3493 = vmul.f32 %v3250, %v3275
  %v3494 = vmul.f32 %v3251, %v3275
  %v3495 = vmul.f32 %v3252, %v3275
  %v3496 = vmul.f32 %v3253, %v3275
  %v3497 = vmul.f32 %v3254, %v3275
  %v3498 = vmul.f32 %v3255, %v3275
  %v3499 = vmul.f32 %v3256, %v3275
  %v3500 = vmul.f32 %v3257, %v3275
  %v3501 = vmul.f32 %v3258, %v3275
  %v3502 = vmul.f32 %v3259, %v3275
  %v3503 = vmul.f32 %v3260, %v3275
  %v3504 = vmul.f32 %v3261, %v3275
  %v3505 = vmul.f32 %v3262, %v3275
  %v3506 = vmul.f32 %v3263, %v3275
  %v3507 = vmul.f32 %v3264, %v3275
  %v3508 = vmul.f32 %v3265, %v3275
  %v3509 = vmul.f32 %v3266, %v3275
  %v3510 = vmul.f32 %v3267, %v3275
  %v3511 = vmul.f32 %v3268, %v3275
  %v3512 = vmul.f32 %v3269, %v3275
  %v3513 = vmul.f32 %v3270, %v3275
  %v3514 = vmul.f32 %v3271, %v3275
  %v3515 = vmul.f32 %v3272, %v3275
  %v3516 = vmul.f32 %v3273, %v3275
  %v3517 = vld [vmem:[%s3] sm:$0x1]
  %v3519 = vlaneseq
  %v3520 = vshrl.u32 %v3519, 7
  %v3521 = vsub.s32 0, %v3520
  %v3522 = vrot.slane %v3517, %v3521
  %v3524 = vmul.f32 %v3276, %v3522
  %v3525 = vmul.f32 %v3277, %v3522
  %v3526 = vmul.f32 %v3278, %v3522
  %v3527 = vmul.f32 %v3279, %v3522
  %v3528 = vmul.f32 %v3280, %v3522
  %v3529 = vmul.f32 %v3281, %v3522
  %v3530 = vmul.f32 %v3282, %v3522
  %v3531 = vmul.f32 %v3283, %v3522
  %v3532 = vmul.f32 %v3284, %v3522
  %v3533 = vmul.f32 %v3285, %v3522
  %v3534 = vmul.f32 %v3286, %v3522
  %v3535 = vmul.f32 %v3287, %v3522
  %v3536 = vmul.f32 %v3288, %v3522
  %v3537 = vmul.f32 %v3289, %v3522
  %v3538 = vmul.f32 %v3290, %v3522
  %v3539 = vmul.f32 %v3291, %v3522
  %v3540 = vmul.f32 %v3292, %v3522
  %v3541 = vmul.f32 %v3293, %v3522
  %v3542 = vmul.f32 %v3294, %v3522
  %v3543 = vmul.f32 %v3295, %v3522
  %v3544 = vmul.f32 %v3296, %v3522
  %v3545 = vmul.f32 %v3297, %v3522
  %v3546 = vmul.f32 %v3298, %v3522
  %v3547 = vmul.f32 %v3299, %v3522
  %v3548 = vmul.f32 %v3300, %v3522
  %v3549 = vmul.f32 %v3301, %v3522
  %v3550 = vmul.f32 %v3302, %v3522
  %v3551 = vmul.f32 %v3303, %v3522
  %v3552 = vmul.f32 %v3304, %v3522
  %v3553 = vmul.f32 %v3305, %v3522
  %v3554 = vmul.f32 %v3306, %v3522
  %v3555 = vmul.f32 %v3307, %v3522
  %v3556 = vmul.f32 %v3308, %v3522
  %v3557 = vmul.f32 %v3309, %v3522
  %v3558 = vmul.f32 %v3310, %v3522
  %v3559 = vmul.f32 %v3311, %v3522
  %v3560 = vmul.f32 %v3312, %v3522
  %v3561 = vmul.f32 %v3313, %v3522
  %v3562 = vmul.f32 %v3314, %v3522
  %v3563 = vmul.f32 %v3315, %v3522
  %v3564 = vmul.f32 %v3316, %v3522
  %v3565 = vmul.f32 %v3317, %v3522
  %v3566 = vmul.f32 %v3318, %v3522
  %v3567 = vmul.f32 %v3319, %v3522
  %v3568 = vmul.f32 %v3320, %v3522
  %v3569 = vmul.f32 %v3321, %v3522
  %v3570 = vmul.f32 %v3322, %v3522
  %v3571 = vmul.f32 %v3323, %v3522
  %v3572 = vmul.f32 %v3324, %v3522
  %v3573 = vmul.f32 %v3325, %v3522
  %v3574 = vmul.f32 %v3326, %v3522
  %v3575 = vmul.f32 %v3327, %v3522
  %v3576 = vmul.f32 %v3328, %v3522
  %v3577 = vmul.f32 %v3329, %v3522
  %v3578 = vmul.f32 %v3330, %v3522
  %v3579 = vmul.f32 %v3331, %v3522
  %v3580 = vmul.f32 %v3332, %v3522
  %v3581 = vmul.f32 %v3333, %v3522
  %v3582 = vmul.f32 %v3334, %v3522
  %v3583 = vmul.f32 %v3335, %v3522
  %v3584 = vmul.f32 %v3336, %v3522
  %v3585 = vmul.f32 %v3337, %v3522
  %v3586 = vmul.f32 %v3338, %v3522
  %v3587 = vmul.f32 %v3339, %v3522
  %v3588 = vmul.f32 %v3340, %v3522
  %v3589 = vmul.f32 %v3341, %v3522
  %v3590 = vmul.f32 %v3342, %v3522
  %v3591 = vmul.f32 %v3343, %v3522
  %v3592 = vmul.f32 %v3344, %v3522
  %v3593 = vmul.f32 %v3345, %v3522
  %v3594 = vmul.f32 %v3346, %v3522
  %v3595 = vmul.f32 %v3347, %v3522
  %v3596 = vmul.f32 %v3348, %v3522
  %v3597 = vmul.f32 %v3349, %v3522
  %v3598 = vmul.f32 %v3350, %v3522
  %v3599 = vmul.f32 %v3351, %v3522
  %v3600 = vmul.f32 %v3352, %v3522
  %v3601 = vmul.f32 %v3353, %v3522
  %v3602 = vmul.f32 %v3354, %v3522
  %v3603 = vmul.f32 %v3355, %v3522
  %v3604 = vmul.f32 %v3356, %v3522
  %v3605 = vmul.f32 %v3357, %v3522
  %v3606 = vmul.f32 %v3358, %v3522
  %v3607 = vmul.f32 %v3359, %v3522
  %v3608 = vmul.f32 %v3360, %v3522
  %v3609 = vmul.f32 %v3361, %v3522
  %v3610 = vmul.f32 %v3362, %v3522
  %v3611 = vmul.f32 %v3363, %v3522
  %v3612 = vmul.f32 %v3364, %v3522
  %v3613 = vmul.f32 %v3365, %v3522
  %v3614 = vmul.f32 %v3366, %v3522
  %v3615 = vmul.f32 %v3367, %v3522
  %v3616 = vmul.f32 %v3368, %v3522
  %v3617 = vmul.f32 %v3369, %v3522
  %v3618 = vmul.f32 %v3370, %v3522
  %v3619 = vmul.f32 %v3371, %v3522
  %v3620 = vmul.f32 %v3372, %v3522
  %v3621 = vmul.f32 %v3373, %v3522
  %v3622 = vmul.f32 %v3374, %v3522
  %v3623 = vmul.f32 %v3375, %v3522
  %v3624 = vmul.f32 %v3376, %v3522
  %v3625 = vmul.f32 %v3377, %v3522
  %v3626 = vmul.f32 %v3378, %v3522
  %v3627 = vmul.f32 %v3379, %v3522
  %v3628 = vmul.f32 %v3380, %v3522
  %v3629 = vmul.f32 %v3381, %v3522
  %v3630 = vmul.f32 %v3382, %v3522
  %v3631 = vmul.f32 %v3383, %v3522
  %v3632 = vmul.f32 %v3384, %v3522
  %v3633 = vmul.f32 %v3385, %v3522
  %v3634 = vmul.f32 %v3386, %v3522
  %v3635 = vmul.f32 %v3387, %v3522
  %v3636 = vmul.f32 %v3388, %v3522
  %v3637 = vmul.f32 %v3389, %v3522
  %v3638 = vmul.f32 %v3390, %v3522
  %v3639 = vmul.f32 %v3391, %v3522
  %v3640 = vmul.f32 %v3392, %v3522
  %v3641 = vmul.f32 %v3393, %v3522
  %v3642 = vmul.f32 %v3394, %v3522
  %v3643 = vmul.f32 %v3395, %v3522
  %v3644 = vmul.f32 %v3396, %v3522
  %v3645 = vmul.f32 %v3397, %v3522
  %v3646 = vmul.f32 %v3398, %v3522
  %v3647 = vmul.f32 %v3399, %v3522
  %v3648 = vmul.f32 %v3400, %v3522
  %v3649 = vmul.f32 %v3401, %v3522
  %v3650 = vmul.f32 %v3402, %v3522
  %v3651 = vmul.f32 %v3403, %v3522
  %v3652 = vmul.f32 %v3404, %v3522
  %v3653 = vmul.f32 %v3405, %v3522
  %v3654 = vmul.f32 %v3406, %v3522
  %v3655 = vmul.f32 %v3407, %v3522
  %v3656 = vmul.f32 %v3408, %v3522
  %v3657 = vmul.f32 %v3409, %v3522
  %v3658 = vmul.f32 %v3410, %v3522
  %v3659 = vmul.f32 %v3411, %v3522
  %v3660 = vmul.f32 %v3412, %v3522
  %v3661 = vmul.f32 %v3413, %v3522
  %v3662 = vmul.f32 %v3414, %v3522
  %v3663 = vmul.f32 %v3415, %v3522
  %v3664 = vmul.f32 %v3416, %v3522
  %v3665 = vmul.f32 %v3417, %v3522
  %v3666 = vmul.f32 %v3418, %v3522
  %v3667 = vmul.f32 %v3419, %v3522
  %v3668 = vmul.f32 %v3420, %v3522
  %v3669 = vmul.f32 %v3421, %v3522
  %v3670 = vmul.f32 %v3422, %v3522
  %v3671 = vmul.f32 %v3423, %v3522
  %v3672 = vmul.f32 %v3424, %v3522
  %v3673 = vmul.f32 %v3425, %v3522
  %v3674 = vmul.f32 %v3426, %v3522
  %v3675 = vmul.f32 %v3427, %v3522
  %v3676 = vmul.f32 %v3428, %v3522
  %v3677 = vmul.f32 %v3429, %v3522
  %v3678 = vmul.f32 %v3430, %v3522
  %v3679 = vmul.f32 %v3431, %v3522
  %v3680 = vmul.f32 %v3432, %v3522
  %v3681 = vmul.f32 %v3433, %v3522
  %v3682 = vmul.f32 %v3434, %v3522
  %v3683 = vmul.f32 %v3435, %v3522
  %v3684 = vmul.f32 %v3436, %v3522
  %v3685 = vmul.f32 %v3437, %v3522
  %v3686 = vmul.f32 %v3438, %v3522
  %v3687 = vmul.f32 %v3439, %v3522
  %v3688 = vmul.f32 %v3440, %v3522
  %v3689 = vmul.f32 %v3441, %v3522
  %v3690 = vmul.f32 %v3442, %v3522
  %v3691 = vmul.f32 %v3443, %v3522
  %v3692 = vmul.f32 %v3444, %v3522
  %v3693 = vmul.f32 %v3445, %v3522
  %v3694 = vmul.f32 %v3446, %v3522
  %v3695 = vmul.f32 %v3447, %v3522
  %v3696 = vmul.f32 %v3448, %v3522
  %v3697 = vmul.f32 %v3449, %v3522
  %v3698 = vmul.f32 %v3450, %v3522
  %v3699 = vmul.f32 %v3451, %v3522
  %v3700 = vmul.f32 %v3452, %v3522
  %v3701 = vmul.f32 %v3453, %v3522
  %v3702 = vmul.f32 %v3454, %v3522
  %v3703 = vmul.f32 %v3455, %v3522
  %v3704 = vmul.f32 %v3456, %v3522
  %v3705 = vmul.f32 %v3457, %v3522
  %v3706 = vmul.f32 %v3458, %v3522
  %v3707 = vmul.f32 %v3459, %v3522
  %v3708 = vmul.f32 %v3460, %v3522
  %v3709 = vmul.f32 %v3461, %v3522
  %v3710 = vmul.f32 %v3462, %v3522
  %v3711 = vmul.f32 %v3463, %v3522
  %v3712 = vmul.f32 %v3464, %v3522
  %v3713 = vmul.f32 %v3465, %v3522
  %v3714 = vmul.f32 %v3466, %v3522
  %v3715 = vmul.f32 %v3467, %v3522
  %v3716 = vmul.f32 %v3468, %v3522
  %v3717 = vmul.f32 %v3469, %v3522
  %v3718 = vmul.f32 %v3470, %v3522
  %v3719 = vmul.f32 %v3471, %v3522
  %v3720 = vmul.f32 %v3472, %v3522
  %v3721 = vmul.f32 %v3473, %v3522
  %v3722 = vmul.f32 %v3474, %v3522
  %v3723 = vmul.f32 %v3475, %v3522
  %v3724 = vmul.f32 %v3476, %v3522
  %v3725 = vmul.f32 %v3477, %v3522
  %v3726 = vmul.f32 %v3478, %v3522
  %v3727 = vmul.f32 %v3479, %v3522
  %v3728 = vmul.f32 %v3480, %v3522
  %v3729 = vmul.f32 %v3481, %v3522
  %v3730 = vmul.f32 %v3482, %v3522
  %v3731 = vmul.f32 %v3483, %v3522
  %v3732 = vmul.f32 %v3484, %v3522
  %v3733 = vmul.f32 %v3485, %v3522
  %v3734 = vmul.f32 %v3486, %v3522
  %v3735 = vmul.f32 %v3487, %v3522
  %v3736 = vmul.f32 %v3488, %v3522
  %v3737 = vmul.f32 %v3489, %v3522
  %v3738 = vmul.f32 %v3490, %v3522
  %v3739 = vmul.f32 %v3491, %v3522
  %v3740 = vmul.f32 %v3492, %v3522
  %v3741 = vmul.f32 %v3493, %v3522
  %v3742 = vmul.f32 %v3494, %v3522
  %v3743 = vmul.f32 %v3495, %v3522
  %v3744 = vmul.f32 %v3496, %v3522
  %v3745 = vmul.f32 %v3497, %v3522
  %v3746 = vmul.f32 %v3498, %v3522
  %v3747 = vmul.f32 %v3499, %v3522
  %v3748 = vmul.f32 %v3500, %v3522
  %v3749 = vmul.f32 %v3501, %v3522
  %v3750 = vmul.f32 %v3502, %v3522
  %v3751 = vmul.f32 %v3503, %v3522
  %v3752 = vmul.f32 %v3504, %v3522
  %v3753 = vmul.f32 %v3505, %v3522
  %v3754 = vmul.f32 %v3506, %v3522
  %v3755 = vmul.f32 %v3507, %v3522
  %v3756 = vmul.f32 %v3508, %v3522
  %v3757 = vmul.f32 %v3509, %v3522
  %v3758 = vmul.f32 %v3510, %v3522
  %v3759 = vmul.f32 %v3511, %v3522
  %v3760 = vmul.f32 %v3512, %v3522
  %v3761 = vmul.f32 %v3513, %v3522
  %v3762 = vmul.f32 %v3514, %v3522
  %v3763 = vmul.f32 %v3515, %v3522
  %v3764 = vmul.f32 %v3516, %v3522
  %v3765 = vld [vmem:[%s4] sm:$0x1]
  %v3767 = vlaneseq
  %v3768 = vshrl.u32 %v3767, 7
  %v3769 = vsub.s32 0, %v3768
  %v3770 = vrot.slane %v3765, %v3769
  %v3772 = vadd.f32 %v3524, %v3770
  %v3773 = vadd.f32 %v3525, %v3770
  %v3774 = vadd.f32 %v3526, %v3770
  %v3775 = vadd.f32 %v3527, %v3770
  %v3776 = vadd.f32 %v3528, %v3770
  %v3777 = vadd.f32 %v3529, %v3770
  %v3778 = vadd.f32 %v3530, %v3770
  %v3779 = vadd.f32 %v3531, %v3770
  %v3780 = vadd.f32 %v3532, %v3770
  %v3781 = vadd.f32 %v3533, %v3770
  %v3782 = vadd.f32 %v3534, %v3770
  %v3783 = vadd.f32 %v3535, %v3770
  %v3784 = vadd.f32 %v3536, %v3770
  %v3785 = vadd.f32 %v3537, %v3770
  %v3786 = vadd.f32 %v3538, %v3770
  %v3787 = vadd.f32 %v3539, %v3770
  %v3788 = vadd.f32 %v3540, %v3770
  %v3789 = vadd.f32 %v3541, %v3770
  %v3790 = vadd.f32 %v3542, %v3770
  %v3791 = vadd.f32 %v3543, %v3770
  %v3792 = vadd.f32 %v3544, %v3770
  %v3793 = vadd.f32 %v3545, %v3770
  %v3794 = vadd.f32 %v3546, %v3770
  %v3795 = vadd.f32 %v3547, %v3770
  %v3796 = vadd.f32 %v3548, %v3770
  %v3797 = vadd.f32 %v3549, %v3770
  %v3798 = vadd.f32 %v3550, %v3770
  %v3799 = vadd.f32 %v3551, %v3770
  %v3800 = vadd.f32 %v3552, %v3770
  %v3801 = vadd.f32 %v3553, %v3770
  %v3802 = vadd.f32 %v3554, %v3770
  %v3803 = vadd.f32 %v3555, %v3770
  %v3804 = vadd.f32 %v3556, %v3770
  %v3805 = vadd.f32 %v3557, %v3770
  %v3806 = vadd.f32 %v3558, %v3770
  %v3807 = vadd.f32 %v3559, %v3770
  %v3808 = vadd.f32 %v3560, %v3770
  %v3809 = vadd.f32 %v3561, %v3770
  %v3810 = vadd.f32 %v3562, %v3770
  %v3811 = vadd.f32 %v3563, %v3770
  %v3812 = vadd.f32 %v3564, %v3770
  %v3813 = vadd.f32 %v3565, %v3770
  %v3814 = vadd.f32 %v3566, %v3770
  %v3815 = vadd.f32 %v3567, %v3770
  %v3816 = vadd.f32 %v3568, %v3770
  %v3817 = vadd.f32 %v3569, %v3770
  %v3818 = vadd.f32 %v3570, %v3770
  %v3819 = vadd.f32 %v3571, %v3770
  %v3820 = vadd.f32 %v3572, %v3770
  %v3821 = vadd.f32 %v3573, %v3770
  %v3822 = vadd.f32 %v3574, %v3770
  %v3823 = vadd.f32 %v3575, %v3770
  %v3824 = vadd.f32 %v3576, %v3770
  %v3825 = vadd.f32 %v3577, %v3770
  %v3826 = vadd.f32 %v3578, %v3770
  %v3827 = vadd.f32 %v3579, %v3770
  %v3828 = vadd.f32 %v3580, %v3770
  %v3829 = vadd.f32 %v3581, %v3770
  %v3830 = vadd.f32 %v3582, %v3770
  %v3831 = vadd.f32 %v3583, %v3770
  %v3832 = vadd.f32 %v3584, %v3770
  %v3833 = vadd.f32 %v3585, %v3770
  %v3834 = vadd.f32 %v3586, %v3770
  %v3835 = vadd.f32 %v3587, %v3770
  %v3836 = vadd.f32 %v3588, %v3770
  %v3837 = vadd.f32 %v3589, %v3770
  %v3838 = vadd.f32 %v3590, %v3770
  %v3839 = vadd.f32 %v3591, %v3770
  %v3840 = vadd.f32 %v3592, %v3770
  %v3841 = vadd.f32 %v3593, %v3770
  %v3842 = vadd.f32 %v3594, %v3770
  %v3843 = vadd.f32 %v3595, %v3770
  %v3844 = vadd.f32 %v3596, %v3770
  %v3845 = vadd.f32 %v3597, %v3770
  %v3846 = vadd.f32 %v3598, %v3770
  %v3847 = vadd.f32 %v3599, %v3770
  %v3848 = vadd.f32 %v3600, %v3770
  %v3849 = vadd.f32 %v3601, %v3770
  %v3850 = vadd.f32 %v3602, %v3770
  %v3851 = vadd.f32 %v3603, %v3770
  %v3852 = vadd.f32 %v3604, %v3770
  %v3853 = vadd.f32 %v3605, %v3770
  %v3854 = vadd.f32 %v3606, %v3770
  %v3855 = vadd.f32 %v3607, %v3770
  %v3856 = vadd.f32 %v3608, %v3770
  %v3857 = vadd.f32 %v3609, %v3770
  %v3858 = vadd.f32 %v3610, %v3770
  %v3859 = vadd.f32 %v3611, %v3770
  %v3860 = vadd.f32 %v3612, %v3770
  %v3861 = vadd.f32 %v3613, %v3770
  %v3862 = vadd.f32 %v3614, %v3770
  %v3863 = vadd.f32 %v3615, %v3770
  %v3864 = vadd.f32 %v3616, %v3770
  %v3865 = vadd.f32 %v3617, %v3770
  %v3866 = vadd.f32 %v3618, %v3770
  %v3867 = vadd.f32 %v3619, %v3770
  %v3868 = vadd.f32 %v3620, %v3770
  %v3869 = vadd.f32 %v3621, %v3770
  %v3870 = vadd.f32 %v3622, %v3770
  %v3871 = vadd.f32 %v3623, %v3770
  %v3872 = vadd.f32 %v3624, %v3770
  %v3873 = vadd.f32 %v3625, %v3770
  %v3874 = vadd.f32 %v3626, %v3770
  %v3875 = vadd.f32 %v3627, %v3770
  %v3876 = vadd.f32 %v3628, %v3770
  %v3877 = vadd.f32 %v3629, %v3770
  %v3878 = vadd.f32 %v3630, %v3770
  %v3879 = vadd.f32 %v3631, %v3770
  %v3880 = vadd.f32 %v3632, %v3770
  %v3881 = vadd.f32 %v3633, %v3770
  %v3882 = vadd.f32 %v3634, %v3770
  %v3883 = vadd.f32 %v3635, %v3770
  %v3884 = vadd.f32 %v3636, %v3770
  %v3885 = vadd.f32 %v3637, %v3770
  %v3886 = vadd.f32 %v3638, %v3770
  %v3887 = vadd.f32 %v3639, %v3770
  %v3888 = vadd.f32 %v3640, %v3770
  %v3889 = vadd.f32 %v3641, %v3770
  %v3890 = vadd.f32 %v3642, %v3770
  %v3891 = vadd.f32 %v3643, %v3770
  %v3892 = vadd.f32 %v3644, %v3770
  %v3893 = vadd.f32 %v3645, %v3770
  %v3894 = vadd.f32 %v3646, %v3770
  %v3895 = vadd.f32 %v3647, %v3770
  %v3896 = vadd.f32 %v3648, %v3770
  %v3897 = vadd.f32 %v3649, %v3770
  %v3898 = vadd.f32 %v3650, %v3770
  %v3899 = vadd.f32 %v3651, %v3770
  %v3900 = vadd.f32 %v3652, %v3770
  %v3901 = vadd.f32 %v3653, %v3770
  %v3902 = vadd.f32 %v3654, %v3770
  %v3903 = vadd.f32 %v3655, %v3770
  %v3904 = vadd.f32 %v3656, %v3770
  %v3905 = vadd.f32 %v3657, %v3770
  %v3906 = vadd.f32 %v3658, %v3770
  %v3907 = vadd.f32 %v3659, %v3770
  %v3908 = vadd.f32 %v3660, %v3770
  %v3909 = vadd.f32 %v3661, %v3770
  %v3910 = vadd.f32 %v3662, %v3770
  %v3911 = vadd.f32 %v3663, %v3770
  %v3912 = vadd.f32 %v3664, %v3770
  %v3913 = vadd.f32 %v3665, %v3770
  %v3914 = vadd.f32 %v3666, %v3770
  %v3915 = vadd.f32 %v3667, %v3770
  %v3916 = vadd.f32 %v3668, %v3770
  %v3917 = vadd.f32 %v3669, %v3770
  %v3918 = vadd.f32 %v3670, %v3770
  %v3919 = vadd.f32 %v3671, %v3770
  %v3920 = vadd.f32 %v3672, %v3770
  %v3921 = vadd.f32 %v3673, %v3770
  %v3922 = vadd.f32 %v3674, %v3770
  %v3923 = vadd.f32 %v3675, %v3770
  %v3924 = vadd.f32 %v3676, %v3770
  %v3925 = vadd.f32 %v3677, %v3770
  %v3926 = vadd.f32 %v3678, %v3770
  %v3927 = vadd.f32 %v3679, %v3770
  %v3928 = vadd.f32 %v3680, %v3770
  %v3929 = vadd.f32 %v3681, %v3770
  %v3930 = vadd.f32 %v3682, %v3770
  %v3931 = vadd.f32 %v3683, %v3770
  %v3932 = vadd.f32 %v3684, %v3770
  %v3933 = vadd.f32 %v3685, %v3770
  %v3934 = vadd.f32 %v3686, %v3770
  %v3935 = vadd.f32 %v3687, %v3770
  %v3936 = vadd.f32 %v3688, %v3770
  %v3937 = vadd.f32 %v3689, %v3770
  %v3938 = vadd.f32 %v3690, %v3770
  %v3939 = vadd.f32 %v3691, %v3770
  %v3940 = vadd.f32 %v3692, %v3770
  %v3941 = vadd.f32 %v3693, %v3770
  %v3942 = vadd.f32 %v3694, %v3770
  %v3943 = vadd.f32 %v3695, %v3770
  %v3944 = vadd.f32 %v3696, %v3770
  %v3945 = vadd.f32 %v3697, %v3770
  %v3946 = vadd.f32 %v3698, %v3770
  %v3947 = vadd.f32 %v3699, %v3770
  %v3948 = vadd.f32 %v3700, %v3770
  %v3949 = vadd.f32 %v3701, %v3770
  %v3950 = vadd.f32 %v3702, %v3770
  %v3951 = vadd.f32 %v3703, %v3770
  %v3952 = vadd.f32 %v3704, %v3770
  %v3953 = vadd.f32 %v3705, %v3770
  %v3954 = vadd.f32 %v3706, %v3770
  %v3955 = vadd.f32 %v3707, %v3770
  %v3956 = vadd.f32 %v3708, %v3770
  %v3957 = vadd.f32 %v3709, %v3770
  %v3958 = vadd.f32 %v3710, %v3770
  %v3959 = vadd.f32 %v3711, %v3770
  %v3960 = vadd.f32 %v3712, %v3770
  %v3961 = vadd.f32 %v3713, %v3770
  %v3962 = vadd.f32 %v3714, %v3770
  %v3963 = vadd.f32 %v3715, %v3770
  %v3964 = vadd.f32 %v3716, %v3770
  %v3965 = vadd.f32 %v3717, %v3770
  %v3966 = vadd.f32 %v3718, %v3770
  %v3967 = vadd.f32 %v3719, %v3770
  %v3968 = vadd.f32 %v3720, %v3770
  %v3969 = vadd.f32 %v3721, %v3770
  %v3970 = vadd.f32 %v3722, %v3770
  %v3971 = vadd.f32 %v3723, %v3770
  %v3972 = vadd.f32 %v3724, %v3770
  %v3973 = vadd.f32 %v3725, %v3770
  %v3974 = vadd.f32 %v3726, %v3770
  %v3975 = vadd.f32 %v3727, %v3770
  %v3976 = vadd.f32 %v3728, %v3770
  %v3977 = vadd.f32 %v3729, %v3770
  %v3978 = vadd.f32 %v3730, %v3770
  %v3979 = vadd.f32 %v3731, %v3770
  %v3980 = vadd.f32 %v3732, %v3770
  %v3981 = vadd.f32 %v3733, %v3770
  %v3982 = vadd.f32 %v3734, %v3770
  %v3983 = vadd.f32 %v3735, %v3770
  %v3984 = vadd.f32 %v3736, %v3770
  %v3985 = vadd.f32 %v3737, %v3770
  %v3986 = vadd.f32 %v3738, %v3770
  %v3987 = vadd.f32 %v3739, %v3770
  %v3988 = vadd.f32 %v3740, %v3770
  %v3989 = vadd.f32 %v3741, %v3770
  %v3990 = vadd.f32 %v3742, %v3770
  %v3991 = vadd.f32 %v3743, %v3770
  %v3992 = vadd.f32 %v3744, %v3770
  %v3993 = vadd.f32 %v3745, %v3770
  %v3994 = vadd.f32 %v3746, %v3770
  %v3995 = vadd.f32 %v3747, %v3770
  %v3996 = vadd.f32 %v3748, %v3770
  %v3997 = vadd.f32 %v3749, %v3770
  %v3998 = vadd.f32 %v3750, %v3770
  %v3999 = vadd.f32 %v3751, %v3770
  %v4000 = vadd.f32 %v3752, %v3770
  %v4001 = vadd.f32 %v3753, %v3770
  %v4002 = vadd.f32 %v3754, %v3770
  %v4003 = vadd.f32 %v3755, %v3770
  %v4004 = vadd.f32 %v3756, %v3770
  %v4005 = vadd.f32 %v3757, %v3770
  %v4006 = vadd.f32 %v3758, %v3770
  %v4007 = vadd.f32 %v3759, %v3770
  %v4008 = vadd.f32 %v3760, %v3770
  %v4009 = vadd.f32 %v3761, %v3770
  %v4010 = vadd.f32 %v3762, %v3770
  %v4011 = vadd.f32 %v3763, %v3770
  %v4012 = vadd.f32 %v3764, %v3770
  %v4013 = vmax.f32 %v3772, 0.0
  %v4014 = vmax.f32 %v3773, 0.0
  %v4015 = vmax.f32 %v3774, 0.0
  %v4016 = vmax.f32 %v3775, 0.0
  %v4017 = vmax.f32 %v3776, 0.0
  %v4018 = vmax.f32 %v3777, 0.0
  %v4019 = vmax.f32 %v3778, 0.0
  %v4020 = vmax.f32 %v3779, 0.0
  %v4021 = vmax.f32 %v3780, 0.0
  %v4022 = vmax.f32 %v3781, 0.0
  %v4023 = vmax.f32 %v3782, 0.0
  %v4024 = vmax.f32 %v3783, 0.0
  %v4025 = vmax.f32 %v3784, 0.0
  %v4026 = vmax.f32 %v3785, 0.0
  %v4027 = vmax.f32 %v3786, 0.0
  %v4028 = vmax.f32 %v3787, 0.0
  %v4029 = vmax.f32 %v3788, 0.0
  %v4030 = vmax.f32 %v3789, 0.0
  %v4031 = vmax.f32 %v3790, 0.0
  %v4032 = vmax.f32 %v3791, 0.0
  %v4033 = vmax.f32 %v3792, 0.0
  %v4034 = vmax.f32 %v3793, 0.0
  %v4035 = vmax.f32 %v3794, 0.0
  %v4036 = vmax.f32 %v3795, 0.0
  %v4037 = vmax.f32 %v3796, 0.0
  %v4038 = vmax.f32 %v3797, 0.0
  %v4039 = vmax.f32 %v3798, 0.0
  %v4040 = vmax.f32 %v3799, 0.0
  %v4041 = vmax.f32 %v3800, 0.0
  %v4042 = vmax.f32 %v3801, 0.0
  %v4043 = vmax.f32 %v3802, 0.0
  %v4044 = vmax.f32 %v3803, 0.0
  %v4045 = vmax.f32 %v3804, 0.0
  %v4046 = vmax.f32 %v3805, 0.0
  %v4047 = vmax.f32 %v3806, 0.0
  %v4048 = vmax.f32 %v3807, 0.0
  %v4049 = vmax.f32 %v3808, 0.0
  %v4050 = vmax.f32 %v3809, 0.0
  %v4051 = vmax.f32 %v3810, 0.0
  %v4052 = vmax.f32 %v3811, 0.0
  %v4053 = vmax.f32 %v3812, 0.0
  %v4054 = vmax.f32 %v3813, 0.0
  %v4055 = vmax.f32 %v3814, 0.0
  %v4056 = vmax.f32 %v3815, 0.0
  %v4057 = vmax.f32 %v3816, 0.0
  %v4058 = vmax.f32 %v3817, 0.0
  %v4059 = vmax.f32 %v3818, 0.0
  %v4060 = vmax.f32 %v3819, 0.0
  %v4061 = vmax.f32 %v3820, 0.0
  %v4062 = vmax.f32 %v3821, 0.0
  %v4063 = vmax.f32 %v3822, 0.0
  %v4064 = vmax.f32 %v3823, 0.0
  %v4065 = vmax.f32 %v3824, 0.0
  %v4066 = vmax.f32 %v3825, 0.0
  %v4067 = vmax.f32 %v3826, 0.0
  %v4068 = vmax.f32 %v3827, 0.0
  %v4069 = vmax.f32 %v3828, 0.0
  %v4070 = vmax.f32 %v3829, 0.0
  %v4071 = vmax.f32 %v3830, 0.0
  %v4072 = vmax.f32 %v3831, 0.0
  %v4073 = vmax.f32 %v3832, 0.0
  %v4074 = vmax.f32 %v3833, 0.0
  %v4075 = vmax.f32 %v3834, 0.0
  %v4076 = vmax.f32 %v3835, 0.0
  %v4077 = vmax.f32 %v3836, 0.0
  %v4078 = vmax.f32 %v3837, 0.0
  %v4079 = vmax.f32 %v3838, 0.0
  %v4080 = vmax.f32 %v3839, 0.0
  %v4081 = vmax.f32 %v3840, 0.0
  %v4082 = vmax.f32 %v3841, 0.0
  %v4083 = vmax.f32 %v3842, 0.0
  %v4084 = vmax.f32 %v3843, 0.0
  %v4085 = vmax.f32 %v3844, 0.0
  %v4086 = vmax.f32 %v3845, 0.0
  %v4087 = vmax.f32 %v3846, 0.0
  %v4088 = vmax.f32 %v3847, 0.0
  %v4089 = vmax.f32 %v3848, 0.0
  %v4090 = vmax.f32 %v3849, 0.0
  %v4091 = vmax.f32 %v3850, 0.0
  %v4092 = vmax.f32 %v3851, 0.0
  %v4093 = vmax.f32 %v3852, 0.0
  %v4094 = vmax.f32 %v3853, 0.0
  %v4095 = vmax.f32 %v3854, 0.0
  %v4096 = vmax.f32 %v3855, 0.0
  %v4097 = vmax.f32 %v3856, 0.0
  %v4098 = vmax.f32 %v3857, 0.0
  %v4099 = vmax.f32 %v3858, 0.0
  %v4100 = vmax.f32 %v3859, 0.0
  %v4101 = vmax.f32 %v3860, 0.0
  %v4102 = vmax.f32 %v3861, 0.0
  %v4103 = vmax.f32 %v3862, 0.0
  %v4104 = vmax.f32 %v3863, 0.0
  %v4105 = vmax.f32 %v3864, 0.0
  %v4106 = vmax.f32 %v3865, 0.0
  %v4107 = vmax.f32 %v3866, 0.0
  %v4108 = vmax.f32 %v3867, 0.0
  %v4109 = vmax.f32 %v3868, 0.0
  %v4110 = vmax.f32 %v3869, 0.0
  %v4111 = vmax.f32 %v3870, 0.0
  %v4112 = vmax.f32 %v3871, 0.0
  %v4113 = vmax.f32 %v3872, 0.0
  %v4114 = vmax.f32 %v3873, 0.0
  %v4115 = vmax.f32 %v3874, 0.0
  %v4116 = vmax.f32 %v3875, 0.0
  %v4117 = vmax.f32 %v3876, 0.0
  %v4118 = vmax.f32 %v3877, 0.0
  %v4119 = vmax.f32 %v3878, 0.0
  %v4120 = vmax.f32 %v3879, 0.0
  %v4121 = vmax.f32 %v3880, 0.0
  %v4122 = vmax.f32 %v3881, 0.0
  %v4123 = vmax.f32 %v3882, 0.0
  %v4124 = vmax.f32 %v3883, 0.0
  %v4125 = vmax.f32 %v3884, 0.0
  %v4126 = vmax.f32 %v3885, 0.0
  %v4127 = vmax.f32 %v3886, 0.0
  %v4128 = vmax.f32 %v3887, 0.0
  %v4129 = vmax.f32 %v3888, 0.0
  %v4130 = vmax.f32 %v3889, 0.0
  %v4131 = vmax.f32 %v3890, 0.0
  %v4132 = vmax.f32 %v3891, 0.0
  %v4133 = vmax.f32 %v3892, 0.0
  %v4134 = vmax.f32 %v3893, 0.0
  %v4135 = vmax.f32 %v3894, 0.0
  %v4136 = vmax.f32 %v3895, 0.0
  %v4137 = vmax.f32 %v3896, 0.0
  %v4138 = vmax.f32 %v3897, 0.0
  %v4139 = vmax.f32 %v3898, 0.0
  %v4140 = vmax.f32 %v3899, 0.0
  %v4141 = vmax.f32 %v3900, 0.0
  %v4142 = vmax.f32 %v3901, 0.0
  %v4143 = vmax.f32 %v3902, 0.0
  %v4144 = vmax.f32 %v3903, 0.0
  %v4145 = vmax.f32 %v3904, 0.0
  %v4146 = vmax.f32 %v3905, 0.0
  %v4147 = vmax.f32 %v3906, 0.0
  %v4148 = vmax.f32 %v3907, 0.0
  %v4149 = vmax.f32 %v3908, 0.0
  %v4150 = vmax.f32 %v3909, 0.0
  %v4151 = vmax.f32 %v3910, 0.0
  %v4152 = vmax.f32 %v3911, 0.0
  %v4153 = vmax.f32 %v3912, 0.0
  %v4154 = vmax.f32 %v3913, 0.0
  %v4155 = vmax.f32 %v3914, 0.0
  %v4156 = vmax.f32 %v3915, 0.0
  %v4157 = vmax.f32 %v3916, 0.0
  %v4158 = vmax.f32 %v3917, 0.0
  %v4159 = vmax.f32 %v3918, 0.0
  %v4160 = vmax.f32 %v3919, 0.0
  %v4161 = vmax.f32 %v3920, 0.0
  %v4162 = vmax.f32 %v3921, 0.0
  %v4163 = vmax.f32 %v3922, 0.0
  %v4164 = vmax.f32 %v3923, 0.0
  %v4165 = vmax.f32 %v3924, 0.0
  %v4166 = vmax.f32 %v3925, 0.0
  %v4167 = vmax.f32 %v3926, 0.0
  %v4168 = vmax.f32 %v3927, 0.0
  %v4169 = vmax.f32 %v3928, 0.0
  %v4170 = vmax.f32 %v3929, 0.0
  %v4171 = vmax.f32 %v3930, 0.0
  %v4172 = vmax.f32 %v3931, 0.0
  %v4173 = vmax.f32 %v3932, 0.0
  %v4174 = vmax.f32 %v3933, 0.0
  %v4175 = vmax.f32 %v3934, 0.0
  %v4176 = vmax.f32 %v3935, 0.0
  %v4177 = vmax.f32 %v3936, 0.0
  %v4178 = vmax.f32 %v3937, 0.0
  %v4179 = vmax.f32 %v3938, 0.0
  %v4180 = vmax.f32 %v3939, 0.0
  %v4181 = vmax.f32 %v3940, 0.0
  %v4182 = vmax.f32 %v3941, 0.0
  %v4183 = vmax.f32 %v3942, 0.0
  %v4184 = vmax.f32 %v3943, 0.0
  %v4185 = vmax.f32 %v3944, 0.0
  %v4186 = vmax.f32 %v3945, 0.0
  %v4187 = vmax.f32 %v3946, 0.0
  %v4188 = vmax.f32 %v3947, 0.0
  %v4189 = vmax.f32 %v3948, 0.0
  %v4190 = vmax.f32 %v3949, 0.0
  %v4191 = vmax.f32 %v3950, 0.0
  %v4192 = vmax.f32 %v3951, 0.0
  %v4193 = vmax.f32 %v3952, 0.0
  %v4194 = vmax.f32 %v3953, 0.0
  %v4195 = vmax.f32 %v3954, 0.0
  %v4196 = vmax.f32 %v3955, 0.0
  %v4197 = vmax.f32 %v3956, 0.0
  %v4198 = vmax.f32 %v3957, 0.0
  %v4199 = vmax.f32 %v3958, 0.0
  %v4200 = vmax.f32 %v3959, 0.0
  %v4201 = vmax.f32 %v3960, 0.0
  %v4202 = vmax.f32 %v3961, 0.0
  %v4203 = vmax.f32 %v3962, 0.0
  %v4204 = vmax.f32 %v3963, 0.0
  %v4205 = vmax.f32 %v3964, 0.0
  %v4206 = vmax.f32 %v3965, 0.0
  %v4207 = vmax.f32 %v3966, 0.0
  %v4208 = vmax.f32 %v3967, 0.0
  %v4209 = vmax.f32 %v3968, 0.0
  %v4210 = vmax.f32 %v3969, 0.0
  %v4211 = vmax.f32 %v3970, 0.0
  %v4212 = vmax.f32 %v3971, 0.0
  %v4213 = vmax.f32 %v3972, 0.0
  %v4214 = vmax.f32 %v3973, 0.0
  %v4215 = vmax.f32 %v3974, 0.0
  %v4216 = vmax.f32 %v3975, 0.0
  %v4217 = vmax.f32 %v3976, 0.0
  %v4218 = vmax.f32 %v3977, 0.0
  %v4219 = vmax.f32 %v3978, 0.0
  %v4220 = vmax.f32 %v3979, 0.0
  %v4221 = vmax.f32 %v3980, 0.0
  %v4222 = vmax.f32 %v3981, 0.0
  %v4223 = vmax.f32 %v3982, 0.0
  %v4224 = vmax.f32 %v3983, 0.0
  %v4225 = vmax.f32 %v3984, 0.0
  %v4226 = vmax.f32 %v3985, 0.0
  %v4227 = vmax.f32 %v3986, 0.0
  %v4228 = vmax.f32 %v3987, 0.0
  %v4229 = vmax.f32 %v3988, 0.0
  %v4230 = vmax.f32 %v3989, 0.0
  %v4231 = vmax.f32 %v3990, 0.0
  %v4232 = vmax.f32 %v3991, 0.0
  %v4233 = vmax.f32 %v3992, 0.0
  %v4234 = vmax.f32 %v3993, 0.0
  %v4235 = vmax.f32 %v3994, 0.0
  %v4236 = vmax.f32 %v3995, 0.0
  %v4237 = vmax.f32 %v3996, 0.0
  %v4238 = vmax.f32 %v3997, 0.0
  %v4239 = vmax.f32 %v3998, 0.0
  %v4240 = vmax.f32 %v3999, 0.0
  %v4241 = vmax.f32 %v4000, 0.0
  %v4242 = vmax.f32 %v4001, 0.0
  %v4243 = vmax.f32 %v4002, 0.0
  %v4244 = vmax.f32 %v4003, 0.0
  %v4245 = vmax.f32 %v4004, 0.0
  %v4246 = vmax.f32 %v4005, 0.0
  %v4247 = vmax.f32 %v4006, 0.0
  %v4248 = vmax.f32 %v4007, 0.0
  %v4249 = vmax.f32 %v4008, 0.0
  %v4250 = vmax.f32 %v4009, 0.0
  %v4251 = vmax.f32 %v4010, 0.0
  %v4252 = vmax.f32 %v4011, 0.0
  %v4253 = vmax.f32 %v4012, 0.0
  %4254 = vst.msk [vmem:[%s5] sm:$0xff] %vm1811, %v4013
  %4255 = vst.msk [vmem:[%s5 + $0x8] sm:$0xff] %vm1811, %v4014
  %4256 = vst.msk [vmem:[%s5 + $0x10] sm:$0xff] %vm1811, %v4015
  %4257 = vst.msk [vmem:[%s5 + $0x18] sm:$0xff] %vm1811, %v4016
  %4258 = vst.msk [vmem:[%s5 + $0x20] sm:$0xff] %vm1811, %v4017
  %4259 = vst.msk [vmem:[%s5 + $0x28] sm:$0xff] %vm1811, %v4018
  %4260 = vst.msk [vmem:[%s5 + $0x30] sm:$0xff] %vm1811, %v4019
  %4261 = vst.msk [vmem:[%s5 + $0x38] sm:$0xff] %vm1811, %v4020
  %4262 = vst.msk [vmem:[%s5 + $0x40] sm:$0xff] %vm1811, %v4021
  %4263 = vst.msk [vmem:[%s5 + $0x48] sm:$0xff] %vm1811, %v4022
  %4264 = vst.msk [vmem:[%s5 + $0x50] sm:$0xff] %vm1811, %v4023
  %4265 = vst.msk [vmem:[%s5 + $0x58] sm:$0xff] %vm1811, %v4024
  %4266 = vst.msk [vmem:[%s5 + $0x60] sm:$0xff] %vm1811, %v4025
  %4267 = vst.msk [vmem:[%s5 + $0x68] sm:$0xff] %vm1811, %v4026
  %4268 = vst.msk [vmem:[%s5 + $0x70] sm:$0xff] %vm1811, %v4027
  %4269 = vst.msk [vmem:[%s5 + $0x78] sm:$0xff] %vm1811, %v4028
  %4270 = vst.msk [vmem:[%s5 + $0x80] sm:$0xff] %vm1811, %v4029
  %4271 = vst.msk [vmem:[%s5 + $0x88] sm:$0xff] %vm1811, %v4030
  %4272 = vst.msk [vmem:[%s5 + $0x90] sm:$0xff] %vm1811, %v4031
  %4273 = vst.msk [vmem:[%s5 + $0x98] sm:$0xff] %vm1811, %v4032
  %4274 = vst.msk [vmem:[%s5 + $0xa0] sm:$0xff] %vm1811, %v4033
  %4275 = vst.msk [vmem:[%s5 + $0xa8] sm:$0xff] %vm1811, %v4034
  %4276 = vst.msk [vmem:[%s5 + $0xb0] sm:$0xff] %vm1811, %v4035
  %4277 = vst.msk [vmem:[%s5 + $0xb8] sm:$0xff] %vm1811, %v4036
  %4278 = vst.msk [vmem:[%s5 + $0xc0] sm:$0xff] %vm1811, %v4037
  %4279 = vst.msk [vmem:[%s5 + $0xc8] sm:$0xff] %vm1811, %v4038
  %4280 = vst.msk [vmem:[%s5 + $0xd0] sm:$0xff] %vm1811, %v4039
  %4281 = vst.msk [vmem:[%s5 + $0xd8] sm:$0xff] %vm1811, %v4040
  %4282 = vst.msk [vmem:[%s5 + $0xe0] sm:$0xff] %vm1811, %v4041
  %4283 = vst.msk [vmem:[%s5 + $0xe8] sm:$0xff] %vm1811, %v4042
  %4284 = vst.msk [vmem:[%s5 + $0xf0] sm:$0xff] %vm1811, %v4043
  %4285 = vst.msk [vmem:[%s5 + $0xf8] sm:$0xff] %vm1811, %v4044
  %4286 = vst.msk [vmem:[%s5 + $0x100] sm:$0xff] %vm1811, %v4045
  %4287 = vst.msk [vmem:[%s5 + $0x108] sm:$0xff] %vm1811, %v4046
  %4288 = vst.msk [vmem:[%s5 + $0x110] sm:$0xff] %vm1811, %v4047
  %4289 = vst.msk [vmem:[%s5 + $0x118] sm:$0xff] %vm1811, %v4048
  %4290 = vst.msk [vmem:[%s5 + $0x120] sm:$0xff] %vm1811, %v4049
  %4291 = vst.msk [vmem:[%s5 + $0x128] sm:$0xff] %vm1811, %v4050
  %4292 = vst.msk [vmem:[%s5 + $0x130] sm:$0xff] %vm1811, %v4051
  %4293 = vst.msk [vmem:[%s5 + $0x138] sm:$0xff] %vm1811, %v4052
  %4294 = vst.msk [vmem:[%s5 + $0x140] sm:$0xff] %vm1811, %v4053
  %4295 = vst.msk [vmem:[%s5 + $0x148] sm:$0xff] %vm1811, %v4054
  %4296 = vst.msk [vmem:[%s5 + $0x150] sm:$0xff] %vm1811, %v4055
  %4297 = vst.msk [vmem:[%s5 + $0x158] sm:$0xff] %vm1811, %v4056
  %4298 = vst.msk [vmem:[%s5 + $0x160] sm:$0xff] %vm1811, %v4057
  %4299 = vst.msk [vmem:[%s5 + $0x168] sm:$0xff] %vm1811, %v4058
  %4300 = vst.msk [vmem:[%s5 + $0x170] sm:$0xff] %vm1811, %v4059
  %4301 = vst.msk [vmem:[%s5 + $0x178] sm:$0xff] %vm1811, %v4060
  %4302 = vst.msk [vmem:[%s5 + $0x180] sm:$0xff] %vm1811, %v4061
  %4303 = vst.msk [vmem:[%s5 + $0x188] sm:$0xff] %vm1811, %v4062
  %4304 = vst.msk [vmem:[%s5 + $0x190] sm:$0xff] %vm1811, %v4063
  %4305 = vst.msk [vmem:[%s5 + $0x198] sm:$0xff] %vm1811, %v4064
  %4306 = vst.msk [vmem:[%s5 + $0x1a0] sm:$0xff] %vm1811, %v4065
  %4307 = vst.msk [vmem:[%s5 + $0x1a8] sm:$0xff] %vm1811, %v4066
  %4308 = vst.msk [vmem:[%s5 + $0x1b0] sm:$0xff] %vm1811, %v4067
  %4309 = vst.msk [vmem:[%s5 + $0x1b8] sm:$0xff] %vm1811, %v4068
  %4310 = vst.msk [vmem:[%s5 + $0x1c0] sm:$0xff] %vm1811, %v4069
  %4311 = vst.msk [vmem:[%s5 + $0x1c8] sm:$0xff] %vm1811, %v4070
  %4312 = vst.msk [vmem:[%s5 + $0x1d0] sm:$0xff] %vm1811, %v4071
  %4313 = vst.msk [vmem:[%s5 + $0x1d8] sm:$0xff] %vm1811, %v4072
  %4314 = vst.msk [vmem:[%s5 + $0x1e0] sm:$0xff] %vm1811, %v4073
  %4315 = vst.msk [vmem:[%s5 + $0x1e8] sm:$0xff] %vm1811, %v4074
  %4316 = vst.msk [vmem:[%s5 + $0x1f0] sm:$0xff] %vm1811, %v4075
  %4317 = vst.msk [vmem:[%s5 + $0x1f8] sm:$0xff] %vm1811, %v4076
  %4318 = vst.msk [vmem:[%s5 + $0x200] sm:$0xff] %vm1811, %v4077
  %4319 = vst.msk [vmem:[%s5 + $0x208] sm:$0xff] %vm1811, %v4078
  %4320 = vst.msk [vmem:[%s5 + $0x210] sm:$0xff] %vm1811, %v4079
  %4321 = vst.msk [vmem:[%s5 + $0x218] sm:$0xff] %vm1811, %v4080
  %4322 = vst.msk [vmem:[%s5 + $0x220] sm:$0xff] %vm1811, %v4081
  %4323 = vst.msk [vmem:[%s5 + $0x228] sm:$0xff] %vm1811, %v4082
  %4324 = vst.msk [vmem:[%s5 + $0x230] sm:$0xff] %vm1811, %v4083
  %4325 = vst.msk [vmem:[%s5 + $0x238] sm:$0xff] %vm1811, %v4084
  %4326 = vst.msk [vmem:[%s5 + $0x240] sm:$0xff] %vm1811, %v4085
  %4327 = vst.msk [vmem:[%s5 + $0x248] sm:$0xff] %vm1811, %v4086
  %4328 = vst.msk [vmem:[%s5 + $0x250] sm:$0xff] %vm1811, %v4087
  %4329 = vst.msk [vmem:[%s5 + $0x258] sm:$0xff] %vm1811, %v4088
  %4330 = vst.msk [vmem:[%s5 + $0x260] sm:$0xff] %vm1811, %v4089
  %4331 = vst.msk [vmem:[%s5 + $0x268] sm:$0xff] %vm1811, %v4090
  %4332 = vst.msk [vmem:[%s5 + $0x270] sm:$0xff] %vm1811, %v4091
  %4333 = vst.msk [vmem:[%s5 + $0x278] sm:$0xff] %vm1811, %v4092
  %4334 = vst.msk [vmem:[%s5 + $0x280] sm:$0xff] %vm1811, %v4093
  %4335 = vst.msk [vmem:[%s5 + $0x288] sm:$0xff] %vm1811, %v4094
  %4336 = vst.msk [vmem:[%s5 + $0x290] sm:$0xff] %vm1811, %v4095
  %4337 = vst.msk [vmem:[%s5 + $0x298] sm:$0xff] %vm1811, %v4096
  %4338 = vst.msk [vmem:[%s5 + $0x2a0] sm:$0xff] %vm1811, %v4097
  %4339 = vst.msk [vmem:[%s5 + $0x2a8] sm:$0xff] %vm1811, %v4098
  %4340 = vst.msk [vmem:[%s5 + $0x2b0] sm:$0xff] %vm1811, %v4099
  %4341 = vst.msk [vmem:[%s5 + $0x2b8] sm:$0xff] %vm1811, %v4100
  %4342 = vst.msk [vmem:[%s5 + $0x2c0] sm:$0xff] %vm1811, %v4101
  %4343 = vst.msk [vmem:[%s5 + $0x2c8] sm:$0xff] %vm1811, %v4102
  %4344 = vst.msk [vmem:[%s5 + $0x2d0] sm:$0xff] %vm1811, %v4103
  %4345 = vst.msk [vmem:[%s5 + $0x2d8] sm:$0xff] %vm1811, %v4104
  %4346 = vst.msk [vmem:[%s5 + $0x2e0] sm:$0xff] %vm1811, %v4105
  %4347 = vst.msk [vmem:[%s5 + $0x2e8] sm:$0xff] %vm1811, %v4106
  %4348 = vst.msk [vmem:[%s5 + $0x2f0] sm:$0xff] %vm1811, %v4107
  %4349 = vst.msk [vmem:[%s5 + $0x2f8] sm:$0xff] %vm1811, %v4108
  %4350 = vst.msk [vmem:[%s5 + $0x300] sm:$0xff] %vm1811, %v4109
  %4351 = vst.msk [vmem:[%s5 + $0x308] sm:$0xff] %vm1811, %v4110
  %4352 = vst.msk [vmem:[%s5 + $0x310] sm:$0xff] %vm1811, %v4111
  %4353 = vst.msk [vmem:[%s5 + $0x318] sm:$0xff] %vm1811, %v4112
  %4354 = vst.msk [vmem:[%s5 + $0x320] sm:$0xff] %vm1811, %v4113
  %4355 = vst.msk [vmem:[%s5 + $0x328] sm:$0xff] %vm1811, %v4114
  %4356 = vst.msk [vmem:[%s5 + $0x330] sm:$0xff] %vm1811, %v4115
  %4357 = vst.msk [vmem:[%s5 + $0x338] sm:$0xff] %vm1811, %v4116
  %4358 = vst.msk [vmem:[%s5 + $0x340] sm:$0xff] %vm1811, %v4117
  %4359 = vst.msk [vmem:[%s5 + $0x348] sm:$0xff] %vm1811, %v4118
  %4360 = vst.msk [vmem:[%s5 + $0x350] sm:$0xff] %vm1811, %v4119
  %4361 = vst.msk [vmem:[%s5 + $0x358] sm:$0xff] %vm1811, %v4120
  %4362 = vst.msk [vmem:[%s5 + $0x360] sm:$0xff] %vm1811, %v4121
  %4363 = vst.msk [vmem:[%s5 + $0x368] sm:$0xff] %vm1811, %v4122
  %4364 = vst.msk [vmem:[%s5 + $0x370] sm:$0xff] %vm1811, %v4123
  %4365 = vst.msk [vmem:[%s5 + $0x378] sm:$0xff] %vm1811, %v4124
  %4366 = vst.msk [vmem:[%s5 + $0x380] sm:$0xff] %vm1811, %v4125
  %4367 = vst.msk [vmem:[%s5 + $0x388] sm:$0xff] %vm1811, %v4126
  %4368 = vst.msk [vmem:[%s5 + $0x390] sm:$0xff] %vm1811, %v4127
  %4369 = vst.msk [vmem:[%s5 + $0x398] sm:$0xff] %vm1811, %v4128
  %4370 = vst.msk [vmem:[%s5 + $0x3a0] sm:$0xff] %vm1811, %v4129
  %4371 = vst.msk [vmem:[%s5 + $0x3a8] sm:$0xff] %vm1811, %v4130
  %4372 = vst.msk [vmem:[%s5 + $0x3b0] sm:$0xff] %vm1811, %v4131
  %4373 = vst.msk [vmem:[%s5 + $0x3b8] sm:$0xff] %vm1811, %v4132
  %4374 = vst.msk [vmem:[%s5 + $0x3c0] sm:$0xff] %vm1811, %v4133
  %4375 = vst.msk [vmem:[%s5 + $0x3c8] sm:$0xff] %vm1811, %v4134
  %4376 = vst.msk [vmem:[%s5 + $0x3d0] sm:$0xff] %vm1811, %v4135
  %4377 = vst.msk [vmem:[%s5 + $0x3d8] sm:$0xff] %vm1811, %v4136
  %4378 = vst.msk [vmem:[%s5 + $0x3e0] sm:$0xff] %vm1811, %v4137
  %4379 = vst.msk [vmem:[%s5 + $0x3e8] sm:$0xff] %vm1811, %v4138
  %4380 = vst.msk [vmem:[%s5 + $0x3f0] sm:$0xff] %vm1811, %v4139
  %4381 = vst.msk [vmem:[%s5 + $0x3f8] sm:$0xff] %vm1811, %v4140
  %4382 = vst.msk [vmem:[%s5 + $0x400] sm:$0xff] %vm1811, %v4141
  %4383 = vst.msk [vmem:[%s5 + $0x408] sm:$0xff] %vm1811, %v4142
  %4384 = vst.msk [vmem:[%s5 + $0x410] sm:$0xff] %vm1811, %v4143
  %4385 = vst.msk [vmem:[%s5 + $0x418] sm:$0xff] %vm1811, %v4144
  %4386 = vst.msk [vmem:[%s5 + $0x420] sm:$0xff] %vm1811, %v4145
  %4387 = vst.msk [vmem:[%s5 + $0x428] sm:$0xff] %vm1811, %v4146
  %4388 = vst.msk [vmem:[%s5 + $0x430] sm:$0xff] %vm1811, %v4147
  %4389 = vst.msk [vmem:[%s5 + $0x438] sm:$0xff] %vm1811, %v4148
  %4390 = vst.msk [vmem:[%s5 + $0x440] sm:$0xff] %vm1811, %v4149
  %4391 = vst.msk [vmem:[%s5 + $0x448] sm:$0xff] %vm1811, %v4150
  %4392 = vst.msk [vmem:[%s5 + $0x450] sm:$0xff] %vm1811, %v4151
  %4393 = vst.msk [vmem:[%s5 + $0x458] sm:$0xff] %vm1811, %v4152
  %4394 = vst.msk [vmem:[%s5 + $0x460] sm:$0xff] %vm1811, %v4153
  %4395 = vst.msk [vmem:[%s5 + $0x468] sm:$0xff] %vm1811, %v4154
  %4396 = vst.msk [vmem:[%s5 + $0x470] sm:$0xff] %vm1811, %v4155
  %4397 = vst.msk [vmem:[%s5 + $0x478] sm:$0xff] %vm1811, %v4156
  %4398 = vst.msk [vmem:[%s5 + $0x480] sm:$0xff] %vm1811, %v4157
  %4399 = vst.msk [vmem:[%s5 + $0x488] sm:$0xff] %vm1811, %v4158
  %4400 = vst.msk [vmem:[%s5 + $0x490] sm:$0xff] %vm1811, %v4159
  %4401 = vst.msk [vmem:[%s5 + $0x498] sm:$0xff] %vm1811, %v4160
  %4402 = vst.msk [vmem:[%s5 + $0x4a0] sm:$0xff] %vm1811, %v4161
  %4403 = vst.msk [vmem:[%s5 + $0x4a8] sm:$0xff] %vm1811, %v4162
  %4404 = vst.msk [vmem:[%s5 + $0x4b0] sm:$0xff] %vm1811, %v4163
  %4405 = vst.msk [vmem:[%s5 + $0x4b8] sm:$0xff] %vm1811, %v4164
  %4406 = vst.msk [vmem:[%s5 + $0x4c0] sm:$0xff] %vm1811, %v4165
  %4407 = vst.msk [vmem:[%s5 + $0x4c8] sm:$0xff] %vm1811, %v4166
  %4408 = vst.msk [vmem:[%s5 + $0x4d0] sm:$0xff] %vm1811, %v4167
  %4409 = vst.msk [vmem:[%s5 + $0x4d8] sm:$0xff] %vm1811, %v4168
  %4410 = vst.msk [vmem:[%s5 + $0x4e0] sm:$0xff] %vm1811, %v4169
  %4411 = vst.msk [vmem:[%s5 + $0x4e8] sm:$0xff] %vm1811, %v4170
  %4412 = vst.msk [vmem:[%s5 + $0x4f0] sm:$0xff] %vm1811, %v4171
  %4413 = vst.msk [vmem:[%s5 + $0x4f8] sm:$0xff] %vm1811, %v4172
  %4414 = vst.msk [vmem:[%s5 + $0x500] sm:$0xff] %vm1811, %v4173
  %4415 = vst.msk [vmem:[%s5 + $0x508] sm:$0xff] %vm1811, %v4174
  %4416 = vst.msk [vmem:[%s5 + $0x510] sm:$0xff] %vm1811, %v4175
  %4417 = vst.msk [vmem:[%s5 + $0x518] sm:$0xff] %vm1811, %v4176
  %4418 = vst.msk [vmem:[%s5 + $0x520] sm:$0xff] %vm1811, %v4177
  %4419 = vst.msk [vmem:[%s5 + $0x528] sm:$0xff] %vm1811, %v4178
  %4420 = vst.msk [vmem:[%s5 + $0x530] sm:$0xff] %vm1811, %v4179
  %4421 = vst.msk [vmem:[%s5 + $0x538] sm:$0xff] %vm1811, %v4180
  %4422 = vst.msk [vmem:[%s5 + $0x540] sm:$0xff] %vm1811, %v4181
  %4423 = vst.msk [vmem:[%s5 + $0x548] sm:$0xff] %vm1811, %v4182
  %4424 = vst.msk [vmem:[%s5 + $0x550] sm:$0xff] %vm1811, %v4183
  %4425 = vst.msk [vmem:[%s5 + $0x558] sm:$0xff] %vm1811, %v4184
  %4426 = vst.msk [vmem:[%s5 + $0x560] sm:$0xff] %vm1811, %v4185
  %4427 = vst.msk [vmem:[%s5 + $0x568] sm:$0xff] %vm1811, %v4186
  %4428 = vst.msk [vmem:[%s5 + $0x570] sm:$0xff] %vm1811, %v4187
  %4429 = vst.msk [vmem:[%s5 + $0x578] sm:$0xff] %vm1811, %v4188
  %4430 = vst.msk [vmem:[%s5 + $0x580] sm:$0xff] %vm1811, %v4189
  %4431 = vst.msk [vmem:[%s5 + $0x588] sm:$0xff] %vm1811, %v4190
  %4432 = vst.msk [vmem:[%s5 + $0x590] sm:$0xff] %vm1811, %v4191
  %4433 = vst.msk [vmem:[%s5 + $0x598] sm:$0xff] %vm1811, %v4192
  %4434 = vst.msk [vmem:[%s5 + $0x5a0] sm:$0xff] %vm1811, %v4193
  %4435 = vst.msk [vmem:[%s5 + $0x5a8] sm:$0xff] %vm1811, %v4194
  %4436 = vst.msk [vmem:[%s5 + $0x5b0] sm:$0xff] %vm1811, %v4195
  %4437 = vst.msk [vmem:[%s5 + $0x5b8] sm:$0xff] %vm1811, %v4196
  %4438 = vst.msk [vmem:[%s5 + $0x5c0] sm:$0xff] %vm1811, %v4197
  %4439 = vst.msk [vmem:[%s5 + $0x5c8] sm:$0xff] %vm1811, %v4198
  %4440 = vst.msk [vmem:[%s5 + $0x5d0] sm:$0xff] %vm1811, %v4199
  %4441 = vst.msk [vmem:[%s5 + $0x5d8] sm:$0xff] %vm1811, %v4200
  %4442 = vst.msk [vmem:[%s5 + $0x5e0] sm:$0xff] %vm1811, %v4201
  %4443 = vst.msk [vmem:[%s5 + $0x5e8] sm:$0xff] %vm1811, %v4202
  %4444 = vst.msk [vmem:[%s5 + $0x5f0] sm:$0xff] %vm1811, %v4203
  %4445 = vst.msk [vmem:[%s5 + $0x5f8] sm:$0xff] %vm1811, %v4204
  %4446 = vst.msk [vmem:[%s5 + $0x600] sm:$0xff] %vm1811, %v4205
  %4447 = vst.msk [vmem:[%s5 + $0x608] sm:$0xff] %vm1811, %v4206
  %4448 = vst.msk [vmem:[%s5 + $0x610] sm:$0xff] %vm1811, %v4207
  %4449 = vst.msk [vmem:[%s5 + $0x618] sm:$0xff] %vm1811, %v4208
  %4450 = vst.msk [vmem:[%s5 + $0x620] sm:$0xff] %vm1811, %v4209
  %4451 = vst.msk [vmem:[%s5 + $0x628] sm:$0xff] %vm1811, %v4210
  %4452 = vst.msk [vmem:[%s5 + $0x630] sm:$0xff] %vm1811, %v4211
  %4453 = vst.msk [vmem:[%s5 + $0x638] sm:$0xff] %vm1811, %v4212
  %4454 = vst.msk [vmem:[%s5 + $0x640] sm:$0xff] %vm1811, %v4213
  %4455 = vst.msk [vmem:[%s5 + $0x648] sm:$0xff] %vm1811, %v4214
  %4456 = vst.msk [vmem:[%s5 + $0x650] sm:$0xff] %vm1811, %v4215
  %4457 = vst.msk [vmem:[%s5 + $0x658] sm:$0xff] %vm1811, %v4216
  %4458 = vst.msk [vmem:[%s5 + $0x660] sm:$0xff] %vm1811, %v4217
  %4459 = vst.msk [vmem:[%s5 + $0x668] sm:$0xff] %vm1811, %v4218
  %4460 = vst.msk [vmem:[%s5 + $0x670] sm:$0xff] %vm1811, %v4219
  %4461 = vst.msk [vmem:[%s5 + $0x678] sm:$0xff] %vm1811, %v4220
  %4462 = vst.msk [vmem:[%s5 + $0x680] sm:$0xff] %vm1811, %v4221
  %4463 = vst.msk [vmem:[%s5 + $0x688] sm:$0xff] %vm1811, %v4222
  %4464 = vst.msk [vmem:[%s5 + $0x690] sm:$0xff] %vm1811, %v4223
  %4465 = vst.msk [vmem:[%s5 + $0x698] sm:$0xff] %vm1811, %v4224
  %4466 = vst.msk [vmem:[%s5 + $0x6a0] sm:$0xff] %vm1811, %v4225
  %4467 = vst.msk [vmem:[%s5 + $0x6a8] sm:$0xff] %vm1811, %v4226
  %4468 = vst.msk [vmem:[%s5 + $0x6b0] sm:$0xff] %vm1811, %v4227
  %4469 = vst.msk [vmem:[%s5 + $0x6b8] sm:$0xff] %vm1811, %v4228
  %4470 = vst.msk [vmem:[%s5 + $0x6c0] sm:$0xff] %vm1811, %v4229
  %4471 = vst.msk [vmem:[%s5 + $0x6c8] sm:$0xff] %vm1811, %v4230
  %4472 = vst.msk [vmem:[%s5 + $0x6d0] sm:$0xff] %vm1811, %v4231
  %4473 = vst.msk [vmem:[%s5 + $0x6d8] sm:$0xff] %vm1811, %v4232
  %4474 = vst.msk [vmem:[%s5 + $0x6e0] sm:$0xff] %vm1811, %v4233
  %4475 = vst.msk [vmem:[%s5 + $0x6e8] sm:$0xff] %vm1811, %v4234
  %4476 = vst.msk [vmem:[%s5 + $0x6f0] sm:$0xff] %vm1811, %v4235
  %4477 = vst.msk [vmem:[%s5 + $0x6f8] sm:$0xff] %vm1811, %v4236
  %4478 = vst.msk [vmem:[%s5 + $0x700] sm:$0xff] %vm1811, %v4237
  %4479 = vst.msk [vmem:[%s5 + $0x708] sm:$0xff] %vm1811, %v4238
  %4480 = vst.msk [vmem:[%s5 + $0x710] sm:$0xff] %vm1811, %v4239
  %4481 = vst.msk [vmem:[%s5 + $0x718] sm:$0xff] %vm1811, %v4240
  %4482 = vst.msk [vmem:[%s5 + $0x720] sm:$0xff] %vm1811, %v4241
  %4483 = vst.msk [vmem:[%s5 + $0x728] sm:$0xff] %vm1811, %v4242
  %4484 = vst.msk [vmem:[%s5 + $0x730] sm:$0xff] %vm1811, %v4243
  %4485 = vst.msk [vmem:[%s5 + $0x738] sm:$0xff] %vm1811, %v4244
  %4486 = vst.msk [vmem:[%s5 + $0x740] sm:$0xff] %vm1811, %v4245
  %4487 = vst.msk [vmem:[%s5 + $0x748] sm:$0xff] %vm1811, %v4246
  %4488 = vst.msk [vmem:[%s5 + $0x750] sm:$0xff] %vm1811, %v4247
  %4489 = vst.msk [vmem:[%s5 + $0x758] sm:$0xff] %vm1811, %v4248
  %4490 = vst.msk [vmem:[%s5 + $0x760] sm:$0xff] %vm1811, %v4249
  %4491 = vst.msk [vmem:[%s5 + $0x768] sm:$0xff] %vm1811, %v4250
  %4492 = vst.msk [vmem:[%s5 + $0x770] sm:$0xff] %vm1811, %v4251
  %4493 = vst.msk [vmem:[%s5 + $0x778] sm:$0xff] %vm1811, %v4252
  %4494 = vst.msk [vmem:[%s5 + $0x780] sm:$0x3] %vm2291, %v4253
  // Predicated region
  $region22: #{convnet_forward.6} parent=0 // pred_check
    _
  $region23: #{convnet_forward.6} parent=0 // pred_check_branch
    %4496 = sbr.rel (0) target = $region25
  $region24: #{convnet_forward.6} parent=0 // pred_region
    _
  $region25: #{convnet_forward.6} parent=0 // pred_fallthru
    _
  // Predicated region
  $region26: #{convnet_forward.6} parent=0 // pred_check
    _
  $region27: #{convnet_forward.6} parent=0 // pred_check_branch
    %4498 = sbr.rel (0) target = $region29
  $region28: #{convnet_forward.6} parent=0 // pred_region
    _
  $region29: #{convnet_forward.6} parent=0 // pred_fallthru
    _

// kernel: convnet_forward.7
$region0: #{convnet_forward.7}
  #allocation0 [shape = 'u32[]', space=smem, size = 0x4, offset = 0x4, fixed_abs, tag = 'smem constant byte address 0x4 - core index']
  #allocation1 [shape = 'u32[144,128]{1,0:T(1,128)}', space=vmem, size = 0x12000, scoped, tag = 'internal scratch']
  %s0 = inlined_call_operand.vmem [shape: f32[200,512], index: 0, kind: input, shape index: {}]
  %s1 = inlined_call_operand.vmem [shape: f32[512,64], index: 1, kind: input, shape index: {}]
  %s2 = inlined_call_operand.vmem [shape: f32[1,64], index: 2, kind: input, shape index: {}]
  %s3 = inlined_call_operand.vmem [shape: f32[1,64], index: 3, kind: input, shape index: {}]
  %s4 = inlined_call_operand.vmem [shape: f32[1,64], index: 4, kind: input, shape index: {}]
  %s5 = inlined_call_operand.vmem [shape: f32[200,64], index: 5, kind: output, shape index: {}]
  %s6 = sld [smem:[#allocation0]]
  $region30: #{convnet_forward.7} parent=0
    _
  %s8 = ssub.s32 1, %s6
  %s9 = scalar_select 0, %s8, %s6
  // Predicated region
  $region2: #{convnet_forward.7} parent=0 // pred_check
    _
  $region3: #{convnet_forward.7} parent=0 // pred_check_branch
    %11 = sbr.rel (0) target = $region5
  $region4: #{convnet_forward.7} parent=0 // pred_region
    _
  $region5: #{convnet_forward.7} parent=0 // pred_fallthru
    _
  // Predicated region
  $region6: #{convnet_forward.7} parent=0 // pred_check
    _
  $region7: #{convnet_forward.7} parent=0 // pred_check_branch
    %13 = sbr.rel (0) target = $region9
  $region8: #{convnet_forward.7} parent=0 // pred_region
    _
  $region9: #{convnet_forward.7} parent=0 // pred_fallthru
    _
  // Predicated region
  $region10: #{convnet_forward.7} parent=0 // pred_check
    _
  $region11: #{convnet_forward.7} parent=0 // pred_check_branch
    %15 = sbr.rel (0) target = $region13
  $region12: #{convnet_forward.7} parent=0 // pred_region
    _
  $region13: #{convnet_forward.7} parent=0 // pred_fallthru
    _
  // Predicated region
  $region14: #{convnet_forward.7} parent=0 // pred_check
    _
  $region15: #{convnet_forward.7} parent=0 // pred_check_branch
    %17 = sbr.rel (0) target = $region17
  $region16: #{convnet_forward.7} parent=0 // pred_region
    _
  $region17: #{convnet_forward.7} parent=0 // pred_fallthru
    _
  // Predicated region
  $region18: #{convnet_forward.7} parent=0 // pred_check
    _
  $region19: #{convnet_forward.7} parent=0 // pred_check_branch
    %19 = sbr.rel (0) target = $region21
  $region20: #{convnet_forward.7} parent=0 // pred_region
    _
  $region21: #{convnet_forward.7} parent=0 // pred_fallthru
    _
  %v20 = vld [vmem:[%s0] sm:$0xff]
  %v21 = vld [vmem:[%s0 + $0x8] sm:$0xff]
  %v22 = vld [vmem:[%s0 + $0x10] sm:$0xff]
  %v23 = vld [vmem:[%s0 + $0x18] sm:$0xff]
  %v24 = vld [vmem:[%s0 + $0x20] sm:$0xff]
  %v25 = vld [vmem:[%s0 + $0x28] sm:$0xff]
  %v26 = vld [vmem:[%s0 + $0x30] sm:$0xff]
  %v27 = vld [vmem:[%s0 + $0x38] sm:$0xff]
  %v28 = vld [vmem:[%s0 + $0x40] sm:$0xff]
  %v29 = vld [vmem:[%s0 + $0x48] sm:$0xff]
  %v30 = vld [vmem:[%s0 + $0x50] sm:$0xff]
  %v31 = vld [vmem:[%s0 + $0x58] sm:$0xff]
  %v32 = vld [vmem:[%s0 + $0x60] sm:$0xff]
  %v33 = vld [vmem:[%s0 + $0x68] sm:$0xff]
  %v34 = vld [vmem:[%s0 + $0x70] sm:$0xff]
  %v35 = vld [vmem:[%s0 + $0x78] sm:$0xff]
  %v36 = vld [vmem:[%s0 + $0x80] sm:$0xff]
  %v37 = vld [vmem:[%s0 + $0x88] sm:$0xff]
  %v38 = vld [vmem:[%s0 + $0x90] sm:$0xff]
  %v39 = vld [vmem:[%s0 + $0x98] sm:$0xff]
  %v40 = vld [vmem:[%s0 + $0xa0] sm:$0xff]
  %v41 = vld [vmem:[%s0 + $0xa8] sm:$0xff]
  %v42 = vld [vmem:[%s0 + $0xb0] sm:$0xff]
  %v43 = vld [vmem:[%s0 + $0xb8] sm:$0xff]
  %v44 = vld [vmem:[%s0 + $0xc0] sm:$0xff]
  %v45 = vld [vmem:[%s0 + $0xc8] sm:$0xff]
  %v46 = vld [vmem:[%s0 + $0xd0] sm:$0xff]
  %v47 = vld [vmem:[%s0 + $0xd8] sm:$0xff]
  %v48 = vld [vmem:[%s0 + $0xe0] sm:$0xff]
  %v49 = vld [vmem:[%s0 + $0xe8] sm:$0xff]
  %v50 = vld [vmem:[%s0 + $0xf0] sm:$0xff]
  %v51 = vld [vmem:[%s0 + $0xf8] sm:$0xff]
  %v52 = vld [vmem:[%s0 + $0x100] sm:$0xff]
  %v53 = vld [vmem:[%s0 + $0x108] sm:$0xff]
  %v54 = vld [vmem:[%s0 + $0x110] sm:$0xff]
  %v55 = vld [vmem:[%s0 + $0x118] sm:$0xff]
  %v56 = vld [vmem:[%s0 + $0x120] sm:$0xff]
  %v57 = vld [vmem:[%s0 + $0x128] sm:$0xff]
  %v58 = vld [vmem:[%s0 + $0x130] sm:$0xff]
  %v59 = vld [vmem:[%s0 + $0x138] sm:$0xff]
  %v60 = vld [vmem:[%s0 + $0x140] sm:$0xff]
  %v61 = vld [vmem:[%s0 + $0x148] sm:$0xff]
  %v62 = vld [vmem:[%s0 + $0x150] sm:$0xff]
  %v63 = vld [vmem:[%s0 + $0x158] sm:$0xff]
  %v64 = vld [vmem:[%s0 + $0x160] sm:$0xff]
  %v65 = vld [vmem:[%s0 + $0x168] sm:$0xff]
  %v66 = vld [vmem:[%s0 + $0x170] sm:$0xff]
  %v67 = vld [vmem:[%s0 + $0x178] sm:$0xff]
  %v68 = vld [vmem:[%s0 + $0x180] sm:$0xff]
  %v69 = vld [vmem:[%s0 + $0x188] sm:$0xff]
  %v70 = vld [vmem:[%s0 + $0x190] sm:$0xff]
  %v71 = vld [vmem:[%s0 + $0x198] sm:$0xff]
  %v72 = vld [vmem:[%s0 + $0x1a0] sm:$0xff]
  %v73 = vld [vmem:[%s0 + $0x1a8] sm:$0xff]
  %v74 = vld [vmem:[%s0 + $0x1b0] sm:$0xff]
  %v75 = vld [vmem:[%s0 + $0x1b8] sm:$0xff]
  %v76 = vld [vmem:[%s0 + $0x1c0] sm:$0xff]
  %v77 = vld [vmem:[%s0 + $0x1c8] sm:$0xff]
  %v78 = vld [vmem:[%s0 + $0x1d0] sm:$0xff]
  %v79 = vld [vmem:[%s0 + $0x1d8] sm:$0xff]
  %v80 = vld [vmem:[%s0 + $0x1e0] sm:$0xff]
  %v81 = vld [vmem:[%s0 + $0x1e8] sm:$0xff]
  %v82 = vld [vmem:[%s0 + $0x1f0] sm:$0xff]
  %v83 = vld [vmem:[%s0 + $0x1f8] sm:$0xff]
  %v84 = vld [vmem:[%s0 + $0x200] sm:$0xff]
  %v85 = vld [vmem:[%s0 + $0x208] sm:$0xff]
  %v86 = vld [vmem:[%s0 + $0x210] sm:$0xff]
  %v87 = vld [vmem:[%s0 + $0x218] sm:$0xff]
  %v88 = vld [vmem:[%s0 + $0x220] sm:$0xff]
  %v89 = vld [vmem:[%s0 + $0x228] sm:$0xff]
  %v90 = vld [vmem:[%s0 + $0x230] sm:$0xff]
  %v91 = vld [vmem:[%s0 + $0x238] sm:$0xff]
  %v92 = vld [vmem:[%s0 + $0x240] sm:$0xff]
  %v93 = vld [vmem:[%s0 + $0x248] sm:$0xff]
  %v94 = vld [vmem:[%s0 + $0x250] sm:$0xff]
  %v95 = vld [vmem:[%s0 + $0x258] sm:$0xff]
  %v96 = vld [vmem:[%s0 + $0x260] sm:$0xff]
  %v97 = vld [vmem:[%s0 + $0x268] sm:$0xff]
  %v98 = vld [vmem:[%s0 + $0x270] sm:$0xff]
  %v99 = vld [vmem:[%s0 + $0x278] sm:$0xff]
  %v100 = vld [vmem:[%s0 + $0x280] sm:$0xff]
  %v101 = vld [vmem:[%s0 + $0x288] sm:$0xff]
  %v102 = vld [vmem:[%s0 + $0x290] sm:$0xff]
  %v103 = vld [vmem:[%s0 + $0x298] sm:$0xff]
  %v104 = vld [vmem:[%s0 + $0x2a0] sm:$0xff]
  %v105 = vld [vmem:[%s0 + $0x2a8] sm:$0xff]
  %v106 = vld [vmem:[%s0 + $0x2b0] sm:$0xff]
  %v107 = vld [vmem:[%s0 + $0x2b8] sm:$0xff]
  %v108 = vld [vmem:[%s0 + $0x2c0] sm:$0xff]
  %v109 = vld [vmem:[%s0 + $0x2c8] sm:$0xff]
  %v110 = vld [vmem:[%s0 + $0x2d0] sm:$0xff]
  %v111 = vld [vmem:[%s0 + $0x2d8] sm:$0xff]
  %v112 = vld [vmem:[%s0 + $0x2e0] sm:$0xff]
  %v113 = vld [vmem:[%s0 + $0x2e8] sm:$0xff]
  %v114 = vld [vmem:[%s0 + $0x2f0] sm:$0xff]
  %v115 = vld [vmem:[%s0 + $0x2f8] sm:$0xff]
  %v116 = vld [vmem:[%s0 + $0x300] sm:$0xff]
  %v117 = vld [vmem:[%s0 + $0x308] sm:$0xff]
  %v118 = vld [vmem:[%s0 + $0x310] sm:$0xff]
  %v119 = vld [vmem:[%s0 + $0x318] sm:$0xff]
  %v120 = vld [vmem:[%s1] sm:$0xff]
  %v121 = vld [vmem:[%s1 + $0x8] sm:$0xff]
  %v122 = vld [vmem:[%s1 + $0x10] sm:$0xff]
  %v123 = vld [vmem:[%s1 + $0x18] sm:$0xff]
  %v124 = vld [vmem:[%s1 + $0x20] sm:$0xff]
  %v125 = vld [vmem:[%s1 + $0x28] sm:$0xff]
  %v126 = vld [vmem:[%s1 + $0x30] sm:$0xff]
  %v127 = vld [vmem:[%s1 + $0x38] sm:$0xff]
  %v128 = vld [vmem:[%s1 + $0x40] sm:$0xff]
  %v129 = vld [vmem:[%s1 + $0x48] sm:$0xff]
  %v130 = vld [vmem:[%s1 + $0x50] sm:$0xff]
  %v131 = vld [vmem:[%s1 + $0x58] sm:$0xff]
  %v132 = vld [vmem:[%s1 + $0x60] sm:$0xff]
  %v133 = vld [vmem:[%s1 + $0x68] sm:$0xff]
  %v134 = vld [vmem:[%s1 + $0x70] sm:$0xff]
  %v135 = vld [vmem:[%s1 + $0x78] sm:$0xff]
  %v136 = vld [vmem:[%s1 + $0x80] sm:$0xff]
  %v137 = vld [vmem:[%s1 + $0x88] sm:$0xff]
  %v138 = vld [vmem:[%s1 + $0x90] sm:$0xff]
  %v139 = vld [vmem:[%s1 + $0x98] sm:$0xff]
  %v140 = vld [vmem:[%s1 + $0xa0] sm:$0xff]
  %v141 = vld [vmem:[%s1 + $0xa8] sm:$0xff]
  %v142 = vld [vmem:[%s1 + $0xb0] sm:$0xff]
  %v143 = vld [vmem:[%s1 + $0xb8] sm:$0xff]
  %v144 = vld [vmem:[%s1 + $0xc0] sm:$0xff]
  %v145 = vld [vmem:[%s1 + $0xc8] sm:$0xff]
  %v146 = vld [vmem:[%s1 + $0xd0] sm:$0xff]
  %v147 = vld [vmem:[%s1 + $0xd8] sm:$0xff]
  %v148 = vld [vmem:[%s1 + $0xe0] sm:$0xff]
  %v149 = vld [vmem:[%s1 + $0xe8] sm:$0xff]
  %v150 = vld [vmem:[%s1 + $0xf0] sm:$0xff]
  %v151 = vld [vmem:[%s1 + $0xf8] sm:$0xff]
  %v152 = vld [vmem:[%s1 + $0x100] sm:$0xff]
  %v153 = vld [vmem:[%s1 + $0x108] sm:$0xff]
  %v154 = vld [vmem:[%s1 + $0x110] sm:$0xff]
  %v155 = vld [vmem:[%s1 + $0x118] sm:$0xff]
  %v156 = vld [vmem:[%s1 + $0x120] sm:$0xff]
  %v157 = vld [vmem:[%s1 + $0x128] sm:$0xff]
  %v158 = vld [vmem:[%s1 + $0x130] sm:$0xff]
  %v159 = vld [vmem:[%s1 + $0x138] sm:$0xff]
  %v160 = vld [vmem:[%s1 + $0x140] sm:$0xff]
  %v161 = vld [vmem:[%s1 + $0x148] sm:$0xff]
  %v162 = vld [vmem:[%s1 + $0x150] sm:$0xff]
  %v163 = vld [vmem:[%s1 + $0x158] sm:$0xff]
  %v164 = vld [vmem:[%s1 + $0x160] sm:$0xff]
  %v165 = vld [vmem:[%s1 + $0x168] sm:$0xff]
  %v166 = vld [vmem:[%s1 + $0x170] sm:$0xff]
  %v167 = vld [vmem:[%s1 + $0x178] sm:$0xff]
  %v168 = vld [vmem:[%s1 + $0x180] sm:$0xff]
  %v169 = vld [vmem:[%s1 + $0x188] sm:$0xff]
  %v170 = vld [vmem:[%s1 + $0x190] sm:$0xff]
  %v171 = vld [vmem:[%s1 + $0x198] sm:$0xff]
  %v172 = vld [vmem:[%s1 + $0x1a0] sm:$0xff]
  %v173 = vld [vmem:[%s1 + $0x1a8] sm:$0xff]
  %v174 = vld [vmem:[%s1 + $0x1b0] sm:$0xff]
  %v175 = vld [vmem:[%s1 + $0x1b8] sm:$0xff]
  %v176 = vld [vmem:[%s1 + $0x1c0] sm:$0xff]
  %v177 = vld [vmem:[%s1 + $0x1c8] sm:$0xff]
  %v178 = vld [vmem:[%s1 + $0x1d0] sm:$0xff]
  %v179 = vld [vmem:[%s1 + $0x1d8] sm:$0xff]
  %v180 = vld [vmem:[%s1 + $0x1e0] sm:$0xff]
  %v181 = vld [vmem:[%s1 + $0x1e8] sm:$0xff]
  %v182 = vld [vmem:[%s1 + $0x1f0] sm:$0xff]
  %v183 = vld [vmem:[%s1 + $0x1f8] sm:$0xff]
  %v184 = vld [vmem:[%s2] sm:$0x1]
  %v186 = vlaneseq
  %v187 = vshrl.u32 %v186, 7
  %v188 = vsub.s32 0, %v187
  %v189 = vrot.slane %v184, %v188
  %191 = vmatprep.subr.mxu0 0.0
  %192 = vmatpush1.msra.mxu0 %v120
  %193 = vmatprep.subr.mxu0 0.0
  %194 = vmatpush1.msra.mxu0 %v121
  %195 = vmatprep.subr.mxu0 0.0
  %196 = vmatpush1.msra.mxu0 %v122
  %197 = vmatprep.subr.mxu0 0.0
  %198 = vmatpush1.msra.mxu0 %v123
  %199 = vmatprep.subr.mxu0 0.0
  %200 = vmatpush1.msra.mxu0 %v124
  %201 = vmatprep.subr.mxu0 0.0
  %202 = vmatpush1.msra.mxu0 %v125
  %203 = vmatprep.subr.mxu0 0.0
  %204 = vmatpush1.msra.mxu0 %v126
  %205 = vmatprep.subr.mxu0 0.0
  %206 = vmatpush1.msra.mxu0 %v127
  %207 = vmatprep.subr.mxu0 0.0
  %208 = vmatpush1.msra.mxu0 %v128
  %209 = vmatprep.subr.mxu0 0.0
  %210 = vmatpush1.msra.mxu0 %v129
  %211 = vmatprep.subr.mxu0 0.0
  %212 = vmatpush1.msra.mxu0 %v130
  %213 = vmatprep.subr.mxu0 0.0
  %214 = vmatpush1.msra.mxu0 %v131
  %215 = vmatprep.subr.mxu0 0.0
  %216 = vmatpush1.msra.mxu0 %v132
  %217 = vmatprep.subr.mxu0 0.0
  %218 = vmatpush1.msra.mxu0 %v133
  %219 = vmatprep.subr.mxu0 0.0
  %220 = vmatpush1.msra.mxu0 %v134
  %221 = vmatprep.subr.mxu0 0.0
  %222 = vmatpush1.msra.mxu0 %v135
  %223 = vmatprep.subr.mxu0 0.0
  %224 = vmatpush1.msra.mxu0 %v136
  %225 = vmatprep.subr.mxu0 0.0
  %226 = vmatpush1.msra.mxu0 %v137
  %227 = vmatprep.subr.mxu0 0.0
  %228 = vmatpush1.msra.mxu0 %v138
  %229 = vmatprep.subr.mxu0 0.0
  %230 = vmatpush1.msra.mxu0 %v139
  %231 = vmatprep.subr.mxu0 0.0
  %232 = vmatpush1.msra.mxu0 %v140
  %233 = vmatprep.subr.mxu0 0.0
  %234 = vmatpush1.msra.mxu0 %v141
  %235 = vmatprep.subr.mxu0 0.0
  %236 = vmatpush1.msra.mxu0 %v142
  %237 = vmatprep.subr.mxu0 0.0
  %238 = vmatpush1.msra.mxu0 %v143
  %239 = vmatprep.subr.mxu0 0.0
  %240 = vmatpush1.msra.mxu0 %v144
  %241 = vmatprep.subr.mxu0 0.0
  %242 = vmatpush1.msra.mxu0 %v145
  %243 = vmatprep.subr.mxu0 0.0
  %244 = vmatpush1.msra.mxu0 %v146
  %245 = vmatprep.subr.mxu0 0.0
  %246 = vmatpush1.msra.mxu0 %v147
  %247 = vmatprep.subr.mxu0 0.0
  %248 = vmatpush1.msra.mxu0 %v148
  %249 = vmatprep.subr.mxu0 0.0
  %250 = vmatpush1.msra.mxu0 %v149
  %251 = vmatprep.subr.mxu0 0.0
  %252 = vmatpush1.msra.mxu0 %v150
  %253 = vmatprep.subr.mxu0 0.0
  %254 = vmatpush1.msra.mxu0 %v151
  %255 = vmatprep.mubr.f32.mxu0 %v21
  %256 = vmatmul.mubr.f32.gmra.mrb[0].mxu0 %v20
  %v257 = vpop.f32.mrb[0].mxu0
  %v258 = vadd.f32 %v189, %v257
  %v259 = vpop.f32.mrb[0].mxu0
  %260 = vmatprep.mubr.f32.mxu0 %v25
  %261 = vmatmul.mubr.f32.gmra.mrb[0].mxu0 %v24
  %v262 = vpop.f32.mrb[0].mxu0
  %v263 = vadd.f32 %v189, %v262
  %v264 = vpop.f32.mrb[0].mxu0
  %265 = vmatprep.mubr.f32.mxu0 %v29
  %266 = vmatmul.mubr.f32.gmra.mrb[0].mxu0 %v28
  %v267 = vpop.f32.mrb[0].mxu0
  %v268 = vadd.f32 %v189, %v267
  %v269 = vpop.f32.mrb[0].mxu0
  %270 = vmatprep.mubr.f32.mxu0 %v33
  %271 = vmatmul.mubr.f32.gmra.mrb[0].mxu0 %v32
  %v272 = vpop.f32.mrb[0].mxu0
  %v273 = vadd.f32 %v189, %v272
  %v274 = vpop.f32.mrb[0].mxu0
  %275 = vmatprep.mubr.f32.mxu0 %v37
  %276 = vmatmul.mubr.f32.gmra.mrb[0].mxu0 %v36
  %v277 = vpop.f32.mrb[0].mxu0
  %v278 = vadd.f32 %v189, %v277
  %v279 = vpop.f32.mrb[0].mxu0
  %280 = vmatprep.mubr.f32.mxu0 %v41
  %281 = vmatmul.mubr.f32.gmra.mrb[0].mxu0 %v40
  %v282 = vpop.f32.mrb[0].mxu0
  %v283 = vadd.f32 %v189, %v282
  %v284 = vpop.f32.mrb[0].mxu0
  %285 = vmatprep.mubr.f32.mxu0 %v45
  %286 = vmatmul.mubr.f32.gmra.mrb[0].mxu0 %v44
  %v287 = vpop.f32.mrb[0].mxu0
  %v288 = vadd.f32 %v189, %v287
  %v289 = vpop.f32.mrb[0].mxu0
  %290 = vmatprep.mubr.f32.mxu0 %v49
  %291 = vmatmul.mubr.f32.gmra.mrb[0].mxu0 %v48
  %v292 = vpop.f32.mrb[0].mxu0
  %v293 = vadd.f32 %v189, %v292
  %v294 = vpop.f32.mrb[0].mxu0
  %295 = vmatprep.mubr.f32.mxu0 %v53
  %296 = vmatmul.mubr.f32.gmra.mrb[0].mxu0 %v52
  %v297 = vpop.f32.mrb[0].mxu0
  %v298 = vadd.f32 %v189, %v297
  %v299 = vpop.f32.mrb[0].mxu0
  %300 = vmatprep.mubr.f32.mxu0 %v57
  %301 = vmatmul.mubr.f32.gmra.mrb[0].mxu0 %v56
  %v302 = vpop.f32.mrb[0].mxu0
  %v303 = vadd.f32 %v189, %v302
  %v304 = vpop.f32.mrb[0].mxu0
  %305 = vmatprep.mubr.f32.mxu0 %v61
  %306 = vmatmul.mubr.f32.gmra.mrb[0].mxu0 %v60
  %v307 = vpop.f32.mrb[0].mxu0
  %v308 = vadd.f32 %v189, %v307
  %v309 = vpop.f32.mrb[0].mxu0
  %310 = vmatprep.mubr.f32.mxu0 %v65
  %311 = vmatmul.mubr.f32.gmra.mrb[0].mxu0 %v64
  %v312 = vpop.f32.mrb[0].mxu0
  %v313 = vadd.f32 %v189, %v312
  %v314 = vpop.f32.mrb[0].mxu0
  %315 = vmatprep.mubr.f32.mxu0 %v69
  %316 = vmatmul.mubr.f32.gmra.mrb[0].mxu0 %v68
  %v317 = vpop.f32.mrb[0].mxu0
  %v318 = vadd.f32 %v189, %v317
  %v319 = vpop.f32.mrb[0].mxu0
  %320 = vmatprep.mubr.f32.mxu0 %v73
  %321 = vmatmul.mubr.f32.gmra.mrb[0].mxu0 %v72
  %v322 = vpop.f32.mrb[0].mxu0
  %v323 = vadd.f32 %v189, %v322
  %v324 = vpop.f32.mrb[0].mxu0
  %325 = vmatprep.mubr.f32.mxu0 %v77
  %326 = vmatmul.mubr.f32.gmra.mrb[0].mxu0 %v76
  %v327 = vpop.f32.mrb[0].mxu0
  %v328 = vadd.f32 %v189, %v327
  %v329 = vpop.f32.mrb[0].mxu0
  %330 = vmatprep.mubr.f32.mxu0 %v81
  %331 = vmatmul.mubr.f32.gmra.mrb[0].mxu0 %v80
  %v332 = vpop.f32.mrb[0].mxu0
  %v333 = vadd.f32 %v189, %v332
  %v334 = vpop.f32.mrb[0].mxu0
  %335 = vmatprep.mubr.f32.mxu0 %v85
  %336 = vmatmul.mubr.f32.gmra.mrb[0].mxu0 %v84
  %v337 = vpop.f32.mrb[0].mxu0
  %v338 = vadd.f32 %v189, %v337
  %v339 = vpop.f32.mrb[0].mxu0
  %340 = vmatprep.mubr.f32.mxu0 %v89
  %341 = vmatmul.mubr.f32.gmra.mrb[0].mxu0 %v88
  %v342 = vpop.f32.mrb[0].mxu0
  %v343 = vadd.f32 %v189, %v342
  %v344 = vpop.f32.mrb[0].mxu0
  %345 = vmatprep.mubr.f32.mxu0 %v93
  %346 = vmatmul.mubr.f32.gmra.mrb[0].mxu0 %v92
  %v347 = vpop.f32.mrb[0].mxu0
  %v348 = vadd.f32 %v189, %v347
  %v349 = vpop.f32.mrb[0].mxu0
  %350 = vmatprep.mubr.f32.mxu0 %v97
  %351 = vmatmul.mubr.f32.gmra.mrb[0].mxu0 %v96
  %v352 = vpop.f32.mrb[0].mxu0
  %v353 = vadd.f32 %v189, %v352
  %v354 = vpop.f32.mrb[0].mxu0
  %355 = vmatprep.mubr.f32.mxu0 %v101
  %356 = vmatmul.mubr.f32.gmra.mrb[0].mxu0 %v100
  %v357 = vpop.f32.mrb[0].mxu0
  %v358 = vadd.f32 %v189, %v357
  %v359 = vpop.f32.mrb[0].mxu0
  %360 = vmatprep.mubr.f32.mxu0 %v105
  %361 = vmatmul.mubr.f32.gmra.mrb[0].mxu0 %v104
  %v362 = vpop.f32.mrb[0].mxu0
  %v363 = vadd.f32 %v189, %v362
  %v364 = vpop.f32.mrb[0].mxu0
  %365 = vmatprep.mubr.f32.mxu0 %v109
  %366 = vmatmul.mubr.f32.gmra.mrb[0].mxu0 %v108
  %v367 = vpop.f32.mrb[0].mxu0
  %v368 = vadd.f32 %v189, %v367
  %v369 = vpop.f32.mrb[0].mxu0
  %370 = vmatprep.mubr.f32.mxu0 %v113
  %371 = vmatmul.mubr.f32.gmra.mrb[0].mxu0 %v112
  %v372 = vpop.f32.mrb[0].mxu0
  %v373 = vadd.f32 %v189, %v372
  %v374 = vpop.f32.mrb[0].mxu0
  %375 = vmatprep.mubr.f32.mxu0 %v117
  %376 = vmatmul.mubr.f32.gmra.mrb[0].mxu0 %v116
  %v377 = vpop.f32.mrb[0].mxu0
  %v378 = vadd.f32 %v189, %v377
  %v379 = vpop.f32.mrb[0].mxu0
  %380 = vdwg.mxu0
  %381 = vmatprep.subr.mxu0 0.0
  %382 = vmatpush1.msra.mxu0 %v152
  %383 = vmatprep.subr.mxu0 0.0
  %384 = vmatpush1.msra.mxu0 %v153
  %385 = vmatprep.subr.mxu0 0.0
  %386 = vmatpush1.msra.mxu0 %v154
  %387 = vmatprep.subr.mxu0 0.0
  %388 = vmatpush1.msra.mxu0 %v155
  %389 = vmatprep.subr.mxu0 0.0
  %390 = vmatpush1.msra.mxu0 %v156
  %391 = vmatprep.subr.mxu0 0.0
  %392 = vmatpush1.msra.mxu0 %v157
  %393 = vmatprep.subr.mxu0 0.0
  %394 = vmatpush1.msra.mxu0 %v158
  %395 = vmatprep.subr.mxu0 0.0
  %396 = vmatpush1.msra.mxu0 %v159
  %397 = vmatprep.subr.mxu0 0.0
  %398 = vmatpush1.msra.mxu0 %v160
  %399 = vmatprep.subr.mxu0 0.0
  %400 = vmatpush1.msra.mxu0 %v161
  %401 = vmatprep.subr.mxu0 0.0
  %402 = vmatpush1.msra.mxu0 %v162
  %403 = vmatprep.subr.mxu0 0.0
  %404 = vmatpush1.msra.mxu0 %v163
  %405 = vmatprep.subr.mxu0 0.0
  %406 = vmatpush1.msra.mxu0 %v164
  %407 = vmatprep.subr.mxu0 0.0
  %408 = vmatpush1.msra.mxu0 %v165
  %409 = vmatprep.subr.mxu0 0.0
  %410 = vmatpush1.msra.mxu0 %v166
  %411 = vmatprep.subr.mxu0 0.0
  %412 = vmatpush1.msra.mxu0 %v167
  %413 = vmatprep.subr.mxu0 0.0
  %414 = vmatpush1.msra.mxu0 %v168
  %415 = vmatprep.subr.mxu0 0.0
  %416 = vmatpush1.msra.mxu0 %v169
  %417 = vmatprep.subr.mxu0 0.0
  %418 = vmatpush1.msra.mxu0 %v170
  %419 = vmatprep.subr.mxu0 0.0
  %420 = vmatpush1.msra.mxu0 %v171
  %421 = vmatprep.subr.mxu0 0.0
  %422 = vmatpush1.msra.mxu0 %v172
  %423 = vmatprep.subr.mxu0 0.0
  %424 = vmatpush1.msra.mxu0 %v173
  %425 = vmatprep.subr.mxu0 0.0
  %426 = vmatpush1.msra.mxu0 %v174
  %427 = vmatprep.subr.mxu0 0.0
  %428 = vmatpush1.msra.mxu0 %v175
  %429 = vmatprep.subr.mxu0 0.0
  %430 = vmatpush1.msra.mxu0 %v176
  %431 = vmatprep.subr.mxu0 0.0
  %432 = vmatpush1.msra.mxu0 %v177
  %433 = vmatprep.subr.mxu0 0.0
  %434 = vmatpush1.msra.mxu0 %v178
  %435 = vmatprep.subr.mxu0 0.0
  %436 = vmatpush1.msra.mxu0 %v179
  %437 = vmatprep.subr.mxu0 0.0
  %438 = vmatpush1.msra.mxu0 %v180
  %439 = vmatprep.subr.mxu0 0.0
  %440 = vmatpush1.msra.mxu0 %v181
  %441 = vmatprep.subr.mxu0 0.0
  %442 = vmatpush1.msra.mxu0 %v182
  %443 = vmatprep.subr.mxu0 0.0
  %444 = vmatpush1.msra.mxu0 %v183
  %445 = vmatprep.mubr.f32.mxu0 %v23
  %446 = vmatmul.mubr.f32.gmra.mrb[0].mxu0 %v22
  %v447 = vpop.f32.mrb[0].mxu0
  %v448 = vadd.f32 %v258, %v447
  %v449 = vpop.f32.mrb[0].mxu0
  %450 = vmatprep.mubr.f32.mxu0 %v27
  %451 = vmatmul.mubr.f32.gmra.mrb[0].mxu0 %v26
  %v452 = vpop.f32.mrb[0].mxu0
  %v453 = vadd.f32 %v263, %v452
  %v454 = vpop.f32.mrb[0].mxu0
  %455 = vmatprep.mubr.f32.mxu0 %v31
  %456 = vmatmul.mubr.f32.gmra.mrb[0].mxu0 %v30
  %v457 = vpop.f32.mrb[0].mxu0
  %v458 = vadd.f32 %v268, %v457
  %v459 = vpop.f32.mrb[0].mxu0
  %460 = vmatprep.mubr.f32.mxu0 %v35
  %461 = vmatmul.mubr.f32.gmra.mrb[0].mxu0 %v34
  %v462 = vpop.f32.mrb[0].mxu0
  %v463 = vadd.f32 %v273, %v462
  %v464 = vpop.f32.mrb[0].mxu0
  %465 = vmatprep.mubr.f32.mxu0 %v39
  %466 = vmatmul.mubr.f32.gmra.mrb[0].mxu0 %v38
  %v467 = vpop.f32.mrb[0].mxu0
  %v468 = vadd.f32 %v278, %v467
  %v469 = vpop.f32.mrb[0].mxu0
  %470 = vmatprep.mubr.f32.mxu0 %v43
  %471 = vmatmul.mubr.f32.gmra.mrb[0].mxu0 %v42
  %v472 = vpop.f32.mrb[0].mxu0
  %v473 = vadd.f32 %v283, %v472
  %v474 = vpop.f32.mrb[0].mxu0
  %475 = vmatprep.mubr.f32.mxu0 %v47
  %476 = vmatmul.mubr.f32.gmra.mrb[0].mxu0 %v46
  %v477 = vpop.f32.mrb[0].mxu0
  %v478 = vadd.f32 %v288, %v477
  %v479 = vpop.f32.mrb[0].mxu0
  %480 = vmatprep.mubr.f32.mxu0 %v51
  %481 = vmatmul.mubr.f32.gmra.mrb[0].mxu0 %v50
  %v482 = vpop.f32.mrb[0].mxu0
  %v483 = vadd.f32 %v293, %v482
  %v484 = vpop.f32.mrb[0].mxu0
  %485 = vmatprep.mubr.f32.mxu0 %v55
  %486 = vmatmul.mubr.f32.gmra.mrb[0].mxu0 %v54
  %v487 = vpop.f32.mrb[0].mxu0
  %v488 = vadd.f32 %v298, %v487
  %v489 = vpop.f32.mrb[0].mxu0
  %490 = vmatprep.mubr.f32.mxu0 %v59
  %491 = vmatmul.mubr.f32.gmra.mrb[0].mxu0 %v58
  %v492 = vpop.f32.mrb[0].mxu0
  %v493 = vadd.f32 %v303, %v492
  %v494 = vpop.f32.mrb[0].mxu0
  %495 = vmatprep.mubr.f32.mxu0 %v63
  %496 = vmatmul.mubr.f32.gmra.mrb[0].mxu0 %v62
  %v497 = vpop.f32.mrb[0].mxu0
  %v498 = vadd.f32 %v308, %v497
  %v499 = vpop.f32.mrb[0].mxu0
  %500 = vmatprep.mubr.f32.mxu0 %v67
  %501 = vmatmul.mubr.f32.gmra.mrb[0].mxu0 %v66
  %v502 = vpop.f32.mrb[0].mxu0
  %v503 = vadd.f32 %v313, %v502
  %v504 = vpop.f32.mrb[0].mxu0
  %505 = vmatprep.mubr.f32.mxu0 %v71
  %506 = vmatmul.mubr.f32.gmra.mrb[0].mxu0 %v70
  %v507 = vpop.f32.mrb[0].mxu0
  %v508 = vadd.f32 %v318, %v507
  %v509 = vpop.f32.mrb[0].mxu0
  %510 = vmatprep.mubr.f32.mxu0 %v75
  %511 = vmatmul.mubr.f32.gmra.mrb[0].mxu0 %v74
  %v512 = vpop.f32.mrb[0].mxu0
  %v513 = vadd.f32 %v323, %v512
  %v514 = vpop.f32.mrb[0].mxu0
  %515 = vmatprep.mubr.f32.mxu0 %v79
  %516 = vmatmul.mubr.f32.gmra.mrb[0].mxu0 %v78
  %v517 = vpop.f32.mrb[0].mxu0
  %v518 = vadd.f32 %v328, %v517
  %v519 = vpop.f32.mrb[0].mxu0
  %520 = vmatprep.mubr.f32.mxu0 %v83
  %521 = vmatmul.mubr.f32.gmra.mrb[0].mxu0 %v82
  %v522 = vpop.f32.mrb[0].mxu0
  %v523 = vadd.f32 %v333, %v522
  %v524 = vpop.f32.mrb[0].mxu0
  %525 = vmatprep.mubr.f32.mxu0 %v87
  %526 = vmatmul.mubr.f32.gmra.mrb[0].mxu0 %v86
  %v527 = vpop.f32.mrb[0].mxu0
  %v528 = vadd.f32 %v338, %v527
  %v529 = vpop.f32.mrb[0].mxu0
  %530 = vmatprep.mubr.f32.mxu0 %v91
  %531 = vmatmul.mubr.f32.gmra.mrb[0].mxu0 %v90
  %v532 = vpop.f32.mrb[0].mxu0
  %v533 = vadd.f32 %v343, %v532
  %v534 = vpop.f32.mrb[0].mxu0
  %535 = vmatprep.mubr.f32.mxu0 %v95
  %536 = vmatmul.mubr.f32.gmra.mrb[0].mxu0 %v94
  %v537 = vpop.f32.mrb[0].mxu0
  %v538 = vadd.f32 %v348, %v537
  %v539 = vpop.f32.mrb[0].mxu0
  %540 = vmatprep.mubr.f32.mxu0 %v99
  %541 = vmatmul.mubr.f32.gmra.mrb[0].mxu0 %v98
  %v542 = vpop.f32.mrb[0].mxu0
  %v543 = vadd.f32 %v353, %v542
  %v544 = vpop.f32.mrb[0].mxu0
  %545 = vmatprep.mubr.f32.mxu0 %v103
  %546 = vmatmul.mubr.f32.gmra.mrb[0].mxu0 %v102
  %v547 = vpop.f32.mrb[0].mxu0
  %v548 = vadd.f32 %v358, %v547
  %v549 = vpop.f32.mrb[0].mxu0
  %550 = vmatprep.mubr.f32.mxu0 %v107
  %551 = vmatmul.mubr.f32.gmra.mrb[0].mxu0 %v106
  %v552 = vpop.f32.mrb[0].mxu0
  %v553 = vadd.f32 %v363, %v552
  %v554 = vpop.f32.mrb[0].mxu0
  %555 = vmatprep.mubr.f32.mxu0 %v111
  %556 = vmatmul.mubr.f32.gmra.mrb[0].mxu0 %v110
  %v557 = vpop.f32.mrb[0].mxu0
  %v558 = vadd.f32 %v368, %v557
  %v559 = vpop.f32.mrb[0].mxu0
  %560 = vmatprep.mubr.f32.mxu0 %v115
  %561 = vmatmul.mubr.f32.gmra.mrb[0].mxu0 %v114
  %v562 = vpop.f32.mrb[0].mxu0
  %v563 = vadd.f32 %v373, %v562
  %v564 = vpop.f32.mrb[0].mxu0
  %565 = vmatprep.mubr.f32.mxu0 %v119
  %566 = vmatmul.mubr.f32.gmra.mrb[0].mxu0 %v118
  %v567 = vpop.f32.mrb[0].mxu0
  %v568 = vadd.f32 %v378, %v567
  %v569 = vpop.f32.mrb[0].mxu0
  %570 = vdwg.mxu0
  %vm571 = vcmask 523264
  %v572 = vsel %vm571, %v448, 0.0
  %v573 = vsel %vm571, %v453, 0.0
  %v574 = vadd.f32 %v572, %v573
  %v575 = vsel %vm571, %v458, 0.0
  %v576 = vadd.f32 %v574, %v575
  %v577 = vsel %vm571, %v463, 0.0
  %v578 = vadd.f32 %v576, %v577
  %v579 = vsel %vm571, %v468, 0.0
  %v580 = vadd.f32 %v578, %v579
  %v581 = vsel %vm571, %v473, 0.0
  %v582 = vadd.f32 %v580, %v581
  %v583 = vsel %vm571, %v478, 0.0
  %v584 = vadd.f32 %v582, %v583
  %v585 = vsel %vm571, %v483, 0.0
  %v586 = vadd.f32 %v584, %v585
  %v587 = vsel %vm571, %v488, 0.0
  %v588 = vadd.f32 %v586, %v587
  %v589 = vsel %vm571, %v493, 0.0
  %v590 = vadd.f32 %v588, %v589
  %v591 = vsel %vm571, %v498, 0.0
  %v592 = vadd.f32 %v590, %v591
  %v593 = vsel %vm571, %v503, 0.0
  %v594 = vadd.f32 %v592, %v593
  %v595 = vsel %vm571, %v508, 0.0
  %v596 = vadd.f32 %v594, %v595
  %v597 = vsel %vm571, %v513, 0.0
  %v598 = vadd.f32 %v596, %v597
  %v599 = vsel %vm571, %v518, 0.0
  %v600 = vadd.f32 %v598, %v599
  %v601 = vsel %vm571, %v523, 0.0
  %v602 = vadd.f32 %v600, %v601
  %v603 = vsel %vm571, %v528, 0.0
  %v604 = vadd.f32 %v602, %v603
  %v605 = vsel %vm571, %v533, 0.0
  %v606 = vadd.f32 %v604, %v605
  %v607 = vsel %vm571, %v538, 0.0
  %v608 = vadd.f32 %v606, %v607
  %v609 = vsel %vm571, %v543, 0.0
  %v610 = vadd.f32 %v608, %v609
  %v611 = vsel %vm571, %v548, 0.0
  %v612 = vadd.f32 %v610, %v611
  %v613 = vsel %vm571, %v553, 0.0
  %v614 = vadd.f32 %v612, %v613
  %v615 = vsel %vm571, %v558, 0.0
  %v616 = vadd.f32 %v614, %v615
  %v617 = vsel %vm571, %v563, 0.0
  %v618 = vadd.f32 %v616, %v617
  %v619 = vsel %vm571, %v568, 0.0
  %v620 = vadd.f32 %v618, %v619
  %v621 = vrot.slane %v620, 4
  %v622 = vadd.f32 %v620, %v621
  %v623 = vrot.slane %v622, 2
  %v624 = vadd.f32 %v622, %v623
  %v625 = vrot.slane %v624, 1
  %v626 = vadd.f32 %v624, %v625
  %v627 = vrcp.pop 200.0
  %v628 = vmul.f32 %v626, %v627
  %v629 = vmul.f32 %v448, %v448
  %v630 = vmul.f32 %v453, %v453
  %v631 = vmul.f32 %v458, %v458
  %v632 = vmul.f32 %v463, %v463
  %v633 = vmul.f32 %v468, %v468
  %v634 = vmul.f32 %v473, %v473
  %v635 = vmul.f32 %v478, %v478
  %v636 = vmul.f32 %v483, %v483
  %v637 = vmul.f32 %v488, %v488
  %v638 = vmul.f32 %v493, %v493
  %v639 = vmul.f32 %v498, %v498
  %v640 = vmul.f32 %v503, %v503
  %v641 = vmul.f32 %v508, %v508
  %v642 = vmul.f32 %v513, %v513
  %v643 = vmul.f32 %v518, %v518
  %v644 = vmul.f32 %v523, %v523
  %v645 = vmul.f32 %v528, %v528
  %v646 = vmul.f32 %v533, %v533
  %v647 = vmul.f32 %v538, %v538
  %v648 = vmul.f32 %v543, %v543
  %v649 = vmul.f32 %v548, %v548
  %v650 = vmul.f32 %v553, %v553
  %v651 = vmul.f32 %v558, %v558
  %v652 = vmul.f32 %v563, %v563
  %v653 = vmul.f32 %v568, %v568
  %v654 = vsel %vm571, %v629, 0.0
  %v655 = vsel %vm571, %v630, 0.0
  %v656 = vadd.f32 %v654, %v655
  %v657 = vsel %vm571, %v631, 0.0
  %v658 = vadd.f32 %v656, %v657
  %v659 = vsel %vm571, %v632, 0.0
  %v660 = vadd.f32 %v658, %v659
  %v661 = vsel %vm571, %v633, 0.0
  %v662 = vadd.f32 %v660, %v661
  %v663 = vsel %vm571, %v634, 0.0
  %v664 = vadd.f32 %v662, %v663
  %v665 = vsel %vm571, %v635, 0.0
  %v666 = vadd.f32 %v664, %v665
  %v667 = vsel %vm571, %v636, 0.0
  %v668 = vadd.f32 %v666, %v667
  %v669 = vsel %vm571, %v637, 0.0
  %v670 = vadd.f32 %v668, %v669
  %v671 = vsel %vm571, %v638, 0.0
  %v672 = vadd.f32 %v670, %v671
  %v673 = vsel %vm571, %v639, 0.0
  %v674 = vadd.f32 %v672, %v673
  %v675 = vsel %vm571, %v640, 0.0
  %v676 = vadd.f32 %v674, %v675
  %v677 = vsel %vm571, %v641, 0.0
  %v678 = vadd.f32 %v676, %v677
  %v679 = vsel %vm571, %v642, 0.0
  %v680 = vadd.f32 %v678, %v679
  %v681 = vsel %vm571, %v643, 0.0
  %v682 = vadd.f32 %v680, %v681
  %v683 = vsel %vm571, %v644, 0.0
  %v684 = vadd.f32 %v682, %v683
  %v685 = vsel %vm571, %v645, 0.0
  %v686 = vadd.f32 %v684, %v685
  %v687 = vsel %vm571, %v646, 0.0
  %v688 = vadd.f32 %v686, %v687
  %v689 = vsel %vm571, %v647, 0.0
  %v690 = vadd.f32 %v688, %v689
  %v691 = vsel %vm571, %v648, 0.0
  %v692 = vadd.f32 %v690, %v691
  %v693 = vsel %vm571, %v649, 0.0
  %v694 = vadd.f32 %v692, %v693
  %v695 = vsel %vm571, %v650, 0.0
  %v696 = vadd.f32 %v694, %v695
  %v697 = vsel %vm571, %v651, 0.0
  %v698 = vadd.f32 %v696, %v697
  %v699 = vsel %vm571, %v652, 0.0
  %v700 = vadd.f32 %v698, %v699
  %v701 = vsel %vm571, %v653, 0.0
  %v702 = vadd.f32 %v700, %v701
  %v703 = vrot.slane %v702, 4
  %v704 = vadd.f32 %v702, %v703
  %v705 = vrot.slane %v704, 2
  %v706 = vadd.f32 %v704, %v705
  %v707 = vrot.slane %v706, 1
  %v708 = vadd.f32 %v706, %v707
  %v709 = vmul.f32 %v708, %v627
  %v710 = vmul.f32 %v628, %v628
  %v711 = vsub.f32 %v709, %v710
  %v712 = vsub.f32 %v448, %v628
  %v713 = vsub.f32 %v453, %v628
  %v714 = vsub.f32 %v458, %v628
  %v715 = vsub.f32 %v463, %v628
  %v716 = vsub.f32 %v468, %v628
  %v717 = vsub.f32 %v473, %v628
  %v718 = vsub.f32 %v478, %v628
  %v719 = vsub.f32 %v483, %v628
  %v720 = vsub.f32 %v488, %v628
  %v721 = vsub.f32 %v493, %v628
  %v722 = vsub.f32 %v498, %v628
  %v723 = vsub.f32 %v503, %v628
  %v724 = vsub.f32 %v508, %v628
  %v725 = vsub.f32 %v513, %v628
  %v726 = vsub.f32 %v518, %v628
  %v727 = vsub.f32 %v523, %v628
  %v728 = vsub.f32 %v528, %v628
  %v729 = vsub.f32 %v533, %v628
  %v730 = vsub.f32 %v538, %v628
  %v731 = vsub.f32 %v543, %v628
  %v732 = vsub.f32 %v548, %v628
  %v733 = vsub.f32 %v553, %v628
  %v734 = vsub.f32 %v558, %v628
  %v735 = vsub.f32 %v563, %v628
  %v736 = vsub.f32 %v568, %v628
  %v737 = vadd.f32 %v711, 1e-05
  %v738 = vrsqrt.pop %v737
  %v739 = vmul.f32 %v712, %v738
  %v740 = vmul.f32 %v713, %v738
  %v741 = vmul.f32 %v714, %v738
  %v742 = vmul.f32 %v715, %v738
  %v743 = vmul.f32 %v716, %v738
  %v744 = vmul.f32 %v717, %v738
  %v745 = vmul.f32 %v718, %v738
  %v746 = vmul.f32 %v719, %v738
  %v747 = vmul.f32 %v720, %v738
  %v748 = vmul.f32 %v721, %v738
  %v749 = vmul.f32 %v722, %v738
  %v750 = vmul.f32 %v723, %v738
  %v751 = vmul.f32 %v724, %v738
  %v752 = vmul.f32 %v725, %v738
  %v753 = vmul.f32 %v726, %v738
  %v754 = vmul.f32 %v727, %v738
  %v755 = vmul.f32 %v728, %v738
  %v756 = vmul.f32 %v729, %v738
  %v757 = vmul.f32 %v730, %v738
  %v758 = vmul.f32 %v731, %v738
  %v759 = vmul.f32 %v732, %v738
  %v760 = vmul.f32 %v733, %v738
  %v761 = vmul.f32 %v734, %v738
  %v762 = vmul.f32 %v735, %v738
  %v763 = vmul.f32 %v736, %v738
  %v764 = vld [vmem:[%s3] sm:$0x1]
  %v766 = vlaneseq
  %v767 = vshrl.u32 %v766, 7
  %v768 = vsub.s32 0, %v767
  %v769 = vrot.slane %v764, %v768
  %v771 = vmul.f32 %v739, %v769
  %v772 = vmul.f32 %v740, %v769
  %v773 = vmul.f32 %v741, %v769
  %v774 = vmul.f32 %v742, %v769
  %v775 = vmul.f32 %v743, %v769
  %v776 = vmul.f32 %v744, %v769
  %v777 = vmul.f32 %v745, %v769
  %v778 = vmul.f32 %v746, %v769
  %v779 = vmul.f32 %v747, %v769
  %v780 = vmul.f32 %v748, %v769
  %v781 = vmul.f32 %v749, %v769
  %v782 = vmul.f32 %v750, %v769
  %v783 = vmul.f32 %v751, %v769
  %v784 = vmul.f32 %v752, %v769
  %v785 = vmul.f32 %v753, %v769
  %v786 = vmul.f32 %v754, %v769
  %v787 = vmul.f32 %v755, %v769
  %v788 = vmul.f32 %v756, %v769
  %v789 = vmul.f32 %v757, %v769
  %v790 = vmul.f32 %v758, %v769
  %v791 = vmul.f32 %v759, %v769
  %v792 = vmul.f32 %v760, %v769
  %v793 = vmul.f32 %v761, %v769
  %v794 = vmul.f32 %v762, %v769
  %v795 = vmul.f32 %v763, %v769
  %v796 = vld [vmem:[%s4] sm:$0x1]
  %v798 = vlaneseq
  %v799 = vshrl.u32 %v798, 7
  %v800 = vsub.s32 0, %v799
  %v801 = vrot.slane %v796, %v800
  %v803 = vadd.f32 %v771, %v801
  %v804 = vadd.f32 %v772, %v801
  %v805 = vadd.f32 %v773, %v801
  %v806 = vadd.f32 %v774, %v801
  %v807 = vadd.f32 %v775, %v801
  %v808 = vadd.f32 %v776, %v801
  %v809 = vadd.f32 %v777, %v801
  %v810 = vadd.f32 %v778, %v801
  %v811 = vadd.f32 %v779, %v801
  %v812 = vadd.f32 %v780, %v801
  %v813 = vadd.f32 %v781, %v801
  %v814 = vadd.f32 %v782, %v801
  %v815 = vadd.f32 %v783, %v801
  %v816 = vadd.f32 %v784, %v801
  %v817 = vadd.f32 %v785, %v801
  %v818 = vadd.f32 %v786, %v801
  %v819 = vadd.f32 %v787, %v801
  %v820 = vadd.f32 %v788, %v801
  %v821 = vadd.f32 %v789, %v801
  %v822 = vadd.f32 %v790, %v801
  %v823 = vadd.f32 %v791, %v801
  %v824 = vadd.f32 %v792, %v801
  %v825 = vadd.f32 %v793, %v801
  %v826 = vadd.f32 %v794, %v801
  %v827 = vadd.f32 %v795, %v801
  %v828 = vmax.f32 %v803, 0.0
  %v829 = vmax.f32 %v804, 0.0
  %v830 = vmax.f32 %v805, 0.0
  %v831 = vmax.f32 %v806, 0.0
  %v832 = vmax.f32 %v807, 0.0
  %v833 = vmax.f32 %v808, 0.0
  %v834 = vmax.f32 %v809, 0.0
  %v835 = vmax.f32 %v810, 0.0
  %v836 = vmax.f32 %v811, 0.0
  %v837 = vmax.f32 %v812, 0.0
  %v838 = vmax.f32 %v813, 0.0
  %v839 = vmax.f32 %v814, 0.0
  %v840 = vmax.f32 %v815, 0.0
  %v841 = vmax.f32 %v816, 0.0
  %v842 = vmax.f32 %v817, 0.0
  %v843 = vmax.f32 %v818, 0.0
  %v844 = vmax.f32 %v819, 0.0
  %v845 = vmax.f32 %v820, 0.0
  %v846 = vmax.f32 %v821, 0.0
  %v847 = vmax.f32 %v822, 0.0
  %v848 = vmax.f32 %v823, 0.0
  %v849 = vmax.f32 %v824, 0.0
  %v850 = vmax.f32 %v825, 0.0
  %v851 = vmax.f32 %v826, 0.0
  %v852 = vmax.f32 %v827, 0.0
  %853 = vst.msk [vmem:[%s5] sm:$0xff] %vm571, %v828
  %854 = vst.msk [vmem:[%s5 + $0x8] sm:$0xff] %vm571, %v829
  %855 = vst.msk [vmem:[%s5 + $0x10] sm:$0xff] %vm571, %v830
  %856 = vst.msk [vmem:[%s5 + $0x18] sm:$0xff] %vm571, %v831
  %857 = vst.msk [vmem:[%s5 + $0x20] sm:$0xff] %vm571, %v832
  %858 = vst.msk [vmem:[%s5 + $0x28] sm:$0xff] %vm571, %v833
  %859 = vst.msk [vmem:[%s5 + $0x30] sm:$0xff] %vm571, %v834
  %860 = vst.msk [vmem:[%s5 + $0x38] sm:$0xff] %vm571, %v835
  %861 = vst.msk [vmem:[%s5 + $0x40] sm:$0xff] %vm571, %v836
  %862 = vst.msk [vmem:[%s5 + $0x48] sm:$0xff] %vm571, %v837
  %863 = vst.msk [vmem:[%s5 + $0x50] sm:$0xff] %vm571, %v838
  %864 = vst.msk [vmem:[%s5 + $0x58] sm:$0xff] %vm571, %v839
  %865 = vst.msk [vmem:[%s5 + $0x60] sm:$0xff] %vm571, %v840
  %866 = vst.msk [vmem:[%s5 + $0x68] sm:$0xff] %vm571, %v841
  %867 = vst.msk [vmem:[%s5 + $0x70] sm:$0xff] %vm571, %v842
  %868 = vst.msk [vmem:[%s5 + $0x78] sm:$0xff] %vm571, %v843
  %869 = vst.msk [vmem:[%s5 + $0x80] sm:$0xff] %vm571, %v844
  %870 = vst.msk [vmem:[%s5 + $0x88] sm:$0xff] %vm571, %v845
  %871 = vst.msk [vmem:[%s5 + $0x90] sm:$0xff] %vm571, %v846
  %872 = vst.msk [vmem:[%s5 + $0x98] sm:$0xff] %vm571, %v847
  %873 = vst.msk [vmem:[%s5 + $0xa0] sm:$0xff] %vm571, %v848
  %874 = vst.msk [vmem:[%s5 + $0xa8] sm:$0xff] %vm571, %v849
  %875 = vst.msk [vmem:[%s5 + $0xb0] sm:$0xff] %vm571, %v850
  %876 = vst.msk [vmem:[%s5 + $0xb8] sm:$0xff] %vm571, %v851
  %877 = vst.msk [vmem:[%s5 + $0xc0] sm:$0xff] %vm571, %v852
  // Predicated region
  $region22: #{convnet_forward.7} parent=0 // pred_check
    _
  $region23: #{convnet_forward.7} parent=0 // pred_check_branch
    %879 = sbr.rel (0) target = $region25
  $region24: #{convnet_forward.7} parent=0 // pred_region
    _
  $region25: #{convnet_forward.7} parent=0 // pred_fallthru
    _
  // Predicated region
  $region26: #{convnet_forward.7} parent=0 // pred_check
    _
  $region27: #{convnet_forward.7} parent=0 // pred_check_branch
    %881 = sbr.rel (0) target = $region29
  $region28: #{convnet_forward.7} parent=0 // pred_region
    _
  $region29: #{convnet_forward.7} parent=0 // pred_fallthru
    _

// kernel: convnet_forward.8
$region0: #{convnet_forward.8}
  #allocation0 [shape = 'u32[]', space=smem, size = 0x4, offset = 0x4, fixed_abs, tag = 'smem constant byte address 0x4 - core index']
  #allocation1 [shape = 'u32[144,128]{1,0:T(1,128)}', space=vmem, size = 0x12000, scoped, tag = 'internal scratch']
  %s0 = inlined_call_operand.vmem [shape: f32[128,576], index: 0, kind: input, shape index: {}]
  %s1 = inlined_call_operand.vmem [shape: f32[576,64], index: 1, kind: input, shape index: {}]
  %s2 = inlined_call_operand.vmem [shape: f32[1,64], index: 2, kind: input, shape index: {}]
  %s3 = inlined_call_operand.vmem [shape: f32[1,64], index: 3, kind: input, shape index: {}]
  %s4 = inlined_call_operand.vmem [shape: f32[1,64], index: 4, kind: input, shape index: {}]
  %s5 = inlined_call_operand.vmem [shape: f32[128,64], index: 5, kind: output, shape index: {}]
  %s6 = sld [smem:[#allocation0]]
  $region30: #{convnet_forward.8} parent=0
    _
  %s8 = ssub.s32 1, %s6
  %s9 = scalar_select 0, %s8, %s6
  // Predicated region
  $region2: #{convnet_forward.8} parent=0 // pred_check
    _
  $region3: #{convnet_forward.8} parent=0 // pred_check_branch
    %11 = sbr.rel (0) target = $region5
  $region4: #{convnet_forward.8} parent=0 // pred_region
    _
  $region5: #{convnet_forward.8} parent=0 // pred_fallthru
    _
  // Predicated region
  $region6: #{convnet_forward.8} parent=0 // pred_check
    _
  $region7: #{convnet_forward.8} parent=0 // pred_check_branch
    %13 = sbr.rel (0) target = $region9
  $region8: #{convnet_forward.8} parent=0 // pred_region
    _
  $region9: #{convnet_forward.8} parent=0 // pred_fallthru
    _
  // Predicated region
  $region10: #{convnet_forward.8} parent=0 // pred_check
    _
  $region11: #{convnet_forward.8} parent=0 // pred_check_branch
    %15 = sbr.rel (0) target = $region13
  $region12: #{convnet_forward.8} parent=0 // pred_region
    _
  $region13: #{convnet_forward.8} parent=0 // pred_fallthru
    _
  // Predicated region
  $region14: #{convnet_forward.8} parent=0 // pred_check
    _
  $region15: #{convnet_forward.8} parent=0 // pred_check_branch
    %17 = sbr.rel (0) target = $region17
  $region16: #{convnet_forward.8} parent=0 // pred_region
    _
  $region17: #{convnet_forward.8} parent=0 // pred_fallthru
    _
  // Predicated region
  $region18: #{convnet_forward.8} parent=0 // pred_check
    _
  $region19: #{convnet_forward.8} parent=0 // pred_check_branch
    %19 = sbr.rel (0) target = $region21
  $region20: #{convnet_forward.8} parent=0 // pred_region
    _
  $region21: #{convnet_forward.8} parent=0 // pred_fallthru
    _
  %v20 = vld [vmem:[%s0] sm:$0xff]
  %v21 = vld [vmem:[%s0 + $0x8] sm:$0xff]
  %v22 = vld [vmem:[%s0 + $0x10] sm:$0xff]
  %v23 = vld [vmem:[%s0 + $0x18] sm:$0xff]
  %v24 = vld [vmem:[%s0 + $0x20] sm:$0xff]
  %v25 = vld [vmem:[%s0 + $0x28] sm:$0xff]
  %v26 = vld [vmem:[%s0 + $0x30] sm:$0xff]
  %v27 = vld [vmem:[%s0 + $0x38] sm:$0xff]
  %v28 = vld [vmem:[%s0 + $0x40] sm:$0xff]
  %v29 = vld [vmem:[%s0 + $0x48] sm:$0xff]
  %v30 = vld [vmem:[%s0 + $0x50] sm:$0xff]
  %v31 = vld [vmem:[%s0 + $0x58] sm:$0xff]
  %v32 = vld [vmem:[%s0 + $0x60] sm:$0xff]
  %v33 = vld [vmem:[%s0 + $0x68] sm:$0xff]
  %v34 = vld [vmem:[%s0 + $0x70] sm:$0xff]
  %v35 = vld [vmem:[%s0 + $0x78] sm:$0xff]
  %v36 = vld [vmem:[%s0 + $0x80] sm:$0xff]
  %v37 = vld [vmem:[%s0 + $0x88] sm:$0xff]
  %v38 = vld [vmem:[%s0 + $0x90] sm:$0xff]
  %v39 = vld [vmem:[%s0 + $0x98] sm:$0xff]
  %v40 = vld [vmem:[%s0 + $0xa0] sm:$0xff]
  %v41 = vld [vmem:[%s0 + $0xa8] sm:$0xff]
  %v42 = vld [vmem:[%s0 + $0xb0] sm:$0xff]
  %v43 = vld [vmem:[%s0 + $0xb8] sm:$0xff]
  %v44 = vld [vmem:[%s0 + $0xc0] sm:$0xff]
  %v45 = vld [vmem:[%s0 + $0xc8] sm:$0xff]
  %v46 = vld [vmem:[%s0 + $0xd0] sm:$0xff]
  %v47 = vld [vmem:[%s0 + $0xd8] sm:$0xff]
  %v48 = vld [vmem:[%s0 + $0xe0] sm:$0xff]
  %v49 = vld [vmem:[%s0 + $0xe8] sm:$0xff]
  %v50 = vld [vmem:[%s0 + $0xf0] sm:$0xff]
  %v51 = vld [vmem:[%s0 + $0xf8] sm:$0xff]
  %v52 = vld [vmem:[%s0 + $0x100] sm:$0xff]
  %v53 = vld [vmem:[%s0 + $0x108] sm:$0xff]
  %v54 = vld [vmem:[%s0 + $0x110] sm:$0xff]
  %v55 = vld [vmem:[%s0 + $0x118] sm:$0xff]
  %v56 = vld [vmem:[%s0 + $0x120] sm:$0xff]
  %v57 = vld [vmem:[%s0 + $0x128] sm:$0xff]
  %v58 = vld [vmem:[%s0 + $0x130] sm:$0xff]
  %v59 = vld [vmem:[%s0 + $0x138] sm:$0xff]
  %v60 = vld [vmem:[%s0 + $0x140] sm:$0xff]
  %v61 = vld [vmem:[%s0 + $0x148] sm:$0xff]
  %v62 = vld [vmem:[%s0 + $0x150] sm:$0xff]
  %v63 = vld [vmem:[%s0 + $0x158] sm:$0xff]
  %v64 = vld [vmem:[%s0 + $0x160] sm:$0xff]
  %v65 = vld [vmem:[%s0 + $0x168] sm:$0xff]
  %v66 = vld [vmem:[%s0 + $0x170] sm:$0xff]
  %v67 = vld [vmem:[%s0 + $0x178] sm:$0xff]
  %v68 = vld [vmem:[%s0 + $0x180] sm:$0xff]
  %v69 = vld [vmem:[%s0 + $0x188] sm:$0xff]
  %v70 = vld [vmem:[%s0 + $0x190] sm:$0xff]
  %v71 = vld [vmem:[%s0 + $0x198] sm:$0xff]
  %v72 = vld [vmem:[%s0 + $0x1a0] sm:$0xff]
  %v73 = vld [vmem:[%s0 + $0x1a8] sm:$0xff]
  %v74 = vld [vmem:[%s0 + $0x1b0] sm:$0xff]
  %v75 = vld [vmem:[%s0 + $0x1b8] sm:$0xff]
  %v76 = vld [vmem:[%s0 + $0x1c0] sm:$0xff]
  %v77 = vld [vmem:[%s0 + $0x1c8] sm:$0xff]
  %v78 = vld [vmem:[%s0 + $0x1d0] sm:$0xff]
  %v79 = vld [vmem:[%s0 + $0x1d8] sm:$0xff]
  %v80 = vld [vmem:[%s0 + $0x1e0] sm:$0xff]
  %v81 = vld [vmem:[%s0 + $0x1e8] sm:$0xff]
  %v82 = vld [vmem:[%s0 + $0x1f0] sm:$0xff]
  %v83 = vld [vmem:[%s0 + $0x1f8] sm:$0xff]
  %v84 = vld [vmem:[%s0 + $0x200] sm:$0xff]
  %v85 = vld [vmem:[%s0 + $0x208] sm:$0xff]
  %v86 = vld [vmem:[%s0 + $0x210] sm:$0xff]
  %v87 = vld [vmem:[%s0 + $0x218] sm:$0xff]
  %v88 = vld [vmem:[%s0 + $0x220] sm:$0xff]
  %v89 = vld [vmem:[%s0 + $0x228] sm:$0xff]
  %v90 = vld [vmem:[%s0 + $0x230] sm:$0xff]
  %v91 = vld [vmem:[%s0 + $0x238] sm:$0xff]
  %v92 = vld [vmem:[%s0 + $0x240] sm:$0xff]
  %v93 = vld [vmem:[%s0 + $0x248] sm:$0xff]
  %v94 = vld [vmem:[%s0 + $0x250] sm:$0xff]
  %v95 = vld [vmem:[%s0 + $0x258] sm:$0xff]
  %v96 = vld [vmem:[%s0 + $0x260] sm:$0xff]
  %v97 = vld [vmem:[%s0 + $0x268] sm:$0xff]
  %v98 = vld [vmem:[%s0 + $0x270] sm:$0xff]
  %v99 = vld [vmem:[%s0 + $0x278] sm:$0xff]
  %v100 = vld [vmem:[%s1] sm:$0xff]
  %v101 = vld [vmem:[%s1 + $0x8] sm:$0xff]
  %v102 = vld [vmem:[%s1 + $0x10] sm:$0xff]
  %v103 = vld [vmem:[%s1 + $0x18] sm:$0xff]
  %v104 = vld [vmem:[%s1 + $0x20] sm:$0xff]
  %v105 = vld [vmem:[%s1 + $0x28] sm:$0xff]
  %v106 = vld [vmem:[%s1 + $0x30] sm:$0xff]
  %v107 = vld [vmem:[%s1 + $0x38] sm:$0xff]
  %v108 = vld [vmem:[%s1 + $0x40] sm:$0xff]
  %v109 = vld [vmem:[%s1 + $0x48] sm:$0xff]
  %v110 = vld [vmem:[%s1 + $0x50] sm:$0xff]
  %v111 = vld [vmem:[%s1 + $0x58] sm:$0xff]
  %v112 = vld [vmem:[%s1 + $0x60] sm:$0xff]
  %v113 = vld [vmem:[%s1 + $0x68] sm:$0xff]
  %v114 = vld [vmem:[%s1 + $0x70] sm:$0xff]
  %v115 = vld [vmem:[%s1 + $0x78] sm:$0xff]
  %v116 = vld [vmem:[%s1 + $0x80] sm:$0xff]
  %v117 = vld [vmem:[%s1 + $0x88] sm:$0xff]
  %v118 = vld [vmem:[%s1 + $0x90] sm:$0xff]
  %v119 = vld [vmem:[%s1 + $0x98] sm:$0xff]
  %v120 = vld [vmem:[%s1 + $0xa0] sm:$0xff]
  %v121 = vld [vmem:[%s1 + $0xa8] sm:$0xff]
  %v122 = vld [vmem:[%s1 + $0xb0] sm:$0xff]
  %v123 = vld [vmem:[%s1 + $0xb8] sm:$0xff]
  %v124 = vld [vmem:[%s1 + $0xc0] sm:$0xff]
  %v125 = vld [vmem:[%s1 + $0xc8] sm:$0xff]
  %v126 = vld [vmem:[%s1 + $0xd0] sm:$0xff]
  %v127 = vld [vmem:[%s1 + $0xd8] sm:$0xff]
  %v128 = vld [vmem:[%s1 + $0xe0] sm:$0xff]
  %v129 = vld [vmem:[%s1 + $0xe8] sm:$0xff]
  %v130 = vld [vmem:[%s1 + $0xf0] sm:$0xff]
  %v131 = vld [vmem:[%s1 + $0xf8] sm:$0xff]
  %v132 = vld [vmem:[%s1 + $0x100] sm:$0xff]
  %v133 = vld [vmem:[%s1 + $0x108] sm:$0xff]
  %v134 = vld [vmem:[%s1 + $0x110] sm:$0xff]
  %v135 = vld [vmem:[%s1 + $0x118] sm:$0xff]
  %v136 = vld [vmem:[%s1 + $0x120] sm:$0xff]
  %v137 = vld [vmem:[%s1 + $0x128] sm:$0xff]
  %v138 = vld [vmem:[%s1 + $0x130] sm:$0xff]
  %v139 = vld [vmem:[%s1 + $0x138] sm:$0xff]
  %v140 = vld [vmem:[%s1 + $0x140] sm:$0xff]
  %v141 = vld [vmem:[%s1 + $0x148] sm:$0xff]
  %v142 = vld [vmem:[%s1 + $0x150] sm:$0xff]
  %v143 = vld [vmem:[%s1 + $0x158] sm:$0xff]
  %v144 = vld [vmem:[%s1 + $0x160] sm:$0xff]
  %v145 = vld [vmem:[%s1 + $0x168] sm:$0xff]
  %v146 = vld [vmem:[%s1 + $0x170] sm:$0xff]
  %v147 = vld [vmem:[%s1 + $0x178] sm:$0xff]
  %v148 = vld [vmem:[%s1 + $0x180] sm:$0xff]
  %v149 = vld [vmem:[%s1 + $0x188] sm:$0xff]
  %v150 = vld [vmem:[%s1 + $0x190] sm:$0xff]
  %v151 = vld [vmem:[%s1 + $0x198] sm:$0xff]
  %v152 = vld [vmem:[%s1 + $0x1a0] sm:$0xff]
  %v153 = vld [vmem:[%s1 + $0x1a8] sm:$0xff]
  %v154 = vld [vmem:[%s1 + $0x1b0] sm:$0xff]
  %v155 = vld [vmem:[%s1 + $0x1b8] sm:$0xff]
  %v156 = vld [vmem:[%s1 + $0x1c0] sm:$0xff]
  %v157 = vld [vmem:[%s1 + $0x1c8] sm:$0xff]
  %v158 = vld [vmem:[%s1 + $0x1d0] sm:$0xff]
  %v159 = vld [vmem:[%s1 + $0x1d8] sm:$0xff]
  %v160 = vld [vmem:[%s1 + $0x1e0] sm:$0xff]
  %v161 = vld [vmem:[%s1 + $0x1e8] sm:$0xff]
  %v162 = vld [vmem:[%s1 + $0x1f0] sm:$0xff]
  %v163 = vld [vmem:[%s1 + $0x1f8] sm:$0xff]
  %v164 = vld [vmem:[%s1 + $0x200] sm:$0xff]
  %v165 = vld [vmem:[%s1 + $0x208] sm:$0xff]
  %v166 = vld [vmem:[%s1 + $0x210] sm:$0xff]
  %v167 = vld [vmem:[%s1 + $0x218] sm:$0xff]
  %v168 = vld [vmem:[%s1 + $0x220] sm:$0xff]
  %v169 = vld [vmem:[%s1 + $0x228] sm:$0xff]
  %v170 = vld [vmem:[%s1 + $0x230] sm:$0xff]
  %v171 = vld [vmem:[%s1 + $0x238] sm:$0xff]
  %v172 = vld [vmem:[%s2] sm:$0x1]
  %v174 = vlaneseq
  %v175 = vshrl.u32 %v174, 7
  %v176 = vsub.s32 0, %v175
  %v177 = vrot.slane %v172, %v176
  %vm179 = vcmask 523264
  %v181 = vsel %vm179, %v24, 0
  %v184 = vsel %vm179, %v29, 0
  %v187 = vsel %vm179, %v34, 0
  %v190 = vsel %vm179, %v39, 0
  %v193 = vsel %vm179, %v44, 0
  %v196 = vsel %vm179, %v49, 0
  %v199 = vsel %vm179, %v54, 0
  %v202 = vsel %vm179, %v59, 0
  %v205 = vsel %vm179, %v64, 0
  %v208 = vsel %vm179, %v69, 0
  %v211 = vsel %vm179, %v74, 0
  %v214 = vsel %vm179, %v79, 0
  %v217 = vsel %vm179, %v84, 0
  %v220 = vsel %vm179, %v89, 0
  %v223 = vsel %vm179, %v94, 0
  %v226 = vsel %vm179, %v99, 0
  %228 = vmatprep.subr.mxu0 0.0
  %229 = vmatpush1.msra.mxu0 %v100
  %230 = vmatprep.subr.mxu0 0.0
  %231 = vmatpush1.msra.mxu0 %v101
  %232 = vmatprep.subr.mxu0 0.0
  %233 = vmatpush1.msra.mxu0 %v102
  %234 = vmatprep.subr.mxu0 0.0
  %235 = vmatpush1.msra.mxu0 %v103
  %236 = vmatprep.subr.mxu0 0.0
  %237 = vmatpush1.msra.mxu0 %v104
  %238 = vmatprep.subr.mxu0 0.0
  %239 = vmatpush1.msra.mxu0 %v105
  %240 = vmatprep.subr.mxu0 0.0
  %241 = vmatpush1.msra.mxu0 %v106
  %242 = vmatprep.subr.mxu0 0.0
  %243 = vmatpush1.msra.mxu0 %v107
  %244 = vmatprep.subr.mxu0 0.0
  %245 = vmatpush1.msra.mxu0 %v108
  %246 = vmatprep.subr.mxu0 0.0
  %247 = vmatpush1.msra.mxu0 %v109
  %248 = vmatprep.subr.mxu0 0.0
  %249 = vmatpush1.msra.mxu0 %v110
  %250 = vmatprep.subr.mxu0 0.0
  %251 = vmatpush1.msra.mxu0 %v111
  %252 = vmatprep.subr.mxu0 0.0
  %253 = vmatpush1.msra.mxu0 %v112
  %254 = vmatprep.subr.mxu0 0.0
  %255 = vmatpush1.msra.mxu0 %v113
  %256 = vmatprep.subr.mxu0 0.0
  %257 = vmatpush1.msra.mxu0 %v114
  %258 = vmatprep.subr.mxu0 0.0
  %259 = vmatpush1.msra.mxu0 %v115
  %260 = vmatprep.subr.mxu0 0.0
  %261 = vmatpush1.msra.mxu0 %v116
  %262 = vmatprep.subr.mxu0 0.0
  %263 = vmatpush1.msra.mxu0 %v117
  %264 = vmatprep.subr.mxu0 0.0
  %265 = vmatpush1.msra.mxu0 %v118
  %266 = vmatprep.subr.mxu0 0.0
  %267 = vmatpush1.msra.mxu0 %v119
  %268 = vmatprep.subr.mxu0 0.0
  %269 = vmatpush1.msra.mxu0 %v120
  %270 = vmatprep.subr.mxu0 0.0
  %271 = vmatpush1.msra.mxu0 %v121
  %272 = vmatprep.subr.mxu0 0.0
  %273 = vmatpush1.msra.mxu0 %v122
  %274 = vmatprep.subr.mxu0 0.0
  %275 = vmatpush1.msra.mxu0 %v123
  %276 = vmatprep.subr.mxu0 0.0
  %277 = vmatpush1.msra.mxu0 %v124
  %278 = vmatprep.subr.mxu0 0.0
  %279 = vmatpush1.msra.mxu0 %v125
  %280 = vmatprep.subr.mxu0 0.0
  %281 = vmatpush1.msra.mxu0 %v126
  %282 = vmatprep.subr.mxu0 0.0
  %283 = vmatpush1.msra.mxu0 %v127
  %284 = vmatprep.subr.mxu0 0.0
  %285 = vmatpush1.msra.mxu0 %v128
  %286 = vmatprep.subr.mxu0 0.0
  %287 = vmatpush1.msra.mxu0 %v129
  %288 = vmatprep.subr.mxu0 0.0
  %289 = vmatpush1.msra.mxu0 %v130
  %290 = vmatprep.subr.mxu0 0.0
  %291 = vmatpush1.msra.mxu0 %v131
  %292 = vmatprep.mubr.f32.mxu0 %v21
  %293 = vmatmul.mubr.f32.gmra.mrb[0].mxu0 %v20
  %v294 = vpop.f32.mrb[0].mxu0
  %v295 = vadd.f32 %v177, %v294
  %v296 = vpop.f32.mrb[0].mxu0
  %297 = vmatprep.mubr.f32.mxu0 %v26
  %298 = vmatmul.mubr.f32.gmra.mrb[0].mxu0 %v25
  %v299 = vpop.f32.mrb[0].mxu0
  %v300 = vadd.f32 %v177, %v299
  %v301 = vpop.f32.mrb[0].mxu0
  %302 = vmatprep.mubr.f32.mxu0 %v31
  %303 = vmatmul.mubr.f32.gmra.mrb[0].mxu0 %v30
  %v304 = vpop.f32.mrb[0].mxu0
  %v305 = vadd.f32 %v177, %v304
  %v306 = vpop.f32.mrb[0].mxu0
  %307 = vmatprep.mubr.f32.mxu0 %v36
  %308 = vmatmul.mubr.f32.gmra.mrb[0].mxu0 %v35
  %v309 = vpop.f32.mrb[0].mxu0
  %v310 = vadd.f32 %v177, %v309
  %v311 = vpop.f32.mrb[0].mxu0
  %312 = vmatprep.mubr.f32.mxu0 %v41
  %313 = vmatmul.mubr.f32.gmra.mrb[0].mxu0 %v40
  %v314 = vpop.f32.mrb[0].mxu0
  %v315 = vadd.f32 %v177, %v314
  %v316 = vpop.f32.mrb[0].mxu0
  %317 = vmatprep.mubr.f32.mxu0 %v46
  %318 = vmatmul.mubr.f32.gmra.mrb[0].mxu0 %v45
  %v319 = vpop.f32.mrb[0].mxu0
  %v320 = vadd.f32 %v177, %v319
  %v321 = vpop.f32.mrb[0].mxu0
  %322 = vmatprep.mubr.f32.mxu0 %v51
  %323 = vmatmul.mubr.f32.gmra.mrb[0].mxu0 %v50
  %v324 = vpop.f32.mrb[0].mxu0
  %v325 = vadd.f32 %v177, %v324
  %v326 = vpop.f32.mrb[0].mxu0
  %327 = vmatprep.mubr.f32.mxu0 %v56
  %328 = vmatmul.mubr.f32.gmra.mrb[0].mxu0 %v55
  %v329 = vpop.f32.mrb[0].mxu0
  %v330 = vadd.f32 %v177, %v329
  %v331 = vpop.f32.mrb[0].mxu0
  %332 = vmatprep.mubr.f32.mxu0 %v61
  %333 = vmatmul.mubr.f32.gmra.mrb[0].mxu0 %v60
  %v334 = vpop.f32.mrb[0].mxu0
  %v335 = vadd.f32 %v177, %v334
  %v336 = vpop.f32.mrb[0].mxu0
  %337 = vmatprep.mubr.f32.mxu0 %v66
  %338 = vmatmul.mubr.f32.gmra.mrb[0].mxu0 %v65
  %v339 = vpop.f32.mrb[0].mxu0
  %v340 = vadd.f32 %v177, %v339
  %v341 = vpop.f32.mrb[0].mxu0
  %342 = vmatprep.mubr.f32.mxu0 %v71
  %343 = vmatmul.mubr.f32.gmra.mrb[0].mxu0 %v70
  %v344 = vpop.f32.mrb[0].mxu0
  %v345 = vadd.f32 %v177, %v344
  %v346 = vpop.f32.mrb[0].mxu0
  %347 = vmatprep.mubr.f32.mxu0 %v76
  %348 = vmatmul.mubr.f32.gmra.mrb[0].mxu0 %v75
  %v349 = vpop.f32.mrb[0].mxu0
  %v350 = vadd.f32 %v177, %v349
  %v351 = vpop.f32.mrb[0].mxu0
  %352 = vmatprep.mubr.f32.mxu0 %v81
  %353 = vmatmul.mubr.f32.gmra.mrb[0].mxu0 %v80
  %v354 = vpop.f32.mrb[0].mxu0
  %v355 = vadd.f32 %v177, %v354
  %v356 = vpop.f32.mrb[0].mxu0
  %357 = vmatprep.mubr.f32.mxu0 %v86
  %358 = vmatmul.mubr.f32.gmra.mrb[0].mxu0 %v85
  %v359 = vpop.f32.mrb[0].mxu0
  %v360 = vadd.f32 %v177, %v359
  %v361 = vpop.f32.mrb[0].mxu0
  %362 = vmatprep.mubr.f32.mxu0 %v91
  %363 = vmatmul.mubr.f32.gmra.mrb[0].mxu0 %v90
  %v364 = vpop.f32.mrb[0].mxu0
  %v365 = vadd.f32 %v177, %v364
  %v366 = vpop.f32.mrb[0].mxu0
  %367 = vmatprep.mubr.f32.mxu0 %v96
  %368 = vmatmul.mubr.f32.gmra.mrb[0].mxu0 %v95
  %v369 = vpop.f32.mrb[0].mxu0
  %v370 = vadd.f32 %v177, %v369
  %v371 = vpop.f32.mrb[0].mxu0
  %372 = vdwg.mxu0
  %373 = vmatprep.subr.mxu0 0.0
  %374 = vmatpush1.msra.mxu0 %v132
  %375 = vmatprep.subr.mxu0 0.0
  %376 = vmatpush1.msra.mxu0 %v133
  %377 = vmatprep.subr.mxu0 0.0
  %378 = vmatpush1.msra.mxu0 %v134
  %379 = vmatprep.subr.mxu0 0.0
  %380 = vmatpush1.msra.mxu0 %v135
  %381 = vmatprep.subr.mxu0 0.0
  %382 = vmatpush1.msra.mxu0 %v136
  %383 = vmatprep.subr.mxu0 0.0
  %384 = vmatpush1.msra.mxu0 %v137
  %385 = vmatprep.subr.mxu0 0.0
  %386 = vmatpush1.msra.mxu0 %v138
  %387 = vmatprep.subr.mxu0 0.0
  %388 = vmatpush1.msra.mxu0 %v139
  %389 = vmatprep.subr.mxu0 0.0
  %390 = vmatpush1.msra.mxu0 %v140
  %391 = vmatprep.subr.mxu0 0.0
  %392 = vmatpush1.msra.mxu0 %v141
  %393 = vmatprep.subr.mxu0 0.0
  %394 = vmatpush1.msra.mxu0 %v142
  %395 = vmatprep.subr.mxu0 0.0
  %396 = vmatpush1.msra.mxu0 %v143
  %397 = vmatprep.subr.mxu0 0.0
  %398 = vmatpush1.msra.mxu0 %v144
  %399 = vmatprep.subr.mxu0 0.0
  %400 = vmatpush1.msra.mxu0 %v145
  %401 = vmatprep.subr.mxu0 0.0
  %402 = vmatpush1.msra.mxu0 %v146
  %403 = vmatprep.subr.mxu0 0.0
  %404 = vmatpush1.msra.mxu0 %v147
  %405 = vmatprep.subr.mxu0 0.0
  %406 = vmatpush1.msra.mxu0 %v148
  %407 = vmatprep.subr.mxu0 0.0
  %408 = vmatpush1.msra.mxu0 %v149
  %409 = vmatprep.subr.mxu0 0.0
  %410 = vmatpush1.msra.mxu0 %v150
  %411 = vmatprep.subr.mxu0 0.0
  %412 = vmatpush1.msra.mxu0 %v151
  %413 = vmatprep.subr.mxu0 0.0
  %414 = vmatpush1.msra.mxu0 %v152
  %415 = vmatprep.subr.mxu0 0.0
  %416 = vmatpush1.msra.mxu0 %v153
  %417 = vmatprep.subr.mxu0 0.0
  %418 = vmatpush1.msra.mxu0 %v154
  %419 = vmatprep.subr.mxu0 0.0
  %420 = vmatpush1.msra.mxu0 %v155
  %421 = vmatprep.subr.mxu0 0.0
  %422 = vmatpush1.msra.mxu0 %v156
  %423 = vmatprep.subr.mxu0 0.0
  %424 = vmatpush1.msra.mxu0 %v157
  %425 = vmatprep.subr.mxu0 0.0
  %426 = vmatpush1.msra.mxu0 %v158
  %427 = vmatprep.subr.mxu0 0.0
  %428 = vmatpush1.msra.mxu0 %v159
  %429 = vmatprep.subr.mxu0 0.0
  %430 = vmatpush1.msra.mxu0 %v160
  %431 = vmatprep.subr.mxu0 0.0
  %432 = vmatpush1.msra.mxu0 %v161
  %433 = vmatprep.subr.mxu0 0.0
  %434 = vmatpush1.msra.mxu0 %v162
  %435 = vmatprep.subr.mxu0 0.0
  %436 = vmatpush1.msra.mxu0 %v163
  %437 = vmatprep.mubr.f32.mxu0 %v23
  %438 = vmatmul.mubr.f32.gmra.mrb[0].mxu0 %v22
  %v439 = vpop.f32.mrb[0].mxu0
  %v440 = vadd.f32 %v295, %v439
  %v441 = vpop.f32.mrb[0].mxu0
  %442 = vmatprep.mubr.f32.mxu0 %v28
  %443 = vmatmul.mubr.f32.gmra.mrb[0].mxu0 %v27
  %v444 = vpop.f32.mrb[0].mxu0
  %v445 = vadd.f32 %v300, %v444
  %v446 = vpop.f32.mrb[0].mxu0
  %447 = vmatprep.mubr.f32.mxu0 %v33
  %448 = vmatmul.mubr.f32.gmra.mrb[0].mxu0 %v32
  %v449 = vpop.f32.mrb[0].mxu0
  %v450 = vadd.f32 %v305, %v449
  %v451 = vpop.f32.mrb[0].mxu0
  %452 = vmatprep.mubr.f32.mxu0 %v38
  %453 = vmatmul.mubr.f32.gmra.mrb[0].mxu0 %v37
  %v454 = vpop.f32.mrb[0].mxu0
  %v455 = vadd.f32 %v310, %v454
  %v456 = vpop.f32.mrb[0].mxu0
  %457 = vmatprep.mubr.f32.mxu0 %v43
  %458 = vmatmul.mubr.f32.gmra.mrb[0].mxu0 %v42
  %v459 = vpop.f32.mrb[0].mxu0
  %v460 = vadd.f32 %v315, %v459
  %v461 = vpop.f32.mrb[0].mxu0
  %462 = vmatprep.mubr.f32.mxu0 %v48
  %463 = vmatmul.mubr.f32.gmra.mrb[0].mxu0 %v47
  %v464 = vpop.f32.mrb[0].mxu0
  %v465 = vadd.f32 %v320, %v464
  %v466 = vpop.f32.mrb[0].mxu0
  %467 = vmatprep.mubr.f32.mxu0 %v53
  %468 = vmatmul.mubr.f32.gmra.mrb[0].mxu0 %v52
  %v469 = vpop.f32.mrb[0].mxu0
  %v470 = vadd.f32 %v325, %v469
  %v471 = vpop.f32.mrb[0].mxu0
  %472 = vmatprep.mubr.f32.mxu0 %v58
  %473 = vmatmul.mubr.f32.gmra.mrb[0].mxu0 %v57
  %v474 = vpop.f32.mrb[0].mxu0
  %v475 = vadd.f32 %v330, %v474
  %v476 = vpop.f32.mrb[0].mxu0
  %477 = vmatprep.mubr.f32.mxu0 %v63
  %478 = vmatmul.mubr.f32.gmra.mrb[0].mxu0 %v62
  %v479 = vpop.f32.mrb[0].mxu0
  %v480 = vadd.f32 %v335, %v479
  %v481 = vpop.f32.mrb[0].mxu0
  %482 = vmatprep.mubr.f32.mxu0 %v68
  %483 = vmatmul.mubr.f32.gmra.mrb[0].mxu0 %v67
  %v484 = vpop.f32.mrb[0].mxu0
  %v485 = vadd.f32 %v340, %v484
  %v486 = vpop.f32.mrb[0].mxu0
  %487 = vmatprep.mubr.f32.mxu0 %v73
  %488 = vmatmul.mubr.f32.gmra.mrb[0].mxu0 %v72
  %v489 = vpop.f32.mrb[0].mxu0
  %v490 = vadd.f32 %v345, %v489
  %v491 = vpop.f32.mrb[0].mxu0
  %492 = vmatprep.mubr.f32.mxu0 %v78
  %493 = vmatmul.mubr.f32.gmra.mrb[0].mxu0 %v77
  %v494 = vpop.f32.mrb[0].mxu0
  %v495 = vadd.f32 %v350, %v494
  %v496 = vpop.f32.mrb[0].mxu0
  %497 = vmatprep.mubr.f32.mxu0 %v83
  %498 = vmatmul.mubr.f32.gmra.mrb[0].mxu0 %v82
  %v499 = vpop.f32.mrb[0].mxu0
  %v500 = vadd.f32 %v355, %v499
  %v501 = vpop.f32.mrb[0].mxu0
  %502 = vmatprep.mubr.f32.mxu0 %v88
  %503 = vmatmul.mubr.f32.gmra.mrb[0].mxu0 %v87
  %v504 = vpop.f32.mrb[0].mxu0
  %v505 = vadd.f32 %v360, %v504
  %v506 = vpop.f32.mrb[0].mxu0
  %507 = vmatprep.mubr.f32.mxu0 %v93
  %508 = vmatmul.mubr.f32.gmra.mrb[0].mxu0 %v92
  %v509 = vpop.f32.mrb[0].mxu0
  %v510 = vadd.f32 %v365, %v509
  %v511 = vpop.f32.mrb[0].mxu0
  %512 = vmatprep.mubr.f32.mxu0 %v98
  %513 = vmatmul.mubr.f32.gmra.mrb[0].mxu0 %v97
  %v514 = vpop.f32.mrb[0].mxu0
  %v515 = vadd.f32 %v370, %v514
  %v516 = vpop.f32.mrb[0].mxu0
  %517 = vdwg.mxu0
  %518 = vmatprep.subr.mxu0 0.0
  %519 = vmatpush1.msra.mxu0 %v164
  %520 = vmatprep.subr.mxu0 0.0
  %521 = vmatpush1.msra.mxu0 %v165
  %522 = vmatprep.subr.mxu0 0.0
  %523 = vmatpush1.msra.mxu0 %v166
  %524 = vmatprep.subr.mxu0 0.0
  %525 = vmatpush1.msra.mxu0 %v167
  %526 = vmatprep.subr.mxu0 0.0
  %527 = vmatpush1.msra.mxu0 %v168
  %528 = vmatprep.subr.mxu0 0.0
  %529 = vmatpush1.msra.mxu0 %v169
  %530 = vmatprep.subr.mxu0 0.0
  %531 = vmatpush1.msra.mxu0 %v170
  %532 = vmatprep.subr.mxu0 0.0
  %533 = vmatpush1.msra.mxu0 %v171
  %534 = vmatprep.subr.mxu0 0.0
  %535 = vmatpush1.msra.mxu0 0.0
  %536 = vmatprep.subr.mxu0 0.0
  %537 = vmatpush1.msra.mxu0 0.0
  %538 = vmatprep.subr.mxu0 0.0
  %539 = vmatpush1.msra.mxu0 0.0
  %540 = vmatprep.subr.mxu0 0.0
  %541 = vmatpush1.msra.mxu0 0.0
  %542 = vmatprep.subr.mxu0 0.0
  %543 = vmatpush1.msra.mxu0 0.0
  %544 = vmatprep.subr.mxu0 0.0
  %545 = vmatpush1.msra.mxu0 0.0
  %546 = vmatprep.subr.mxu0 0.0
  %547 = vmatpush1.msra.mxu0 0.0
  %548 = vmatprep.subr.mxu0 0.0
  %549 = vmatpush1.msra.mxu0 0.0
  %550 = vmatprep.subr.mxu0 0.0
  %551 = vmatpush1.msra.mxu0 0.0
  %552 = vmatprep.subr.mxu0 0.0
  %553 = vmatpush1.msra.mxu0 0.0
  %554 = vmatprep.subr.mxu0 0.0
  %555 = vmatpush1.msra.mxu0 0.0
  %556 = vmatprep.subr.mxu0 0.0
  %557 = vmatpush1.msra.mxu0 0.0
  %558 = vmatprep.subr.mxu0 0.0
  %559 = vmatpush1.msra.mxu0 0.0
  %560 = vmatprep.subr.mxu0 0.0
  %561 = vmatpush1.msra.mxu0 0.0
  %562 = vmatprep.subr.mxu0 0.0
  %563 = vmatpush1.msra.mxu0 0.0
  %564 = vmatprep.subr.mxu0 0.0
  %565 = vmatpush1.msra.mxu0 0.0
  %566 = vmatprep.subr.mxu0 0.0
  %567 = vmatpush1.msra.mxu0 0.0
  %568 = vmatprep.subr.mxu0 0.0
  %569 = vmatpush1.msra.mxu0 0.0
  %570 = vmatprep.subr.mxu0 0.0
  %571 = vmatpush1.msra.mxu0 0.0
  %572 = vmatprep.subr.mxu0 0.0
  %573 = vmatpush1.msra.mxu0 0.0
  %574 = vmatprep.subr.mxu0 0.0
  %575 = vmatpush1.msra.mxu0 0.0
  %576 = vmatprep.subr.mxu0 0.0
  %577 = vmatpush1.msra.mxu0 0.0
  %578 = vmatprep.subr.mxu0 0.0
  %579 = vmatpush1.msra.mxu0 0.0
  %580 = vmatprep.subr.mxu0 0.0
  %581 = vmatpush1.msra.mxu0 0.0
  %582 = vmatprep.mubr.f32.mxu0 0.0
  %583 = vmatmul.mubr.f32.gmra.mrb[0].mxu0 %v181
  %v584 = vpop.f32.mrb[0].mxu0
  %v585 = vadd.f32 %v440, %v584
  %v586 = vpop.f32.mrb[0].mxu0
  %587 = vmatprep.mubr.f32.mxu0 0.0
  %588 = vmatmul.mubr.f32.gmra.mrb[0].mxu0 %v184
  %v589 = vpop.f32.mrb[0].mxu0
  %v590 = vadd.f32 %v445, %v589
  %v591 = vpop.f32.mrb[0].mxu0
  %592 = vmatprep.mubr.f32.mxu0 0.0
  %593 = vmatmul.mubr.f32.gmra.mrb[0].mxu0 %v187
  %v594 = vpop.f32.mrb[0].mxu0
  %v595 = vadd.f32 %v450, %v594
  %v596 = vpop.f32.mrb[0].mxu0
  %597 = vmatprep.mubr.f32.mxu0 0.0
  %598 = vmatmul.mubr.f32.gmra.mrb[0].mxu0 %v190
  %v599 = vpop.f32.mrb[0].mxu0
  %v600 = vadd.f32 %v455, %v599
  %v601 = vpop.f32.mrb[0].mxu0
  %602 = vmatprep.mubr.f32.mxu0 0.0
  %603 = vmatmul.mubr.f32.gmra.mrb[0].mxu0 %v193
  %v604 = vpop.f32.mrb[0].mxu0
  %v605 = vadd.f32 %v460, %v604
  %v606 = vpop.f32.mrb[0].mxu0
  %607 = vmatprep.mubr.f32.mxu0 0.0
  %608 = vmatmul.mubr.f32.gmra.mrb[0].mxu0 %v196
  %v609 = vpop.f32.mrb[0].mxu0
  %v610 = vadd.f32 %v465, %v609
  %v611 = vpop.f32.mrb[0].mxu0
  %612 = vmatprep.mubr.f32.mxu0 0.0
  %613 = vmatmul.mubr.f32.gmra.mrb[0].mxu0 %v199
  %v614 = vpop.f32.mrb[0].mxu0
  %v615 = vadd.f32 %v470, %v614
  %v616 = vpop.f32.mrb[0].mxu0
  %617 = vmatprep.mubr.f32.mxu0 0.0
  %618 = vmatmul.mubr.f32.gmra.mrb[0].mxu0 %v202
  %v619 = vpop.f32.mrb[0].mxu0
  %v620 = vadd.f32 %v475, %v619
  %v621 = vpop.f32.mrb[0].mxu0
  %622 = vmatprep.mubr.f32.mxu0 0.0
  %623 = vmatmul.mubr.f32.gmra.mrb[0].mxu0 %v205
  %v624 = vpop.f32.mrb[0].mxu0
  %v625 = vadd.f32 %v480, %v624
  %v626 = vpop.f32.mrb[0].mxu0
  %627 = vmatprep.mubr.f32.mxu0 0.0
  %628 = vmatmul.mubr.f32.gmra.mrb[0].mxu0 %v208
  %v629 = vpop.f32.mrb[0].mxu0
  %v630 = vadd.f32 %v485, %v629
  %v631 = vpop.f32.mrb[0].mxu0
  %632 = vmatprep.mubr.f32.mxu0 0.0
  %633 = vmatmul.mubr.f32.gmra.mrb[0].mxu0 %v211
  %v634 = vpop.f32.mrb[0].mxu0
  %v635 = vadd.f32 %v490, %v634
  %v636 = vpop.f32.mrb[0].mxu0
  %637 = vmatprep.mubr.f32.mxu0 0.0
  %638 = vmatmul.mubr.f32.gmra.mrb[0].mxu0 %v214
  %v639 = vpop.f32.mrb[0].mxu0
  %v640 = vadd.f32 %v495, %v639
  %v641 = vpop.f32.mrb[0].mxu0
  %642 = vmatprep.mubr.f32.mxu0 0.0
  %643 = vmatmul.mubr.f32.gmra.mrb[0].mxu0 %v217
  %v644 = vpop.f32.mrb[0].mxu0
  %v645 = vadd.f32 %v500, %v644
  %v646 = vpop.f32.mrb[0].mxu0
  %647 = vmatprep.mubr.f32.mxu0 0.0
  %648 = vmatmul.mubr.f32.gmra.mrb[0].mxu0 %v220
  %v649 = vpop.f32.mrb[0].mxu0
  %v650 = vadd.f32 %v505, %v649
  %v651 = vpop.f32.mrb[0].mxu0
  %652 = vmatprep.mubr.f32.mxu0 0.0
  %653 = vmatmul.mubr.f32.gmra.mrb[0].mxu0 %v223
  %v654 = vpop.f32.mrb[0].mxu0
  %v655 = vadd.f32 %v510, %v654
  %v656 = vpop.f32.mrb[0].mxu0
  %657 = vmatprep.mubr.f32.mxu0 0.0
  %658 = vmatmul.mubr.f32.gmra.mrb[0].mxu0 %v226
  %v659 = vpop.f32.mrb[0].mxu0
  %v660 = vadd.f32 %v515, %v659
  %v661 = vpop.f32.mrb[0].mxu0
  %662 = vdwg.mxu0
  %v663 = vsel %vm179, %v585, 0.0
  %v664 = vsel %vm179, %v590, 0.0
  %v665 = vadd.f32 %v663, %v664
  %v666 = vsel %vm179, %v595, 0.0
  %v667 = vadd.f32 %v665, %v666
  %v668 = vsel %vm179, %v600, 0.0
  %v669 = vadd.f32 %v667, %v668
  %v670 = vsel %vm179, %v605, 0.0
  %v671 = vadd.f32 %v669, %v670
  %v672 = vsel %vm179, %v610, 0.0
  %v673 = vadd.f32 %v671, %v672
  %v674 = vsel %vm179, %v615, 0.0
  %v675 = vadd.f32 %v673, %v674
  %v676 = vsel %vm179, %v620, 0.0
  %v677 = vadd.f32 %v675, %v676
  %v678 = vsel %vm179, %v625, 0.0
  %v679 = vadd.f32 %v677, %v678
  %v680 = vsel %vm179, %v630, 0.0
  %v681 = vadd.f32 %v679, %v680
  %v682 = vsel %vm179, %v635, 0.0
  %v683 = vadd.f32 %v681, %v682
  %v684 = vsel %vm179, %v640, 0.0
  %v685 = vadd.f32 %v683, %v684
  %v686 = vsel %vm179, %v645, 0.0
  %v687 = vadd.f32 %v685, %v686
  %v688 = vsel %vm179, %v650, 0.0
  %v689 = vadd.f32 %v687, %v688
  %v690 = vsel %vm179, %v655, 0.0
  %v691 = vadd.f32 %v689, %v690
  %v692 = vsel %vm179, %v660, 0.0
  %v693 = vadd.f32 %v691, %v692
  %v694 = vrot.slane %v693, 4
  %v695 = vadd.f32 %v693, %v694
  %v696 = vrot.slane %v695, 2
  %v697 = vadd.f32 %v695, %v696
  %v698 = vrot.slane %v697, 1
  %v699 = vadd.f32 %v697, %v698
  %v700 = vrcp.pop 128.0
  %v701 = vmul.f32 %v699, %v700
  %v702 = vmul.f32 %v585, %v585
  %v703 = vmul.f32 %v590, %v590
  %v704 = vmul.f32 %v595, %v595
  %v705 = vmul.f32 %v600, %v600
  %v706 = vmul.f32 %v605, %v605
  %v707 = vmul.f32 %v610, %v610
  %v708 = vmul.f32 %v615, %v615
  %v709 = vmul.f32 %v620, %v620
  %v710 = vmul.f32 %v625, %v625
  %v711 = vmul.f32 %v630, %v630
  %v712 = vmul.f32 %v635, %v635
  %v713 = vmul.f32 %v640, %v640
  %v714 = vmul.f32 %v645, %v645
  %v715 = vmul.f32 %v650, %v650
  %v716 = vmul.f32 %v655, %v655
  %v717 = vmul.f32 %v660, %v660
  %v718 = vsel %vm179, %v702, 0.0
  %v719 = vsel %vm179, %v703, 0.0
  %v720 = vadd.f32 %v718, %v719
  %v721 = vsel %vm179, %v704, 0.0
  %v722 = vadd.f32 %v720, %v721
  %v723 = vsel %vm179, %v705, 0.0
  %v724 = vadd.f32 %v722, %v723
  %v725 = vsel %vm179, %v706, 0.0
  %v726 = vadd.f32 %v724, %v725
  %v727 = vsel %vm179, %v707, 0.0
  %v728 = vadd.f32 %v726, %v727
  %v729 = vsel %vm179, %v708, 0.0
  %v730 = vadd.f32 %v728, %v729
  %v731 = vsel %vm179, %v709, 0.0
  %v732 = vadd.f32 %v730, %v731
  %v733 = vsel %vm179, %v710, 0.0
  %v734 = vadd.f32 %v732, %v733
  %v735 = vsel %vm179, %v711, 0.0
  %v736 = vadd.f32 %v734, %v735
  %v737 = vsel %vm179, %v712, 0.0
  %v738 = vadd.f32 %v736, %v737
  %v739 = vsel %vm179, %v713, 0.0
  %v740 = vadd.f32 %v738, %v739
  %v741 = vsel %vm179, %v714, 0.0
  %v742 = vadd.f32 %v740, %v741
  %v743 = vsel %vm179, %v715, 0.0
  %v744 = vadd.f32 %v742, %v743
  %v745 = vsel %vm179, %v716, 0.0
  %v746 = vadd.f32 %v744, %v745
  %v747 = vsel %vm179, %v717, 0.0
  %v748 = vadd.f32 %v746, %v747
  %v749 = vrot.slane %v748, 4
  %v750 = vadd.f32 %v748, %v749
  %v751 = vrot.slane %v750, 2
  %v752 = vadd.f32 %v750, %v751
  %v753 = vrot.slane %v752, 1
  %v754 = vadd.f32 %v752, %v753
  %v755 = vmul.f32 %v754, %v700
  %v756 = vmul.f32 %v701, %v701
  %v757 = vsub.f32 %v755, %v756
  %v758 = vsub.f32 %v585, %v701
  %v759 = vsub.f32 %v590, %v701
  %v760 = vsub.f32 %v595, %v701
  %v761 = vsub.f32 %v600, %v701
  %v762 = vsub.f32 %v605, %v701
  %v763 = vsub.f32 %v610, %v701
  %v764 = vsub.f32 %v615, %v701
  %v765 = vsub.f32 %v620, %v701
  %v766 = vsub.f32 %v625, %v701
  %v767 = vsub.f32 %v630, %v701
  %v768 = vsub.f32 %v635, %v701
  %v769 = vsub.f32 %v640, %v701
  %v770 = vsub.f32 %v645, %v701
  %v771 = vsub.f32 %v650, %v701
  %v772 = vsub.f32 %v655, %v701
  %v773 = vsub.f32 %v660, %v701
  %v774 = vadd.f32 %v757, 1e-05
  %v775 = vrsqrt.pop %v774
  %v776 = vmul.f32 %v758, %v775
  %v777 = vmul.f32 %v759, %v775
  %v778 = vmul.f32 %v760, %v775
  %v779 = vmul.f32 %v761, %v775
  %v780 = vmul.f32 %v762, %v775
  %v781 = vmul.f32 %v763, %v775
  %v782 = vmul.f32 %v764, %v775
  %v783 = vmul.f32 %v765, %v775
  %v784 = vmul.f32 %v766, %v775
  %v785 = vmul.f32 %v767, %v775
  %v786 = vmul.f32 %v768, %v775
  %v787 = vmul.f32 %v769, %v775
  %v788 = vmul.f32 %v770, %v775
  %v789 = vmul.f32 %v771, %v775
  %v790 = vmul.f32 %v772, %v775
  %v791 = vmul.f32 %v773, %v775
  %v792 = vld [vmem:[%s3] sm:$0x1]
  %v794 = vlaneseq
  %v795 = vshrl.u32 %v794, 7
  %v796 = vsub.s32 0, %v795
  %v797 = vrot.slane %v792, %v796
  %v799 = vmul.f32 %v776, %v797
  %v800 = vmul.f32 %v777, %v797
  %v801 = vmul.f32 %v778, %v797
  %v802 = vmul.f32 %v779, %v797
  %v803 = vmul.f32 %v780, %v797
  %v804 = vmul.f32 %v781, %v797
  %v805 = vmul.f32 %v782, %v797
  %v806 = vmul.f32 %v783, %v797
  %v807 = vmul.f32 %v784, %v797
  %v808 = vmul.f32 %v785, %v797
  %v809 = vmul.f32 %v786, %v797
  %v810 = vmul.f32 %v787, %v797
  %v811 = vmul.f32 %v788, %v797
  %v812 = vmul.f32 %v789, %v797
  %v813 = vmul.f32 %v790, %v797
  %v814 = vmul.f32 %v791, %v797
  %v815 = vld [vmem:[%s4] sm:$0x1]
  %v817 = vlaneseq
  %v818 = vshrl.u32 %v817, 7
  %v819 = vsub.s32 0, %v818
  %v820 = vrot.slane %v815, %v819
  %v822 = vadd.f32 %v799, %v820
  %v823 = vadd.f32 %v800, %v820
  %v824 = vadd.f32 %v801, %v820
  %v825 = vadd.f32 %v802, %v820
  %v826 = vadd.f32 %v803, %v820
  %v827 = vadd.f32 %v804, %v820
  %v828 = vadd.f32 %v805, %v820
  %v829 = vadd.f32 %v806, %v820
  %v830 = vadd.f32 %v807, %v820
  %v831 = vadd.f32 %v808, %v820
  %v832 = vadd.f32 %v809, %v820
  %v833 = vadd.f32 %v810, %v820
  %v834 = vadd.f32 %v811, %v820
  %v835 = vadd.f32 %v812, %v820
  %v836 = vadd.f32 %v813, %v820
  %v837 = vadd.f32 %v814, %v820
  %v838 = vmax.f32 %v822, 0.0
  %v839 = vmax.f32 %v823, 0.0
  %v840 = vmax.f32 %v824, 0.0
  %v841 = vmax.f32 %v825, 0.0
  %v842 = vmax.f32 %v826, 0.0
  %v843 = vmax.f32 %v827, 0.0
  %v844 = vmax.f32 %v828, 0.0
  %v845 = vmax.f32 %v829, 0.0
  %v846 = vmax.f32 %v830, 0.0
  %v847 = vmax.f32 %v831, 0.0
  %v848 = vmax.f32 %v832, 0.0
  %v849 = vmax.f32 %v833, 0.0
  %v850 = vmax.f32 %v834, 0.0
  %v851 = vmax.f32 %v835, 0.0
  %v852 = vmax.f32 %v836, 0.0
  %v853 = vmax.f32 %v837, 0.0
  %854 = vst.msk [vmem:[%s5] sm:$0xff] %vm179, %v838
  %855 = vst.msk [vmem:[%s5 + $0x8] sm:$0xff] %vm179, %v839
  %856 = vst.msk [vmem:[%s5 + $0x10] sm:$0xff] %vm179, %v840
  %857 = vst.msk [vmem:[%s5 + $0x18] sm:$0xff] %vm179, %v841
  %858 = vst.msk [vmem:[%s5 + $0x20] sm:$0xff] %vm179, %v842
  %859 = vst.msk [vmem:[%s5 + $0x28] sm:$0xff] %vm179, %v843
  %860 = vst.msk [vmem:[%s5 + $0x30] sm:$0xff] %vm179, %v844
  %861 = vst.msk [vmem:[%s5 + $0x38] sm:$0xff] %vm179, %v845
  %862 = vst.msk [vmem:[%s5 + $0x40] sm:$0xff] %vm179, %v846
  %863 = vst.msk [vmem:[%s5 + $0x48] sm:$0xff] %vm179, %v847
  %864 = vst.msk [vmem:[%s5 + $0x50] sm:$0xff] %vm179, %v848
  %865 = vst.msk [vmem:[%s5 + $0x58] sm:$0xff] %vm179, %v849
  %866 = vst.msk [vmem:[%s5 + $0x60] sm:$0xff] %vm179, %v850
  %867 = vst.msk [vmem:[%s5 + $0x68] sm:$0xff] %vm179, %v851
  %868 = vst.msk [vmem:[%s5 + $0x70] sm:$0xff] %vm179, %v852
  %869 = vst.msk [vmem:[%s5 + $0x78] sm:$0xff] %vm179, %v853
  // Predicated region
  $region22: #{convnet_forward.8} parent=0 // pred_check
    _
  $region23: #{convnet_forward.8} parent=0 // pred_check_branch
    %871 = sbr.rel (0) target = $region25
  $region24: #{convnet_forward.8} parent=0 // pred_region
    _
  $region25: #{convnet_forward.8} parent=0 // pred_fallthru
    _
  // Predicated region
  $region26: #{convnet_forward.8} parent=0 // pred_check
    _
  $region27: #{convnet_forward.8} parent=0 // pred_check_branch
    %873 = sbr.rel (0) target = $region29
  $region28: #{convnet_forward.8} parent=0 // pred_region
    _
  $region29: #{convnet_forward.8} parent=0 // pred_fallthru
    _

// kernel: convnet_forward.10
$region0: #{convnet_forward.10}
  #allocation0 [shape = 'u32[]', space=smem, size = 0x4, offset = 0x4, fixed_abs, tag = 'smem constant byte address 0x4 - core index']
  #allocation1 [shape = 'u32[144,128]{1,0:T(1,128)}', space=vmem, size = 0x12000, scoped, tag = 'internal scratch']
  %s0 = inlined_call_operand.vmem [shape: f32[2,256], index: 0, kind: input, shape index: {}]
  %s1 = inlined_call_operand.vmem [shape: f32[256,32], index: 1, kind: input, shape index: {}]
  %s2 = inlined_call_operand.vmem [shape: f32[1,32], index: 2, kind: input, shape index: {}]
  %s3 = inlined_call_operand.vmem [shape: f32[1,32], index: 3, kind: input, shape index: {}]
  %s4 = inlined_call_operand.vmem [shape: f32[1,32], index: 4, kind: input, shape index: {}]
  %s5 = inlined_call_operand.vmem [shape: f32[2,32], index: 5, kind: output, shape index: {}]
  %s6 = sld [smem:[#allocation0]]
  $region30: #{convnet_forward.10} parent=0
    _
  %s8 = ssub.s32 1, %s6
  %s9 = scalar_select 0, %s8, %s6
  // Predicated region
  $region2: #{convnet_forward.10} parent=0 // pred_check
    _
  $region3: #{convnet_forward.10} parent=0 // pred_check_branch
    %11 = sbr.rel (0) target = $region5
  $region4: #{convnet_forward.10} parent=0 // pred_region
    _
  $region5: #{convnet_forward.10} parent=0 // pred_fallthru
    _
  // Predicated region
  $region6: #{convnet_forward.10} parent=0 // pred_check
    _
  $region7: #{convnet_forward.10} parent=0 // pred_check_branch
    %13 = sbr.rel (0) target = $region9
  $region8: #{convnet_forward.10} parent=0 // pred_region
    _
  $region9: #{convnet_forward.10} parent=0 // pred_fallthru
    _
  // Predicated region
  $region10: #{convnet_forward.10} parent=0 // pred_check
    _
  $region11: #{convnet_forward.10} parent=0 // pred_check_branch
    %15 = sbr.rel (0) target = $region13
  $region12: #{convnet_forward.10} parent=0 // pred_region
    _
  $region13: #{convnet_forward.10} parent=0 // pred_fallthru
    _
  // Predicated region
  $region14: #{convnet_forward.10} parent=0 // pred_check
    _
  $region15: #{convnet_forward.10} parent=0 // pred_check_branch
    %17 = sbr.rel (0) target = $region17
  $region16: #{convnet_forward.10} parent=0 // pred_region
    _
  $region17: #{convnet_forward.10} parent=0 // pred_fallthru
    _
  // Predicated region
  $region18: #{convnet_forward.10} parent=0 // pred_check
    _
  $region19: #{convnet_forward.10} parent=0 // pred_check_branch
    %19 = sbr.rel (0) target = $region21
  $region20: #{convnet_forward.10} parent=0 // pred_region
    _
  $region21: #{convnet_forward.10} parent=0 // pred_fallthru
    _
  %v20 = vld [vmem:[%s0] sm:$0xf]
  %v21 = vld [vmem:[%s1] sm:$0xff]
  %v22 = vld [vmem:[%s1 + $0x8] sm:$0xff]
  %v23 = vld [vmem:[%s1 + $0x10] sm:$0xff]
  %v24 = vld [vmem:[%s1 + $0x18] sm:$0xff]
  %v25 = vld [vmem:[%s1 + $0x20] sm:$0xff]
  %v26 = vld [vmem:[%s1 + $0x28] sm:$0xff]
  %v27 = vld [vmem:[%s1 + $0x30] sm:$0xff]
  %v28 = vld [vmem:[%s1 + $0x38] sm:$0xff]
  %v29 = vld [vmem:[%s1 + $0x40] sm:$0xff]
  %v30 = vld [vmem:[%s1 + $0x48] sm:$0xff]
  %v31 = vld [vmem:[%s1 + $0x50] sm:$0xff]
  %v32 = vld [vmem:[%s1 + $0x58] sm:$0xff]
  %v33 = vld [vmem:[%s1 + $0x60] sm:$0xff]
  %v34 = vld [vmem:[%s1 + $0x68] sm:$0xff]
  %v35 = vld [vmem:[%s1 + $0x70] sm:$0xff]
  %v36 = vld [vmem:[%s1 + $0x78] sm:$0xff]
  %v37 = vld [vmem:[%s1 + $0x80] sm:$0xff]
  %v38 = vld [vmem:[%s1 + $0x88] sm:$0xff]
  %v39 = vld [vmem:[%s1 + $0x90] sm:$0xff]
  %v40 = vld [vmem:[%s1 + $0x98] sm:$0xff]
  %v41 = vld [vmem:[%s1 + $0xa0] sm:$0xff]
  %v42 = vld [vmem:[%s1 + $0xa8] sm:$0xff]
  %v43 = vld [vmem:[%s1 + $0xb0] sm:$0xff]
  %v44 = vld [vmem:[%s1 + $0xb8] sm:$0xff]
  %v45 = vld [vmem:[%s1 + $0xc0] sm:$0xff]
  %v46 = vld [vmem:[%s1 + $0xc8] sm:$0xff]
  %v47 = vld [vmem:[%s1 + $0xd0] sm:$0xff]
  %v48 = vld [vmem:[%s1 + $0xd8] sm:$0xff]
  %v49 = vld [vmem:[%s1 + $0xe0] sm:$0xff]
  %v50 = vld [vmem:[%s1 + $0xe8] sm:$0xff]
  %v51 = vld [vmem:[%s1 + $0xf0] sm:$0xff]
  %v52 = vld [vmem:[%s1 + $0xf8] sm:$0xff]
  %v53 = vld [vmem:[%s2] sm:$0x1]
  %v55 = vlaneseq
  %v56 = vshrl.u32 %v55, 7
  %v57 = vsub.s32 0, %v56
  %v58 = vrot.slane %v53, %v57
  %v62 = vunpack.c.l.s4 1983009808
  %v63 = vunpack.c.0.s8 %v62
  %v64 = vlaneseq
  %v65 = vshrl.u32 %v64, 7
  %v66 = vsub.s32 %v63, %v65
  %v67 = vrot.slane %v20, %v66
  %v68 = vcombine.high %v67, %v67
  %71 = vmatprep.subr.mxu0 0.0
  %72 = vmatpush1.msra.mxu0 %v21
  %73 = vmatprep.subr.mxu0 0.0
  %74 = vmatpush1.msra.mxu0 %v22
  %75 = vmatprep.subr.mxu0 0.0
  %76 = vmatpush1.msra.mxu0 %v23
  %77 = vmatprep.subr.mxu0 0.0
  %78 = vmatpush1.msra.mxu0 %v24
  %79 = vmatprep.subr.mxu0 0.0
  %80 = vmatpush1.msra.mxu0 %v25
  %81 = vmatprep.subr.mxu0 0.0
  %82 = vmatpush1.msra.mxu0 %v26
  %83 = vmatprep.subr.mxu0 0.0
  %84 = vmatpush1.msra.mxu0 %v27
  %85 = vmatprep.subr.mxu0 0.0
  %86 = vmatpush1.msra.mxu0 %v28
  %87 = vmatprep.subr.mxu0 0.0
  %88 = vmatpush1.msra.mxu0 %v29
  %89 = vmatprep.subr.mxu0 0.0
  %90 = vmatpush1.msra.mxu0 %v30
  %91 = vmatprep.subr.mxu0 0.0
  %92 = vmatpush1.msra.mxu0 %v31
  %93 = vmatprep.subr.mxu0 0.0
  %94 = vmatpush1.msra.mxu0 %v32
  %95 = vmatprep.subr.mxu0 0.0
  %96 = vmatpush1.msra.mxu0 %v33
  %97 = vmatprep.subr.mxu0 0.0
  %98 = vmatpush1.msra.mxu0 %v34
  %99 = vmatprep.subr.mxu0 0.0
  %100 = vmatpush1.msra.mxu0 %v35
  %101 = vmatprep.subr.mxu0 0.0
  %102 = vmatpush1.msra.mxu0 %v36
  %103 = vmatprep.subr.mxu0 0.0
  %104 = vmatpush1.msra.mxu0 %v37
  %105 = vmatprep.subr.mxu0 0.0
  %106 = vmatpush1.msra.mxu0 %v38
  %107 = vmatprep.subr.mxu0 0.0
  %108 = vmatpush1.msra.mxu0 %v39
  %109 = vmatprep.subr.mxu0 0.0
  %110 = vmatpush1.msra.mxu0 %v40
  %111 = vmatprep.subr.mxu0 0.0
  %112 = vmatpush1.msra.mxu0 %v41
  %113 = vmatprep.subr.mxu0 0.0
  %114 = vmatpush1.msra.mxu0 %v42
  %115 = vmatprep.subr.mxu0 0.0
  %116 = vmatpush1.msra.mxu0 %v43
  %117 = vmatprep.subr.mxu0 0.0
  %118 = vmatpush1.msra.mxu0 %v44
  %119 = vmatprep.subr.mxu0 0.0
  %120 = vmatpush1.msra.mxu0 %v45
  %121 = vmatprep.subr.mxu0 0.0
  %122 = vmatpush1.msra.mxu0 %v46
  %123 = vmatprep.subr.mxu0 0.0
  %124 = vmatpush1.msra.mxu0 %v47
  %125 = vmatprep.subr.mxu0 0.0
  %126 = vmatpush1.msra.mxu0 %v48
  %127 = vmatprep.subr.mxu0 0.0
  %128 = vmatpush1.msra.mxu0 %v49
  %129 = vmatprep.subr.mxu0 0.0
  %130 = vmatpush1.msra.mxu0 %v50
  %131 = vmatprep.subr.mxu0 0.0
  %132 = vmatpush1.msra.mxu0 %v51
  %133 = vmatprep.subr.mxu0 0.0
  %134 = vmatpush1.msra.mxu0 %v52
  %135 = vmatprep.mubr.f32.mxu0 %v68
  %136 = vmatmul.mubr.f32.gmra.mrb[0].mxu0 %v67
  %v137 = vpop.f32.mrb[0].mxu0
  %v138 = vadd.f32 %v58, %v137
  %v139 = vpop.f32.mrb[0].mxu0
  %140 = vdwg.mxu0
  %vm141 = vcmask 254976
  %v142 = vsel %vm141, %v138, 0.0
  %v143 = vrot.slane %v142, 4
  %v144 = vadd.f32 %v142, %v143
  %v145 = vrot.slane %v144, 2
  %v146 = vadd.f32 %v144, %v145
  %v147 = vrot.slane %v146, 1
  %v148 = vadd.f32 %v146, %v147
  %v149 = vrcp.pop 2.0
  %v150 = vmul.f32 %v148, %v149
  %v151 = vmul.f32 %v138, %v138
  %v152 = vsel %vm141, %v151, 0.0
  %v153 = vrot.slane %v152, 4
  %v154 = vadd.f32 %v152, %v153
  %v155 = vrot.slane %v154, 2
  %v156 = vadd.f32 %v154, %v155
  %v157 = vrot.slane %v156, 1
  %v158 = vadd.f32 %v156, %v157
  %v159 = vmul.f32 %v158, %v149
  %v160 = vmul.f32 %v150, %v150
  %v161 = vsub.f32 %v159, %v160
  %v162 = vsub.f32 %v138, %v150
  %v163 = vadd.f32 %v161, 1e-05
  %v164 = vrsqrt.pop %v163
  %v165 = vmul.f32 %v162, %v164
  %v166 = vld [vmem:[%s3] sm:$0x1]
  %v168 = vlaneseq
  %v169 = vshrl.u32 %v168, 7
  %v170 = vsub.s32 0, %v169
  %v171 = vrot.slane %v166, %v170
  %v173 = vmul.f32 %v165, %v171
  %v174 = vld [vmem:[%s4] sm:$0x1]
  %v176 = vlaneseq
  %v177 = vshrl.u32 %v176, 7
  %v178 = vsub.s32 0, %v177
  %v179 = vrot.slane %v174, %v178
  %v181 = vadd.f32 %v173, %v179
  %v182 = vmax.f32 %v181, 0.0
  %183 = vst.msk [vmem:[%s5] sm:$0x3] %vm141, %v182
  // Predicated region
  $region22: #{convnet_forward.10} parent=0 // pred_check
    _
  $region23: #{convnet_forward.10} parent=0 // pred_check_branch
    %185 = sbr.rel (0) target = $region25
  $region24: #{convnet_forward.10} parent=0 // pred_region
    _
  $region25: #{convnet_forward.10} parent=0 // pred_fallthru
    _
  // Predicated region
  $region26: #{convnet_forward.10} parent=0 // pred_check
    _
  $region27: #{convnet_forward.10} parent=0 // pred_check_branch
    %187 = sbr.rel (0) target = $region29
  $region28: #{convnet_forward.10} parent=0 // pred_region
    _
  $region29: #{convnet_forward.10} parent=0 // pred_fallthru
    _

// kernel: convnet_forward.9
$region0: #{convnet_forward.9}
  #allocation0 [shape = 'u32[]', space=smem, size = 0x4, offset = 0x4, fixed_abs, tag = 'smem constant byte address 0x4 - core index']
  #allocation1 [shape = 'u32[144,128]{1,0:T(1,128)}', space=vmem, size = 0x12000, scoped, tag = 'internal scratch']
  %s0 = inlined_call_operand.vmem [shape: f32[2,4096], index: 0, kind: input, shape index: {}]
  %s1 = inlined_call_operand.vmem [shape: f32[4096,256], index: 1, kind: input, shape index: {}]
  %s2 = inlined_call_operand.vmem [shape: f32[1,256], index: 2, kind: input, shape index: {}]
  %s3 = inlined_call_operand.vmem [shape: f32[1,256], index: 3, kind: input, shape index: {}]
  %s4 = inlined_call_operand.vmem [shape: f32[1,256], index: 4, kind: input, shape index: {}]
  %s5 = inlined_call_operand.vmem [shape: f32[2,256], index: 5, kind: output, shape index: {}]
  %s6 = sld [smem:[#allocation0]]
  $region30: #{convnet_forward.9} parent=0
    _
  %s8 = ssub.s32 1, %s6
  %s9 = scalar_select 0, %s8, %s6
  // Predicated region
  $region2: #{convnet_forward.9} parent=0 // pred_check
    _
  $region3: #{convnet_forward.9} parent=0 // pred_check_branch
    %11 = sbr.rel (0) target = $region5
  $region4: #{convnet_forward.9} parent=0 // pred_region
    _
  $region5: #{convnet_forward.9} parent=0 // pred_fallthru
    _
  // Predicated region
  $region6: #{convnet_forward.9} parent=0 // pred_check
    _
  $region7: #{convnet_forward.9} parent=0 // pred_check_branch
    %13 = sbr.rel (0) target = $region9
  $region8: #{convnet_forward.9} parent=0 // pred_region
    _
  $region9: #{convnet_forward.9} parent=0 // pred_fallthru
    _
  // Predicated region
  $region10: #{convnet_forward.9} parent=0 // pred_check
    _
  $region11: #{convnet_forward.9} parent=0 // pred_check_branch
    %15 = sbr.rel (0) target = $region13
  $region12: #{convnet_forward.9} parent=0 // pred_region
    _
  $region13: #{convnet_forward.9} parent=0 // pred_fallthru
    _
  // Predicated region
  $region14: #{convnet_forward.9} parent=0 // pred_check
    _
  $region15: #{convnet_forward.9} parent=0 // pred_check_branch
    %17 = sbr.rel (0) target = $region17
  $region16: #{convnet_forward.9} parent=0 // pred_region
    _
  $region17: #{convnet_forward.9} parent=0 // pred_fallthru
    _
  // Predicated region
  $region18: #{convnet_forward.9} parent=0 // pred_check
    _
  $region19: #{convnet_forward.9} parent=0 // pred_check_branch
    %19 = sbr.rel (0) target = $region21
  $region20: #{convnet_forward.9} parent=0 // pred_region
    _
  $region21: #{convnet_forward.9} parent=0 // pred_fallthru
    _
  %v20 = vld [vmem:[%s0] sm:$0xff]
  %v21 = vld [vmem:[%s0 + $0x8] sm:$0xff]
  %v22 = vld [vmem:[%s0 + $0x10] sm:$0xff]
  %v23 = vld [vmem:[%s0 + $0x18] sm:$0xff]
  %v24 = vld [vmem:[%s0 + $0x20] sm:$0xff]
  %v25 = vld [vmem:[%s0 + $0x28] sm:$0xff]
  %v26 = vld [vmem:[%s0 + $0x30] sm:$0xff]
  %v27 = vld [vmem:[%s0 + $0x38] sm:$0xff]
  %v28 = vld [vmem:[%s1] sm:$0xff]
  %v29 = vld [vmem:[%s1 + $0x8] sm:$0xff]
  %v30 = vld [vmem:[%s1 + $0x10] sm:$0xff]
  %v31 = vld [vmem:[%s1 + $0x18] sm:$0xff]
  %v32 = vld [vmem:[%s1 + $0x20] sm:$0xff]
  %v33 = vld [vmem:[%s1 + $0x28] sm:$0xff]
  %v34 = vld [vmem:[%s1 + $0x30] sm:$0xff]
  %v35 = vld [vmem:[%s1 + $0x38] sm:$0xff]
  %v36 = vld [vmem:[%s1 + $0x40] sm:$0xff]
  %v37 = vld [vmem:[%s1 + $0x48] sm:$0xff]
  %v38 = vld [vmem:[%s1 + $0x50] sm:$0xff]
  %v39 = vld [vmem:[%s1 + $0x58] sm:$0xff]
  %v40 = vld [vmem:[%s1 + $0x60] sm:$0xff]
  %v41 = vld [vmem:[%s1 + $0x68] sm:$0xff]
  %v42 = vld [vmem:[%s1 + $0x70] sm:$0xff]
  %v43 = vld [vmem:[%s1 + $0x78] sm:$0xff]
  %v44 = vld [vmem:[%s1 + $0x80] sm:$0xff]
  %v45 = vld [vmem:[%s1 + $0x88] sm:$0xff]
  %v46 = vld [vmem:[%s1 + $0x90] sm:$0xff]
  %v47 = vld [vmem:[%s1 + $0x98] sm:$0xff]
  %v48 = vld [vmem:[%s1 + $0xa0] sm:$0xff]
  %v49 = vld [vmem:[%s1 + $0xa8] sm:$0xff]
  %v50 = vld [vmem:[%s1 + $0xb0] sm:$0xff]
  %v51 = vld [vmem:[%s1 + $0xb8] sm:$0xff]
  %v52 = vld [vmem:[%s1 + $0xc0] sm:$0xff]
  %v53 = vld [vmem:[%s1 + $0xc8] sm:$0xff]
  %v54 = vld [vmem:[%s1 + $0xd0] sm:$0xff]
  %v55 = vld [vmem:[%s1 + $0xd8] sm:$0xff]
  %v56 = vld [vmem:[%s1 + $0xe0] sm:$0xff]
  %v57 = vld [vmem:[%s1 + $0xe8] sm:$0xff]
  %v58 = vld [vmem:[%s1 + $0xf0] sm:$0xff]
  %v59 = vld [vmem:[%s1 + $0xf8] sm:$0xff]
  %v60 = vld [vmem:[%s1 + $0x100] sm:$0xff]
  %v61 = vld [vmem:[%s1 + $0x108] sm:$0xff]
  %v62 = vld [vmem:[%s1 + $0x110] sm:$0xff]
  %v63 = vld [vmem:[%s1 + $0x118] sm:$0xff]
  %v64 = vld [vmem:[%s1 + $0x120] sm:$0xff]
  %v65 = vld [vmem:[%s1 + $0x128] sm:$0xff]
  %v66 = vld [vmem:[%s1 + $0x130] sm:$0xff]
  %v67 = vld [vmem:[%s1 + $0x138] sm:$0xff]
  %v68 = vld [vmem:[%s1 + $0x140] sm:$0xff]
  %v69 = vld [vmem:[%s1 + $0x148] sm:$0xff]
  %v70 = vld [vmem:[%s1 + $0x150] sm:$0xff]
  %v71 = vld [vmem:[%s1 + $0x158] sm:$0xff]
  %v72 = vld [vmem:[%s1 + $0x160] sm:$0xff]
  %v73 = vld [vmem:[%s1 + $0x168] sm:$0xff]
  %v74 = vld [vmem:[%s1 + $0x170] sm:$0xff]
  %v75 = vld [vmem:[%s1 + $0x178] sm:$0xff]
  %v76 = vld [vmem:[%s1 + $0x180] sm:$0xff]
  %v77 = vld [vmem:[%s1 + $0x188] sm:$0xff]
  %v78 = vld [vmem:[%s1 + $0x190] sm:$0xff]
  %v79 = vld [vmem:[%s1 + $0x198] sm:$0xff]
  %v80 = vld [vmem:[%s1 + $0x1a0] sm:$0xff]
  %v81 = vld [vmem:[%s1 + $0x1a8] sm:$0xff]
  %v82 = vld [vmem:[%s1 + $0x1b0] sm:$0xff]
  %v83 = vld [vmem:[%s1 + $0x1b8] sm:$0xff]
  %v84 = vld [vmem:[%s1 + $0x1c0] sm:$0xff]
  %v85 = vld [vmem:[%s1 + $0x1c8] sm:$0xff]
  %v86 = vld [vmem:[%s1 + $0x1d0] sm:$0xff]
  %v87 = vld [vmem:[%s1 + $0x1d8] sm:$0xff]
  %v88 = vld [vmem:[%s1 + $0x1e0] sm:$0xff]
  %v89 = vld [vmem:[%s1 + $0x1e8] sm:$0xff]
  %v90 = vld [vmem:[%s1 + $0x1f0] sm:$0xff]
  %v91 = vld [vmem:[%s1 + $0x1f8] sm:$0xff]
  %v92 = vld [vmem:[%s1 + $0x200] sm:$0xff]
  %v93 = vld [vmem:[%s1 + $0x208] sm:$0xff]
  %v94 = vld [vmem:[%s1 + $0x210] sm:$0xff]
  %v95 = vld [vmem:[%s1 + $0x218] sm:$0xff]
  %v96 = vld [vmem:[%s1 + $0x220] sm:$0xff]
  %v97 = vld [vmem:[%s1 + $0x228] sm:$0xff]
  %v98 = vld [vmem:[%s1 + $0x230] sm:$0xff]
  %v99 = vld [vmem:[%s1 + $0x238] sm:$0xff]
  %v100 = vld [vmem:[%s1 + $0x240] sm:$0xff]
  %v101 = vld [vmem:[%s1 + $0x248] sm:$0xff]
  %v102 = vld [vmem:[%s1 + $0x250] sm:$0xff]
  %v103 = vld [vmem:[%s1 + $0x258] sm:$0xff]
  %v104 = vld [vmem:[%s1 + $0x260] sm:$0xff]
  %v105 = vld [vmem:[%s1 + $0x268] sm:$0xff]
  %v106 = vld [vmem:[%s1 + $0x270] sm:$0xff]
  %v107 = vld [vmem:[%s1 + $0x278] sm:$0xff]
  %v108 = vld [vmem:[%s1 + $0x280] sm:$0xff]
  %v109 = vld [vmem:[%s1 + $0x288] sm:$0xff]
  %v110 = vld [vmem:[%s1 + $0x290] sm:$0xff]
  %v111 = vld [vmem:[%s1 + $0x298] sm:$0xff]
  %v112 = vld [vmem:[%s1 + $0x2a0] sm:$0xff]
  %v113 = vld [vmem:[%s1 + $0x2a8] sm:$0xff]
  %v114 = vld [vmem:[%s1 + $0x2b0] sm:$0xff]
  %v115 = vld [vmem:[%s1 + $0x2b8] sm:$0xff]
  %v116 = vld [vmem:[%s1 + $0x2c0] sm:$0xff]
  %v117 = vld [vmem:[%s1 + $0x2c8] sm:$0xff]
  %v118 = vld [vmem:[%s1 + $0x2d0] sm:$0xff]
  %v119 = vld [vmem:[%s1 + $0x2d8] sm:$0xff]
  %v120 = vld [vmem:[%s1 + $0x2e0] sm:$0xff]
  %v121 = vld [vmem:[%s1 + $0x2e8] sm:$0xff]
  %v122 = vld [vmem:[%s1 + $0x2f0] sm:$0xff]
  %v123 = vld [vmem:[%s1 + $0x2f8] sm:$0xff]
  %v124 = vld [vmem:[%s1 + $0x300] sm:$0xff]
  %v125 = vld [vmem:[%s1 + $0x308] sm:$0xff]
  %v126 = vld [vmem:[%s1 + $0x310] sm:$0xff]
  %v127 = vld [vmem:[%s1 + $0x318] sm:$0xff]
  %v128 = vld [vmem:[%s1 + $0x320] sm:$0xff]
  %v129 = vld [vmem:[%s1 + $0x328] sm:$0xff]
  %v130 = vld [vmem:[%s1 + $0x330] sm:$0xff]
  %v131 = vld [vmem:[%s1 + $0x338] sm:$0xff]
  %v132 = vld [vmem:[%s1 + $0x340] sm:$0xff]
  %v133 = vld [vmem:[%s1 + $0x348] sm:$0xff]
  %v134 = vld [vmem:[%s1 + $0x350] sm:$0xff]
  %v135 = vld [vmem:[%s1 + $0x358] sm:$0xff]
  %v136 = vld [vmem:[%s1 + $0x360] sm:$0xff]
  %v137 = vld [vmem:[%s1 + $0x368] sm:$0xff]
  %v138 = vld [vmem:[%s1 + $0x370] sm:$0xff]
  %v139 = vld [vmem:[%s1 + $0x378] sm:$0xff]
  %v140 = vld [vmem:[%s1 + $0x380] sm:$0xff]
  %v141 = vld [vmem:[%s1 + $0x388] sm:$0xff]
  %v142 = vld [vmem:[%s1 + $0x390] sm:$0xff]
  %v143 = vld [vmem:[%s1 + $0x398] sm:$0xff]
  %v144 = vld [vmem:[%s1 + $0x3a0] sm:$0xff]
  %v145 = vld [vmem:[%s1 + $0x3a8] sm:$0xff]
  %v146 = vld [vmem:[%s1 + $0x3b0] sm:$0xff]
  %v147 = vld [vmem:[%s1 + $0x3b8] sm:$0xff]
  %v148 = vld [vmem:[%s1 + $0x3c0] sm:$0xff]
  %v149 = vld [vmem:[%s1 + $0x3c8] sm:$0xff]
  %v150 = vld [vmem:[%s1 + $0x3d0] sm:$0xff]
  %v151 = vld [vmem:[%s1 + $0x3d8] sm:$0xff]
  %v152 = vld [vmem:[%s1 + $0x3e0] sm:$0xff]
  %v153 = vld [vmem:[%s1 + $0x3e8] sm:$0xff]
  %v154 = vld [vmem:[%s1 + $0x3f0] sm:$0xff]
  %v155 = vld [vmem:[%s1 + $0x3f8] sm:$0xff]
  %v156 = vld [vmem:[%s1 + $0x400] sm:$0xff]
  %v157 = vld [vmem:[%s1 + $0x408] sm:$0xff]
  %v158 = vld [vmem:[%s1 + $0x410] sm:$0xff]
  %v159 = vld [vmem:[%s1 + $0x418] sm:$0xff]
  %v160 = vld [vmem:[%s1 + $0x420] sm:$0xff]
  %v161 = vld [vmem:[%s1 + $0x428] sm:$0xff]
  %v162 = vld [vmem:[%s1 + $0x430] sm:$0xff]
  %v163 = vld [vmem:[%s1 + $0x438] sm:$0xff]
  %v164 = vld [vmem:[%s1 + $0x440] sm:$0xff]
  %v165 = vld [vmem:[%s1 + $0x448] sm:$0xff]
  %v166 = vld [vmem:[%s1 + $0x450] sm:$0xff]
  %v167 = vld [vmem:[%s1 + $0x458] sm:$0xff]
  %v168 = vld [vmem:[%s1 + $0x460] sm:$0xff]
  %v169 = vld [vmem:[%s1 + $0x468] sm:$0xff]
  %v170 = vld [vmem:[%s1 + $0x470] sm:$0xff]
  %v171 = vld [vmem:[%s1 + $0x478] sm:$0xff]
  %v172 = vld [vmem:[%s1 + $0x480] sm:$0xff]
  %v173 = vld [vmem:[%s1 + $0x488] sm:$0xff]
  %v174 = vld [vmem:[%s1 + $0x490] sm:$0xff]
  %v175 = vld [vmem:[%s1 + $0x498] sm:$0xff]
  %v176 = vld [vmem:[%s1 + $0x4a0] sm:$0xff]
  %v177 = vld [vmem:[%s1 + $0x4a8] sm:$0xff]
  %v178 = vld [vmem:[%s1 + $0x4b0] sm:$0xff]
  %v179 = vld [vmem:[%s1 + $0x4b8] sm:$0xff]
  %v180 = vld [vmem:[%s1 + $0x4c0] sm:$0xff]
  %v181 = vld [vmem:[%s1 + $0x4c8] sm:$0xff]
  %v182 = vld [vmem:[%s1 + $0x4d0] sm:$0xff]
  %v183 = vld [vmem:[%s1 + $0x4d8] sm:$0xff]
  %v184 = vld [vmem:[%s1 + $0x4e0] sm:$0xff]
  %v185 = vld [vmem:[%s1 + $0x4e8] sm:$0xff]
  %v186 = vld [vmem:[%s1 + $0x4f0] sm:$0xff]
  %v187 = vld [vmem:[%s1 + $0x4f8] sm:$0xff]
  %v188 = vld [vmem:[%s1 + $0x500] sm:$0xff]
  %v189 = vld [vmem:[%s1 + $0x508] sm:$0xff]
  %v190 = vld [vmem:[%s1 + $0x510] sm:$0xff]
  %v191 = vld [vmem:[%s1 + $0x518] sm:$0xff]
  %v192 = vld [vmem:[%s1 + $0x520] sm:$0xff]
  %v193 = vld [vmem:[%s1 + $0x528] sm:$0xff]
  %v194 = vld [vmem:[%s1 + $0x530] sm:$0xff]
  %v195 = vld [vmem:[%s1 + $0x538] sm:$0xff]
  %v196 = vld [vmem:[%s1 + $0x540] sm:$0xff]
  %v197 = vld [vmem:[%s1 + $0x548] sm:$0xff]
  %v198 = vld [vmem:[%s1 + $0x550] sm:$0xff]
  %v199 = vld [vmem:[%s1 + $0x558] sm:$0xff]
  %v200 = vld [vmem:[%s1 + $0x560] sm:$0xff]
  %v201 = vld [vmem:[%s1 + $0x568] sm:$0xff]
  %v202 = vld [vmem:[%s1 + $0x570] sm:$0xff]
  %v203 = vld [vmem:[%s1 + $0x578] sm:$0xff]
  %v204 = vld [vmem:[%s1 + $0x580] sm:$0xff]
  %v205 = vld [vmem:[%s1 + $0x588] sm:$0xff]
  %v206 = vld [vmem:[%s1 + $0x590] sm:$0xff]
  %v207 = vld [vmem:[%s1 + $0x598] sm:$0xff]
  %v208 = vld [vmem:[%s1 + $0x5a0] sm:$0xff]
  %v209 = vld [vmem:[%s1 + $0x5a8] sm:$0xff]
  %v210 = vld [vmem:[%s1 + $0x5b0] sm:$0xff]
  %v211 = vld [vmem:[%s1 + $0x5b8] sm:$0xff]
  %v212 = vld [vmem:[%s1 + $0x5c0] sm:$0xff]
  %v213 = vld [vmem:[%s1 + $0x5c8] sm:$0xff]
  %v214 = vld [vmem:[%s1 + $0x5d0] sm:$0xff]
  %v215 = vld [vmem:[%s1 + $0x5d8] sm:$0xff]
  %v216 = vld [vmem:[%s1 + $0x5e0] sm:$0xff]
  %v217 = vld [vmem:[%s1 + $0x5e8] sm:$0xff]
  %v218 = vld [vmem:[%s1 + $0x5f0] sm:$0xff]
  %v219 = vld [vmem:[%s1 + $0x5f8] sm:$0xff]
  %v220 = vld [vmem:[%s1 + $0x600] sm:$0xff]
  %v221 = vld [vmem:[%s1 + $0x608] sm:$0xff]
  %v222 = vld [vmem:[%s1 + $0x610] sm:$0xff]
  %v223 = vld [vmem:[%s1 + $0x618] sm:$0xff]
  %v224 = vld [vmem:[%s1 + $0x620] sm:$0xff]
  %v225 = vld [vmem:[%s1 + $0x628] sm:$0xff]
  %v226 = vld [vmem:[%s1 + $0x630] sm:$0xff]
  %v227 = vld [vmem:[%s1 + $0x638] sm:$0xff]
  %v228 = vld [vmem:[%s1 + $0x640] sm:$0xff]
  %v229 = vld [vmem:[%s1 + $0x648] sm:$0xff]
  %v230 = vld [vmem:[%s1 + $0x650] sm:$0xff]
  %v231 = vld [vmem:[%s1 + $0x658] sm:$0xff]
  %v232 = vld [vmem:[%s1 + $0x660] sm:$0xff]
  %v233 = vld [vmem:[%s1 + $0x668] sm:$0xff]
  %v234 = vld [vmem:[%s1 + $0x670] sm:$0xff]
  %v235 = vld [vmem:[%s1 + $0x678] sm:$0xff]
  %v236 = vld [vmem:[%s1 + $0x680] sm:$0xff]
  %v237 = vld [vmem:[%s1 + $0x688] sm:$0xff]
  %v238 = vld [vmem:[%s1 + $0x690] sm:$0xff]
  %v239 = vld [vmem:[%s1 + $0x698] sm:$0xff]
  %v240 = vld [vmem:[%s1 + $0x6a0] sm:$0xff]
  %v241 = vld [vmem:[%s1 + $0x6a8] sm:$0xff]
  %v242 = vld [vmem:[%s1 + $0x6b0] sm:$0xff]
  %v243 = vld [vmem:[%s1 + $0x6b8] sm:$0xff]
  %v244 = vld [vmem:[%s1 + $0x6c0] sm:$0xff]
  %v245 = vld [vmem:[%s1 + $0x6c8] sm:$0xff]
  %v246 = vld [vmem:[%s1 + $0x6d0] sm:$0xff]
  %v247 = vld [vmem:[%s1 + $0x6d8] sm:$0xff]
  %v248 = vld [vmem:[%s1 + $0x6e0] sm:$0xff]
  %v249 = vld [vmem:[%s1 + $0x6e8] sm:$0xff]
  %v250 = vld [vmem:[%s1 + $0x6f0] sm:$0xff]
  %v251 = vld [vmem:[%s1 + $0x6f8] sm:$0xff]
  %v252 = vld [vmem:[%s1 + $0x700] sm:$0xff]
  %v253 = vld [vmem:[%s1 + $0x708] sm:$0xff]
  %v254 = vld [vmem:[%s1 + $0x710] sm:$0xff]
  %v255 = vld [vmem:[%s1 + $0x718] sm:$0xff]
  %v256 = vld [vmem:[%s1 + $0x720] sm:$0xff]
  %v257 = vld [vmem:[%s1 + $0x728] sm:$0xff]
  %v258 = vld [vmem:[%s1 + $0x730] sm:$0xff]
  %v259 = vld [vmem:[%s1 + $0x738] sm:$0xff]
  %v260 = vld [vmem:[%s1 + $0x740] sm:$0xff]
  %v261 = vld [vmem:[%s1 + $0x748] sm:$0xff]
  %v262 = vld [vmem:[%s1 + $0x750] sm:$0xff]
  %v263 = vld [vmem:[%s1 + $0x758] sm:$0xff]
  %v264 = vld [vmem:[%s1 + $0x760] sm:$0xff]
  %v265 = vld [vmem:[%s1 + $0x768] sm:$0xff]
  %v266 = vld [vmem:[%s1 + $0x770] sm:$0xff]
  %v267 = vld [vmem:[%s1 + $0x778] sm:$0xff]
  %v268 = vld [vmem:[%s1 + $0x780] sm:$0xff]
  %v269 = vld [vmem:[%s1 + $0x788] sm:$0xff]
  %v270 = vld [vmem:[%s1 + $0x790] sm:$0xff]
  %v271 = vld [vmem:[%s1 + $0x798] sm:$0xff]
  %v272 = vld [vmem:[%s1 + $0x7a0] sm:$0xff]
  %v273 = vld [vmem:[%s1 + $0x7a8] sm:$0xff]
  %v274 = vld [vmem:[%s1 + $0x7b0] sm:$0xff]
  %v275 = vld [vmem:[%s1 + $0x7b8] sm:$0xff]
  %v276 = vld [vmem:[%s1 + $0x7c0] sm:$0xff]
  %v277 = vld [vmem:[%s1 + $0x7c8] sm:$0xff]
  %v278 = vld [vmem:[%s1 + $0x7d0] sm:$0xff]
  %v279 = vld [vmem:[%s1 + $0x7d8] sm:$0xff]
  %v280 = vld [vmem:[%s1 + $0x7e0] sm:$0xff]
  %v281 = vld [vmem:[%s1 + $0x7e8] sm:$0xff]
  %v282 = vld [vmem:[%s1 + $0x7f0] sm:$0xff]
  %v283 = vld [vmem:[%s1 + $0x7f8] sm:$0xff]
  %v284 = vld [vmem:[%s1 + $0x800] sm:$0xff]
  %v285 = vld [vmem:[%s1 + $0x808] sm:$0xff]
  %v286 = vld [vmem:[%s1 + $0x810] sm:$0xff]
  %v287 = vld [vmem:[%s1 + $0x818] sm:$0xff]
  %v288 = vld [vmem:[%s1 + $0x820] sm:$0xff]
  %v289 = vld [vmem:[%s1 + $0x828] sm:$0xff]
  %v290 = vld [vmem:[%s1 + $0x830] sm:$0xff]
  %v291 = vld [vmem:[%s1 + $0x838] sm:$0xff]
  %v292 = vld [vmem:[%s1 + $0x840] sm:$0xff]
  %v293 = vld [vmem:[%s1 + $0x848] sm:$0xff]
  %v294 = vld [vmem:[%s1 + $0x850] sm:$0xff]
  %v295 = vld [vmem:[%s1 + $0x858] sm:$0xff]
  %v296 = vld [vmem:[%s1 + $0x860] sm:$0xff]
  %v297 = vld [vmem:[%s1 + $0x868] sm:$0xff]
  %v298 = vld [vmem:[%s1 + $0x870] sm:$0xff]
  %v299 = vld [vmem:[%s1 + $0x878] sm:$0xff]
  %v300 = vld [vmem:[%s1 + $0x880] sm:$0xff]
  %v301 = vld [vmem:[%s1 + $0x888] sm:$0xff]
  %v302 = vld [vmem:[%s1 + $0x890] sm:$0xff]
  %v303 = vld [vmem:[%s1 + $0x898] sm:$0xff]
  %v304 = vld [vmem:[%s1 + $0x8a0] sm:$0xff]
  %v305 = vld [vmem:[%s1 + $0x8a8] sm:$0xff]
  %v306 = vld [vmem:[%s1 + $0x8b0] sm:$0xff]
  %v307 = vld [vmem:[%s1 + $0x8b8] sm:$0xff]
  %v308 = vld [vmem:[%s1 + $0x8c0] sm:$0xff]
  %v309 = vld [vmem:[%s1 + $0x8c8] sm:$0xff]
  %v310 = vld [vmem:[%s1 + $0x8d0] sm:$0xff]
  %v311 = vld [vmem:[%s1 + $0x8d8] sm:$0xff]
  %v312 = vld [vmem:[%s1 + $0x8e0] sm:$0xff]
  %v313 = vld [vmem:[%s1 + $0x8e8] sm:$0xff]
  %v314 = vld [vmem:[%s1 + $0x8f0] sm:$0xff]
  %v315 = vld [vmem:[%s1 + $0x8f8] sm:$0xff]
  %v316 = vld [vmem:[%s1 + $0x900] sm:$0xff]
  %v317 = vld [vmem:[%s1 + $0x908] sm:$0xff]
  %v318 = vld [vmem:[%s1 + $0x910] sm:$0xff]
  %v319 = vld [vmem:[%s1 + $0x918] sm:$0xff]
  %v320 = vld [vmem:[%s1 + $0x920] sm:$0xff]
  %v321 = vld [vmem:[%s1 + $0x928] sm:$0xff]
  %v322 = vld [vmem:[%s1 + $0x930] sm:$0xff]
  %v323 = vld [vmem:[%s1 + $0x938] sm:$0xff]
  %v324 = vld [vmem:[%s1 + $0x940] sm:$0xff]
  %v325 = vld [vmem:[%s1 + $0x948] sm:$0xff]
  %v326 = vld [vmem:[%s1 + $0x950] sm:$0xff]
  %v327 = vld [vmem:[%s1 + $0x958] sm:$0xff]
  %v328 = vld [vmem:[%s1 + $0x960] sm:$0xff]
  %v329 = vld [vmem:[%s1 + $0x968] sm:$0xff]
  %v330 = vld [vmem:[%s1 + $0x970] sm:$0xff]
  %v331 = vld [vmem:[%s1 + $0x978] sm:$0xff]
  %v332 = vld [vmem:[%s1 + $0x980] sm:$0xff]
  %v333 = vld [vmem:[%s1 + $0x988] sm:$0xff]
  %v334 = vld [vmem:[%s1 + $0x990] sm:$0xff]
  %v335 = vld [vmem:[%s1 + $0x998] sm:$0xff]
  %v336 = vld [vmem:[%s1 + $0x9a0] sm:$0xff]
  %v337 = vld [vmem:[%s1 + $0x9a8] sm:$0xff]
  %v338 = vld [vmem:[%s1 + $0x9b0] sm:$0xff]
  %v339 = vld [vmem:[%s1 + $0x9b8] sm:$0xff]
  %v340 = vld [vmem:[%s1 + $0x9c0] sm:$0xff]
  %v341 = vld [vmem:[%s1 + $0x9c8] sm:$0xff]
  %v342 = vld [vmem:[%s1 + $0x9d0] sm:$0xff]
  %v343 = vld [vmem:[%s1 + $0x9d8] sm:$0xff]
  %v344 = vld [vmem:[%s1 + $0x9e0] sm:$0xff]
  %v345 = vld [vmem:[%s1 + $0x9e8] sm:$0xff]
  %v346 = vld [vmem:[%s1 + $0x9f0] sm:$0xff]
  %v347 = vld [vmem:[%s1 + $0x9f8] sm:$0xff]
  %v348 = vld [vmem:[%s1 + $0xa00] sm:$0xff]
  %v349 = vld [vmem:[%s1 + $0xa08] sm:$0xff]
  %v350 = vld [vmem:[%s1 + $0xa10] sm:$0xff]
  %v351 = vld [vmem:[%s1 + $0xa18] sm:$0xff]
  %v352 = vld [vmem:[%s1 + $0xa20] sm:$0xff]
  %v353 = vld [vmem:[%s1 + $0xa28] sm:$0xff]
  %v354 = vld [vmem:[%s1 + $0xa30] sm:$0xff]
  %v355 = vld [vmem:[%s1 + $0xa38] sm:$0xff]
  %v356 = vld [vmem:[%s1 + $0xa40] sm:$0xff]
  %v357 = vld [vmem:[%s1 + $0xa48] sm:$0xff]
  %v358 = vld [vmem:[%s1 + $0xa50] sm:$0xff]
  %v359 = vld [vmem:[%s1 + $0xa58] sm:$0xff]
  %v360 = vld [vmem:[%s1 + $0xa60] sm:$0xff]
  %v361 = vld [vmem:[%s1 + $0xa68] sm:$0xff]
  %v362 = vld [vmem:[%s1 + $0xa70] sm:$0xff]
  %v363 = vld [vmem:[%s1 + $0xa78] sm:$0xff]
  %v364 = vld [vmem:[%s1 + $0xa80] sm:$0xff]
  %v365 = vld [vmem:[%s1 + $0xa88] sm:$0xff]
  %v366 = vld [vmem:[%s1 + $0xa90] sm:$0xff]
  %v367 = vld [vmem:[%s1 + $0xa98] sm:$0xff]
  %v368 = vld [vmem:[%s1 + $0xaa0] sm:$0xff]
  %v369 = vld [vmem:[%s1 + $0xaa8] sm:$0xff]
  %v370 = vld [vmem:[%s1 + $0xab0] sm:$0xff]
  %v371 = vld [vmem:[%s1 + $0xab8] sm:$0xff]
  %v372 = vld [vmem:[%s1 + $0xac0] sm:$0xff]
  %v373 = vld [vmem:[%s1 + $0xac8] sm:$0xff]
  %v374 = vld [vmem:[%s1 + $0xad0] sm:$0xff]
  %v375 = vld [vmem:[%s1 + $0xad8] sm:$0xff]
  %v376 = vld [vmem:[%s1 + $0xae0] sm:$0xff]
  %v377 = vld [vmem:[%s1 + $0xae8] sm:$0xff]
  %v378 = vld [vmem:[%s1 + $0xaf0] sm:$0xff]
  %v379 = vld [vmem:[%s1 + $0xaf8] sm:$0xff]
  %v380 = vld [vmem:[%s1 + $0xb00] sm:$0xff]
  %v381 = vld [vmem:[%s1 + $0xb08] sm:$0xff]
  %v382 = vld [vmem:[%s1 + $0xb10] sm:$0xff]
  %v383 = vld [vmem:[%s1 + $0xb18] sm:$0xff]
  %v384 = vld [vmem:[%s1 + $0xb20] sm:$0xff]
  %v385 = vld [vmem:[%s1 + $0xb28] sm:$0xff]
  %v386 = vld [vmem:[%s1 + $0xb30] sm:$0xff]
  %v387 = vld [vmem:[%s1 + $0xb38] sm:$0xff]
  %v388 = vld [vmem:[%s1 + $0xb40] sm:$0xff]
  %v389 = vld [vmem:[%s1 + $0xb48] sm:$0xff]
  %v390 = vld [vmem:[%s1 + $0xb50] sm:$0xff]
  %v391 = vld [vmem:[%s1 + $0xb58] sm:$0xff]
  %v392 = vld [vmem:[%s1 + $0xb60] sm:$0xff]
  %v393 = vld [vmem:[%s1 + $0xb68] sm:$0xff]
  %v394 = vld [vmem:[%s1 + $0xb70] sm:$0xff]
  %v395 = vld [vmem:[%s1 + $0xb78] sm:$0xff]
  %v396 = vld [vmem:[%s1 + $0xb80] sm:$0xff]
  %v397 = vld [vmem:[%s1 + $0xb88] sm:$0xff]
  %v398 = vld [vmem:[%s1 + $0xb90] sm:$0xff]
  %v399 = vld [vmem:[%s1 + $0xb98] sm:$0xff]
  %v400 = vld [vmem:[%s1 + $0xba0] sm:$0xff]
  %v401 = vld [vmem:[%s1 + $0xba8] sm:$0xff]
  %v402 = vld [vmem:[%s1 + $0xbb0] sm:$0xff]
  %v403 = vld [vmem:[%s1 + $0xbb8] sm:$0xff]
  %v404 = vld [vmem:[%s1 + $0xbc0] sm:$0xff]
  %v405 = vld [vmem:[%s1 + $0xbc8] sm:$0xff]
  %v406 = vld [vmem:[%s1 + $0xbd0] sm:$0xff]
  %v407 = vld [vmem:[%s1 + $0xbd8] sm:$0xff]
  %v408 = vld [vmem:[%s1 + $0xbe0] sm:$0xff]
  %v409 = vld [vmem:[%s1 + $0xbe8] sm:$0xff]
  %v410 = vld [vmem:[%s1 + $0xbf0] sm:$0xff]
  %v411 = vld [vmem:[%s1 + $0xbf8] sm:$0xff]
  %v412 = vld [vmem:[%s1 + $0xc00] sm:$0xff]
  %v413 = vld [vmem:[%s1 + $0xc08] sm:$0xff]
  %v414 = vld [vmem:[%s1 + $0xc10] sm:$0xff]
  %v415 = vld [vmem:[%s1 + $0xc18] sm:$0xff]
  %v416 = vld [vmem:[%s1 + $0xc20] sm:$0xff]
  %v417 = vld [vmem:[%s1 + $0xc28] sm:$0xff]
  %v418 = vld [vmem:[%s1 + $0xc30] sm:$0xff]
  %v419 = vld [vmem:[%s1 + $0xc38] sm:$0xff]
  %v420 = vld [vmem:[%s1 + $0xc40] sm:$0xff]
  %v421 = vld [vmem:[%s1 + $0xc48] sm:$0xff]
  %v422 = vld [vmem:[%s1 + $0xc50] sm:$0xff]
  %v423 = vld [vmem:[%s1 + $0xc58] sm:$0xff]
  %v424 = vld [vmem:[%s1 + $0xc60] sm:$0xff]
  %v425 = vld [vmem:[%s1 + $0xc68] sm:$0xff]
  %v426 = vld [vmem:[%s1 + $0xc70] sm:$0xff]
  %v427 = vld [vmem:[%s1 + $0xc78] sm:$0xff]
  %v428 = vld [vmem:[%s1 + $0xc80] sm:$0xff]
  %v429 = vld [vmem:[%s1 + $0xc88] sm:$0xff]
  %v430 = vld [vmem:[%s1 + $0xc90] sm:$0xff]
  %v431 = vld [vmem:[%s1 + $0xc98] sm:$0xff]
  %v432 = vld [vmem:[%s1 + $0xca0] sm:$0xff]
  %v433 = vld [vmem:[%s1 + $0xca8] sm:$0xff]
  %v434 = vld [vmem:[%s1 + $0xcb0] sm:$0xff]
  %v435 = vld [vmem:[%s1 + $0xcb8] sm:$0xff]
  %v436 = vld [vmem:[%s1 + $0xcc0] sm:$0xff]
  %v437 = vld [vmem:[%s1 + $0xcc8] sm:$0xff]
  %v438 = vld [vmem:[%s1 + $0xcd0] sm:$0xff]
  %v439 = vld [vmem:[%s1 + $0xcd8] sm:$0xff]
  %v440 = vld [vmem:[%s1 + $0xce0] sm:$0xff]
  %v441 = vld [vmem:[%s1 + $0xce8] sm:$0xff]
  %v442 = vld [vmem:[%s1 + $0xcf0] sm:$0xff]
  %v443 = vld [vmem:[%s1 + $0xcf8] sm:$0xff]
  %v444 = vld [vmem:[%s1 + $0xd00] sm:$0xff]
  %v445 = vld [vmem:[%s1 + $0xd08] sm:$0xff]
  %v446 = vld [vmem:[%s1 + $0xd10] sm:$0xff]
  %v447 = vld [vmem:[%s1 + $0xd18] sm:$0xff]
  %v448 = vld [vmem:[%s1 + $0xd20] sm:$0xff]
  %v449 = vld [vmem:[%s1 + $0xd28] sm:$0xff]
  %v450 = vld [vmem:[%s1 + $0xd30] sm:$0xff]
  %v451 = vld [vmem:[%s1 + $0xd38] sm:$0xff]
  %v452 = vld [vmem:[%s1 + $0xd40] sm:$0xff]
  %v453 = vld [vmem:[%s1 + $0xd48] sm:$0xff]
  %v454 = vld [vmem:[%s1 + $0xd50] sm:$0xff]
  %v455 = vld [vmem:[%s1 + $0xd58] sm:$0xff]
  %v456 = vld [vmem:[%s1 + $0xd60] sm:$0xff]
  %v457 = vld [vmem:[%s1 + $0xd68] sm:$0xff]
  %v458 = vld [vmem:[%s1 + $0xd70] sm:$0xff]
  %v459 = vld [vmem:[%s1 + $0xd78] sm:$0xff]
  %v460 = vld [vmem:[%s1 + $0xd80] sm:$0xff]
  %v461 = vld [vmem:[%s1 + $0xd88] sm:$0xff]
  %v462 = vld [vmem:[%s1 + $0xd90] sm:$0xff]
  %v463 = vld [vmem:[%s1 + $0xd98] sm:$0xff]
  %v464 = vld [vmem:[%s1 + $0xda0] sm:$0xff]
  %v465 = vld [vmem:[%s1 + $0xda8] sm:$0xff]
  %v466 = vld [vmem:[%s1 + $0xdb0] sm:$0xff]
  %v467 = vld [vmem:[%s1 + $0xdb8] sm:$0xff]
  %v468 = vld [vmem:[%s1 + $0xdc0] sm:$0xff]
  %v469 = vld [vmem:[%s1 + $0xdc8] sm:$0xff]
  %v470 = vld [vmem:[%s1 + $0xdd0] sm:$0xff]
  %v471 = vld [vmem:[%s1 + $0xdd8] sm:$0xff]
  %v472 = vld [vmem:[%s1 + $0xde0] sm:$0xff]
  %v473 = vld [vmem:[%s1 + $0xde8] sm:$0xff]
  %v474 = vld [vmem:[%s1 + $0xdf0] sm:$0xff]
  %v475 = vld [vmem:[%s1 + $0xdf8] sm:$0xff]
  %v476 = vld [vmem:[%s1 + $0xe00] sm:$0xff]
  %v477 = vld [vmem:[%s1 + $0xe08] sm:$0xff]
  %v478 = vld [vmem:[%s1 + $0xe10] sm:$0xff]
  %v479 = vld [vmem:[%s1 + $0xe18] sm:$0xff]
  %v480 = vld [vmem:[%s1 + $0xe20] sm:$0xff]
  %v481 = vld [vmem:[%s1 + $0xe28] sm:$0xff]
  %v482 = vld [vmem:[%s1 + $0xe30] sm:$0xff]
  %v483 = vld [vmem:[%s1 + $0xe38] sm:$0xff]
  %v484 = vld [vmem:[%s1 + $0xe40] sm:$0xff]
  %v485 = vld [vmem:[%s1 + $0xe48] sm:$0xff]
  %v486 = vld [vmem:[%s1 + $0xe50] sm:$0xff]
  %v487 = vld [vmem:[%s1 + $0xe58] sm:$0xff]
  %v488 = vld [vmem:[%s1 + $0xe60] sm:$0xff]
  %v489 = vld [vmem:[%s1 + $0xe68] sm:$0xff]
  %v490 = vld [vmem:[%s1 + $0xe70] sm:$0xff]
  %v491 = vld [vmem:[%s1 + $0xe78] sm:$0xff]
  %v492 = vld [vmem:[%s1 + $0xe80] sm:$0xff]
  %v493 = vld [vmem:[%s1 + $0xe88] sm:$0xff]
  %v494 = vld [vmem:[%s1 + $0xe90] sm:$0xff]
  %v495 = vld [vmem:[%s1 + $0xe98] sm:$0xff]
  %v496 = vld [vmem:[%s1 + $0xea0] sm:$0xff]
  %v497 = vld [vmem:[%s1 + $0xea8] sm:$0xff]
  %v498 = vld [vmem:[%s1 + $0xeb0] sm:$0xff]
  %v499 = vld [vmem:[%s1 + $0xeb8] sm:$0xff]
  %v500 = vld [vmem:[%s1 + $0xec0] sm:$0xff]
  %v501 = vld [vmem:[%s1 + $0xec8] sm:$0xff]
  %v502 = vld [vmem:[%s1 + $0xed0] sm:$0xff]
  %v503 = vld [vmem:[%s1 + $0xed8] sm:$0xff]
  %v504 = vld [vmem:[%s1 + $0xee0] sm:$0xff]
  %v505 = vld [vmem:[%s1 + $0xee8] sm:$0xff]
  %v506 = vld [vmem:[%s1 + $0xef0] sm:$0xff]
  %v507 = vld [vmem:[%s1 + $0xef8] sm:$0xff]
  %v508 = vld [vmem:[%s1 + $0xf00] sm:$0xff]
  %v509 = vld [vmem:[%s1 + $0xf08] sm:$0xff]
  %v510 = vld [vmem:[%s1 + $0xf10] sm:$0xff]
  %v511 = vld [vmem:[%s1 + $0xf18] sm:$0xff]
  %v512 = vld [vmem:[%s1 + $0xf20] sm:$0xff]
  %v513 = vld [vmem:[%s1 + $0xf28] sm:$0xff]
  %v514 = vld [vmem:[%s1 + $0xf30] sm:$0xff]
  %v515 = vld [vmem:[%s1 + $0xf38] sm:$0xff]
  %v516 = vld [vmem:[%s1 + $0xf40] sm:$0xff]
  %v517 = vld [vmem:[%s1 + $0xf48] sm:$0xff]
  %v518 = vld [vmem:[%s1 + $0xf50] sm:$0xff]
  %v519 = vld [vmem:[%s1 + $0xf58] sm:$0xff]
  %v520 = vld [vmem:[%s1 + $0xf60] sm:$0xff]
  %v521 = vld [vmem:[%s1 + $0xf68] sm:$0xff]
  %v522 = vld [vmem:[%s1 + $0xf70] sm:$0xff]
  %v523 = vld [vmem:[%s1 + $0xf78] sm:$0xff]
  %v524 = vld [vmem:[%s1 + $0xf80] sm:$0xff]
  %v525 = vld [vmem:[%s1 + $0xf88] sm:$0xff]
  %v526 = vld [vmem:[%s1 + $0xf90] sm:$0xff]
  %v527 = vld [vmem:[%s1 + $0xf98] sm:$0xff]
  %v528 = vld [vmem:[%s1 + $0xfa0] sm:$0xff]
  %v529 = vld [vmem:[%s1 + $0xfa8] sm:$0xff]
  %v530 = vld [vmem:[%s1 + $0xfb0] sm:$0xff]
  %v531 = vld [vmem:[%s1 + $0xfb8] sm:$0xff]
  %v532 = vld [vmem:[%s1 + $0xfc0] sm:$0xff]
  %v533 = vld [vmem:[%s1 + $0xfc8] sm:$0xff]
  %v534 = vld [vmem:[%s1 + $0xfd0] sm:$0xff]
  %v535 = vld [vmem:[%s1 + $0xfd8] sm:$0xff]
  %v536 = vld [vmem:[%s1 + $0xfe0] sm:$0xff]
  %v537 = vld [vmem:[%s1 + $0xfe8] sm:$0xff]
  %v538 = vld [vmem:[%s1 + $0xff0] sm:$0xff]
  %v539 = vld [vmem:[%s1 + $0xff8] sm:$0xff]
  %v540 = vld [vmem:[%s1 + $0x1000] sm:$0xff]
  %v541 = vld [vmem:[%s1 + $0x1008] sm:$0xff]
  %v542 = vld [vmem:[%s1 + $0x1010] sm:$0xff]
  %v543 = vld [vmem:[%s1 + $0x1018] sm:$0xff]
  %v544 = vld [vmem:[%s1 + $0x1020] sm:$0xff]
  %v545 = vld [vmem:[%s1 + $0x1028] sm:$0xff]
  %v546 = vld [vmem:[%s1 + $0x1030] sm:$0xff]
  %v547 = vld [vmem:[%s1 + $0x1038] sm:$0xff]
  %v548 = vld [vmem:[%s1 + $0x1040] sm:$0xff]
  %v549 = vld [vmem:[%s1 + $0x1048] sm:$0xff]
  %v550 = vld [vmem:[%s1 + $0x1050] sm:$0xff]
  %v551 = vld [vmem:[%s1 + $0x1058] sm:$0xff]
  %v552 = vld [vmem:[%s1 + $0x1060] sm:$0xff]
  %v553 = vld [vmem:[%s1 + $0x1068] sm:$0xff]
  %v554 = vld [vmem:[%s1 + $0x1070] sm:$0xff]
  %v555 = vld [vmem:[%s1 + $0x1078] sm:$0xff]
  %v556 = vld [vmem:[%s1 + $0x1080] sm:$0xff]
  %v557 = vld [vmem:[%s1 + $0x1088] sm:$0xff]
  %v558 = vld [vmem:[%s1 + $0x1090] sm:$0xff]
  %v559 = vld [vmem:[%s1 + $0x1098] sm:$0xff]
  %v560 = vld [vmem:[%s1 + $0x10a0] sm:$0xff]
  %v561 = vld [vmem:[%s1 + $0x10a8] sm:$0xff]
  %v562 = vld [vmem:[%s1 + $0x10b0] sm:$0xff]
  %v563 = vld [vmem:[%s1 + $0x10b8] sm:$0xff]
  %v564 = vld [vmem:[%s1 + $0x10c0] sm:$0xff]
  %v565 = vld [vmem:[%s1 + $0x10c8] sm:$0xff]
  %v566 = vld [vmem:[%s1 + $0x10d0] sm:$0xff]
  %v567 = vld [vmem:[%s1 + $0x10d8] sm:$0xff]
  %v568 = vld [vmem:[%s1 + $0x10e0] sm:$0xff]
  %v569 = vld [vmem:[%s1 + $0x10e8] sm:$0xff]
  %v570 = vld [vmem:[%s1 + $0x10f0] sm:$0xff]
  %v571 = vld [vmem:[%s1 + $0x10f8] sm:$0xff]
  %v572 = vld [vmem:[%s1 + $0x1100] sm:$0xff]
  %v573 = vld [vmem:[%s1 + $0x1108] sm:$0xff]
  %v574 = vld [vmem:[%s1 + $0x1110] sm:$0xff]
  %v575 = vld [vmem:[%s1 + $0x1118] sm:$0xff]
  %v576 = vld [vmem:[%s1 + $0x1120] sm:$0xff]
  %v577 = vld [vmem:[%s1 + $0x1128] sm:$0xff]
  %v578 = vld [vmem:[%s1 + $0x1130] sm:$0xff]
  %v579 = vld [vmem:[%s1 + $0x1138] sm:$0xff]
  %v580 = vld [vmem:[%s1 + $0x1140] sm:$0xff]
  %v581 = vld [vmem:[%s1 + $0x1148] sm:$0xff]
  %v582 = vld [vmem:[%s1 + $0x1150] sm:$0xff]
  %v583 = vld [vmem:[%s1 + $0x1158] sm:$0xff]
  %v584 = vld [vmem:[%s1 + $0x1160] sm:$0xff]
  %v585 = vld [vmem:[%s1 + $0x1168] sm:$0xff]
  %v586 = vld [vmem:[%s1 + $0x1170] sm:$0xff]
  %v587 = vld [vmem:[%s1 + $0x1178] sm:$0xff]
  %v588 = vld [vmem:[%s1 + $0x1180] sm:$0xff]
  %v589 = vld [vmem:[%s1 + $0x1188] sm:$0xff]
  %v590 = vld [vmem:[%s1 + $0x1190] sm:$0xff]
  %v591 = vld [vmem:[%s1 + $0x1198] sm:$0xff]
  %v592 = vld [vmem:[%s1 + $0x11a0] sm:$0xff]
  %v593 = vld [vmem:[%s1 + $0x11a8] sm:$0xff]
  %v594 = vld [vmem:[%s1 + $0x11b0] sm:$0xff]
  %v595 = vld [vmem:[%s1 + $0x11b8] sm:$0xff]
  %v596 = vld [vmem:[%s1 + $0x11c0] sm:$0xff]
  %v597 = vld [vmem:[%s1 + $0x11c8] sm:$0xff]
  %v598 = vld [vmem:[%s1 + $0x11d0] sm:$0xff]
  %v599 = vld [vmem:[%s1 + $0x11d8] sm:$0xff]
  %v600 = vld [vmem:[%s1 + $0x11e0] sm:$0xff]
  %v601 = vld [vmem:[%s1 + $0x11e8] sm:$0xff]
  %v602 = vld [vmem:[%s1 + $0x11f0] sm:$0xff]
  %v603 = vld [vmem:[%s1 + $0x11f8] sm:$0xff]
  %v604 = vld [vmem:[%s1 + $0x1200] sm:$0xff]
  %v605 = vld [vmem:[%s1 + $0x1208] sm:$0xff]
  %v606 = vld [vmem:[%s1 + $0x1210] sm:$0xff]
  %v607 = vld [vmem:[%s1 + $0x1218] sm:$0xff]
  %v608 = vld [vmem:[%s1 + $0x1220] sm:$0xff]
  %v609 = vld [vmem:[%s1 + $0x1228] sm:$0xff]
  %v610 = vld [vmem:[%s1 + $0x1230] sm:$0xff]
  %v611 = vld [vmem:[%s1 + $0x1238] sm:$0xff]
  %v612 = vld [vmem:[%s1 + $0x1240] sm:$0xff]
  %v613 = vld [vmem:[%s1 + $0x1248] sm:$0xff]
  %v614 = vld [vmem:[%s1 + $0x1250] sm:$0xff]
  %v615 = vld [vmem:[%s1 + $0x1258] sm:$0xff]
  %v616 = vld [vmem:[%s1 + $0x1260] sm:$0xff]
  %v617 = vld [vmem:[%s1 + $0x1268] sm:$0xff]
  %v618 = vld [vmem:[%s1 + $0x1270] sm:$0xff]
  %v619 = vld [vmem:[%s1 + $0x1278] sm:$0xff]
  %v620 = vld [vmem:[%s1 + $0x1280] sm:$0xff]
  %v621 = vld [vmem:[%s1 + $0x1288] sm:$0xff]
  %v622 = vld [vmem:[%s1 + $0x1290] sm:$0xff]
  %v623 = vld [vmem:[%s1 + $0x1298] sm:$0xff]
  %v624 = vld [vmem:[%s1 + $0x12a0] sm:$0xff]
  %v625 = vld [vmem:[%s1 + $0x12a8] sm:$0xff]
  %v626 = vld [vmem:[%s1 + $0x12b0] sm:$0xff]
  %v627 = vld [vmem:[%s1 + $0x12b8] sm:$0xff]
  %v628 = vld [vmem:[%s1 + $0x12c0] sm:$0xff]
  %v629 = vld [vmem:[%s1 + $0x12c8] sm:$0xff]
  %v630 = vld [vmem:[%s1 + $0x12d0] sm:$0xff]
  %v631 = vld [vmem:[%s1 + $0x12d8] sm:$0xff]
  %v632 = vld [vmem:[%s1 + $0x12e0] sm:$0xff]
  %v633 = vld [vmem:[%s1 + $0x12e8] sm:$0xff]
  %v634 = vld [vmem:[%s1 + $0x12f0] sm:$0xff]
  %v635 = vld [vmem:[%s1 + $0x12f8] sm:$0xff]
  %v636 = vld [vmem:[%s1 + $0x1300] sm:$0xff]
  %v637 = vld [vmem:[%s1 + $0x1308] sm:$0xff]
  %v638 = vld [vmem:[%s1 + $0x1310] sm:$0xff]
  %v639 = vld [vmem:[%s1 + $0x1318] sm:$0xff]
  %v640 = vld [vmem:[%s1 + $0x1320] sm:$0xff]
  %v641 = vld [vmem:[%s1 + $0x1328] sm:$0xff]
  %v642 = vld [vmem:[%s1 + $0x1330] sm:$0xff]
  %v643 = vld [vmem:[%s1 + $0x1338] sm:$0xff]
  %v644 = vld [vmem:[%s1 + $0x1340] sm:$0xff]
  %v645 = vld [vmem:[%s1 + $0x1348] sm:$0xff]
  %v646 = vld [vmem:[%s1 + $0x1350] sm:$0xff]
  %v647 = vld [vmem:[%s1 + $0x1358] sm:$0xff]
  %v648 = vld [vmem:[%s1 + $0x1360] sm:$0xff]
  %v649 = vld [vmem:[%s1 + $0x1368] sm:$0xff]
  %v650 = vld [vmem:[%s1 + $0x1370] sm:$0xff]
  %v651 = vld [vmem:[%s1 + $0x1378] sm:$0xff]
  %v652 = vld [vmem:[%s1 + $0x1380] sm:$0xff]
  %v653 = vld [vmem:[%s1 + $0x1388] sm:$0xff]
  %v654 = vld [vmem:[%s1 + $0x1390] sm:$0xff]
  %v655 = vld [vmem:[%s1 + $0x1398] sm:$0xff]
  %v656 = vld [vmem:[%s1 + $0x13a0] sm:$0xff]
  %v657 = vld [vmem:[%s1 + $0x13a8] sm:$0xff]
  %v658 = vld [vmem:[%s1 + $0x13b0] sm:$0xff]
  %v659 = vld [vmem:[%s1 + $0x13b8] sm:$0xff]
  %v660 = vld [vmem:[%s1 + $0x13c0] sm:$0xff]
  %v661 = vld [vmem:[%s1 + $0x13c8] sm:$0xff]
  %v662 = vld [vmem:[%s1 + $0x13d0] sm:$0xff]
  %v663 = vld [vmem:[%s1 + $0x13d8] sm:$0xff]
  %v664 = vld [vmem:[%s1 + $0x13e0] sm:$0xff]
  %v665 = vld [vmem:[%s1 + $0x13e8] sm:$0xff]
  %v666 = vld [vmem:[%s1 + $0x13f0] sm:$0xff]
  %v667 = vld [vmem:[%s1 + $0x13f8] sm:$0xff]
  %v668 = vld [vmem:[%s1 + $0x1400] sm:$0xff]
  %v669 = vld [vmem:[%s1 + $0x1408] sm:$0xff]
  %v670 = vld [vmem:[%s1 + $0x1410] sm:$0xff]
  %v671 = vld [vmem:[%s1 + $0x1418] sm:$0xff]
  %v672 = vld [vmem:[%s1 + $0x1420] sm:$0xff]
  %v673 = vld [vmem:[%s1 + $0x1428] sm:$0xff]
  %v674 = vld [vmem:[%s1 + $0x1430] sm:$0xff]
  %v675 = vld [vmem:[%s1 + $0x1438] sm:$0xff]
  %v676 = vld [vmem:[%s1 + $0x1440] sm:$0xff]
  %v677 = vld [vmem:[%s1 + $0x1448] sm:$0xff]
  %v678 = vld [vmem:[%s1 + $0x1450] sm:$0xff]
  %v679 = vld [vmem:[%s1 + $0x1458] sm:$0xff]
  %v680 = vld [vmem:[%s1 + $0x1460] sm:$0xff]
  %v681 = vld [vmem:[%s1 + $0x1468] sm:$0xff]
  %v682 = vld [vmem:[%s1 + $0x1470] sm:$0xff]
  %v683 = vld [vmem:[%s1 + $0x1478] sm:$0xff]
  %v684 = vld [vmem:[%s1 + $0x1480] sm:$0xff]
  %v685 = vld [vmem:[%s1 + $0x1488] sm:$0xff]
  %v686 = vld [vmem:[%s1 + $0x1490] sm:$0xff]
  %v687 = vld [vmem:[%s1 + $0x1498] sm:$0xff]
  %v688 = vld [vmem:[%s1 + $0x14a0] sm:$0xff]
  %v689 = vld [vmem:[%s1 + $0x14a8] sm:$0xff]
  %v690 = vld [vmem:[%s1 + $0x14b0] sm:$0xff]
  %v691 = vld [vmem:[%s1 + $0x14b8] sm:$0xff]
  %v692 = vld [vmem:[%s1 + $0x14c0] sm:$0xff]
  %v693 = vld [vmem:[%s1 + $0x14c8] sm:$0xff]
  %v694 = vld [vmem:[%s1 + $0x14d0] sm:$0xff]
  %v695 = vld [vmem:[%s1 + $0x14d8] sm:$0xff]
  %v696 = vld [vmem:[%s1 + $0x14e0] sm:$0xff]
  %v697 = vld [vmem:[%s1 + $0x14e8] sm:$0xff]
  %v698 = vld [vmem:[%s1 + $0x14f0] sm:$0xff]
  %v699 = vld [vmem:[%s1 + $0x14f8] sm:$0xff]
  %v700 = vld [vmem:[%s1 + $0x1500] sm:$0xff]
  %v701 = vld [vmem:[%s1 + $0x1508] sm:$0xff]
  %v702 = vld [vmem:[%s1 + $0x1510] sm:$0xff]
  %v703 = vld [vmem:[%s1 + $0x1518] sm:$0xff]
  %v704 = vld [vmem:[%s1 + $0x1520] sm:$0xff]
  %v705 = vld [vmem:[%s1 + $0x1528] sm:$0xff]
  %v706 = vld [vmem:[%s1 + $0x1530] sm:$0xff]
  %v707 = vld [vmem:[%s1 + $0x1538] sm:$0xff]
  %v708 = vld [vmem:[%s1 + $0x1540] sm:$0xff]
  %v709 = vld [vmem:[%s1 + $0x1548] sm:$0xff]
  %v710 = vld [vmem:[%s1 + $0x1550] sm:$0xff]
  %v711 = vld [vmem:[%s1 + $0x1558] sm:$0xff]
  %v712 = vld [vmem:[%s1 + $0x1560] sm:$0xff]
  %v713 = vld [vmem:[%s1 + $0x1568] sm:$0xff]
  %v714 = vld [vmem:[%s1 + $0x1570] sm:$0xff]
  %v715 = vld [vmem:[%s1 + $0x1578] sm:$0xff]
  %v716 = vld [vmem:[%s1 + $0x1580] sm:$0xff]
  %v717 = vld [vmem:[%s1 + $0x1588] sm:$0xff]
  %v718 = vld [vmem:[%s1 + $0x1590] sm:$0xff]
  %v719 = vld [vmem:[%s1 + $0x1598] sm:$0xff]
  %v720 = vld [vmem:[%s1 + $0x15a0] sm:$0xff]
  %v721 = vld [vmem:[%s1 + $0x15a8] sm:$0xff]
  %v722 = vld [vmem:[%s1 + $0x15b0] sm:$0xff]
  %v723 = vld [vmem:[%s1 + $0x15b8] sm:$0xff]
  %v724 = vld [vmem:[%s1 + $0x15c0] sm:$0xff]
  %v725 = vld [vmem:[%s1 + $0x15c8] sm:$0xff]
  %v726 = vld [vmem:[%s1 + $0x15d0] sm:$0xff]
  %v727 = vld [vmem:[%s1 + $0x15d8] sm:$0xff]
  %v728 = vld [vmem:[%s1 + $0x15e0] sm:$0xff]
  %v729 = vld [vmem:[%s1 + $0x15e8] sm:$0xff]
  %v730 = vld [vmem:[%s1 + $0x15f0] sm:$0xff]
  %v731 = vld [vmem:[%s1 + $0x15f8] sm:$0xff]
  %v732 = vld [vmem:[%s1 + $0x1600] sm:$0xff]
  %v733 = vld [vmem:[%s1 + $0x1608] sm:$0xff]
  %v734 = vld [vmem:[%s1 + $0x1610] sm:$0xff]
  %v735 = vld [vmem:[%s1 + $0x1618] sm:$0xff]
  %v736 = vld [vmem:[%s1 + $0x1620] sm:$0xff]
  %v737 = vld [vmem:[%s1 + $0x1628] sm:$0xff]
  %v738 = vld [vmem:[%s1 + $0x1630] sm:$0xff]
  %v739 = vld [vmem:[%s1 + $0x1638] sm:$0xff]
  %v740 = vld [vmem:[%s1 + $0x1640] sm:$0xff]
  %v741 = vld [vmem:[%s1 + $0x1648] sm:$0xff]
  %v742 = vld [vmem:[%s1 + $0x1650] sm:$0xff]
  %v743 = vld [vmem:[%s1 + $0x1658] sm:$0xff]
  %v744 = vld [vmem:[%s1 + $0x1660] sm:$0xff]
  %v745 = vld [vmem:[%s1 + $0x1668] sm:$0xff]
  %v746 = vld [vmem:[%s1 + $0x1670] sm:$0xff]
  %v747 = vld [vmem:[%s1 + $0x1678] sm:$0xff]
  %v748 = vld [vmem:[%s1 + $0x1680] sm:$0xff]
  %v749 = vld [vmem:[%s1 + $0x1688] sm:$0xff]
  %v750 = vld [vmem:[%s1 + $0x1690] sm:$0xff]
  %v751 = vld [vmem:[%s1 + $0x1698] sm:$0xff]
  %v752 = vld [vmem:[%s1 + $0x16a0] sm:$0xff]
  %v753 = vld [vmem:[%s1 + $0x16a8] sm:$0xff]
  %v754 = vld [vmem:[%s1 + $0x16b0] sm:$0xff]
  %v755 = vld [vmem:[%s1 + $0x16b8] sm:$0xff]
  %v756 = vld [vmem:[%s1 + $0x16c0] sm:$0xff]
  %v757 = vld [vmem:[%s1 + $0x16c8] sm:$0xff]
  %v758 = vld [vmem:[%s1 + $0x16d0] sm:$0xff]
  %v759 = vld [vmem:[%s1 + $0x16d8] sm:$0xff]
  %v760 = vld [vmem:[%s1 + $0x16e0] sm:$0xff]
  %v761 = vld [vmem:[%s1 + $0x16e8] sm:$0xff]
  %v762 = vld [vmem:[%s1 + $0x16f0] sm:$0xff]
  %v763 = vld [vmem:[%s1 + $0x16f8] sm:$0xff]
  %v764 = vld [vmem:[%s1 + $0x1700] sm:$0xff]
  %v765 = vld [vmem:[%s1 + $0x1708] sm:$0xff]
  %v766 = vld [vmem:[%s1 + $0x1710] sm:$0xff]
  %v767 = vld [vmem:[%s1 + $0x1718] sm:$0xff]
  %v768 = vld [vmem:[%s1 + $0x1720] sm:$0xff]
  %v769 = vld [vmem:[%s1 + $0x1728] sm:$0xff]
  %v770 = vld [vmem:[%s1 + $0x1730] sm:$0xff]
  %v771 = vld [vmem:[%s1 + $0x1738] sm:$0xff]
  %v772 = vld [vmem:[%s1 + $0x1740] sm:$0xff]
  %v773 = vld [vmem:[%s1 + $0x1748] sm:$0xff]
  %v774 = vld [vmem:[%s1 + $0x1750] sm:$0xff]
  %v775 = vld [vmem:[%s1 + $0x1758] sm:$0xff]
  %v776 = vld [vmem:[%s1 + $0x1760] sm:$0xff]
  %v777 = vld [vmem:[%s1 + $0x1768] sm:$0xff]
  %v778 = vld [vmem:[%s1 + $0x1770] sm:$0xff]
  %v779 = vld [vmem:[%s1 + $0x1778] sm:$0xff]
  %v780 = vld [vmem:[%s1 + $0x1780] sm:$0xff]
  %v781 = vld [vmem:[%s1 + $0x1788] sm:$0xff]
  %v782 = vld [vmem:[%s1 + $0x1790] sm:$0xff]
  %v783 = vld [vmem:[%s1 + $0x1798] sm:$0xff]
  %v784 = vld [vmem:[%s1 + $0x17a0] sm:$0xff]
  %v785 = vld [vmem:[%s1 + $0x17a8] sm:$0xff]
  %v786 = vld [vmem:[%s1 + $0x17b0] sm:$0xff]
  %v787 = vld [vmem:[%s1 + $0x17b8] sm:$0xff]
  %v788 = vld [vmem:[%s1 + $0x17c0] sm:$0xff]
  %v789 = vld [vmem:[%s1 + $0x17c8] sm:$0xff]
  %v790 = vld [vmem:[%s1 + $0x17d0] sm:$0xff]
  %v791 = vld [vmem:[%s1 + $0x17d8] sm:$0xff]
  %v792 = vld [vmem:[%s1 + $0x17e0] sm:$0xff]
  %v793 = vld [vmem:[%s1 + $0x17e8] sm:$0xff]
  %v794 = vld [vmem:[%s1 + $0x17f0] sm:$0xff]
  %v795 = vld [vmem:[%s1 + $0x17f8] sm:$0xff]
  %v796 = vld [vmem:[%s1 + $0x1800] sm:$0xff]
  %v797 = vld [vmem:[%s1 + $0x1808] sm:$0xff]
  %v798 = vld [vmem:[%s1 + $0x1810] sm:$0xff]
  %v799 = vld [vmem:[%s1 + $0x1818] sm:$0xff]
  %v800 = vld [vmem:[%s1 + $0x1820] sm:$0xff]
  %v801 = vld [vmem:[%s1 + $0x1828] sm:$0xff]
  %v802 = vld [vmem:[%s1 + $0x1830] sm:$0xff]
  %v803 = vld [vmem:[%s1 + $0x1838] sm:$0xff]
  %v804 = vld [vmem:[%s1 + $0x1840] sm:$0xff]
  %v805 = vld [vmem:[%s1 + $0x1848] sm:$0xff]
  %v806 = vld [vmem:[%s1 + $0x1850] sm:$0xff]
  %v807 = vld [vmem:[%s1 + $0x1858] sm:$0xff]
  %v808 = vld [vmem:[%s1 + $0x1860] sm:$0xff]
  %v809 = vld [vmem:[%s1 + $0x1868] sm:$0xff]
  %v810 = vld [vmem:[%s1 + $0x1870] sm:$0xff]
  %v811 = vld [vmem:[%s1 + $0x1878] sm:$0xff]
  %v812 = vld [vmem:[%s1 + $0x1880] sm:$0xff]
  %v813 = vld [vmem:[%s1 + $0x1888] sm:$0xff]
  %v814 = vld [vmem:[%s1 + $0x1890] sm:$0xff]
  %v815 = vld [vmem:[%s1 + $0x1898] sm:$0xff]
  %v816 = vld [vmem:[%s1 + $0x18a0] sm:$0xff]
  %v817 = vld [vmem:[%s1 + $0x18a8] sm:$0xff]
  %v818 = vld [vmem:[%s1 + $0x18b0] sm:$0xff]
  %v819 = vld [vmem:[%s1 + $0x18b8] sm:$0xff]
  %v820 = vld [vmem:[%s1 + $0x18c0] sm:$0xff]
  %v821 = vld [vmem:[%s1 + $0x18c8] sm:$0xff]
  %v822 = vld [vmem:[%s1 + $0x18d0] sm:$0xff]
  %v823 = vld [vmem:[%s1 + $0x18d8] sm:$0xff]
  %v824 = vld [vmem:[%s1 + $0x18e0] sm:$0xff]
  %v825 = vld [vmem:[%s1 + $0x18e8] sm:$0xff]
  %v826 = vld [vmem:[%s1 + $0x18f0] sm:$0xff]
  %v827 = vld [vmem:[%s1 + $0x18f8] sm:$0xff]
  %v828 = vld [vmem:[%s1 + $0x1900] sm:$0xff]
  %v829 = vld [vmem:[%s1 + $0x1908] sm:$0xff]
  %v830 = vld [vmem:[%s1 + $0x1910] sm:$0xff]
  %v831 = vld [vmem:[%s1 + $0x1918] sm:$0xff]
  %v832 = vld [vmem:[%s1 + $0x1920] sm:$0xff]
  %v833 = vld [vmem:[%s1 + $0x1928] sm:$0xff]
  %v834 = vld [vmem:[%s1 + $0x1930] sm:$0xff]
  %v835 = vld [vmem:[%s1 + $0x1938] sm:$0xff]
  %v836 = vld [vmem:[%s1 + $0x1940] sm:$0xff]
  %v837 = vld [vmem:[%s1 + $0x1948] sm:$0xff]
  %v838 = vld [vmem:[%s1 + $0x1950] sm:$0xff]
  %v839 = vld [vmem:[%s1 + $0x1958] sm:$0xff]
  %v840 = vld [vmem:[%s1 + $0x1960] sm:$0xff]
  %v841 = vld [vmem:[%s1 + $0x1968] sm:$0xff]
  %v842 = vld [vmem:[%s1 + $0x1970] sm:$0xff]
  %v843 = vld [vmem:[%s1 + $0x1978] sm:$0xff]
  %v844 = vld [vmem:[%s1 + $0x1980] sm:$0xff]
  %v845 = vld [vmem:[%s1 + $0x1988] sm:$0xff]
  %v846 = vld [vmem:[%s1 + $0x1990] sm:$0xff]
  %v847 = vld [vmem:[%s1 + $0x1998] sm:$0xff]
  %v848 = vld [vmem:[%s1 + $0x19a0] sm:$0xff]
  %v849 = vld [vmem:[%s1 + $0x19a8] sm:$0xff]
  %v850 = vld [vmem:[%s1 + $0x19b0] sm:$0xff]
  %v851 = vld [vmem:[%s1 + $0x19b8] sm:$0xff]
  %v852 = vld [vmem:[%s1 + $0x19c0] sm:$0xff]
  %v853 = vld [vmem:[%s1 + $0x19c8] sm:$0xff]
  %v854 = vld [vmem:[%s1 + $0x19d0] sm:$0xff]
  %v855 = vld [vmem:[%s1 + $0x19d8] sm:$0xff]
  %v856 = vld [vmem:[%s1 + $0x19e0] sm:$0xff]
  %v857 = vld [vmem:[%s1 + $0x19e8] sm:$0xff]
  %v858 = vld [vmem:[%s1 + $0x19f0] sm:$0xff]
  %v859 = vld [vmem:[%s1 + $0x19f8] sm:$0xff]
  %v860 = vld [vmem:[%s1 + $0x1a00] sm:$0xff]
  %v861 = vld [vmem:[%s1 + $0x1a08] sm:$0xff]
  %v862 = vld [vmem:[%s1 + $0x1a10] sm:$0xff]
  %v863 = vld [vmem:[%s1 + $0x1a18] sm:$0xff]
  %v864 = vld [vmem:[%s1 + $0x1a20] sm:$0xff]
  %v865 = vld [vmem:[%s1 + $0x1a28] sm:$0xff]
  %v866 = vld [vmem:[%s1 + $0x1a30] sm:$0xff]
  %v867 = vld [vmem:[%s1 + $0x1a38] sm:$0xff]
  %v868 = vld [vmem:[%s1 + $0x1a40] sm:$0xff]
  %v869 = vld [vmem:[%s1 + $0x1a48] sm:$0xff]
  %v870 = vld [vmem:[%s1 + $0x1a50] sm:$0xff]
  %v871 = vld [vmem:[%s1 + $0x1a58] sm:$0xff]
  %v872 = vld [vmem:[%s1 + $0x1a60] sm:$0xff]
  %v873 = vld [vmem:[%s1 + $0x1a68] sm:$0xff]
  %v874 = vld [vmem:[%s1 + $0x1a70] sm:$0xff]
  %v875 = vld [vmem:[%s1 + $0x1a78] sm:$0xff]
  %v876 = vld [vmem:[%s1 + $0x1a80] sm:$0xff]
  %v877 = vld [vmem:[%s1 + $0x1a88] sm:$0xff]
  %v878 = vld [vmem:[%s1 + $0x1a90] sm:$0xff]
  %v879 = vld [vmem:[%s1 + $0x1a98] sm:$0xff]
  %v880 = vld [vmem:[%s1 + $0x1aa0] sm:$0xff]
  %v881 = vld [vmem:[%s1 + $0x1aa8] sm:$0xff]
  %v882 = vld [vmem:[%s1 + $0x1ab0] sm:$0xff]
  %v883 = vld [vmem:[%s1 + $0x1ab8] sm:$0xff]
  %v884 = vld [vmem:[%s1 + $0x1ac0] sm:$0xff]
  %v885 = vld [vmem:[%s1 + $0x1ac8] sm:$0xff]
  %v886 = vld [vmem:[%s1 + $0x1ad0] sm:$0xff]
  %v887 = vld [vmem:[%s1 + $0x1ad8] sm:$0xff]
  %v888 = vld [vmem:[%s1 + $0x1ae0] sm:$0xff]
  %v889 = vld [vmem:[%s1 + $0x1ae8] sm:$0xff]
  %v890 = vld [vmem:[%s1 + $0x1af0] sm:$0xff]
  %v891 = vld [vmem:[%s1 + $0x1af8] sm:$0xff]
  %v892 = vld [vmem:[%s1 + $0x1b00] sm:$0xff]
  %v893 = vld [vmem:[%s1 + $0x1b08] sm:$0xff]
  %v894 = vld [vmem:[%s1 + $0x1b10] sm:$0xff]
  %v895 = vld [vmem:[%s1 + $0x1b18] sm:$0xff]
  %v896 = vld [vmem:[%s1 + $0x1b20] sm:$0xff]
  %v897 = vld [vmem:[%s1 + $0x1b28] sm:$0xff]
  %v898 = vld [vmem:[%s1 + $0x1b30] sm:$0xff]
  %v899 = vld [vmem:[%s1 + $0x1b38] sm:$0xff]
  %v900 = vld [vmem:[%s1 + $0x1b40] sm:$0xff]
  %v901 = vld [vmem:[%s1 + $0x1b48] sm:$0xff]
  %v902 = vld [vmem:[%s1 + $0x1b50] sm:$0xff]
  %v903 = vld [vmem:[%s1 + $0x1b58] sm:$0xff]
  %v904 = vld [vmem:[%s1 + $0x1b60] sm:$0xff]
  %v905 = vld [vmem:[%s1 + $0x1b68] sm:$0xff]
  %v906 = vld [vmem:[%s1 + $0x1b70] sm:$0xff]
  %v907 = vld [vmem:[%s1 + $0x1b78] sm:$0xff]
  %v908 = vld [vmem:[%s1 + $0x1b80] sm:$0xff]
  %v909 = vld [vmem:[%s1 + $0x1b88] sm:$0xff]
  %v910 = vld [vmem:[%s1 + $0x1b90] sm:$0xff]
  %v911 = vld [vmem:[%s1 + $0x1b98] sm:$0xff]
  %v912 = vld [vmem:[%s1 + $0x1ba0] sm:$0xff]
  %v913 = vld [vmem:[%s1 + $0x1ba8] sm:$0xff]
  %v914 = vld [vmem:[%s1 + $0x1bb0] sm:$0xff]
  %v915 = vld [vmem:[%s1 + $0x1bb8] sm:$0xff]
  %v916 = vld [vmem:[%s1 + $0x1bc0] sm:$0xff]
  %v917 = vld [vmem:[%s1 + $0x1bc8] sm:$0xff]
  %v918 = vld [vmem:[%s1 + $0x1bd0] sm:$0xff]
  %v919 = vld [vmem:[%s1 + $0x1bd8] sm:$0xff]
  %v920 = vld [vmem:[%s1 + $0x1be0] sm:$0xff]
  %v921 = vld [vmem:[%s1 + $0x1be8] sm:$0xff]
  %v922 = vld [vmem:[%s1 + $0x1bf0] sm:$0xff]
  %v923 = vld [vmem:[%s1 + $0x1bf8] sm:$0xff]
  %v924 = vld [vmem:[%s1 + $0x1c00] sm:$0xff]
  %v925 = vld [vmem:[%s1 + $0x1c08] sm:$0xff]
  %v926 = vld [vmem:[%s1 + $0x1c10] sm:$0xff]
  %v927 = vld [vmem:[%s1 + $0x1c18] sm:$0xff]
  %v928 = vld [vmem:[%s1 + $0x1c20] sm:$0xff]
  %v929 = vld [vmem:[%s1 + $0x1c28] sm:$0xff]
  %v930 = vld [vmem:[%s1 + $0x1c30] sm:$0xff]
  %v931 = vld [vmem:[%s1 + $0x1c38] sm:$0xff]
  %v932 = vld [vmem:[%s1 + $0x1c40] sm:$0xff]
  %v933 = vld [vmem:[%s1 + $0x1c48] sm:$0xff]
  %v934 = vld [vmem:[%s1 + $0x1c50] sm:$0xff]
  %v935 = vld [vmem:[%s1 + $0x1c58] sm:$0xff]
  %v936 = vld [vmem:[%s1 + $0x1c60] sm:$0xff]
  %v937 = vld [vmem:[%s1 + $0x1c68] sm:$0xff]
  %v938 = vld [vmem:[%s1 + $0x1c70] sm:$0xff]
  %v939 = vld [vmem:[%s1 + $0x1c78] sm:$0xff]
  %v940 = vld [vmem:[%s1 + $0x1c80] sm:$0xff]
  %v941 = vld [vmem:[%s1 + $0x1c88] sm:$0xff]
  %v942 = vld [vmem:[%s1 + $0x1c90] sm:$0xff]
  %v943 = vld [vmem:[%s1 + $0x1c98] sm:$0xff]
  %v944 = vld [vmem:[%s1 + $0x1ca0] sm:$0xff]
  %v945 = vld [vmem:[%s1 + $0x1ca8] sm:$0xff]
  %v946 = vld [vmem:[%s1 + $0x1cb0] sm:$0xff]
  %v947 = vld [vmem:[%s1 + $0x1cb8] sm:$0xff]
  %v948 = vld [vmem:[%s1 + $0x1cc0] sm:$0xff]
  %v949 = vld [vmem:[%s1 + $0x1cc8] sm:$0xff]
  %v950 = vld [vmem:[%s1 + $0x1cd0] sm:$0xff]
  %v951 = vld [vmem:[%s1 + $0x1cd8] sm:$0xff]
  %v952 = vld [vmem:[%s1 + $0x1ce0] sm:$0xff]
  %v953 = vld [vmem:[%s1 + $0x1ce8] sm:$0xff]
  %v954 = vld [vmem:[%s1 + $0x1cf0] sm:$0xff]
  %v955 = vld [vmem:[%s1 + $0x1cf8] sm:$0xff]
  %v956 = vld [vmem:[%s1 + $0x1d00] sm:$0xff]
  %v957 = vld [vmem:[%s1 + $0x1d08] sm:$0xff]
  %v958 = vld [vmem:[%s1 + $0x1d10] sm:$0xff]
  %v959 = vld [vmem:[%s1 + $0x1d18] sm:$0xff]
  %v960 = vld [vmem:[%s1 + $0x1d20] sm:$0xff]
  %v961 = vld [vmem:[%s1 + $0x1d28] sm:$0xff]
  %v962 = vld [vmem:[%s1 + $0x1d30] sm:$0xff]
  %v963 = vld [vmem:[%s1 + $0x1d38] sm:$0xff]
  %v964 = vld [vmem:[%s1 + $0x1d40] sm:$0xff]
  %v965 = vld [vmem:[%s1 + $0x1d48] sm:$0xff]
  %v966 = vld [vmem:[%s1 + $0x1d50] sm:$0xff]
  %v967 = vld [vmem:[%s1 + $0x1d58] sm:$0xff]
  %v968 = vld [vmem:[%s1 + $0x1d60] sm:$0xff]
  %v969 = vld [vmem:[%s1 + $0x1d68] sm:$0xff]
  %v970 = vld [vmem:[%s1 + $0x1d70] sm:$0xff]
  %v971 = vld [vmem:[%s1 + $0x1d78] sm:$0xff]
  %v972 = vld [vmem:[%s1 + $0x1d80] sm:$0xff]
  %v973 = vld [vmem:[%s1 + $0x1d88] sm:$0xff]
  %v974 = vld [vmem:[%s1 + $0x1d90] sm:$0xff]
  %v975 = vld [vmem:[%s1 + $0x1d98] sm:$0xff]
  %v976 = vld [vmem:[%s1 + $0x1da0] sm:$0xff]
  %v977 = vld [vmem:[%s1 + $0x1da8] sm:$0xff]
  %v978 = vld [vmem:[%s1 + $0x1db0] sm:$0xff]
  %v979 = vld [vmem:[%s1 + $0x1db8] sm:$0xff]
  %v980 = vld [vmem:[%s1 + $0x1dc0] sm:$0xff]
  %v981 = vld [vmem:[%s1 + $0x1dc8] sm:$0xff]
  %v982 = vld [vmem:[%s1 + $0x1dd0] sm:$0xff]
  %v983 = vld [vmem:[%s1 + $0x1dd8] sm:$0xff]
  %v984 = vld [vmem:[%s1 + $0x1de0] sm:$0xff]
  %v985 = vld [vmem:[%s1 + $0x1de8] sm:$0xff]
  %v986 = vld [vmem:[%s1 + $0x1df0] sm:$0xff]
  %v987 = vld [vmem:[%s1 + $0x1df8] sm:$0xff]
  %v988 = vld [vmem:[%s1 + $0x1e00] sm:$0xff]
  %v989 = vld [vmem:[%s1 + $0x1e08] sm:$0xff]
  %v990 = vld [vmem:[%s1 + $0x1e10] sm:$0xff]
  %v991 = vld [vmem:[%s1 + $0x1e18] sm:$0xff]
  %v992 = vld [vmem:[%s1 + $0x1e20] sm:$0xff]
  %v993 = vld [vmem:[%s1 + $0x1e28] sm:$0xff]
  %v994 = vld [vmem:[%s1 + $0x1e30] sm:$0xff]
  %v995 = vld [vmem:[%s1 + $0x1e38] sm:$0xff]
  %v996 = vld [vmem:[%s1 + $0x1e40] sm:$0xff]
  %v997 = vld [vmem:[%s1 + $0x1e48] sm:$0xff]
  %v998 = vld [vmem:[%s1 + $0x1e50] sm:$0xff]
  %v999 = vld [vmem:[%s1 + $0x1e58] sm:$0xff]
  %v1000 = vld [vmem:[%s1 + $0x1e60] sm:$0xff]
  %v1001 = vld [vmem:[%s1 + $0x1e68] sm:$0xff]
  %v1002 = vld [vmem:[%s1 + $0x1e70] sm:$0xff]
  %v1003 = vld [vmem:[%s1 + $0x1e78] sm:$0xff]
  %v1004 = vld [vmem:[%s1 + $0x1e80] sm:$0xff]
  %v1005 = vld [vmem:[%s1 + $0x1e88] sm:$0xff]
  %v1006 = vld [vmem:[%s1 + $0x1e90] sm:$0xff]
  %v1007 = vld [vmem:[%s1 + $0x1e98] sm:$0xff]
  %v1008 = vld [vmem:[%s1 + $0x1ea0] sm:$0xff]
  %v1009 = vld [vmem:[%s1 + $0x1ea8] sm:$0xff]
  %v1010 = vld [vmem:[%s1 + $0x1eb0] sm:$0xff]
  %v1011 = vld [vmem:[%s1 + $0x1eb8] sm:$0xff]
  %v1012 = vld [vmem:[%s1 + $0x1ec0] sm:$0xff]
  %v1013 = vld [vmem:[%s1 + $0x1ec8] sm:$0xff]
  %v1014 = vld [vmem:[%s1 + $0x1ed0] sm:$0xff]
  %v1015 = vld [vmem:[%s1 + $0x1ed8] sm:$0xff]
  %v1016 = vld [vmem:[%s1 + $0x1ee0] sm:$0xff]
  %v1017 = vld [vmem:[%s1 + $0x1ee8] sm:$0xff]
  %v1018 = vld [vmem:[%s1 + $0x1ef0] sm:$0xff]
  %v1019 = vld [vmem:[%s1 + $0x1ef8] sm:$0xff]
  %v1020 = vld [vmem:[%s1 + $0x1f00] sm:$0xff]
  %v1021 = vld [vmem:[%s1 + $0x1f08] sm:$0xff]
  %v1022 = vld [vmem:[%s1 + $0x1f10] sm:$0xff]
  %v1023 = vld [vmem:[%s1 + $0x1f18] sm:$0xff]
  %v1024 = vld [vmem:[%s1 + $0x1f20] sm:$0xff]
  %v1025 = vld [vmem:[%s1 + $0x1f28] sm:$0xff]
  %v1026 = vld [vmem:[%s1 + $0x1f30] sm:$0xff]
  %v1027 = vld [vmem:[%s1 + $0x1f38] sm:$0xff]
  %v1028 = vld [vmem:[%s1 + $0x1f40] sm:$0xff]
  %v1029 = vld [vmem:[%s1 + $0x1f48] sm:$0xff]
  %v1030 = vld [vmem:[%s1 + $0x1f50] sm:$0xff]
  %v1031 = vld [vmem:[%s1 + $0x1f58] sm:$0xff]
  %v1032 = vld [vmem:[%s1 + $0x1f60] sm:$0xff]
  %v1033 = vld [vmem:[%s1 + $0x1f68] sm:$0xff]
  %v1034 = vld [vmem:[%s1 + $0x1f70] sm:$0xff]
  %v1035 = vld [vmem:[%s1 + $0x1f78] sm:$0xff]
  %v1036 = vld [vmem:[%s1 + $0x1f80] sm:$0xff]
  %v1037 = vld [vmem:[%s1 + $0x1f88] sm:$0xff]
  %v1038 = vld [vmem:[%s1 + $0x1f90] sm:$0xff]
  %v1039 = vld [vmem:[%s1 + $0x1f98] sm:$0xff]
  %v1040 = vld [vmem:[%s1 + $0x1fa0] sm:$0xff]
  %v1041 = vld [vmem:[%s1 + $0x1fa8] sm:$0xff]
  %v1042 = vld [vmem:[%s1 + $0x1fb0] sm:$0xff]
  %v1043 = vld [vmem:[%s1 + $0x1fb8] sm:$0xff]
  %v1044 = vld [vmem:[%s1 + $0x1fc0] sm:$0xff]
  %v1045 = vld [vmem:[%s1 + $0x1fc8] sm:$0xff]
  %v1046 = vld [vmem:[%s1 + $0x1fd0] sm:$0xff]
  %v1047 = vld [vmem:[%s1 + $0x1fd8] sm:$0xff]
  %v1048 = vld [vmem:[%s1 + $0x1fe0] sm:$0xff]
  %v1049 = vld [vmem:[%s1 + $0x1fe8] sm:$0xff]
  %v1050 = vld [vmem:[%s1 + $0x1ff0] sm:$0xff]
  %v1051 = vld [vmem:[%s1 + $0x1ff8] sm:$0xff]
  %v1052 = vld [vmem:[%s2] sm:$0x3]
  %v1054 = vlaneseq
  %v1055 = vshrl.u32 %v1054, 7
  %v1056 = vsub.s32 0, %v1055
  %v1057 = vrot.slane %v1052, %v1056
  %v1058 = vlaneseq
  %v1059 = vshrl.u32 %v1058, 7
  %v1060 = vsub.s32 1, %v1059
  %v1061 = vrot.slane %v1052, %v1060
  %v1072 = vcombine.high %v20, %v20
  %v1074 = vunpack.c.l.s4 1983009808
  %v1075 = vunpack.c.0.s8 %v1074
  %v1076 = vlaneseq
  %v1077 = vshrl.u32 %v1076, 7
  %v1078 = vsub.s32 %v1075, %v1077
  %v1079 = vrot.slane %v20, %v1078
  %v1081 = vunpack.c.l.s4 1983009808
  %v1082 = vunpack.c.0.s8 %v1081
  %v1083 = vlaneseq
  %v1084 = vshrl.u32 %v1083, 7
  %v1085 = vsub.s32 %v1082, %v1084
  %v1086 = vrot.slane %v1072, %v1085
  %v1087 = vcombine.high %v1079, %v1079
  %v1088 = vcombine.high %v1086, %v1086
  %v1089 = vcombine.high %v21, %v21
  %v1091 = vunpack.c.l.s4 1983009808
  %v1092 = vunpack.c.0.s8 %v1091
  %v1093 = vlaneseq
  %v1094 = vshrl.u32 %v1093, 7
  %v1095 = vsub.s32 %v1092, %v1094
  %v1096 = vrot.slane %v21, %v1095
  %v1098 = vunpack.c.l.s4 1983009808
  %v1099 = vunpack.c.0.s8 %v1098
  %v1100 = vlaneseq
  %v1101 = vshrl.u32 %v1100, 7
  %v1102 = vsub.s32 %v1099, %v1101
  %v1103 = vrot.slane %v1089, %v1102
  %v1104 = vcombine.high %v1096, %v1096
  %v1105 = vcombine.high %v1103, %v1103
  %v1106 = vcombine.high %v22, %v22
  %v1108 = vunpack.c.l.s4 1983009808
  %v1109 = vunpack.c.0.s8 %v1108
  %v1110 = vlaneseq
  %v1111 = vshrl.u32 %v1110, 7
  %v1112 = vsub.s32 %v1109, %v1111
  %v1113 = vrot.slane %v22, %v1112
  %v1115 = vunpack.c.l.s4 1983009808
  %v1116 = vunpack.c.0.s8 %v1115
  %v1117 = vlaneseq
  %v1118 = vshrl.u32 %v1117, 7
  %v1119 = vsub.s32 %v1116, %v1118
  %v1120 = vrot.slane %v1106, %v1119
  %v1121 = vcombine.high %v1113, %v1113
  %v1122 = vcombine.high %v1120, %v1120
  %v1123 = vcombine.high %v23, %v23
  %v1125 = vunpack.c.l.s4 1983009808
  %v1126 = vunpack.c.0.s8 %v1125
  %v1127 = vlaneseq
  %v1128 = vshrl.u32 %v1127, 7
  %v1129 = vsub.s32 %v1126, %v1128
  %v1130 = vrot.slane %v23, %v1129
  %v1132 = vunpack.c.l.s4 1983009808
  %v1133 = vunpack.c.0.s8 %v1132
  %v1134 = vlaneseq
  %v1135 = vshrl.u32 %v1134, 7
  %v1136 = vsub.s32 %v1133, %v1135
  %v1137 = vrot.slane %v1123, %v1136
  %v1138 = vcombine.high %v1130, %v1130
  %v1139 = vcombine.high %v1137, %v1137
  %v1140 = vcombine.high %v24, %v24
  %v1142 = vunpack.c.l.s4 1983009808
  %v1143 = vunpack.c.0.s8 %v1142
  %v1144 = vlaneseq
  %v1145 = vshrl.u32 %v1144, 7
  %v1146 = vsub.s32 %v1143, %v1145
  %v1147 = vrot.slane %v24, %v1146
  %v1149 = vunpack.c.l.s4 1983009808
  %v1150 = vunpack.c.0.s8 %v1149
  %v1151 = vlaneseq
  %v1152 = vshrl.u32 %v1151, 7
  %v1153 = vsub.s32 %v1150, %v1152
  %v1154 = vrot.slane %v1140, %v1153
  %v1155 = vcombine.high %v1147, %v1147
  %v1156 = vcombine.high %v1154, %v1154
  %v1157 = vcombine.high %v25, %v25
  %v1159 = vunpack.c.l.s4 1983009808
  %v1160 = vunpack.c.0.s8 %v1159
  %v1161 = vlaneseq
  %v1162 = vshrl.u32 %v1161, 7
  %v1163 = vsub.s32 %v1160, %v1162
  %v1164 = vrot.slane %v25, %v1163
  %v1166 = vunpack.c.l.s4 1983009808
  %v1167 = vunpack.c.0.s8 %v1166
  %v1168 = vlaneseq
  %v1169 = vshrl.u32 %v1168, 7
  %v1170 = vsub.s32 %v1167, %v1169
  %v1171 = vrot.slane %v1157, %v1170
  %v1172 = vcombine.high %v1164, %v1164
  %v1173 = vcombine.high %v1171, %v1171
  %v1174 = vcombine.high %v26, %v26
  %v1176 = vunpack.c.l.s4 1983009808
  %v1177 = vunpack.c.0.s8 %v1176
  %v1178 = vlaneseq
  %v1179 = vshrl.u32 %v1178, 7
  %v1180 = vsub.s32 %v1177, %v1179
  %v1181 = vrot.slane %v26, %v1180
  %v1183 = vunpack.c.l.s4 1983009808
  %v1184 = vunpack.c.0.s8 %v1183
  %v1185 = vlaneseq
  %v1186 = vshrl.u32 %v1185, 7
  %v1187 = vsub.s32 %v1184, %v1186
  %v1188 = vrot.slane %v1174, %v1187
  %v1189 = vcombine.high %v1181, %v1181
  %v1190 = vcombine.high %v1188, %v1188
  %v1191 = vcombine.high %v27, %v27
  %v1193 = vunpack.c.l.s4 1983009808
  %v1194 = vunpack.c.0.s8 %v1193
  %v1195 = vlaneseq
  %v1196 = vshrl.u32 %v1195, 7
  %v1197 = vsub.s32 %v1194, %v1196
  %v1198 = vrot.slane %v27, %v1197
  %v1200 = vunpack.c.l.s4 1983009808
  %v1201 = vunpack.c.0.s8 %v1200
  %v1202 = vlaneseq
  %v1203 = vshrl.u32 %v1202, 7
  %v1204 = vsub.s32 %v1201, %v1203
  %v1205 = vrot.slane %v1191, %v1204
  %v1206 = vcombine.high %v1198, %v1198
  %v1207 = vcombine.high %v1205, %v1205
  %1240 = vmatprep.subr.mxu0 %v29
  %1241 = vmatpush1.msra.mxu0 %v28
  %1242 = vmatprep.subr.mxu0 %v31
  %1243 = vmatpush1.msra.mxu0 %v30
  %1244 = vmatprep.subr.mxu0 %v33
  %1245 = vmatpush1.msra.mxu0 %v32
  %1246 = vmatprep.subr.mxu0 %v35
  %1247 = vmatpush1.msra.mxu0 %v34
  %1248 = vmatprep.subr.mxu0 %v37
  %1249 = vmatpush1.msra.mxu0 %v36
  %1250 = vmatprep.subr.mxu0 %v39
  %1251 = vmatpush1.msra.mxu0 %v38
  %1252 = vmatprep.subr.mxu0 %v41
  %1253 = vmatpush1.msra.mxu0 %v40
  %1254 = vmatprep.subr.mxu0 %v43
  %1255 = vmatpush1.msra.mxu0 %v42
  %1256 = vmatprep.subr.mxu0 %v45
  %1257 = vmatpush1.msra.mxu0 %v44
  %1258 = vmatprep.subr.mxu0 %v47
  %1259 = vmatpush1.msra.mxu0 %v46
  %1260 = vmatprep.subr.mxu0 %v49
  %1261 = vmatpush1.msra.mxu0 %v48
  %1262 = vmatprep.subr.mxu0 %v51
  %1263 = vmatpush1.msra.mxu0 %v50
  %1264 = vmatprep.subr.mxu0 %v53
  %1265 = vmatpush1.msra.mxu0 %v52
  %1266 = vmatprep.subr.mxu0 %v55
  %1267 = vmatpush1.msra.mxu0 %v54
  %1268 = vmatprep.subr.mxu0 %v57
  %1269 = vmatpush1.msra.mxu0 %v56
  %1270 = vmatprep.subr.mxu0 %v59
  %1271 = vmatpush1.msra.mxu0 %v58
  %1272 = vmatprep.subr.mxu0 %v61
  %1273 = vmatpush1.msra.mxu0 %v60
  %1274 = vmatprep.subr.mxu0 %v63
  %1275 = vmatpush1.msra.mxu0 %v62
  %1276 = vmatprep.subr.mxu0 %v65
  %1277 = vmatpush1.msra.mxu0 %v64
  %1278 = vmatprep.subr.mxu0 %v67
  %1279 = vmatpush1.msra.mxu0 %v66
  %1280 = vmatprep.subr.mxu0 %v69
  %1281 = vmatpush1.msra.mxu0 %v68
  %1282 = vmatprep.subr.mxu0 %v71
  %1283 = vmatpush1.msra.mxu0 %v70
  %1284 = vmatprep.subr.mxu0 %v73
  %1285 = vmatpush1.msra.mxu0 %v72
  %1286 = vmatprep.subr.mxu0 %v75
  %1287 = vmatpush1.msra.mxu0 %v74
  %1288 = vmatprep.subr.mxu0 %v77
  %1289 = vmatpush1.msra.mxu0 %v76
  %1290 = vmatprep.subr.mxu0 %v79
  %1291 = vmatpush1.msra.mxu0 %v78
  %1292 = vmatprep.subr.mxu0 %v81
  %1293 = vmatpush1.msra.mxu0 %v80
  %1294 = vmatprep.subr.mxu0 %v83
  %1295 = vmatpush1.msra.mxu0 %v82
  %1296 = vmatprep.subr.mxu0 %v85
  %1297 = vmatpush1.msra.mxu0 %v84
  %1298 = vmatprep.subr.mxu0 %v87
  %1299 = vmatpush1.msra.mxu0 %v86
  %1300 = vmatprep.subr.mxu0 %v89
  %1301 = vmatpush1.msra.mxu0 %v88
  %1302 = vmatprep.subr.mxu0 %v91
  %1303 = vmatpush1.msra.mxu0 %v90
  %1304 = vmatprep.mubr.f32.mxu0 %v1087
  %1305 = vmatmul.mubr.f32.gmra.mrb[0].mxu0 %v1079
  %v1306 = vpop.f32.mrb[0].mxu0
  %v1307 = vadd.f32 %v1057, %v1306
  %v1308 = vpop.f32.mrb[0].mxu0
  %v1309 = vadd.f32 %v1061, %v1308
  %1310 = vdwg.mxu0
  %1311 = vmatprep.subr.mxu0 %v93
  %1312 = vmatpush1.msra.mxu0 %v92
  %1313 = vmatprep.subr.mxu0 %v95
  %1314 = vmatpush1.msra.mxu0 %v94
  %1315 = vmatprep.subr.mxu0 %v97
  %1316 = vmatpush1.msra.mxu0 %v96
  %1317 = vmatprep.subr.mxu0 %v99
  %1318 = vmatpush1.msra.mxu0 %v98
  %1319 = vmatprep.subr.mxu0 %v101
  %1320 = vmatpush1.msra.mxu0 %v100
  %1321 = vmatprep.subr.mxu0 %v103
  %1322 = vmatpush1.msra.mxu0 %v102
  %1323 = vmatprep.subr.mxu0 %v105
  %1324 = vmatpush1.msra.mxu0 %v104
  %1325 = vmatprep.subr.mxu0 %v107
  %1326 = vmatpush1.msra.mxu0 %v106
  %1327 = vmatprep.subr.mxu0 %v109
  %1328 = vmatpush1.msra.mxu0 %v108
  %1329 = vmatprep.subr.mxu0 %v111
  %1330 = vmatpush1.msra.mxu0 %v110
  %1331 = vmatprep.subr.mxu0 %v113
  %1332 = vmatpush1.msra.mxu0 %v112
  %1333 = vmatprep.subr.mxu0 %v115
  %1334 = vmatpush1.msra.mxu0 %v114
  %1335 = vmatprep.subr.mxu0 %v117
  %1336 = vmatpush1.msra.mxu0 %v116
  %1337 = vmatprep.subr.mxu0 %v119
  %1338 = vmatpush1.msra.mxu0 %v118
  %1339 = vmatprep.subr.mxu0 %v121
  %1340 = vmatpush1.msra.mxu0 %v120
  %1341 = vmatprep.subr.mxu0 %v123
  %1342 = vmatpush1.msra.mxu0 %v122
  %1343 = vmatprep.subr.mxu0 %v125
  %1344 = vmatpush1.msra.mxu0 %v124
  %1345 = vmatprep.subr.mxu0 %v127
  %1346 = vmatpush1.msra.mxu0 %v126
  %1347 = vmatprep.subr.mxu0 %v129
  %1348 = vmatpush1.msra.mxu0 %v128
  %1349 = vmatprep.subr.mxu0 %v131
  %1350 = vmatpush1.msra.mxu0 %v130
  %1351 = vmatprep.subr.mxu0 %v133
  %1352 = vmatpush1.msra.mxu0 %v132
  %1353 = vmatprep.subr.mxu0 %v135
  %1354 = vmatpush1.msra.mxu0 %v134
  %1355 = vmatprep.subr.mxu0 %v137
  %1356 = vmatpush1.msra.mxu0 %v136
  %1357 = vmatprep.subr.mxu0 %v139
  %1358 = vmatpush1.msra.mxu0 %v138
  %1359 = vmatprep.subr.mxu0 %v141
  %1360 = vmatpush1.msra.mxu0 %v140
  %1361 = vmatprep.subr.mxu0 %v143
  %1362 = vmatpush1.msra.mxu0 %v142
  %1363 = vmatprep.subr.mxu0 %v145
  %1364 = vmatpush1.msra.mxu0 %v144
  %1365 = vmatprep.subr.mxu0 %v147
  %1366 = vmatpush1.msra.mxu0 %v146
  %1367 = vmatprep.subr.mxu0 %v149
  %1368 = vmatpush1.msra.mxu0 %v148
  %1369 = vmatprep.subr.mxu0 %v151
  %1370 = vmatpush1.msra.mxu0 %v150
  %1371 = vmatprep.subr.mxu0 %v153
  %1372 = vmatpush1.msra.mxu0 %v152
  %1373 = vmatprep.subr.mxu0 %v155
  %1374 = vmatpush1.msra.mxu0 %v154
  %1375 = vmatprep.mubr.f32.mxu0 %v1088
  %1376 = vmatmul.mubr.f32.gmra.mrb[0].mxu0 %v1086
  %v1377 = vpop.f32.mrb[0].mxu0
  %v1378 = vadd.f32 %v1307, %v1377
  %v1379 = vpop.f32.mrb[0].mxu0
  %v1380 = vadd.f32 %v1309, %v1379
  %1381 = vdwg.mxu0
  %1382 = vmatprep.subr.mxu0 %v157
  %1383 = vmatpush1.msra.mxu0 %v156
  %1384 = vmatprep.subr.mxu0 %v159
  %1385 = vmatpush1.msra.mxu0 %v158
  %1386 = vmatprep.subr.mxu0 %v161
  %1387 = vmatpush1.msra.mxu0 %v160
  %1388 = vmatprep.subr.mxu0 %v163
  %1389 = vmatpush1.msra.mxu0 %v162
  %1390 = vmatprep.subr.mxu0 %v165
  %1391 = vmatpush1.msra.mxu0 %v164
  %1392 = vmatprep.subr.mxu0 %v167
  %1393 = vmatpush1.msra.mxu0 %v166
  %1394 = vmatprep.subr.mxu0 %v169
  %1395 = vmatpush1.msra.mxu0 %v168
  %1396 = vmatprep.subr.mxu0 %v171
  %1397 = vmatpush1.msra.mxu0 %v170
  %1398 = vmatprep.subr.mxu0 %v173
  %1399 = vmatpush1.msra.mxu0 %v172
  %1400 = vmatprep.subr.mxu0 %v175
  %1401 = vmatpush1.msra.mxu0 %v174
  %1402 = vmatprep.subr.mxu0 %v177
  %1403 = vmatpush1.msra.mxu0 %v176
  %1404 = vmatprep.subr.mxu0 %v179
  %1405 = vmatpush1.msra.mxu0 %v178
  %1406 = vmatprep.subr.mxu0 %v181
  %1407 = vmatpush1.msra.mxu0 %v180
  %1408 = vmatprep.subr.mxu0 %v183
  %1409 = vmatpush1.msra.mxu0 %v182
  %1410 = vmatprep.subr.mxu0 %v185
  %1411 = vmatpush1.msra.mxu0 %v184
  %1412 = vmatprep.subr.mxu0 %v187
  %1413 = vmatpush1.msra.mxu0 %v186
  %1414 = vmatprep.subr.mxu0 %v189
  %1415 = vmatpush1.msra.mxu0 %v188
  %1416 = vmatprep.subr.mxu0 %v191
  %1417 = vmatpush1.msra.mxu0 %v190
  %1418 = vmatprep.subr.mxu0 %v193
  %1419 = vmatpush1.msra.mxu0 %v192
  %1420 = vmatprep.subr.mxu0 %v195
  %1421 = vmatpush1.msra.mxu0 %v194
  %1422 = vmatprep.subr.mxu0 %v197
  %1423 = vmatpush1.msra.mxu0 %v196
  %1424 = vmatprep.subr.mxu0 %v199
  %1425 = vmatpush1.msra.mxu0 %v198
  %1426 = vmatprep.subr.mxu0 %v201
  %1427 = vmatpush1.msra.mxu0 %v200
  %1428 = vmatprep.subr.mxu0 %v203
  %1429 = vmatpush1.msra.mxu0 %v202
  %1430 = vmatprep.subr.mxu0 %v205
  %1431 = vmatpush1.msra.mxu0 %v204
  %1432 = vmatprep.subr.mxu0 %v207
  %1433 = vmatpush1.msra.mxu0 %v206
  %1434 = vmatprep.subr.mxu0 %v209
  %1435 = vmatpush1.msra.mxu0 %v208
  %1436 = vmatprep.subr.mxu0 %v211
  %1437 = vmatpush1.msra.mxu0 %v210
  %1438 = vmatprep.subr.mxu0 %v213
  %1439 = vmatpush1.msra.mxu0 %v212
  %1440 = vmatprep.subr.mxu0 %v215
  %1441 = vmatpush1.msra.mxu0 %v214
  %1442 = vmatprep.subr.mxu0 %v217
  %1443 = vmatpush1.msra.mxu0 %v216
  %1444 = vmatprep.subr.mxu0 %v219
  %1445 = vmatpush1.msra.mxu0 %v218
  %1446 = vmatprep.mubr.f32.mxu0 %v1104
  %1447 = vmatmul.mubr.f32.gmra.mrb[0].mxu0 %v1096
  %v1448 = vpop.f32.mrb[0].mxu0
  %v1449 = vadd.f32 %v1378, %v1448
  %v1450 = vpop.f32.mrb[0].mxu0
  %v1451 = vadd.f32 %v1380, %v1450
  %1452 = vdwg.mxu0
  %1453 = vmatprep.subr.mxu0 %v221
  %1454 = vmatpush1.msra.mxu0 %v220
  %1455 = vmatprep.subr.mxu0 %v223
  %1456 = vmatpush1.msra.mxu0 %v222
  %1457 = vmatprep.subr.mxu0 %v225
  %1458 = vmatpush1.msra.mxu0 %v224
  %1459 = vmatprep.subr.mxu0 %v227
  %1460 = vmatpush1.msra.mxu0 %v226
  %1461 = vmatprep.subr.mxu0 %v229
  %1462 = vmatpush1.msra.mxu0 %v228
  %1463 = vmatprep.subr.mxu0 %v231
  %1464 = vmatpush1.msra.mxu0 %v230
  %1465 = vmatprep.subr.mxu0 %v233
  %1466 = vmatpush1.msra.mxu0 %v232
  %1467 = vmatprep.subr.mxu0 %v235
  %1468 = vmatpush1.msra.mxu0 %v234
  %1469 = vmatprep.subr.mxu0 %v237
  %1470 = vmatpush1.msra.mxu0 %v236
  %1471 = vmatprep.subr.mxu0 %v239
  %1472 = vmatpush1.msra.mxu0 %v238
  %1473 = vmatprep.subr.mxu0 %v241
  %1474 = vmatpush1.msra.mxu0 %v240
  %1475 = vmatprep.subr.mxu0 %v243
  %1476 = vmatpush1.msra.mxu0 %v242
  %1477 = vmatprep.subr.mxu0 %v245
  %1478 = vmatpush1.msra.mxu0 %v244
  %1479 = vmatprep.subr.mxu0 %v247
  %1480 = vmatpush1.msra.mxu0 %v246
  %1481 = vmatprep.subr.mxu0 %v249
  %1482 = vmatpush1.msra.mxu0 %v248
  %1483 = vmatprep.subr.mxu0 %v251
  %1484 = vmatpush1.msra.mxu0 %v250
  %1485 = vmatprep.subr.mxu0 %v253
  %1486 = vmatpush1.msra.mxu0 %v252
  %1487 = vmatprep.subr.mxu0 %v255
  %1488 = vmatpush1.msra.mxu0 %v254
  %1489 = vmatprep.subr.mxu0 %v257
  %1490 = vmatpush1.msra.mxu0 %v256
  %1491 = vmatprep.subr.mxu0 %v259
  %1492 = vmatpush1.msra.mxu0 %v258
  %1493 = vmatprep.subr.mxu0 %v261
  %1494 = vmatpush1.msra.mxu0 %v260
  %1495 = vmatprep.subr.mxu0 %v263
  %1496 = vmatpush1.msra.mxu0 %v262
  %1497 = vmatprep.subr.mxu0 %v265
  %1498 = vmatpush1.msra.mxu0 %v264
  %1499 = vmatprep.subr.mxu0 %v267
  %1500 = vmatpush1.msra.mxu0 %v266
  %1501 = vmatprep.subr.mxu0 %v269
  %1502 = vmatpush1.msra.mxu0 %v268
  %1503 = vmatprep.subr.mxu0 %v271
  %1504 = vmatpush1.msra.mxu0 %v270
  %1505 = vmatprep.subr.mxu0 %v273
  %1506 = vmatpush1.msra.mxu0 %v272
  %1507 = vmatprep.subr.mxu0 %v275
  %1508 = vmatpush1.msra.mxu0 %v274
  %1509 = vmatprep.subr.mxu0 %v277
  %1510 = vmatpush1.msra.mxu0 %v276
  %1511 = vmatprep.subr.mxu0 %v279
  %1512 = vmatpush1.msra.mxu0 %v278
  %1513 = vmatprep.subr.mxu0 %v281
  %1514 = vmatpush1.msra.mxu0 %v280
  %1515 = vmatprep.subr.mxu0 %v283
  %1516 = vmatpush1.msra.mxu0 %v282
  %1517 = vmatprep.mubr.f32.mxu0 %v1105
  %1518 = vmatmul.mubr.f32.gmra.mrb[0].mxu0 %v1103
  %v1519 = vpop.f32.mrb[0].mxu0
  %v1520 = vadd.f32 %v1449, %v1519
  %v1521 = vpop.f32.mrb[0].mxu0
  %v1522 = vadd.f32 %v1451, %v1521
  %1523 = vdwg.mxu0
  %1524 = vmatprep.subr.mxu0 %v285
  %1525 = vmatpush1.msra.mxu0 %v284
  %1526 = vmatprep.subr.mxu0 %v287
  %1527 = vmatpush1.msra.mxu0 %v286
  %1528 = vmatprep.subr.mxu0 %v289
  %1529 = vmatpush1.msra.mxu0 %v288
  %1530 = vmatprep.subr.mxu0 %v291
  %1531 = vmatpush1.msra.mxu0 %v290
  %1532 = vmatprep.subr.mxu0 %v293
  %1533 = vmatpush1.msra.mxu0 %v292
  %1534 = vmatprep.subr.mxu0 %v295
  %1535 = vmatpush1.msra.mxu0 %v294
  %1536 = vmatprep.subr.mxu0 %v297
  %1537 = vmatpush1.msra.mxu0 %v296
  %1538 = vmatprep.subr.mxu0 %v299
  %1539 = vmatpush1.msra.mxu0 %v298
  %1540 = vmatprep.subr.mxu0 %v301
  %1541 = vmatpush1.msra.mxu0 %v300
  %1542 = vmatprep.subr.mxu0 %v303
  %1543 = vmatpush1.msra.mxu0 %v302
  %1544 = vmatprep.subr.mxu0 %v305
  %1545 = vmatpush1.msra.mxu0 %v304
  %1546 = vmatprep.subr.mxu0 %v307
  %1547 = vmatpush1.msra.mxu0 %v306
  %1548 = vmatprep.subr.mxu0 %v309
  %1549 = vmatpush1.msra.mxu0 %v308
  %1550 = vmatprep.subr.mxu0 %v311
  %1551 = vmatpush1.msra.mxu0 %v310
  %1552 = vmatprep.subr.mxu0 %v313
  %1553 = vmatpush1.msra.mxu0 %v312
  %1554 = vmatprep.subr.mxu0 %v315
  %1555 = vmatpush1.msra.mxu0 %v314
  %1556 = vmatprep.subr.mxu0 %v317
  %1557 = vmatpush1.msra.mxu0 %v316
  %1558 = vmatprep.subr.mxu0 %v319
  %1559 = vmatpush1.msra.mxu0 %v318
  %1560 = vmatprep.subr.mxu0 %v321
  %1561 = vmatpush1.msra.mxu0 %v320
  %1562 = vmatprep.subr.mxu0 %v323
  %1563 = vmatpush1.msra.mxu0 %v322
  %1564 = vmatprep.subr.mxu0 %v325
  %1565 = vmatpush1.msra.mxu0 %v324
  %1566 = vmatprep.subr.mxu0 %v327
  %1567 = vmatpush1.msra.mxu0 %v326
  %1568 = vmatprep.subr.mxu0 %v329
  %1569 = vmatpush1.msra.mxu0 %v328
  %1570 = vmatprep.subr.mxu0 %v331
  %1571 = vmatpush1.msra.mxu0 %v330
  %1572 = vmatprep.subr.mxu0 %v333
  %1573 = vmatpush1.msra.mxu0 %v332
  %1574 = vmatprep.subr.mxu0 %v335
  %1575 = vmatpush1.msra.mxu0 %v334
  %1576 = vmatprep.subr.mxu0 %v337
  %1577 = vmatpush1.msra.mxu0 %v336
  %1578 = vmatprep.subr.mxu0 %v339
  %1579 = vmatpush1.msra.mxu0 %v338
  %1580 = vmatprep.subr.mxu0 %v341
  %1581 = vmatpush1.msra.mxu0 %v340
  %1582 = vmatprep.subr.mxu0 %v343
  %1583 = vmatpush1.msra.mxu0 %v342
  %1584 = vmatprep.subr.mxu0 %v345
  %1585 = vmatpush1.msra.mxu0 %v344
  %1586 = vmatprep.subr.mxu0 %v347
  %1587 = vmatpush1.msra.mxu0 %v346
  %1588 = vmatprep.mubr.f32.mxu0 %v1121
  %1589 = vmatmul.mubr.f32.gmra.mrb[0].mxu0 %v1113
  %v1590 = vpop.f32.mrb[0].mxu0
  %v1591 = vadd.f32 %v1520, %v1590
  %v1592 = vpop.f32.mrb[0].mxu0
  %v1593 = vadd.f32 %v1522, %v1592
  %1594 = vdwg.mxu0
  %1595 = vmatprep.subr.mxu0 %v349
  %1596 = vmatpush1.msra.mxu0 %v348
  %1597 = vmatprep.subr.mxu0 %v351
  %1598 = vmatpush1.msra.mxu0 %v350
  %1599 = vmatprep.subr.mxu0 %v353
  %1600 = vmatpush1.msra.mxu0 %v352
  %1601 = vmatprep.subr.mxu0 %v355
  %1602 = vmatpush1.msra.mxu0 %v354
  %1603 = vmatprep.subr.mxu0 %v357
  %1604 = vmatpush1.msra.mxu0 %v356
  %1605 = vmatprep.subr.mxu0 %v359
  %1606 = vmatpush1.msra.mxu0 %v358
  %1607 = vmatprep.subr.mxu0 %v361
  %1608 = vmatpush1.msra.mxu0 %v360
  %1609 = vmatprep.subr.mxu0 %v363
  %1610 = vmatpush1.msra.mxu0 %v362
  %1611 = vmatprep.subr.mxu0 %v365
  %1612 = vmatpush1.msra.mxu0 %v364
  %1613 = vmatprep.subr.mxu0 %v367
  %1614 = vmatpush1.msra.mxu0 %v366
  %1615 = vmatprep.subr.mxu0 %v369
  %1616 = vmatpush1.msra.mxu0 %v368
  %1617 = vmatprep.subr.mxu0 %v371
  %1618 = vmatpush1.msra.mxu0 %v370
  %1619 = vmatprep.subr.mxu0 %v373
  %1620 = vmatpush1.msra.mxu0 %v372
  %1621 = vmatprep.subr.mxu0 %v375
  %1622 = vmatpush1.msra.mxu0 %v374
  %1623 = vmatprep.subr.mxu0 %v377
  %1624 = vmatpush1.msra.mxu0 %v376
  %1625 = vmatprep.subr.mxu0 %v379
  %1626 = vmatpush1.msra.mxu0 %v378
  %1627 = vmatprep.subr.mxu0 %v381
  %1628 = vmatpush1.msra.mxu0 %v380
  %1629 = vmatprep.subr.mxu0 %v383
  %1630 = vmatpush1.msra.mxu0 %v382
  %1631 = vmatprep.subr.mxu0 %v385
  %1632 = vmatpush1.msra.mxu0 %v384
  %1633 = vmatprep.subr.mxu0 %v387
  %1634 = vmatpush1.msra.mxu0 %v386
  %1635 = vmatprep.subr.mxu0 %v389
  %1636 = vmatpush1.msra.mxu0 %v388
  %1637 = vmatprep.subr.mxu0 %v391
  %1638 = vmatpush1.msra.mxu0 %v390
  %1639 = vmatprep.subr.mxu0 %v393
  %1640 = vmatpush1.msra.mxu0 %v392
  %1641 = vmatprep.subr.mxu0 %v395
  %1642 = vmatpush1.msra.mxu0 %v394
  %1643 = vmatprep.subr.mxu0 %v397
  %1644 = vmatpush1.msra.mxu0 %v396
  %1645 = vmatprep.subr.mxu0 %v399
  %1646 = vmatpush1.msra.mxu0 %v398
  %1647 = vmatprep.subr.mxu0 %v401
  %1648 = vmatpush1.msra.mxu0 %v400
  %1649 = vmatprep.subr.mxu0 %v403
  %1650 = vmatpush1.msra.mxu0 %v402
  %1651 = vmatprep.subr.mxu0 %v405
  %1652 = vmatpush1.msra.mxu0 %v404
  %1653 = vmatprep.subr.mxu0 %v407
  %1654 = vmatpush1.msra.mxu0 %v406
  %1655 = vmatprep.subr.mxu0 %v409
  %1656 = vmatpush1.msra.mxu0 %v408
  %1657 = vmatprep.subr.mxu0 %v411
  %1658 = vmatpush1.msra.mxu0 %v410
  %1659 = vmatprep.mubr.f32.mxu0 %v1122
  %1660 = vmatmul.mubr.f32.gmra.mrb[0].mxu0 %v1120
  %v1661 = vpop.f32.mrb[0].mxu0
  %v1662 = vadd.f32 %v1591, %v1661
  %v1663 = vpop.f32.mrb[0].mxu0
  %v1664 = vadd.f32 %v1593, %v1663
  %1665 = vdwg.mxu0
  %1666 = vmatprep.subr.mxu0 %v413
  %1667 = vmatpush1.msra.mxu0 %v412
  %1668 = vmatprep.subr.mxu0 %v415
  %1669 = vmatpush1.msra.mxu0 %v414
  %1670 = vmatprep.subr.mxu0 %v417
  %1671 = vmatpush1.msra.mxu0 %v416
  %1672 = vmatprep.subr.mxu0 %v419
  %1673 = vmatpush1.msra.mxu0 %v418
  %1674 = vmatprep.subr.mxu0 %v421
  %1675 = vmatpush1.msra.mxu0 %v420
  %1676 = vmatprep.subr.mxu0 %v423
  %1677 = vmatpush1.msra.mxu0 %v422
  %1678 = vmatprep.subr.mxu0 %v425
  %1679 = vmatpush1.msra.mxu0 %v424
  %1680 = vmatprep.subr.mxu0 %v427
  %1681 = vmatpush1.msra.mxu0 %v426
  %1682 = vmatprep.subr.mxu0 %v429
  %1683 = vmatpush1.msra.mxu0 %v428
  %1684 = vmatprep.subr.mxu0 %v431
  %1685 = vmatpush1.msra.mxu0 %v430
  %1686 = vmatprep.subr.mxu0 %v433
  %1687 = vmatpush1.msra.mxu0 %v432
  %1688 = vmatprep.subr.mxu0 %v435
  %1689 = vmatpush1.msra.mxu0 %v434
  %1690 = vmatprep.subr.mxu0 %v437
  %1691 = vmatpush1.msra.mxu0 %v436
  %1692 = vmatprep.subr.mxu0 %v439
  %1693 = vmatpush1.msra.mxu0 %v438
  %1694 = vmatprep.subr.mxu0 %v441
  %1695 = vmatpush1.msra.mxu0 %v440
  %1696 = vmatprep.subr.mxu0 %v443
  %1697 = vmatpush1.msra.mxu0 %v442
  %1698 = vmatprep.subr.mxu0 %v445
  %1699 = vmatpush1.msra.mxu0 %v444
  %1700 = vmatprep.subr.mxu0 %v447
  %1701 = vmatpush1.msra.mxu0 %v446
  %1702 = vmatprep.subr.mxu0 %v449
  %1703 = vmatpush1.msra.mxu0 %v448
  %1704 = vmatprep.subr.mxu0 %v451
  %1705 = vmatpush1.msra.mxu0 %v450
  %1706 = vmatprep.subr.mxu0 %v453
  %1707 = vmatpush1.msra.mxu0 %v452
  %1708 = vmatprep.subr.mxu0 %v455
  %1709 = vmatpush1.msra.mxu0 %v454
  %1710 = vmatprep.subr.mxu0 %v457
  %1711 = vmatpush1.msra.mxu0 %v456
  %1712 = vmatprep.subr.mxu0 %v459
  %1713 = vmatpush1.msra.mxu0 %v458
  %1714 = vmatprep.subr.mxu0 %v461
  %1715 = vmatpush1.msra.mxu0 %v460
  %1716 = vmatprep.subr.mxu0 %v463
  %1717 = vmatpush1.msra.mxu0 %v462
  %1718 = vmatprep.subr.mxu0 %v465
  %1719 = vmatpush1.msra.mxu0 %v464
  %1720 = vmatprep.subr.mxu0 %v467
  %1721 = vmatpush1.msra.mxu0 %v466
  %1722 = vmatprep.subr.mxu0 %v469
  %1723 = vmatpush1.msra.mxu0 %v468
  %1724 = vmatprep.subr.mxu0 %v471
  %1725 = vmatpush1.msra.mxu0 %v470
  %1726 = vmatprep.subr.mxu0 %v473
  %1727 = vmatpush1.msra.mxu0 %v472
  %1728 = vmatprep.subr.mxu0 %v475
  %1729 = vmatpush1.msra.mxu0 %v474
  %1730 = vmatprep.mubr.f32.mxu0 %v1138
  %1731 = vmatmul.mubr.f32.gmra.mrb[0].mxu0 %v1130
  %v1732 = vpop.f32.mrb[0].mxu0
  %v1733 = vadd.f32 %v1662, %v1732
  %v1734 = vpop.f32.mrb[0].mxu0
  %v1735 = vadd.f32 %v1664, %v1734
  %1736 = vdwg.mxu0
  %1737 = vmatprep.subr.mxu0 %v477
  %1738 = vmatpush1.msra.mxu0 %v476
  %1739 = vmatprep.subr.mxu0 %v479
  %1740 = vmatpush1.msra.mxu0 %v478
  %1741 = vmatprep.subr.mxu0 %v481
  %1742 = vmatpush1.msra.mxu0 %v480
  %1743 = vmatprep.subr.mxu0 %v483
  %1744 = vmatpush1.msra.mxu0 %v482
  %1745 = vmatprep.subr.mxu0 %v485
  %1746 = vmatpush1.msra.mxu0 %v484
  %1747 = vmatprep.subr.mxu0 %v487
  %1748 = vmatpush1.msra.mxu0 %v486
  %1749 = vmatprep.subr.mxu0 %v489
  %1750 = vmatpush1.msra.mxu0 %v488
  %1751 = vmatprep.subr.mxu0 %v491
  %1752 = vmatpush1.msra.mxu0 %v490
  %1753 = vmatprep.subr.mxu0 %v493
  %1754 = vmatpush1.msra.mxu0 %v492
  %1755 = vmatprep.subr.mxu0 %v495
  %1756 = vmatpush1.msra.mxu0 %v494
  %1757 = vmatprep.subr.mxu0 %v497
  %1758 = vmatpush1.msra.mxu0 %v496
  %1759 = vmatprep.subr.mxu0 %v499
  %1760 = vmatpush1.msra.mxu0 %v498
  %1761 = vmatprep.subr.mxu0 %v501
  %1762 = vmatpush1.msra.mxu0 %v500
  %1763 = vmatprep.subr.mxu0 %v503
  %1764 = vmatpush1.msra.mxu0 %v502
  %1765 = vmatprep.subr.mxu0 %v505
  %1766 = vmatpush1.msra.mxu0 %v504
  %1767 = vmatprep.subr.mxu0 %v507
  %1768 = vmatpush1.msra.mxu0 %v506
  %1769 = vmatprep.subr.mxu0 %v509
  %1770 = vmatpush1.msra.mxu0 %v508
  %1771 = vmatprep.subr.mxu0 %v511
  %1772 = vmatpush1.msra.mxu0 %v510
  %1773 = vmatprep.subr.mxu0 %v513
  %1774 = vmatpush1.msra.mxu0 %v512
  %1775 = vmatprep.subr.mxu0 %v515
  %1776 = vmatpush1.msra.mxu0 %v514
  %1777 = vmatprep.subr.mxu0 %v517
  %1778 = vmatpush1.msra.mxu0 %v516
  %1779 = vmatprep.subr.mxu0 %v519
  %1780 = vmatpush1.msra.mxu0 %v518
  %1781 = vmatprep.subr.mxu0 %v521
  %1782 = vmatpush1.msra.mxu0 %v520
  %1783 = vmatprep.subr.mxu0 %v523
  %1784 = vmatpush1.msra.mxu0 %v522
  %1785 = vmatprep.subr.mxu0 %v525
  %1786 = vmatpush1.msra.mxu0 %v524
  %1787 = vmatprep.subr.mxu0 %v527
  %1788 = vmatpush1.msra.mxu0 %v526
  %1789 = vmatprep.subr.mxu0 %v529
  %1790 = vmatpush1.msra.mxu0 %v528
  %1791 = vmatprep.subr.mxu0 %v531
  %1792 = vmatpush1.msra.mxu0 %v530
  %1793 = vmatprep.subr.mxu0 %v533
  %1794 = vmatpush1.msra.mxu0 %v532
  %1795 = vmatprep.subr.mxu0 %v535
  %1796 = vmatpush1.msra.mxu0 %v534
  %1797 = vmatprep.subr.mxu0 %v537
  %1798 = vmatpush1.msra.mxu0 %v536
  %1799 = vmatprep.subr.mxu0 %v539
  %1800 = vmatpush1.msra.mxu0 %v538
  %1801 = vmatprep.mubr.f32.mxu0 %v1139
  %1802 = vmatmul.mubr.f32.gmra.mrb[0].mxu0 %v1137
  %v1803 = vpop.f32.mrb[0].mxu0
  %v1804 = vadd.f32 %v1733, %v1803
  %v1805 = vpop.f32.mrb[0].mxu0
  %v1806 = vadd.f32 %v1735, %v1805
  %1807 = vdwg.mxu0
  %1808 = vmatprep.subr.mxu0 %v541
  %1809 = vmatpush1.msra.mxu0 %v540
  %1810 = vmatprep.subr.mxu0 %v543
  %1811 = vmatpush1.msra.mxu0 %v542
  %1812 = vmatprep.subr.mxu0 %v545
  %1813 = vmatpush1.msra.mxu0 %v544
  %1814 = vmatprep.subr.mxu0 %v547
  %1815 = vmatpush1.msra.mxu0 %v546
  %1816 = vmatprep.subr.mxu0 %v549
  %1817 = vmatpush1.msra.mxu0 %v548
  %1818 = vmatprep.subr.mxu0 %v551
  %1819 = vmatpush1.msra.mxu0 %v550
  %1820 = vmatprep.subr.mxu0 %v553
  %1821 = vmatpush1.msra.mxu0 %v552
  %1822 = vmatprep.subr.mxu0 %v555
  %1823 = vmatpush1.msra.mxu0 %v554
  %1824 = vmatprep.subr.mxu0 %v557
  %1825 = vmatpush1.msra.mxu0 %v556
  %1826 = vmatprep.subr.mxu0 %v559
  %1827 = vmatpush1.msra.mxu0 %v558
  %1828 = vmatprep.subr.mxu0 %v561
  %1829 = vmatpush1.msra.mxu0 %v560
  %1830 = vmatprep.subr.mxu0 %v563
  %1831 = vmatpush1.msra.mxu0 %v562
  %1832 = vmatprep.subr.mxu0 %v565
  %1833 = vmatpush1.msra.mxu0 %v564
  %1834 = vmatprep.subr.mxu0 %v567
  %1835 = vmatpush1.msra.mxu0 %v566
  %1836 = vmatprep.subr.mxu0 %v569
  %1837 = vmatpush1.msra.mxu0 %v568
  %1838 = vmatprep.subr.mxu0 %v571
  %1839 = vmatpush1.msra.mxu0 %v570
  %1840 = vmatprep.subr.mxu0 %v573
  %1841 = vmatpush1.msra.mxu0 %v572
  %1842 = vmatprep.subr.mxu0 %v575
  %1843 = vmatpush1.msra.mxu0 %v574
  %1844 = vmatprep.subr.mxu0 %v577
  %1845 = vmatpush1.msra.mxu0 %v576
  %1846 = vmatprep.subr.mxu0 %v579
  %1847 = vmatpush1.msra.mxu0 %v578
  %1848 = vmatprep.subr.mxu0 %v581
  %1849 = vmatpush1.msra.mxu0 %v580
  %1850 = vmatprep.subr.mxu0 %v583
  %1851 = vmatpush1.msra.mxu0 %v582
  %1852 = vmatprep.subr.mxu0 %v585
  %1853 = vmatpush1.msra.mxu0 %v584
  %1854 = vmatprep.subr.mxu0 %v587
  %1855 = vmatpush1.msra.mxu0 %v586
  %1856 = vmatprep.subr.mxu0 %v589
  %1857 = vmatpush1.msra.mxu0 %v588
  %1858 = vmatprep.subr.mxu0 %v591
  %1859 = vmatpush1.msra.mxu0 %v590
  %1860 = vmatprep.subr.mxu0 %v593
  %1861 = vmatpush1.msra.mxu0 %v592
  %1862 = vmatprep.subr.mxu0 %v595
  %1863 = vmatpush1.msra.mxu0 %v594
  %1864 = vmatprep.subr.mxu0 %v597
  %1865 = vmatpush1.msra.mxu0 %v596
  %1866 = vmatprep.subr.mxu0 %v599
  %1867 = vmatpush1.msra.mxu0 %v598
  %1868 = vmatprep.subr.mxu0 %v601
  %1869 = vmatpush1.msra.mxu0 %v600
  %1870 = vmatprep.subr.mxu0 %v603
  %1871 = vmatpush1.msra.mxu0 %v602
  %1872 = vmatprep.mubr.f32.mxu0 %v1155
  %1873 = vmatmul.mubr.f32.gmra.mrb[0].mxu0 %v1147
  %v1874 = vpop.f32.mrb[0].mxu0
  %v1875 = vadd.f32 %v1804, %v1874
  %v1876 = vpop.f32.mrb[0].mxu0
  %v1877 = vadd.f32 %v1806, %v1876
  %1878 = vdwg.mxu0
  %1879 = vmatprep.subr.mxu0 %v605
  %1880 = vmatpush1.msra.mxu0 %v604
  %1881 = vmatprep.subr.mxu0 %v607
  %1882 = vmatpush1.msra.mxu0 %v606
  %1883 = vmatprep.subr.mxu0 %v609
  %1884 = vmatpush1.msra.mxu0 %v608
  %1885 = vmatprep.subr.mxu0 %v611
  %1886 = vmatpush1.msra.mxu0 %v610
  %1887 = vmatprep.subr.mxu0 %v613
  %1888 = vmatpush1.msra.mxu0 %v612
  %1889 = vmatprep.subr.mxu0 %v615
  %1890 = vmatpush1.msra.mxu0 %v614
  %1891 = vmatprep.subr.mxu0 %v617
  %1892 = vmatpush1.msra.mxu0 %v616
  %1893 = vmatprep.subr.mxu0 %v619
  %1894 = vmatpush1.msra.mxu0 %v618
  %1895 = vmatprep.subr.mxu0 %v621
  %1896 = vmatpush1.msra.mxu0 %v620
  %1897 = vmatprep.subr.mxu0 %v623
  %1898 = vmatpush1.msra.mxu0 %v622
  %1899 = vmatprep.subr.mxu0 %v625
  %1900 = vmatpush1.msra.mxu0 %v624
  %1901 = vmatprep.subr.mxu0 %v627
  %1902 = vmatpush1.msra.mxu0 %v626
  %1903 = vmatprep.subr.mxu0 %v629
  %1904 = vmatpush1.msra.mxu0 %v628
  %1905 = vmatprep.subr.mxu0 %v631
  %1906 = vmatpush1.msra.mxu0 %v630
  %1907 = vmatprep.subr.mxu0 %v633
  %1908 = vmatpush1.msra.mxu0 %v632
  %1909 = vmatprep.subr.mxu0 %v635
  %1910 = vmatpush1.msra.mxu0 %v634
  %1911 = vmatprep.subr.mxu0 %v637
  %1912 = vmatpush1.msra.mxu0 %v636
  %1913 = vmatprep.subr.mxu0 %v639
  %1914 = vmatpush1.msra.mxu0 %v638
  %1915 = vmatprep.subr.mxu0 %v641
  %1916 = vmatpush1.msra.mxu0 %v640
  %1917 = vmatprep.subr.mxu0 %v643
  %1918 = vmatpush1.msra.mxu0 %v642
  %1919 = vmatprep.subr.mxu0 %v645
  %1920 = vmatpush1.msra.mxu0 %v644
  %1921 = vmatprep.subr.mxu0 %v647
  %1922 = vmatpush1.msra.mxu0 %v646
  %1923 = vmatprep.subr.mxu0 %v649
  %1924 = vmatpush1.msra.mxu0 %v648
  %1925 = vmatprep.subr.mxu0 %v651
  %1926 = vmatpush1.msra.mxu0 %v650
  %1927 = vmatprep.subr.mxu0 %v653
  %1928 = vmatpush1.msra.mxu0 %v652
  %1929 = vmatprep.subr.mxu0 %v655
  %1930 = vmatpush1.msra.mxu0 %v654
  %1931 = vmatprep.subr.mxu0 %v657
  %1932 = vmatpush1.msra.mxu0 %v656
  %1933 = vmatprep.subr.mxu0 %v659
  %1934 = vmatpush1.msra.mxu0 %v658
  %1935 = vmatprep.subr.mxu0 %v661
  %1936 = vmatpush1.msra.mxu0 %v660
  %1937 = vmatprep.subr.mxu0 %v663
  %1938 = vmatpush1.msra.mxu0 %v662
  %1939 = vmatprep.subr.mxu0 %v665
  %1940 = vmatpush1.msra.mxu0 %v664
  %1941 = vmatprep.subr.mxu0 %v667
  %1942 = vmatpush1.msra.mxu0 %v666
  %1943 = vmatprep.mubr.f32.mxu0 %v1156
  %1944 = vmatmul.mubr.f32.gmra.mrb[0].mxu0 %v1154
  %v1945 = vpop.f32.mrb[0].mxu0
  %v1946 = vadd.f32 %v1875, %v1945
  %v1947 = vpop.f32.mrb[0].mxu0
  %v1948 = vadd.f32 %v1877, %v1947
  %1949 = vdwg.mxu0
  %1950 = vmatprep.subr.mxu0 %v669
  %1951 = vmatpush1.msra.mxu0 %v668
  %1952 = vmatprep.subr.mxu0 %v671
  %1953 = vmatpush1.msra.mxu0 %v670
  %1954 = vmatprep.subr.mxu0 %v673
  %1955 = vmatpush1.msra.mxu0 %v672
  %1956 = vmatprep.subr.mxu0 %v675
  %1957 = vmatpush1.msra.mxu0 %v674
  %1958 = vmatprep.subr.mxu0 %v677
  %1959 = vmatpush1.msra.mxu0 %v676
  %1960 = vmatprep.subr.mxu0 %v679
  %1961 = vmatpush1.msra.mxu0 %v678
  %1962 = vmatprep.subr.mxu0 %v681
  %1963 = vmatpush1.msra.mxu0 %v680
  %1964 = vmatprep.subr.mxu0 %v683
  %1965 = vmatpush1.msra.mxu0 %v682
  %1966 = vmatprep.subr.mxu0 %v685
  %1967 = vmatpush1.msra.mxu0 %v684
  %1968 = vmatprep.subr.mxu0 %v687
  %1969 = vmatpush1.msra.mxu0 %v686
  %1970 = vmatprep.subr.mxu0 %v689
  %1971 = vmatpush1.msra.mxu0 %v688
  %1972 = vmatprep.subr.mxu0 %v691
  %1973 = vmatpush1.msra.mxu0 %v690
  %1974 = vmatprep.subr.mxu0 %v693
  %1975 = vmatpush1.msra.mxu0 %v692
  %1976 = vmatprep.subr.mxu0 %v695
  %1977 = vmatpush1.msra.mxu0 %v694
  %1978 = vmatprep.subr.mxu0 %v697
  %1979 = vmatpush1.msra.mxu0 %v696
  %1980 = vmatprep.subr.mxu0 %v699
  %1981 = vmatpush1.msra.mxu0 %v698
  %1982 = vmatprep.subr.mxu0 %v701
  %1983 = vmatpush1.msra.mxu0 %v700
  %1984 = vmatprep.subr.mxu0 %v703
  %1985 = vmatpush1.msra.mxu0 %v702
  %1986 = vmatprep.subr.mxu0 %v705
  %1987 = vmatpush1.msra.mxu0 %v704
  %1988 = vmatprep.subr.mxu0 %v707
  %1989 = vmatpush1.msra.mxu0 %v706
  %1990 = vmatprep.subr.mxu0 %v709
  %1991 = vmatpush1.msra.mxu0 %v708
  %1992 = vmatprep.subr.mxu0 %v711
  %1993 = vmatpush1.msra.mxu0 %v710
  %1994 = vmatprep.subr.mxu0 %v713
  %1995 = vmatpush1.msra.mxu0 %v712
  %1996 = vmatprep.subr.mxu0 %v715
  %1997 = vmatpush1.msra.mxu0 %v714
  %1998 = vmatprep.subr.mxu0 %v717
  %1999 = vmatpush1.msra.mxu0 %v716
  %2000 = vmatprep.subr.mxu0 %v719
  %2001 = vmatpush1.msra.mxu0 %v718
  %2002 = vmatprep.subr.mxu0 %v721
  %2003 = vmatpush1.msra.mxu0 %v720
  %2004 = vmatprep.subr.mxu0 %v723
  %2005 = vmatpush1.msra.mxu0 %v722
  %2006 = vmatprep.subr.mxu0 %v725
  %2007 = vmatpush1.msra.mxu0 %v724
  %2008 = vmatprep.subr.mxu0 %v727
  %2009 = vmatpush1.msra.mxu0 %v726
  %2010 = vmatprep.subr.mxu0 %v729
  %2011 = vmatpush1.msra.mxu0 %v728
  %2012 = vmatprep.subr.mxu0 %v731
  %2013 = vmatpush1.msra.mxu0 %v730
  %2014 = vmatprep.mubr.f32.mxu0 %v1172
  %2015 = vmatmul.mubr.f32.gmra.mrb[0].mxu0 %v1164
  %v2016 = vpop.f32.mrb[0].mxu0
  %v2017 = vadd.f32 %v1946, %v2016
  %v2018 = vpop.f32.mrb[0].mxu0
  %v2019 = vadd.f32 %v1948, %v2018
  %2020 = vdwg.mxu0
  %2021 = vmatprep.subr.mxu0 %v733
  %2022 = vmatpush1.msra.mxu0 %v732
  %2023 = vmatprep.subr.mxu0 %v735
  %2024 = vmatpush1.msra.mxu0 %v734
  %2025 = vmatprep.subr.mxu0 %v737
  %2026 = vmatpush1.msra.mxu0 %v736
  %2027 = vmatprep.subr.mxu0 %v739
  %2028 = vmatpush1.msra.mxu0 %v738
  %2029 = vmatprep.subr.mxu0 %v741
  %2030 = vmatpush1.msra.mxu0 %v740
  %2031 = vmatprep.subr.mxu0 %v743
  %2032 = vmatpush1.msra.mxu0 %v742
  %2033 = vmatprep.subr.mxu0 %v745
  %2034 = vmatpush1.msra.mxu0 %v744
  %2035 = vmatprep.subr.mxu0 %v747
  %2036 = vmatpush1.msra.mxu0 %v746
  %2037 = vmatprep.subr.mxu0 %v749
  %2038 = vmatpush1.msra.mxu0 %v748
  %2039 = vmatprep.subr.mxu0 %v751
  %2040 = vmatpush1.msra.mxu0 %v750
  %2041 = vmatprep.subr.mxu0 %v753
  %2042 = vmatpush1.msra.mxu0 %v752
  %2043 = vmatprep.subr.mxu0 %v755
  %2044 = vmatpush1.msra.mxu0 %v754
  %2045 = vmatprep.subr.mxu0 %v757
  %2046 = vmatpush1.msra.mxu0 %v756
  %2047 = vmatprep.subr.mxu0 %v759
  %2048 = vmatpush1.msra.mxu0 %v758
  %2049 = vmatprep.subr.mxu0 %v761
  %2050 = vmatpush1.msra.mxu0 %v760
  %2051 = vmatprep.subr.mxu0 %v763
  %2052 = vmatpush1.msra.mxu0 %v762
  %2053 = vmatprep.subr.mxu0 %v765
  %2054 = vmatpush1.msra.mxu0 %v764
  %2055 = vmatprep.subr.mxu0 %v767
  %2056 = vmatpush1.msra.mxu0 %v766
  %2057 = vmatprep.subr.mxu0 %v769
  %2058 = vmatpush1.msra.mxu0 %v768
  %2059 = vmatprep.subr.mxu0 %v771
  %2060 = vmatpush1.msra.mxu0 %v770
  %2061 = vmatprep.subr.mxu0 %v773
  %2062 = vmatpush1.msra.mxu0 %v772
  %2063 = vmatprep.subr.mxu0 %v775
  %2064 = vmatpush1.msra.mxu0 %v774
  %2065 = vmatprep.subr.mxu0 %v777
  %2066 = vmatpush1.msra.mxu0 %v776
  %2067 = vmatprep.subr.mxu0 %v779
  %2068 = vmatpush1.msra.mxu0 %v778
  %2069 = vmatprep.subr.mxu0 %v781
  %2070 = vmatpush1.msra.mxu0 %v780
  %2071 = vmatprep.subr.mxu0 %v783
  %2072 = vmatpush1.msra.mxu0 %v782
  %2073 = vmatprep.subr.mxu0 %v785
  %2074 = vmatpush1.msra.mxu0 %v784
  %2075 = vmatprep.subr.mxu0 %v787
  %2076 = vmatpush1.msra.mxu0 %v786
  %2077 = vmatprep.subr.mxu0 %v789
  %2078 = vmatpush1.msra.mxu0 %v788
  %2079 = vmatprep.subr.mxu0 %v791
  %2080 = vmatpush1.msra.mxu0 %v790
  %2081 = vmatprep.subr.mxu0 %v793
  %2082 = vmatpush1.msra.mxu0 %v792
  %2083 = vmatprep.subr.mxu0 %v795
  %2084 = vmatpush1.msra.mxu0 %v794
  %2085 = vmatprep.mubr.f32.mxu0 %v1173
  %2086 = vmatmul.mubr.f32.gmra.mrb[0].mxu0 %v1171
  %v2087 = vpop.f32.mrb[0].mxu0
  %v2088 = vadd.f32 %v2017, %v2087
  %v2089 = vpop.f32.mrb[0].mxu0
  %v2090 = vadd.f32 %v2019, %v2089
  %2091 = vdwg.mxu0
  %2092 = vmatprep.subr.mxu0 %v797
  %2093 = vmatpush1.msra.mxu0 %v796
  %2094 = vmatprep.subr.mxu0 %v799
  %2095 = vmatpush1.msra.mxu0 %v798
  %2096 = vmatprep.subr.mxu0 %v801
  %2097 = vmatpush1.msra.mxu0 %v800
  %2098 = vmatprep.subr.mxu0 %v803
  %2099 = vmatpush1.msra.mxu0 %v802
  %2100 = vmatprep.subr.mxu0 %v805
  %2101 = vmatpush1.msra.mxu0 %v804
  %2102 = vmatprep.subr.mxu0 %v807
  %2103 = vmatpush1.msra.mxu0 %v806
  %2104 = vmatprep.subr.mxu0 %v809
  %2105 = vmatpush1.msra.mxu0 %v808
  %2106 = vmatprep.subr.mxu0 %v811
  %2107 = vmatpush1.msra.mxu0 %v810
  %2108 = vmatprep.subr.mxu0 %v813
  %2109 = vmatpush1.msra.mxu0 %v812
  %2110 = vmatprep.subr.mxu0 %v815
  %2111 = vmatpush1.msra.mxu0 %v814
  %2112 = vmatprep.subr.mxu0 %v817
  %2113 = vmatpush1.msra.mxu0 %v816
  %2114 = vmatprep.subr.mxu0 %v819
  %2115 = vmatpush1.msra.mxu0 %v818
  %2116 = vmatprep.subr.mxu0 %v821
  %2117 = vmatpush1.msra.mxu0 %v820
  %2118 = vmatprep.subr.mxu0 %v823
  %2119 = vmatpush1.msra.mxu0 %v822
  %2120 = vmatprep.subr.mxu0 %v825
  %2121 = vmatpush1.msra.mxu0 %v824
  %2122 = vmatprep.subr.mxu0 %v827
  %2123 = vmatpush1.msra.mxu0 %v826
  %2124 = vmatprep.subr.mxu0 %v829
  %2125 = vmatpush1.msra.mxu0 %v828
  %2126 = vmatprep.subr.mxu0 %v831
  %2127 = vmatpush1.msra.mxu0 %v830
  %2128 = vmatprep.subr.mxu0 %v833
  %2129 = vmatpush1.msra.mxu0 %v832
  %2130 = vmatprep.subr.mxu0 %v835
  %2131 = vmatpush1.msra.mxu0 %v834
  %2132 = vmatprep.subr.mxu0 %v837
  %2133 = vmatpush1.msra.mxu0 %v836
  %2134 = vmatprep.subr.mxu0 %v839
  %2135 = vmatpush1.msra.mxu0 %v838
  %2136 = vmatprep.subr.mxu0 %v841
  %2137 = vmatpush1.msra.mxu0 %v840
  %2138 = vmatprep.subr.mxu0 %v843
  %2139 = vmatpush1.msra.mxu0 %v842
  %2140 = vmatprep.subr.mxu0 %v845
  %2141 = vmatpush1.msra.mxu0 %v844
  %2142 = vmatprep.subr.mxu0 %v847
  %2143 = vmatpush1.msra.mxu0 %v846
  %2144 = vmatprep.subr.mxu0 %v849
  %2145 = vmatpush1.msra.mxu0 %v848
  %2146 = vmatprep.subr.mxu0 %v851
  %2147 = vmatpush1.msra.mxu0 %v850
  %2148 = vmatprep.subr.mxu0 %v853
  %2149 = vmatpush1.msra.mxu0 %v852
  %2150 = vmatprep.subr.mxu0 %v855
  %2151 = vmatpush1.msra.mxu0 %v854
  %2152 = vmatprep.subr.mxu0 %v857
  %2153 = vmatpush1.msra.mxu0 %v856
  %2154 = vmatprep.subr.mxu0 %v859
  %2155 = vmatpush1.msra.mxu0 %v858
  %2156 = vmatprep.mubr.f32.mxu0 %v1189
  %2157 = vmatmul.mubr.f32.gmra.mrb[0].mxu0 %v1181
  %v2158 = vpop.f32.mrb[0].mxu0
  %v2159 = vadd.f32 %v2088, %v2158
  %v2160 = vpop.f32.mrb[0].mxu0
  %v2161 = vadd.f32 %v2090, %v2160
  %2162 = vdwg.mxu0
  %2163 = vmatprep.subr.mxu0 %v861
  %2164 = vmatpush1.msra.mxu0 %v860
  %2165 = vmatprep.subr.mxu0 %v863
  %2166 = vmatpush1.msra.mxu0 %v862
  %2167 = vmatprep.subr.mxu0 %v865
  %2168 = vmatpush1.msra.mxu0 %v864
  %2169 = vmatprep.subr.mxu0 %v867
  %2170 = vmatpush1.msra.mxu0 %v866
  %2171 = vmatprep.subr.mxu0 %v869
  %2172 = vmatpush1.msra.mxu0 %v868
  %2173 = vmatprep.subr.mxu0 %v871
  %2174 = vmatpush1.msra.mxu0 %v870
  %2175 = vmatprep.subr.mxu0 %v873
  %2176 = vmatpush1.msra.mxu0 %v872
  %2177 = vmatprep.subr.mxu0 %v875
  %2178 = vmatpush1.msra.mxu0 %v874
  %2179 = vmatprep.subr.mxu0 %v877
  %2180 = vmatpush1.msra.mxu0 %v876
  %2181 = vmatprep.subr.mxu0 %v879
  %2182 = vmatpush1.msra.mxu0 %v878
  %2183 = vmatprep.subr.mxu0 %v881
  %2184 = vmatpush1.msra.mxu0 %v880
  %2185 = vmatprep.subr.mxu0 %v883
  %2186 = vmatpush1.msra.mxu0 %v882
  %2187 = vmatprep.subr.mxu0 %v885
  %2188 = vmatpush1.msra.mxu0 %v884
  %2189 = vmatprep.subr.mxu0 %v887
  %2190 = vmatpush1.msra.mxu0 %v886
  %2191 = vmatprep.subr.mxu0 %v889
  %2192 = vmatpush1.msra.mxu0 %v888
  %2193 = vmatprep.subr.mxu0 %v891
  %2194 = vmatpush1.msra.mxu0 %v890
  %2195 = vmatprep.subr.mxu0 %v893
  %2196 = vmatpush1.msra.mxu0 %v892
  %2197 = vmatprep.subr.mxu0 %v895
  %2198 = vmatpush1.msra.mxu0 %v894
  %2199 = vmatprep.subr.mxu0 %v897
  %2200 = vmatpush1.msra.mxu0 %v896
  %2201 = vmatprep.subr.mxu0 %v899
  %2202 = vmatpush1.msra.mxu0 %v898
  %2203 = vmatprep.subr.mxu0 %v901
  %2204 = vmatpush1.msra.mxu0 %v900
  %2205 = vmatprep.subr.mxu0 %v903
  %2206 = vmatpush1.msra.mxu0 %v902
  %2207 = vmatprep.subr.mxu0 %v905
  %2208 = vmatpush1.msra.mxu0 %v904
  %2209 = vmatprep.subr.mxu0 %v907
  %2210 = vmatpush1.msra.mxu0 %v906
  %2211 = vmatprep.subr.mxu0 %v909
  %2212 = vmatpush1.msra.mxu0 %v908
  %2213 = vmatprep.subr.mxu0 %v911
  %2214 = vmatpush1.msra.mxu0 %v910
  %2215 = vmatprep.subr.mxu0 %v913
  %2216 = vmatpush1.msra.mxu0 %v912
  %2217 = vmatprep.subr.mxu0 %v915
  %2218 = vmatpush1.msra.mxu0 %v914
  %2219 = vmatprep.subr.mxu0 %v917
  %2220 = vmatpush1.msra.mxu0 %v916
  %2221 = vmatprep.subr.mxu0 %v919
  %2222 = vmatpush1.msra.mxu0 %v918
  %2223 = vmatprep.subr.mxu0 %v921
  %2224 = vmatpush1.msra.mxu0 %v920
  %2225 = vmatprep.subr.mxu0 %v923
  %2226 = vmatpush1.msra.mxu0 %v922
  %2227 = vmatprep.mubr.f32.mxu0 %v1190
  %2228 = vmatmul.mubr.f32.gmra.mrb[0].mxu0 %v1188
  %v2229 = vpop.f32.mrb[0].mxu0
  %v2230 = vadd.f32 %v2159, %v2229
  %v2231 = vpop.f32.mrb[0].mxu0
  %v2232 = vadd.f32 %v2161, %v2231
  %2233 = vdwg.mxu0
  %2234 = vmatprep.subr.mxu0 %v925
  %2235 = vmatpush1.msra.mxu0 %v924
  %2236 = vmatprep.subr.mxu0 %v927
  %2237 = vmatpush1.msra.mxu0 %v926
  %2238 = vmatprep.subr.mxu0 %v929
  %2239 = vmatpush1.msra.mxu0 %v928
  %2240 = vmatprep.subr.mxu0 %v931
  %2241 = vmatpush1.msra.mxu0 %v930
  %2242 = vmatprep.subr.mxu0 %v933
  %2243 = vmatpush1.msra.mxu0 %v932
  %2244 = vmatprep.subr.mxu0 %v935
  %2245 = vmatpush1.msra.mxu0 %v934
  %2246 = vmatprep.subr.mxu0 %v937
  %2247 = vmatpush1.msra.mxu0 %v936
  %2248 = vmatprep.subr.mxu0 %v939
  %2249 = vmatpush1.msra.mxu0 %v938
  %2250 = vmatprep.subr.mxu0 %v941
  %2251 = vmatpush1.msra.mxu0 %v940
  %2252 = vmatprep.subr.mxu0 %v943
  %2253 = vmatpush1.msra.mxu0 %v942
  %2254 = vmatprep.subr.mxu0 %v945
  %2255 = vmatpush1.msra.mxu0 %v944
  %2256 = vmatprep.subr.mxu0 %v947
  %2257 = vmatpush1.msra.mxu0 %v946
  %2258 = vmatprep.subr.mxu0 %v949
  %2259 = vmatpush1.msra.mxu0 %v948
  %2260 = vmatprep.subr.mxu0 %v951
  %2261 = vmatpush1.msra.mxu0 %v950
  %2262 = vmatprep.subr.mxu0 %v953
  %2263 = vmatpush1.msra.mxu0 %v952
  %2264 = vmatprep.subr.mxu0 %v955
  %2265 = vmatpush1.msra.mxu0 %v954
  %2266 = vmatprep.subr.mxu0 %v957
  %2267 = vmatpush1.msra.mxu0 %v956
  %2268 = vmatprep.subr.mxu0 %v959
  %2269 = vmatpush1.msra.mxu0 %v958
  %2270 = vmatprep.subr.mxu0 %v961
  %2271 = vmatpush1.msra.mxu0 %v960
  %2272 = vmatprep.subr.mxu0 %v963
  %2273 = vmatpush1.msra.mxu0 %v962
  %2274 = vmatprep.subr.mxu0 %v965
  %2275 = vmatpush1.msra.mxu0 %v964
  %2276 = vmatprep.subr.mxu0 %v967
  %2277 = vmatpush1.msra.mxu0 %v966
  %2278 = vmatprep.subr.mxu0 %v969
  %2279 = vmatpush1.msra.mxu0 %v968
  %2280 = vmatprep.subr.mxu0 %v971
  %2281 = vmatpush1.msra.mxu0 %v970
  %2282 = vmatprep.subr.mxu0 %v973
  %2283 = vmatpush1.msra.mxu0 %v972
  %2284 = vmatprep.subr.mxu0 %v975
  %2285 = vmatpush1.msra.mxu0 %v974
  %2286 = vmatprep.subr.mxu0 %v977
  %2287 = vmatpush1.msra.mxu0 %v976
  %2288 = vmatprep.subr.mxu0 %v979
  %2289 = vmatpush1.msra.mxu0 %v978
  %2290 = vmatprep.subr.mxu0 %v981
  %2291 = vmatpush1.msra.mxu0 %v980
  %2292 = vmatprep.subr.mxu0 %v983
  %2293 = vmatpush1.msra.mxu0 %v982
  %2294 = vmatprep.subr.mxu0 %v985
  %2295 = vmatpush1.msra.mxu0 %v984
  %2296 = vmatprep.subr.mxu0 %v987
  %2297 = vmatpush1.msra.mxu0 %v986
  %2298 = vmatprep.mubr.f32.mxu0 %v1206
  %2299 = vmatmul.mubr.f32.gmra.mrb[0].mxu0 %v1198
  %v2300 = vpop.f32.mrb[0].mxu0
  %v2301 = vadd.f32 %v2230, %v2300
  %v2302 = vpop.f32.mrb[0].mxu0
  %v2303 = vadd.f32 %v2232, %v2302
  %2304 = vdwg.mxu0
  %2305 = vmatprep.subr.mxu0 %v989
  %2306 = vmatpush1.msra.mxu0 %v988
  %2307 = vmatprep.subr.mxu0 %v991
  %2308 = vmatpush1.msra.mxu0 %v990
  %2309 = vmatprep.subr.mxu0 %v993
  %2310 = vmatpush1.msra.mxu0 %v992
  %2311 = vmatprep.subr.mxu0 %v995
  %2312 = vmatpush1.msra.mxu0 %v994
  %2313 = vmatprep.subr.mxu0 %v997
  %2314 = vmatpush1.msra.mxu0 %v996
  %2315 = vmatprep.subr.mxu0 %v999
  %2316 = vmatpush1.msra.mxu0 %v998
  %2317 = vmatprep.subr.mxu0 %v1001
  %2318 = vmatpush1.msra.mxu0 %v1000
  %2319 = vmatprep.subr.mxu0 %v1003
  %2320 = vmatpush1.msra.mxu0 %v1002
  %2321 = vmatprep.subr.mxu0 %v1005
  %2322 = vmatpush1.msra.mxu0 %v1004
  %2323 = vmatprep.subr.mxu0 %v1007
  %2324 = vmatpush1.msra.mxu0 %v1006
  %2325 = vmatprep.subr.mxu0 %v1009
  %2326 = vmatpush1.msra.mxu0 %v1008
  %2327 = vmatprep.subr.mxu0 %v1011
  %2328 = vmatpush1.msra.mxu0 %v1010
  %2329 = vmatprep.subr.mxu0 %v1013
  %2330 = vmatpush1.msra.mxu0 %v1012
  %2331 = vmatprep.subr.mxu0 %v1015
  %2332 = vmatpush1.msra.mxu0 %v1014
  %2333 = vmatprep.subr.mxu0 %v1017
  %2334 = vmatpush1.msra.mxu0 %v1016
  %2335 = vmatprep.subr.mxu0 %v1019
  %2336 = vmatpush1.msra.mxu0 %v1018
  %2337 = vmatprep.subr.mxu0 %v1021
  %2338 = vmatpush1.msra.mxu0 %v1020
  %2339 = vmatprep.subr.mxu0 %v1023
  %2340 = vmatpush1.msra.mxu0 %v1022
  %2341 = vmatprep.subr.mxu0 %v1025
  %2342 = vmatpush1.msra.mxu0 %v1024
  %2343 = vmatprep.subr.mxu0 %v1027
  %2344 = vmatpush1.msra.mxu0 %v1026
  %2345 = vmatprep.subr.mxu0 %v1029
  %2346 = vmatpush1.msra.mxu0 %v1028
  %2347 = vmatprep.subr.mxu0 %v1031
  %2348 = vmatpush1.msra.mxu0 %v1030
  %2349 = vmatprep.subr.mxu0 %v1033
  %2350 = vmatpush1.msra.mxu0 %v1032
  %2351 = vmatprep.subr.mxu0 %v1035
  %2352 = vmatpush1.msra.mxu0 %v1034
  %2353 = vmatprep.subr.mxu0 %v1037
  %2354 = vmatpush1.msra.mxu0 %v1036
  %2355 = vmatprep.subr.mxu0 %v1039
  %2356 = vmatpush1.msra.mxu0 %v1038
  %2357 = vmatprep.subr.mxu0 %v1041
  %2358 = vmatpush1.msra.mxu0 %v1040
  %2359 = vmatprep.subr.mxu0 %v1043
  %2360 = vmatpush1.msra.mxu0 %v1042
  %2361 = vmatprep.subr.mxu0 %v1045
  %2362 = vmatpush1.msra.mxu0 %v1044
  %2363 = vmatprep.subr.mxu0 %v1047
  %2364 = vmatpush1.msra.mxu0 %v1046
  %2365 = vmatprep.subr.mxu0 %v1049
  %2366 = vmatpush1.msra.mxu0 %v1048
  %2367 = vmatprep.subr.mxu0 %v1051
  %2368 = vmatpush1.msra.mxu0 %v1050
  %2369 = vmatprep.mubr.f32.mxu0 %v1207
  %2370 = vmatmul.mubr.f32.gmra.mrb[0].mxu0 %v1205
  %v2371 = vpop.f32.mrb[0].mxu0
  %v2372 = vadd.f32 %v2301, %v2371
  %v2373 = vpop.f32.mrb[0].mxu0
  %v2374 = vadd.f32 %v2303, %v2373
  %2375 = vdwg.mxu0
  %vm2376 = vcmask 1041408
  %v2377 = vsel %vm2376, %v2372, 0.0
  %v2378 = vrot.slane %v2377, 4
  %v2379 = vadd.f32 %v2377, %v2378
  %v2380 = vrot.slane %v2379, 2
  %v2381 = vadd.f32 %v2379, %v2380
  %v2382 = vrot.slane %v2381, 1
  %v2383 = vadd.f32 %v2381, %v2382
  %v2384 = vsel %vm2376, %v2374, 0.0
  %v2385 = vrot.slane %v2384, 4
  %v2386 = vadd.f32 %v2384, %v2385
  %v2387 = vrot.slane %v2386, 2
  %v2388 = vadd.f32 %v2386, %v2387
  %v2389 = vrot.slane %v2388, 1
  %v2390 = vadd.f32 %v2388, %v2389
  %v2391 = vrcp.pop 2.0
  %v2392 = vmul.f32 %v2383, %v2391
  %v2393 = vmul.f32 %v2390, %v2391
  %v2394 = vmul.f32 %v2372, %v2372
  %v2395 = vmul.f32 %v2374, %v2374
  %v2396 = vsel %vm2376, %v2394, 0.0
  %v2397 = vrot.slane %v2396, 4
  %v2398 = vadd.f32 %v2396, %v2397
  %v2399 = vrot.slane %v2398, 2
  %v2400 = vadd.f32 %v2398, %v2399
  %v2401 = vrot.slane %v2400, 1
  %v2402 = vadd.f32 %v2400, %v2401
  %v2403 = vsel %vm2376, %v2395, 0.0
  %v2404 = vrot.slane %v2403, 4
  %v2405 = vadd.f32 %v2403, %v2404
  %v2406 = vrot.slane %v2405, 2
  %v2407 = vadd.f32 %v2405, %v2406
  %v2408 = vrot.slane %v2407, 1
  %v2409 = vadd.f32 %v2407, %v2408
  %v2410 = vmul.f32 %v2402, %v2391
  %v2411 = vmul.f32 %v2409, %v2391
  %v2412 = vmul.f32 %v2392, %v2392
  %v2413 = vmul.f32 %v2393, %v2393
  %v2414 = vsub.f32 %v2410, %v2412
  %v2415 = vsub.f32 %v2411, %v2413
  %v2416 = vsub.f32 %v2372, %v2392
  %v2417 = vsub.f32 %v2374, %v2393
  %v2418 = vadd.f32 %v2414, 1e-05
  %v2419 = vadd.f32 %v2415, 1e-05
  %v2420 = vrsqrt.pop %v2418
  %v2421 = vrsqrt.pop %v2419
  %v2422 = vmul.f32 %v2416, %v2420
  %v2423 = vmul.f32 %v2417, %v2421
  %v2424 = vld [vmem:[%s3] sm:$0x3]
  %v2426 = vlaneseq
  %v2427 = vshrl.u32 %v2426, 7
  %v2428 = vsub.s32 0, %v2427
  %v2429 = vrot.slane %v2424, %v2428
  %v2430 = vlaneseq
  %v2431 = vshrl.u32 %v2430, 7
  %v2432 = vsub.s32 1, %v2431
  %v2433 = vrot.slane %v2424, %v2432
  %v2436 = vmul.f32 %v2422, %v2429
  %v2437 = vmul.f32 %v2423, %v2433
  %v2438 = vld [vmem:[%s4] sm:$0x3]
  %v2440 = vlaneseq
  %v2441 = vshrl.u32 %v2440, 7
  %v2442 = vsub.s32 0, %v2441
  %v2443 = vrot.slane %v2438, %v2442
  %v2444 = vlaneseq
  %v2445 = vshrl.u32 %v2444, 7
  %v2446 = vsub.s32 1, %v2445
  %v2447 = vrot.slane %v2438, %v2446
  %v2450 = vadd.f32 %v2436, %v2443
  %v2451 = vadd.f32 %v2437, %v2447
  %v2452 = vmax.f32 %v2450, 0.0
  %v2453 = vmax.f32 %v2451, 0.0
  %v2456 = vcombine.low %v2452, %v2453
  %v2458 = vunpack.c.l.s4 1983009808
  %v2459 = vunpack.c.0.s8 %v2458
  %v2460 = vlaneseq
  %v2461 = vshrl.u32 %v2460, 7
  %v2462 = vsub.s32 %v2459, %v2461
  %v2463 = vrot.slane %v2456, %v2462
  %2465 = vst [vmem:[%s5] sm:$0xf] %v2463
  // Predicated region
  $region22: #{convnet_forward.9} parent=0 // pred_check
    _
  $region23: #{convnet_forward.9} parent=0 // pred_check_branch
    %2467 = sbr.rel (0) target = $region25
  $region24: #{convnet_forward.9} parent=0 // pred_region
    _
  $region25: #{convnet_forward.9} parent=0 // pred_fallthru
    _
  // Predicated region
  $region26: #{convnet_forward.9} parent=0 // pred_check
    _
  $region27: #{convnet_forward.9} parent=0 // pred_check_branch
    %2469 = sbr.rel (0) target = $region29
  $region28: #{convnet_forward.9} parent=0 // pred_region
    _
  $region29: #{convnet_forward.9} parent=0 // pred_fallthru
    _

// kernel: convnet_forward.11
$region0: #{convnet_forward.11}
  #allocation0 [shape = 'u32[]', space=smem, size = 0x4, offset = 0x4, fixed_abs, tag = 'smem constant byte address 0x4 - core index']
  #allocation1 [shape = 'u32[144,128]{1,0:T(1,128)}', space=vmem, size = 0x12000, scoped, tag = 'internal scratch']
  %s0 = inlined_call_operand.vmem [shape: f32[2,32], index: 0, kind: input, shape index: {}]
  %s1 = inlined_call_operand.vmem [shape: f32[32,6], index: 1, kind: input, shape index: {}]
  %s2 = inlined_call_operand.vmem [shape: f32[1,6], index: 2, kind: input, shape index: {}]
  %s3 = inlined_call_operand.hbm [shape: f32[2,6], index: 3, kind: output, shape index: {}]
  %s4 = sld [smem:[#allocation0]]
  $region22: #{convnet_forward.11} parent=0
    _
  %s6 = ssub.s32 1, %s4
  %s7 = scalar_select 0, %s6, %s4
  $region1: #{convnet_forward.11} parent=0
    #allocation2 [shape = 'u8[1024]{0}', space=vmem, size = 0x400, scoped, tag = 'output window, operand 0, single buffered']
    #allocation3 [shape = 's32[1]{0}', space=sflag, size = 0x4, scoped, tag = 'scoped memory for convnet_forward.11']
    %8 = vsyncpa [#allocation3], 0
    // Predicated region
    $region2: #{convnet_forward.11} parent=1 // pred_check
      _
    $region3: #{convnet_forward.11} parent=1 // pred_check_branch
      %10 = sbr.rel (0) target = $region5
    $region4: #{convnet_forward.11} parent=1 // pred_region
      _
    $region5: #{convnet_forward.11} parent=1 // pred_fallthru
      _
    // Predicated region
    $region6: #{convnet_forward.11} parent=1 // pred_check
      _
    $region7: #{convnet_forward.11} parent=1 // pred_check_branch
      %12 = sbr.rel (0) target = $region9
    $region8: #{convnet_forward.11} parent=1 // pred_region
      _
    $region9: #{convnet_forward.11} parent=1 // pred_fallthru
      _
    // Predicated region
    $region10: #{convnet_forward.11} parent=1 // pred_check
      _
    $region11: #{convnet_forward.11} parent=1 // pred_check_branch
      %14 = sbr.rel (0) target = $region13
    $region12: #{convnet_forward.11} parent=1 // pred_region
      _
    $region13: #{convnet_forward.11} parent=1 // pred_fallthru
      _
    %v15 = vld [vmem:[%s0] sm:$0x3]
    %v16 = vld [vmem:[%s1] sm:$0xff]
    %v17 = vld [vmem:[%s1 + $0x8] sm:$0xff]
    %v18 = vld [vmem:[%s1 + $0x10] sm:$0xff]
    %v19 = vld [vmem:[%s1 + $0x18] sm:$0xff]
    %v20 = vld [vmem:[%s2] sm:$0x1]
    %v22 = vlaneseq
    %v23 = vshrl.u32 %v22, 7
    %v24 = vsub.s32 0, %v23
    %v25 = vrot.slane %v20, %v24
    %vm27 = vcmask 261120
    %v29 = vsel %vm27, %v15, 0
    %31 = vmatprep.subr.mxu0 0.0
    %32 = vmatpush1.msra.mxu0 %v16
    %33 = vmatprep.subr.mxu0 0.0
    %34 = vmatpush1.msra.mxu0 %v17
    %35 = vmatprep.subr.mxu0 0.0
    %36 = vmatpush1.msra.mxu0 %v18
    %37 = vmatprep.subr.mxu0 0.0
    %38 = vmatpush1.msra.mxu0 %v19
    %39 = vmatprep.subr.mxu0 0.0
    %40 = vmatpush1.msra.mxu0 0.0
    %41 = vmatprep.subr.mxu0 0.0
    %42 = vmatpush1.msra.mxu0 0.0
    %43 = vmatprep.subr.mxu0 0.0
    %44 = vmatpush1.msra.mxu0 0.0
    %45 = vmatprep.subr.mxu0 0.0
    %46 = vmatpush1.msra.mxu0 0.0
    %47 = vmatprep.subr.mxu0 0.0
    %48 = vmatpush1.msra.mxu0 0.0
    %49 = vmatprep.subr.mxu0 0.0
    %50 = vmatpush1.msra.mxu0 0.0
    %51 = vmatprep.subr.mxu0 0.0
    %52 = vmatpush1.msra.mxu0 0.0
    %53 = vmatprep.subr.mxu0 0.0
    %54 = vmatpush1.msra.mxu0 0.0
    %55 = vmatprep.subr.mxu0 0.0
    %56 = vmatpush1.msra.mxu0 0.0
    %57 = vmatprep.subr.mxu0 0.0
    %58 = vmatpush1.msra.mxu0 0.0
    %59 = vmatprep.subr.mxu0 0.0
    %60 = vmatpush1.msra.mxu0 0.0
    %61 = vmatprep.subr.mxu0 0.0
    %62 = vmatpush1.msra.mxu0 0.0
    %63 = vmatprep.subr.mxu0 0.0
    %64 = vmatpush1.msra.mxu0 0.0
    %65 = vmatprep.subr.mxu0 0.0
    %66 = vmatpush1.msra.mxu0 0.0
    %67 = vmatprep.subr.mxu0 0.0
    %68 = vmatpush1.msra.mxu0 0.0
    %69 = vmatprep.subr.mxu0 0.0
    %70 = vmatpush1.msra.mxu0 0.0
    %71 = vmatprep.subr.mxu0 0.0
    %72 = vmatpush1.msra.mxu0 0.0
    %73 = vmatprep.subr.mxu0 0.0
    %74 = vmatpush1.msra.mxu0 0.0
    %75 = vmatprep.subr.mxu0 0.0
    %76 = vmatpush1.msra.mxu0 0.0
    %77 = vmatprep.subr.mxu0 0.0
    %78 = vmatpush1.msra.mxu0 0.0
    %79 = vmatprep.subr.mxu0 0.0
    %80 = vmatpush1.msra.mxu0 0.0
    %81 = vmatprep.subr.mxu0 0.0
    %82 = vmatpush1.msra.mxu0 0.0
    %83 = vmatprep.subr.mxu0 0.0
    %84 = vmatpush1.msra.mxu0 0.0
    %85 = vmatprep.subr.mxu0 0.0
    %86 = vmatpush1.msra.mxu0 0.0
    %87 = vmatprep.subr.mxu0 0.0
    %88 = vmatpush1.msra.mxu0 0.0
    %89 = vmatprep.subr.mxu0 0.0
    %90 = vmatpush1.msra.mxu0 0.0
    %91 = vmatprep.subr.mxu0 0.0
    %92 = vmatpush1.msra.mxu0 0.0
    %93 = vmatprep.subr.mxu0 0.0
    %94 = vmatpush1.msra.mxu0 0.0
    %95 = vmatprep.mubr.f32.mxu0 0.0
    %96 = vmatmul.mubr.f32.gmra.mrb[0].mxu0 %v29
    %v97 = vpop.f32.mrb[0].mxu0
    %v98 = vadd.f32 %v25, %v97
    %v99 = vpop.f32.mrb[0].mxu0
    %100 = vdwg.mxu0
    %vm101 = vcmask 41984
    %102 = vst.msk [vmem:[#allocation2] sm:$0x3] %vm101, %v98
    // Predicated region
    $region14: #{convnet_forward.11} parent=1 // pred_check
      _
    $region15: #{convnet_forward.11} parent=1 // pred_check_branch
      %104 = sbr.rel (0) target = $region17
    $region16: #{convnet_forward.11} parent=1 // pred_region
      %s106 = ssub.s32 32, 32
      %107 = vsyncadd [#allocation3], %s106
      %s109 = sshll.u32 [#allocation2], 4
      %s110 = int_to_ptr.vmem [resolvable:$true] %s109
      %112 = dma.vmem_to_hbm [thread:$0]  %s110, 32, %s3, [#allocation3]
    $region17: #{convnet_forward.11} parent=1 // pred_fallthru
      _
    // Predicated region
    $region18: #{convnet_forward.11} parent=1 // pred_check
      _
    $region19: #{convnet_forward.11} parent=1 // pred_check_branch
      %114 = sbr.rel (0) target = $region21
    $region20: #{convnet_forward.11} parent=1 // pred_region
      %115 = dma.done [#allocation3], 32
    $region21: #{convnet_forward.11} parent=1 // pred_fallthru
      _
    %116 = vsyncpa [#allocation3], 1

</llo_original>
